<compile_context>
chip_gen: v6e
topology: v6e:2x2x1
jax: 0.10.0
libtpu: 0.0.40
codegen_flags: <defaults>
</compile_context>

<pallas_src>
import jax
import jax.numpy as jnp
from jax.experimental import pallas as pl
from jax.experimental.pallas import tpu as pltpu

HEADS = 2
_NEG = -(2.0 ** 100)   # "minus infinity" fill that is exactly representable in bf16 and f32


def _expand_heads(a, c):
    """(X, H) -> (X, H*c): repeat each head's value across its c channels.

    Pure VPU lane-broadcast + lane-concat; replaces the former K=2 f32 `hexp` matmuls that
    used <=2 of the MXU's output lanes and serialized on the MXU result FIFO."""
    rows = a.shape[0]
    return jnp.concatenate(
        [jnp.broadcast_to(a[:, h:h + 1], (rows, c)) for h in range(HEADS)], axis=1)


def _gat_kernel(erow_ref, ecol_ref, t_ref, msg_ref, x_ref, last_ref,
                w4_ref, b4_ref, wt_ref, bt_ref, wet_ref, wem_ref,
                out_ref,
                qn_ref, src_ref, skip_ref, m_ref, l_ref, acc_ref):
    f32 = jnp.float32
    bf16 = jnp.bfloat16
    N = x_ref.shape[0]
    TE = msg_ref.shape[0]
    HC = out_ref.shape[1]
    H = HEADS
    C = HC // H

    j = pl.program_id(0)

    # -------- one-time node-level work (kept resident in VMEM scratch) --------
    @pl.when(j == 0)
    def _init():
        # fused projection: [q | skip | k | v]  (N, 4*HC), lane-dense, bf16 MXU / f32 accum
        p = jnp.dot(x_ref[...].astype(bf16), w4_ref[...],
                    preferred_element_type=f32) + b4_ref[...]
        qn_ref[...] = p[:, 0:HC].astype(bf16)
        skip_ref[...] = p[:, HC:2 * HC]
        # source table gathered per edge: [k | v | last_update * W_t]
        src_ref[...] = jnp.concatenate(
            [p[:, 2 * HC:4 * HC], last_ref[...] * wt_ref[...]], axis=1).astype(bf16)
        m_ref[...] = jnp.full((N, H), _NEG, f32)
        l_ref[...] = jnp.zeros((N, H), f32)
        acc_ref[...] = jnp.zeros((N, HC), f32)

    # -------- per-edge-tile work --------
    # Masks built in-place from iota in BOTH orientations (no XLU transposes):
    #   (TE, N) for the gathers, (N, TE) only for the scatter.
    src_col = ecol_ref[:, 0:1]                               # (TE, 1) int32
    dst_col = ecol_ref[:, 1:2]                               # (TE, 1) int32
    dst_row = erow_ref[1:2, :]                               # (1, TE) int32
    node_en = jax.lax.broadcasted_iota(jnp.int32, (TE, N), 1)
    g_src_en = (node_en == src_col).astype(bf16)             # (TE, N) one-hot rows
    g_dst_en = (node_en == dst_col).astype(bf16)             # (TE, N)
    mask_ne = jax.lax.broadcasted_iota(jnp.int32, (N, TE), 0) == dst_row   # (N, TE) bool

    # gathers via one-hot matmul (bf16 selectors exact, f32 accumulation -> exact selection)
    q_dst = jnp.dot(g_dst_en, qn_ref[...], preferred_element_type=f32)     # (TE, HC)
    srcg = jnp.dot(g_src_en, src_ref[...], preferred_element_type=f32)     # (TE, 2HC+Td)
    k_src = srcg[:, 0:HC]
    v_src = srcg[:, HC:2 * HC]
    phase_src = srcg[:, 2 * HC:]                                           # last_update*W_t

    # TimeEncoder + lin_edge (weight pre-split: no [rel_t_enc, msg] lane concat)
    rel_enc = jnp.cos(phase_src - t_ref[...] * wt_ref[...] + bt_ref[...])  # (TE, Td)
    edge_enc = (jnp.dot(rel_enc.astype(bf16), wet_ref[...], preferred_element_type=f32)
                + jnp.dot(msg_ref[...], wem_ref[...], preferred_element_type=f32))

    k = k_src + edge_enc
    v = v_src + edge_enc

    # per-head scores, computed as lane-sums (no MXU): s[:, h] = <q_h, k_h>/sqrt(C)
    qk = q_dst * k
    s = jnp.concatenate(
        [jnp.sum(qk[:, h * C:(h + 1) * C], axis=1, keepdims=True) for h in range(H)],
        axis=1) * (1.0 / (C ** 0.5))                                       # (TE, H)
    s_rows = s.T                                                           # (H, TE) tiny relayout

    # online segment-softmax over destination nodes (flash-style running m / l / acc)
    # TODO(synk): at N >~ 256 tile this mask/max/scatter section over node sub-tiles to
    #             bound the (N, TE) vreg working set (perf feedback #7).
    m_tile = jnp.concatenate(
        [jnp.max(jnp.where(mask_ne, s_rows[h:h + 1, :], _NEG), axis=1, keepdims=True)
         for h in range(H)], axis=1)                                       # (N, H)
    m_prev = m_ref[...]
    m_new = jnp.maximum(m_prev, m_tile)
    # Keep the running max bf16-valued so its per-edge one-hot gather (below) is exact;
    # monotone-safe: corr <= 1 and exp(s - m_edge) may exceed 1 only by a bf16 ulp factor.
    m_new = m_new.astype(bf16).astype(f32)
    corr = jnp.exp(m_prev - m_new)                                         # (N, H)
    m_ref[...] = m_new

    m_edge = jnp.dot(g_dst_en, m_new.astype(bf16), preferred_element_type=f32)  # (TE, H)
    ex = jnp.exp(s - m_edge)                                               # (TE, H)
    av = _expand_heads(ex, C) * v                                          # (TE, HC), VPU

    # ONE scatter of [weighted values | ex] back to destination nodes
    scat = jnp.dot(mask_ne.astype(bf16),
                   jnp.concatenate([av, ex], axis=1).astype(bf16),
                   preferred_element_type=f32)                             # (N, HC+H)
    acc_ref[...] = _expand_heads(corr, C) * acc_ref[...] + scat[:, 0:HC]
    l_ref[...] = corr * l_ref[...] + scat[:, HC:]

    # -------- finalize: normalize and add the skip (root) projection --------
    @pl.when(j == pl.num_programs(0) - 1)
    def _finalize():
        inv_l = pl.reciprocal(l_ref[...] + 1e-16, approx=True)             # EUP slot
        out_ref[...] = (acc_ref[...] * _expand_heads(inv_l, C)
                        + skip_ref[...]).astype(out_ref.dtype)


def _padded_bytes(rows, cols, itemsize):
    """Rough VMEM footprint of a 2-D tile after (8, 128) layout padding."""
    return (-(-rows // 8) * 8) * (-(-cols // 128) * 128) * itemsize


def graph_attention_embedding(params, x, last_update, edge_index, t, msg, *, edge_tile=256):
    """Wrapper: fuses/splits weights, pads the edge list to the tile size, builds the grid."""
    f32 = jnp.float32
    bf16 = jnp.bfloat16
    N, in_ch = x.shape
    E = edge_index.shape[1]
    HC = params["wq"].shape[1]
    Td = params["wt"].shape[1]
    msg_dim = msg.shape[1]
    assert edge_tile % 128 == 0, "edge_tile must be a multiple of 128"

    x = x.astype(f32)
    # time path stays f32; rebase timestamps to a small range (exact for rel_t, keeps the
    # bf16-stored phase last_update*W_t accurate)
    t = t.astype(f32)
    last_update = last_update.astype(f32)
    t0 = jnp.minimum(jnp.min(t), jnp.min(last_update))
    t_col = (t - t0).reshape(E, 1)
    last_col = (last_update - t0).reshape(N, 1)

    # fused node projection [q | skip | k | v] and split lin_edge weight
    w4 = jnp.concatenate([params["wq"], params["wskip"], params["wk"], params["wv"]],
                         axis=1).astype(bf16)                                # (in, 4*HC)
    b4 = jnp.concatenate([params["bq"], params["bskip"], params["bk"], params["bv"]],
                         axis=1).astype(f32)                                 # (1, 4*HC)
    we_t = params["we"][:Td].astype(bf16)                                    # (Td, HC)
    we_m = params["we"][Td:].astype(bf16)                                    # (msg_dim, HC)

    # pad edges to a multiple of the edge tile; padded edges use dst = -1 (match no node)
    TE = edge_tile
    pad = (-E) % TE
    edge_idx = edge_index.astype(jnp.int32)
    msg_p = msg.astype(bf16)
    if pad:
        pad_edges = jnp.concatenate([jnp.zeros((1, pad), jnp.int32),
                                     jnp.full((1, pad), -1, jnp.int32)], axis=0)
        edge_idx = jnp.concatenate([edge_idx, pad_edges], axis=1)
        t_col = jnp.concatenate([t_col, jnp.zeros((pad, 1), f32)], axis=0)
        msg_p = jnp.concatenate([msg_p, jnp.zeros((pad, msg_dim), bf16)], axis=0)
    E_pad = E + pad
    edge_rows = edge_idx                    # (2, E_pad): dst row -> (N, TE) scatter mask
    edge_cols = edge_idx.T                  # (E_pad, 2): src/dst columns -> (TE, N) gather masks

    # explicit VMEM budget (perf feedback): residents (x2 pipeline buffers) + 2x edge-tile
    # inputs + scratch + (N, TE) mask working set; clamped to stay within v7x's 64 MiB.
    resident = (_padded_bytes(N, in_ch, 4) + _padded_bytes(N, 1, 4)
                + _padded_bytes(in_ch, 4 * HC, 2) + _padded_bytes(1, 4 * HC, 4)
                + 2 * _padded_bytes(1, Td, 4) + _padded_bytes(Td, HC, 2)
                + _padded_bytes(msg_dim, HC, 2) + _padded_bytes(N, HC, 4))
    tile_in = (_padded_bytes(2, TE, 4) + _padded_bytes(TE, 2, 4)
               + _padded_bytes(TE, 1, 4) + _padded_bytes(TE, msg_dim, 2))
    scratch = (_padded_bytes(N, HC, 2) + _padded_bytes(N, 2 * HC + Td, 2)
               + 2 * _padded_bytes(N, HC, 4) + 2 * _padded_bytes(N, HEADS, 4))
    working = 6 * _padded_bytes(N, TE, 4) + 6 * _padded_bytes(TE, max(2 * HC + Td, 128), 4)
    est = 2 * (resident + 2 * tile_in + scratch + working)
    vmem_limit = int(min(max(est, 32 * 1024 * 1024), 64 * 1024 * 1024))

    const = lambda j: (0, 0)   # resident (un-tiled) operands
    grid_spec = pltpu.PrefetchScalarGridSpec(
        num_scalar_prefetch=0,
        grid=(E_pad // TE,),
        in_specs=[
            pl.BlockSpec((2, TE), lambda j: (0, j)),          # edge_index tile (row layout)
            pl.BlockSpec((TE, 2), lambda j: (j, 0)),          # edge_index tile (column layout)
            pl.BlockSpec((TE, 1), lambda j: (j, 0)),          # t tile
            pl.BlockSpec((TE, msg_dim), lambda j: (j, 0)),    # msg tile
            pl.BlockSpec((N, in_ch), const),                  # x (resident)
            pl.BlockSpec((N, 1), const),                      # last_update (resident)
            pl.BlockSpec((in_ch, 4 * HC), const),             # fused projection weight
            pl.BlockSpec((1, 4 * HC), const),                 # fused bias
            pl.BlockSpec((1, Td), const),                     # time weight
            pl.BlockSpec((1, Td), const),                     # time bias
            pl.BlockSpec((Td, HC), const),                    # lin_edge (time half)
            pl.BlockSpec((msg_dim, HC), const),               # lin_edge (msg half)
        ],
        out_specs=pl.BlockSpec((N, HC), const),
        scratch_shapes=[
            pltpu.VMEM((N, HC), jnp.bfloat16),                # q per node
            pltpu.VMEM((N, 2 * HC + Td), jnp.bfloat16),       # [k | v | last*wt] per node
            pltpu.VMEM((N, HC), jnp.float32),                 # skip projection
            pltpu.VMEM((N, HEADS), jnp.float32),              # running max m
            pltpu.VMEM((N, HEADS), jnp.float32),              # running sum l
            pltpu.VMEM((N, HC), jnp.float32),                 # running weighted values
        ],
    )
    return pl.pallas_call(
        _gat_kernel,
        out_shape=jax.ShapeDtypeStruct((N, HC), x.dtype),
        grid_spec=grid_spec,
        compiler_params=pltpu.CompilerParams(
            dimension_semantics=("arbitrary",),
            vmem_limit_bytes=vmem_limit),
    )(edge_rows, edge_cols, t_col, msg_p, x, last_col, w4, b4,
      params["wt"].astype(f32), params["bt"].astype(f32), we_t, we_m)


def reference(params, x, last_update, edge_index, t, msg):
    """Plain-JAX f32 reference of the same forward pass."""
    src, dst = edge_index[0], edge_index[1]
    E, N = src.shape[0], x.shape[0]
    H = HEADS
    HC = params["wq"].shape[1]
    C = HC // H
    rel_t = last_update[src] - t
    rel_t_enc = jnp.cos(rel_t[:, None] * params["wt"] + params["bt"])
    edge_attr = jnp.concatenate([rel_t_enc, msg], axis=-1)
    edge_enc = edge_attr @ params["we"]
    q = (x @ params["wq"] + params["bq"])[dst]
    k = (x[src] @ params["wk"] + params["bk"]) + edge_enc
    v = (x[src] @ params["wv"] + params["bv"]) + edge_enc
    q = q.reshape(E, H, C); k = k.reshape(E, H, C); v = v.reshape(E, H, C)
    s = (q * k).sum(-1) / jnp.sqrt(jnp.float32(C))
    seg_max = jnp.full((N, H), -jnp.inf, jnp.float32).at[dst].max(s)
    ex = jnp.exp(s - seg_max[dst])
    seg_sum = jnp.zeros((N, H), jnp.float32).at[dst].add(ex)
    alpha = ex / (seg_sum[dst] + 1e-16)
    out = jnp.zeros((N, H, C), jnp.float32).at[dst].add(alpha[..., None] * v)
    return out.reshape(N, HC) + x @ params["wskip"] + params["bskip"]


if __name__ == "__main__":
    key = jax.random.PRNGKey(0)
    N, E = 64, 384                              # pads to 512 edges -> two 256-edge grid steps
    in_channels, out_channels = 32, 32          # out_channels = heads * (out_channels // 2)
    msg_dim, time_dim = 16, 16
    HC = out_channels
    edge_dim = msg_dim + time_dim

    ks = jax.random.split(key, 16)

    def init(k, shape, scale=0.1):
        return (scale * jax.random.normal(k, shape)).astype(jnp.float32)

    params = {
        "wt":    init(ks[0], (1, time_dim)),          # TimeEncoder Linear(1, time_dim)
        "bt":    init(ks[1], (1, time_dim)),
        "wq":    init(ks[2], (in_channels, HC)),      # lin_query
        "bq":    init(ks[3], (1, HC)),
        "wk":    init(ks[4], (in_channels, HC)),      # lin_key
        "bk":    init(ks[5], (1, HC)),
        "wv":    init(ks[6], (in_channels, HC)),      # lin_value
        "bv":    init(ks[7], (1, HC)),
        "we":    init(ks[8], (edge_dim, HC)),         # lin_edge (no bias in PyG)
        "wskip": init(ks[9], (in_channels, HC)),      # lin_skip (root weight)
        "bskip": init(ks[10], (1, HC)),
    }

    x = init(ks[11], (N, in_channels), 1.0)
    last_update = (10.0 * jax.random.uniform(ks[12], (N,))).astype(jnp.float32)
    t = (10.0 * jax.random.uniform(ks[13], (E,))).astype(jnp.float32)
    msg = init(ks[14], (E, msg_dim), 1.0)
    edge_index = jax.random.randint(ks[15], (2, E), 0, N, dtype=jnp.int32)

    out = graph_attention_embedding(params, x, last_update, edge_index, t, msg)
    out = jax.block_until_ready(out)

    ref = reference(params, x, last_update, edge_index, t, msg)
    max_err = float(jnp.max(jnp.abs(out - ref)))
    # bf16 MXU operands / bf16 scatter payload with f32 accumulation vs. an all-f32 reference
    # at O(1) magnitudes (plus an approx-EUP reciprocal in the finalize step).
    assert max_err < 4e-2, f"mismatch vs reference: {max_err}"
    print("KERNEL_OK")
</pallas_src>

<mosaic_0001>
module attributes {stable_mosaic.version = 11 : i64} {
  func.func @_gat_kernel(%arg0: i32, %arg1: memref<2x256xi32, #tpu.memory_space<vmem>>, %arg2: memref<256x2xi32, #tpu.memory_space<vmem>>, %arg3: memref<256x1xf32, #tpu.memory_space<vmem>>, %arg4: memref<256x16xbf16, #tpu.memory_space<vmem>>, %arg5: memref<64x32xf32, #tpu.memory_space<vmem>>, %arg6: memref<64x1xf32, #tpu.memory_space<vmem>>, %arg7: memref<32x128xbf16, #tpu.memory_space<vmem>>, %arg8: memref<1x128xf32, #tpu.memory_space<vmem>>, %arg9: memref<1x16xf32, #tpu.memory_space<vmem>>, %arg10: memref<1x16xf32, #tpu.memory_space<vmem>>, %arg11: memref<16x32xbf16, #tpu.memory_space<vmem>>, %arg12: memref<16x32xbf16, #tpu.memory_space<vmem>>, %arg13: memref<64x32xf32, #tpu.memory_space<vmem>>, %arg14: memref<64x32xbf16, #tpu.memory_space<vmem>>, %arg15: memref<64x80xbf16, #tpu.memory_space<vmem>>, %arg16: memref<64x32xf32, #tpu.memory_space<vmem>>, %arg17: memref<64x2xf32, #tpu.memory_space<vmem>>, %arg18: memref<64x2xf32, #tpu.memory_space<vmem>>, %arg19: memref<64x32xf32, #tpu.memory_space<vmem>>) attributes {dimension_semantics = [#tpu.dimension_semantics<arbitrary>], iteration_bounds = array<i64: 2>, scalar_prefetch = 0 : i64, scratch_operands = 6 : i64, tpu.core_type = #tpu.core_type<tc>, window_params = [{transform_indices = @transform_0, window_bounds = array<i64: 2, 256>}, {transform_indices = @transform_1, window_bounds = array<i64: 256, 2>}, {transform_indices = @transform_2, window_bounds = array<i64: 256, 1>}, {transform_indices = @transform_3, window_bounds = array<i64: 256, 16>}, {pipeline_mode = #tpu.pipeline_mode<synchronous>, transform_indices = @transform_4, window_bounds = array<i64: 64, 32>}, {pipeline_mode = #tpu.pipeline_mode<synchronous>, transform_indices = @transform_5, window_bounds = array<i64: 64, 1>}, {pipeline_mode = #tpu.pipeline_mode<synchronous>, transform_indices = @transform_6, window_bounds = array<i64: 32, 128>}, {pipeline_mode = #tpu.pipeline_mode<synchronous>, transform_indices = @transform_7, window_bounds = array<i64: 1, 128>}, {pipeline_mode = #tpu.pipeline_mode<synchronous>, transform_indices = @transform_8, window_bounds = array<i64: 1, 16>}, {pipeline_mode = #tpu.pipeline_mode<synchronous>, transform_indices = @transform_9, window_bounds = array<i64: 1, 16>}, {pipeline_mode = #tpu.pipeline_mode<synchronous>, transform_indices = @transform_10, window_bounds = array<i64: 16, 32>}, {pipeline_mode = #tpu.pipeline_mode<synchronous>, transform_indices = @transform_11, window_bounds = array<i64: 16, 32>}, {pipeline_mode = #tpu.pipeline_mode<synchronous>, transform_indices = @transform_12, window_bounds = array<i64: 64, 32>}]} {
    %c0_i32 = arith.constant 0 : i32
    %0 = arith.cmpi eq, %arg0, %c0_i32 : i32
    %1 = arith.extui %0 : i1 to i32
    %c0_i32_0 = arith.constant 0 : i32
    %2 = arith.cmpi ne, %1, %c0_i32_0 : i32
    scf.if %2 {
      %c0_46 = arith.constant 0 : index
      %c0_47 = arith.constant 0 : index
      %117 = vector.load %arg5[%c0_46, %c0_47] : memref<64x32xf32, #tpu.memory_space<vmem>>, vector<64x32xf32>
      %118 = arith.truncf %117 : vector<64x32xf32> to vector<64x32xbf16>
      %c0_48 = arith.constant 0 : index
      %c0_49 = arith.constant 0 : index
      %119 = vector.load %arg7[%c0_48, %c0_49] : memref<32x128xbf16, #tpu.memory_space<vmem>>, vector<32x128xbf16>
      %cst_50 = arith.constant dense<0.000000e+00> : vector<64x128xf32>
      %120 = tpu.matmul %118, %119, %cst_50 {dimension_numbers = #tpu.dot_dimension_numbers<[1], [0], [0], [1], [0, 0, 1, 1], [], []>} : vector<64x32xbf16>, vector<32x128xbf16>, vector<64x128xf32> -> vector<64x128xf32>
      %c0_51 = arith.constant 0 : index
      %c0_52 = arith.constant 0 : index
      %121 = vector.load %arg8[%c0_51, %c0_52] : memref<1x128xf32, #tpu.memory_space<vmem>>, vector<1x128xf32>
      %122 = vector.broadcast %121 : vector<1x128xf32> to vector<64x128xf32>
      %123 = arith.addf %120, %122 : vector<64x128xf32>
      %124 = vector.extract_strided_slice %123 {offsets = [0, 0], sizes = [64, 32], strides = [1, 1]} : vector<64x128xf32> to vector<64x32xf32>
      %125 = arith.truncf %124 : vector<64x32xf32> to vector<64x32xbf16>
      %c0_53 = arith.constant 0 : index
      %c0_54 = arith.constant 0 : index
      %126 = vector.load %arg14[%c0_53, %c0_54] : memref<64x32xbf16, #tpu.memory_space<vmem>>, vector<64x32xbf16>
      tpu.vector_store %arg14[%c0_53, %c0_54], %125 {strides = array<i32>} : memref<64x32xbf16, #tpu.memory_space<vmem>>, vector<64x32xbf16>,
      %127 = vector.extract_strided_slice %123 {offsets = [0, 32], sizes = [64, 32], strides = [1, 1]} : vector<64x128xf32> to vector<64x32xf32>
      %c0_55 = arith.constant 0 : index
      %c0_56 = arith.constant 0 : index
      %128 = vector.load %arg16[%c0_55, %c0_56] : memref<64x32xf32, #tpu.memory_space<vmem>>, vector<64x32xf32>
      tpu.vector_store %arg16[%c0_55, %c0_56], %127 {strides = array<i32>} : memref<64x32xf32, #tpu.memory_space<vmem>>, vector<64x32xf32>,
      %129 = vector.extract_strided_slice %123 {offsets = [0, 64], sizes = [64, 64], strides = [1, 1]} : vector<64x128xf32> to vector<64x64xf32>
      %c0_57 = arith.constant 0 : index
      %c0_58 = arith.constant 0 : index
      %130 = vector.load %arg6[%c0_57, %c0_58] : memref<64x1xf32, #tpu.memory_space<vmem>>, vector<64x1xf32>
      %c0_59 = arith.constant 0 : index
      %c0_60 = arith.constant 0 : index
      %131 = vector.load %arg9[%c0_59, %c0_60] : memref<1x16xf32, #tpu.memory_space<vmem>>, vector<1x16xf32>
      %132 = vector.broadcast %130 : vector<64x1xf32> to vector<64x16xf32>
      %133 = vector.broadcast %131 : vector<1x16xf32> to vector<64x16xf32>
      %134 = arith.mulf %132, %133 : vector<64x16xf32>
      %135 = tpu.concatenate %129, %134 in 1 : vector<64x64xf32>, vector<64x16xf32> -> vector<64x80xf32>
      %136 = arith.truncf %135 : vector<64x80xf32> to vector<64x80xbf16>
      %c0_61 = arith.constant 0 : index
      %c0_62 = arith.constant 0 : index
      %137 = vector.load %arg15[%c0_61, %c0_62] : memref<64x80xbf16, #tpu.memory_space<vmem>>, vector<64x80xbf16>
      tpu.vector_store %arg15[%c0_61, %c0_62], %136 {strides = array<i32>} : memref<64x80xbf16, #tpu.memory_space<vmem>>, vector<64x80xbf16>,
      %cst_63 = arith.constant -1.2676506E+30 : f32
      %138 = vector.broadcast %cst_63 : f32 to vector<64x2xf32>
      %c0_64 = arith.constant 0 : index
      %c0_65 = arith.constant 0 : index
      %139 = vector.load %arg17[%c0_64, %c0_65] : memref<64x2xf32, #tpu.memory_space<vmem>>, vector<64x2xf32>
      tpu.vector_store %arg17[%c0_64, %c0_65], %138 {strides = array<i32>} : memref<64x2xf32, #tpu.memory_space<vmem>>, vector<64x2xf32>,
      %cst_66 = arith.constant 0.000000e+00 : f32
      %140 = vector.broadcast %cst_66 : f32 to vector<64x2xf32>
      %c0_67 = arith.constant 0 : index
      %c0_68 = arith.constant 0 : index
      %141 = vector.load %arg18[%c0_67, %c0_68] : memref<64x2xf32, #tpu.memory_space<vmem>>, vector<64x2xf32>
      tpu.vector_store %arg18[%c0_67, %c0_68], %140 {strides = array<i32>} : memref<64x2xf32, #tpu.memory_space<vmem>>, vector<64x2xf32>,
      %cst_69 = arith.constant 0.000000e+00 : f32
      %142 = vector.broadcast %cst_69 : f32 to vector<64x32xf32>
      %c0_70 = arith.constant 0 : index
      %c0_71 = arith.constant 0 : index
      %143 = vector.load %arg19[%c0_70, %c0_71] : memref<64x32xf32, #tpu.memory_space<vmem>>, vector<64x32xf32>
      tpu.vector_store %arg19[%c0_70, %c0_71], %142 {strides = array<i32>} : memref<64x32xf32, #tpu.memory_space<vmem>>, vector<64x32xf32>,
    } else {
    }
    %c0 = arith.constant 0 : index
    %c0_1 = arith.constant 0 : index
    %3 = vector.load %arg2[%c0, %c0_1] : memref<256x2xi32, #tpu.memory_space<vmem>>, vector<256x1xi32>
    %c0_2 = arith.constant 0 : index
    %c1 = arith.constant 1 : index
    %4 = vector.load %arg2[%c0_2, %c1] : memref<256x2xi32, #tpu.memory_space<vmem>>, vector<256x1xi32>
    %c1_3 = arith.constant 1 : index
    %c0_4 = arith.constant 0 : index
    %5 = vector.load %arg1[%c1_3, %c0_4] : memref<2x256xi32, #tpu.memory_space<vmem>>, vector<1x256xi32>
    %6 = tpu.iota {dimensions = array<i32: 1>} : vector<256x64xi32>
    %7 = vector.broadcast %3 : vector<256x1xi32> to vector<256x64xi32>
    %8 = arith.cmpi eq, %6, %7 : vector<256x64xi32>
    %9 = arith.extui %8 : vector<256x64xi1> to vector<256x64xi32>
    %10 = arith.sitofp %9 : vector<256x64xi32> to vector<256x64xf32>
    %11 = arith.truncf %10 : vector<256x64xf32> to vector<256x64xbf16>
    %12 = vector.broadcast %4 : vector<256x1xi32> to vector<256x64xi32>
    %13 = arith.cmpi eq, %6, %12 : vector<256x64xi32>
    %14 = arith.extui %13 : vector<256x64xi1> to vector<256x64xi32>
    %15 = arith.sitofp %14 : vector<256x64xi32> to vector<256x64xf32>
    %16 = arith.truncf %15 : vector<256x64xf32> to vector<256x64xbf16>
    %17 = tpu.iota {dimensions = array<i32: 0>} : vector<64x256xi32>
    %18 = vector.broadcast %5 : vector<1x256xi32> to vector<64x256xi32>
    %19 = arith.cmpi eq, %17, %18 : vector<64x256xi32>
    %c0_5 = arith.constant 0 : index
    %c0_6 = arith.constant 0 : index
    %20 = vector.load %arg14[%c0_5, %c0_6] : memref<64x32xbf16, #tpu.memory_space<vmem>>, vector<64x32xbf16>
    %cst = arith.constant dense<0.000000e+00> : vector<256x32xf32>
    %21 = tpu.matmul %16, %20, %cst {dimension_numbers = #tpu.dot_dimension_numbers<[1], [0], [0], [1], [0, 0, 1, 1], [], []>} : vector<256x64xbf16>, vector<64x32xbf16>, vector<256x32xf32> -> vector<256x32xf32>
    %c0_7 = arith.constant 0 : index
    %c0_8 = arith.constant 0 : index
    %22 = vector.load %arg15[%c0_7, %c0_8] : memref<64x80xbf16, #tpu.memory_space<vmem>>, vector<64x80xbf16>
    %cst_9 = arith.constant dense<0.000000e+00> : vector<256x80xf32>
    %23 = tpu.matmul %11, %22, %cst_9 {dimension_numbers = #tpu.dot_dimension_numbers<[1], [0], [0], [1], [0, 0, 1, 1], [], []>} : vector<256x64xbf16>, vector<64x80xbf16>, vector<256x80xf32> -> vector<256x80xf32>
    %24 = vector.extract_strided_slice %23 {offsets = [0, 0], sizes = [256, 32], strides = [1, 1]} : vector<256x80xf32> to vector<256x32xf32>
    %25 = vector.extract_strided_slice %23 {offsets = [0, 32], sizes = [256, 32], strides = [1, 1]} : vector<256x80xf32> to vector<256x32xf32>
    %26 = vector.extract_strided_slice %23 {offsets = [0, 64], sizes = [256, 16], strides = [1, 1]} : vector<256x80xf32> to vector<256x16xf32>
    %c0_10 = arith.constant 0 : index
    %c0_11 = arith.constant 0 : index
    %27 = vector.load %arg3[%c0_10, %c0_11] : memref<256x1xf32, #tpu.memory_space<vmem>>, vector<256x1xf32>
    %c0_12 = arith.constant 0 : index
    %c0_13 = arith.constant 0 : index
    %28 = vector.load %arg9[%c0_12, %c0_13] : memref<1x16xf32, #tpu.memory_space<vmem>>, vector<1x16xf32>
    %29 = vector.broadcast %27 : vector<256x1xf32> to vector<256x16xf32>
    %30 = vector.broadcast %28 : vector<1x16xf32> to vector<256x16xf32>
    %31 = arith.mulf %29, %30 : vector<256x16xf32>
    %32 = arith.subf %26, %31 : vector<256x16xf32>
    %c0_14 = arith.constant 0 : index
    %c0_15 = arith.constant 0 : index
    %33 = vector.load %arg10[%c0_14, %c0_15] : memref<1x16xf32, #tpu.memory_space<vmem>>, vector<1x16xf32>
    %34 = vector.broadcast %33 : vector<1x16xf32> to vector<256x16xf32>
    %35 = arith.addf %32, %34 : vector<256x16xf32>
    %36 = math.cos %35 : vector<256x16xf32>
    %37 = arith.truncf %36 : vector<256x16xf32> to vector<256x16xbf16>
    %c0_16 = arith.constant 0 : index
    %c0_17 = arith.constant 0 : index
    %38 = vector.load %arg11[%c0_16, %c0_17] : memref<16x32xbf16, #tpu.memory_space<vmem>>, vector<16x32xbf16>
    %cst_18 = arith.constant dense<0.000000e+00> : vector<256x32xf32>
    %39 = tpu.matmul %37, %38, %cst_18 {dimension_numbers = #tpu.dot_dimension_numbers<[1], [0], [0], [1], [0, 0, 1, 1], [], []>} : vector<256x16xbf16>, vector<16x32xbf16>, vector<256x32xf32> -> vector<256x32xf32>
    %c0_19 = arith.constant 0 : index
    %c0_20 = arith.constant 0 : index
    %40 = vector.load %arg4[%c0_19, %c0_20] : memref<256x16xbf16, #tpu.memory_space<vmem>>, vector<256x16xbf16>
    %c0_21 = arith.constant 0 : index
    %c0_22 = arith.constant 0 : index
    %41 = vector.load %arg12[%c0_21, %c0_22] : memref<16x32xbf16, #tpu.memory_space<vmem>>, vector<16x32xbf16>
    %cst_23 = arith.constant dense<0.000000e+00> : vector<256x32xf32>
    %42 = tpu.matmul %40, %41, %cst_23 {dimension_numbers = #tpu.dot_dimension_numbers<[1], [0], [0], [1], [0, 0, 1, 1], [], []>} : vector<256x16xbf16>, vector<16x32xbf16>, vector<256x32xf32> -> vector<256x32xf32>
    %43 = arith.addf %39, %42 : vector<256x32xf32>
    %44 = arith.addf %24, %43 : vector<256x32xf32>
    %45 = arith.addf %25, %43 : vector<256x32xf32>
    %46 = arith.mulf %21, %44 : vector<256x32xf32>
    %47 = vector.extract_strided_slice %46 {offsets = [0, 0], sizes = [256, 16], strides = [1, 1]} : vector<256x32xf32> to vector<256x16xf32>
    %cst_24 = arith.constant dense<0.000000e+00> : vector<256xf32>
    %48 = vector.multi_reduction <add>, %47, %cst_24 [1] : vector<256x16xf32> to vector<256xf32>
    %49 = vector.shape_cast %48 : vector<256xf32> to vector<256x1xf32>
    %50 = vector.extract_strided_slice %46 {offsets = [0, 16], sizes = [256, 16], strides = [1, 1]} : vector<256x32xf32> to vector<256x16xf32>
    %cst_25 = arith.constant dense<0.000000e+00> : vector<256xf32>
    %51 = vector.multi_reduction <add>, %50, %cst_25 [1] : vector<256x16xf32> to vector<256xf32>
    %52 = vector.shape_cast %51 : vector<256xf32> to vector<256x1xf32>
    %53 = tpu.concatenate %49, %52 in 1 : vector<256x1xf32>, vector<256x1xf32> -> vector<256x2xf32>
    %cst_26 = arith.constant 2.500000e-01 : f32
    %54 = vector.broadcast %cst_26 : f32 to vector<256x2xf32>
    %55 = arith.mulf %53, %54 : vector<256x2xf32>
    %56 = tpu.transpose %55, [1, 0] : vector<256x2xf32> -> vector<2x256xf32>
    %57 = vector.extract_strided_slice %56 {offsets = [0, 0], sizes = [1, 256], strides = [1, 1]} : vector<2x256xf32> to vector<1x256xf32>
    %cst_27 = arith.constant -1.2676506E+30 : f32
    %58 = vector.shape_cast %57 : vector<1x256xf32> to vector<1x256xf32>
    %59 = vector.broadcast %58 : vector<1x256xf32> to vector<64x256xf32>
    %60 = vector.broadcast %cst_27 : f32 to vector<64x256xf32>
    %61 = arith.select %19, %59, %60 : vector<64x256xi1>, vector<64x256xf32>
    %cst_28 = arith.constant dense<0xFF800000> : vector<64xf32>
    %62 = vector.multi_reduction <maximumf>, %61, %cst_28 [1] : vector<64x256xf32> to vector<64xf32>
    %63 = vector.shape_cast %62 : vector<64xf32> to vector<64x1xf32>
    %64 = vector.extract_strided_slice %56 {offsets = [1, 0], sizes = [1, 256], strides = [1, 1]} : vector<2x256xf32> to vector<1x256xf32>
    %cst_29 = arith.constant -1.2676506E+30 : f32
    %65 = vector.shape_cast %64 : vector<1x256xf32> to vector<1x256xf32>
    %66 = vector.broadcast %65 : vector<1x256xf32> to vector<64x256xf32>
    %67 = vector.broadcast %cst_29 : f32 to vector<64x256xf32>
    %68 = arith.select %19, %66, %67 : vector<64x256xi1>, vector<64x256xf32>
    %cst_30 = arith.constant dense<0xFF800000> : vector<64xf32>
    %69 = vector.multi_reduction <maximumf>, %68, %cst_30 [1] : vector<64x256xf32> to vector<64xf32>
    %70 = vector.shape_cast %69 : vector<64xf32> to vector<64x1xf32>
    %71 = tpu.concatenate %63, %70 in 1 : vector<64x1xf32>, vector<64x1xf32> -> vector<64x2xf32>
    %c0_31 = arith.constant 0 : index
    %c0_32 = arith.constant 0 : index
    %72 = vector.load %arg17[%c0_31, %c0_32] : memref<64x2xf32, #tpu.memory_space<vmem>>, vector<64x2xf32>
    %73 = arith.maximumf %72, %71 : vector<64x2xf32>
    %74 = arith.truncf %73 : vector<64x2xf32> to vector<64x2xbf16>
    %75 = arith.extf %74 : vector<64x2xbf16> to vector<64x2xf32>
    %76 = arith.subf %72, %75 : vector<64x2xf32>
    %77 = math.exp %76 : vector<64x2xf32>
    %c0_33 = arith.constant 0 : index
    %c0_34 = arith.constant 0 : index
    %78 = vector.load %arg17[%c0_33, %c0_34] : memref<64x2xf32, #tpu.memory_space<vmem>>, vector<64x2xf32>
    tpu.vector_store %arg17[%c0_33, %c0_34], %75 {strides = array<i32>} : memref<64x2xf32, #tpu.memory_space<vmem>>, vector<64x2xf32>,
    %79 = arith.truncf %75 : vector<64x2xf32> to vector<64x2xbf16>
    %cst_35 = arith.constant dense<0.000000e+00> : vector<256x2xf32>
    %80 = tpu.matmul %16, %79, %cst_35 {dimension_numbers = #tpu.dot_dimension_numbers<[1], [0], [0], [1], [0, 0, 1, 1], [], []>} : vector<256x64xbf16>, vector<64x2xbf16>, vector<256x2xf32> -> vector<256x2xf32>
    %81 = arith.subf %55, %80 : vector<256x2xf32>
    %82 = math.exp %81 : vector<256x2xf32>
    %83 = vector.extract_strided_slice %82 {offsets = [0, 0], sizes = [256, 1], strides = [1, 1]} : vector<256x2xf32> to vector<256x1xf32>
    %84 = vector.shape_cast %83 : vector<256x1xf32> to vector<256x1xf32>
    %85 = vector.broadcast %84 : vector<256x1xf32> to vector<256x16xf32>
    %86 = vector.extract_strided_slice %82 {offsets = [0, 1], sizes = [256, 1], strides = [1, 1]} : vector<256x2xf32> to vector<256x1xf32>
    %87 = vector.shape_cast %86 : vector<256x1xf32> to vector<256x1xf32>
    %88 = vector.broadcast %87 : vector<256x1xf32> to vector<256x16xf32>
    %89 = tpu.concatenate %85, %88 in 1 : vector<256x16xf32>, vector<256x16xf32> -> vector<256x32xf32>
    %90 = arith.mulf %89, %45 : vector<256x32xf32>
    %91 = arith.extui %19 : vector<64x256xi1> to vector<64x256xi32>
    %92 = arith.sitofp %91 : vector<64x256xi32> to vector<64x256xf32>
    %93 = arith.truncf %92 : vector<64x256xf32> to vector<64x256xbf16>
    %94 = tpu.concatenate %90, %82 in 1 : vector<256x32xf32>, vector<256x2xf32> -> vector<256x34xf32>
    %95 = arith.truncf %94 : vector<256x34xf32> to vector<256x34xbf16>
    %cst_36 = arith.constant dense<0.000000e+00> : vector<64x34xf32>
    %96 = tpu.matmul %93, %95, %cst_36 {dimension_numbers = #tpu.dot_dimension_numbers<[1], [0], [0], [1], [0, 0, 1, 1], [], []>} : vector<64x256xbf16>, vector<256x34xbf16>, vector<64x34xf32> -> vector<64x34xf32>
    %97 = vector.extract_strided_slice %77 {offsets = [0, 0], sizes = [64, 1], strides = [1, 1]} : vector<64x2xf32> to vector<64x1xf32>
    %98 = vector.shape_cast %97 : vector<64x1xf32> to vector<64x1xf32>
    %99 = vector.broadcast %98 : vector<64x1xf32> to vector<64x16xf32>
    %100 = vector.extract_strided_slice %77 {offsets = [0, 1], sizes = [64, 1], strides = [1, 1]} : vector<64x2xf32> to vector<64x1xf32>
    %101 = vector.shape_cast %100 : vector<64x1xf32> to vector<64x1xf32>
    %102 = vector.broadcast %101 : vector<64x1xf32> to vector<64x16xf32>
    %103 = tpu.concatenate %99, %102 in 1 : vector<64x16xf32>, vector<64x16xf32> -> vector<64x32xf32>
    %c0_37 = arith.constant 0 : index
    %c0_38 = arith.constant 0 : index
    %104 = vector.load %arg19[%c0_37, %c0_38] : memref<64x32xf32, #tpu.memory_space<vmem>>, vector<64x32xf32>
    %105 = arith.mulf %103, %104 : vector<64x32xf32>
    %106 = vector.extract_strided_slice %96 {offsets = [0, 0], sizes = [64, 32], strides = [1, 1]} : vector<64x34xf32> to vector<64x32xf32>
    %107 = arith.addf %105, %106 : vector<64x32xf32>
    %c0_39 = arith.constant 0 : index
    %c0_40 = arith.constant 0 : index
    %108 = vector.load %arg19[%c0_39, %c0_40] : memref<64x32xf32, #tpu.memory_space<vmem>>, vector<64x32xf32>
    tpu.vector_store %arg19[%c0_39, %c0_40], %107 {strides = array<i32>} : memref<64x32xf32, #tpu.memory_space<vmem>>, vector<64x32xf32>,
    %c0_41 = arith.constant 0 : index
    %c0_42 = arith.constant 0 : index
    %109 = vector.load %arg18[%c0_41, %c0_42] : memref<64x2xf32, #tpu.memory_space<vmem>>, vector<64x2xf32>
    %110 = arith.mulf %77, %109 : vector<64x2xf32>
    %111 = vector.extract_strided_slice %96 {offsets = [0, 32], sizes = [64, 2], strides = [1, 1]} : vector<64x34xf32> to vector<64x2xf32>
    %112 = arith.addf %110, %111 : vector<64x2xf32>
    %c0_43 = arith.constant 0 : index
    %c0_44 = arith.constant 0 : index
    %113 = vector.load %arg18[%c0_43, %c0_44] : memref<64x2xf32, #tpu.memory_space<vmem>>, vector<64x2xf32>
    tpu.vector_store %arg18[%c0_43, %c0_44], %112 {strides = array<i32>} : memref<64x2xf32, #tpu.memory_space<vmem>>, vector<64x2xf32>,
    %c1_i32 = arith.constant 1 : i32
    %114 = arith.cmpi eq, %arg0, %c1_i32 : i32
    %115 = arith.extui %114 : i1 to i32
    %c0_i32_45 = arith.constant 0 : i32
    %116 = arith.cmpi ne, %115, %c0_i32_45 : i32
    scf.if %116 {
      %c0_46 = arith.constant 0 : index
      %c0_47 = arith.constant 0 : index
      %117 = vector.load %arg18[%c0_46, %c0_47] : memref<64x2xf32, #tpu.memory_space<vmem>>, vector<64x2xf32>
      %cst_48 = arith.constant 1.000000e-16 : f32
      %118 = vector.broadcast %cst_48 : f32 to vector<64x2xf32>
      %119 = arith.addf %117, %118 : vector<64x2xf32>
      %120 = tpu.reciprocal %119 {approx = true} : vector<64x2xf32> -> vector<64x2xf32>
      %c0_49 = arith.constant 0 : index
      %c0_50 = arith.constant 0 : index
      %121 = vector.load %arg19[%c0_49, %c0_50] : memref<64x32xf32, #tpu.memory_space<vmem>>, vector<64x32xf32>
      %122 = vector.extract_strided_slice %120 {offsets = [0, 0], sizes = [64, 1], strides = [1, 1]} : vector<64x2xf32> to vector<64x1xf32>
      %123 = vector.shape_cast %122 : vector<64x1xf32> to vector<64x1xf32>
      %124 = vector.broadcast %123 : vector<64x1xf32> to vector<64x16xf32>
      %125 = vector.extract_strided_slice %120 {offsets = [0, 1], sizes = [64, 1], strides = [1, 1]} : vector<64x2xf32> to vector<64x1xf32>
      %126 = vector.shape_cast %125 : vector<64x1xf32> to vector<64x1xf32>
      %127 = vector.broadcast %126 : vector<64x1xf32> to vector<64x16xf32>
      %128 = tpu.concatenate %124, %127 in 1 : vector<64x16xf32>, vector<64x16xf32> -> vector<64x32xf32>
      %129 = arith.mulf %121, %128 : vector<64x32xf32>
      %c0_51 = arith.constant 0 : index
      %c0_52 = arith.constant 0 : index
      %130 = vector.load %arg16[%c0_51, %c0_52] : memref<64x32xf32, #tpu.memory_space<vmem>>, vector<64x32xf32>
      %131 = arith.addf %129, %130 : vector<64x32xf32>
      %c0_53 = arith.constant 0 : index
      %c0_54 = arith.constant 0 : index
      %132 = vector.load %arg13[%c0_53, %c0_54] : memref<64x32xf32, #tpu.memory_space<vmem>>, vector<64x32xf32>
      tpu.vector_store %arg13[%c0_53, %c0_54], %131 {strides = array<i32>} : memref<64x32xf32, #tpu.memory_space<vmem>>, vector<64x32xf32>,
    } else {
    }
    return
  }
  func.func @transform_0(%arg0: i32) -> (i32, i32) {
    %c0_i32 = arith.constant 0 : i32
    %c0_i32_0 = arith.constant 0 : i32
    return %c0_i32, %arg0 : i32, i32
  }
  func.func @transform_1(%arg0: i32) -> (i32, i32) {
    %c0_i32 = arith.constant 0 : i32
    %c0_i32_0 = arith.constant 0 : i32
    return %arg0, %c0_i32 : i32, i32
  }
  func.func @transform_2(%arg0: i32) -> (i32, i32) {
    %c0_i32 = arith.constant 0 : i32
    %c0_i32_0 = arith.constant 0 : i32
    return %arg0, %c0_i32 : i32, i32
  }
  func.func @transform_3(%arg0: i32) -> (i32, i32) {
    %c0_i32 = arith.constant 0 : i32
    %c0_i32_0 = arith.constant 0 : i32
    return %arg0, %c0_i32 : i32, i32
  }
  func.func @transform_4(%arg0: i32) -> (i32, i32) {
    %c0_i32 = arith.constant 0 : i32
    %c0_i32_0 = arith.constant 0 : i32
    %c0_i32_1 = arith.constant 0 : i32
    return %c0_i32, %c0_i32_0 : i32, i32
  }
  func.func @transform_5(%arg0: i32) -> (i32, i32) {
    %c0_i32 = arith.constant 0 : i32
    %c0_i32_0 = arith.constant 0 : i32
    %c0_i32_1 = arith.constant 0 : i32
    return %c0_i32, %c0_i32_0 : i32, i32
  }
  func.func @transform_6(%arg0: i32) -> (i32, i32) {
    %c0_i32 = arith.constant 0 : i32
    %c0_i32_0 = arith.constant 0 : i32
    %c0_i32_1 = arith.constant 0 : i32
    return %c0_i32, %c0_i32_0 : i32, i32
  }
  func.func @transform_7(%arg0: i32) -> (i32, i32) {
    %c0_i32 = arith.constant 0 : i32
    %c0_i32_0 = arith.constant 0 : i32
    %c0_i32_1 = arith.constant 0 : i32
    return %c0_i32, %c0_i32_0 : i32, i32
  }
  func.func @transform_8(%arg0: i32) -> (i32, i32) {
    %c0_i32 = arith.constant 0 : i32
    %c0_i32_0 = arith.constant 0 : i32
    %c0_i32_1 = arith.constant 0 : i32
    return %c0_i32, %c0_i32_0 : i32, i32
  }
  func.func @transform_9(%arg0: i32) -> (i32, i32) {
    %c0_i32 = arith.constant 0 : i32
    %c0_i32_0 = arith.constant 0 : i32
    %c0_i32_1 = arith.constant 0 : i32
    return %c0_i32, %c0_i32_0 : i32, i32
  }
  func.func @transform_10(%arg0: i32) -> (i32, i32) {
    %c0_i32 = arith.constant 0 : i32
    %c0_i32_0 = arith.constant 0 : i32
    %c0_i32_1 = arith.constant 0 : i32
    return %c0_i32, %c0_i32_0 : i32, i32
  }
  func.func @transform_11(%arg0: i32) -> (i32, i32) {
    %c0_i32 = arith.constant 0 : i32
    %c0_i32_0 = arith.constant 0 : i32
    %c0_i32_1 = arith.constant 0 : i32
    return %c0_i32, %c0_i32_0 : i32, i32
  }
  func.func @transform_12(%arg0: i32) -> (i32, i32) {
    %c0_i32 = arith.constant 0 : i32
    %c0_i32_0 = arith.constant 0 : i32
    %c0_i32_1 = arith.constant 0 : i32
    return %c0_i32, %c0_i32_0 : i32, i32
  }
}

</mosaic_0001>

<llo_original>
// kernel: tpu_custom_call.1
$region0: #{tpu_custom_call.1}
  #allocation0 [shape = 'u32[]', space=smem, size = 0x4, offset = 0x4, fixed_abs, tag = 'smem constant byte address 0x4 - core index']
  #allocation1 [shape = 'u32[144,128]{1,0:T(1,128)}', space=vmem, size = 0x12000, scoped, tag = 'internal scratch']
  #allocation2 [shape = 'bf16[64,32]{1,0:T(8,128)(2,1)}', space=vmem, size = 0x4000, scoped, tag = 'scratch operand']
  #allocation3 [shape = 'bf16[64,80]{1,0:T(8,128)(2,1)}', space=vmem, size = 0x4000, scoped, tag = 'scratch operand']
  #allocation4 [shape = 'f32[64,32]{1,0:T(8,128)}', space=vmem, size = 0x8000, scoped, tag = 'scratch operand']
  #allocation5 [shape = 'f32[64,2]{1,0:T(8,128)}', space=vmem, size = 0x8000, scoped, tag = 'scratch operand']
  #allocation6 [shape = 'f32[64,2]{1,0:T(8,128)}', space=vmem, size = 0x8000, scoped, tag = 'scratch operand']
  #allocation7 [shape = 'f32[64,32]{1,0:T(8,128)}', space=vmem, size = 0x8000, scoped, tag = 'scratch operand']
  %s0 = inlined_call_operand.vmem [shape: s32[2,512], index: 0, kind: input, shape index: {}]
  %s1 = inlined_call_operand.vmem [shape: s32[512,2], index: 1, kind: input, shape index: {}]
  %s2 = inlined_call_operand.vmem [shape: f32[512,1], index: 2, kind: input, shape index: {}]
  %s3 = inlined_call_operand.vmem [shape: bf16[512,16], index: 3, kind: input, shape index: {}]
  %s4 = inlined_call_operand.vmem [shape: f32[64,32], index: 4, kind: input, shape index: {}]
  %s5 = inlined_call_operand.vmem [shape: f32[64,1], index: 5, kind: input, shape index: {}]
  %s6 = inlined_call_operand.vmem [shape: bf16[32,128], index: 6, kind: input, shape index: {}]
  %s7 = inlined_call_operand.vmem [shape: f32[1,128], index: 7, kind: input, shape index: {}]
  %s8 = inlined_call_operand.vmem [shape: f32[1,16], index: 8, kind: input, shape index: {}]
  %s9 = inlined_call_operand.vmem [shape: f32[1,16], index: 9, kind: input, shape index: {}]
  %s10 = inlined_call_operand.vmem [shape: bf16[16,32], index: 10, kind: input, shape index: {}]
  %s11 = inlined_call_operand.vmem [shape: bf16[16,32], index: 11, kind: input, shape index: {}]
  %s12 = inlined_call_operand.vmem [shape: f32[64,32], index: 12, kind: output, shape index: {}]
  %s13 = sld [smem:[#allocation0]]
  $region89: #{tpu_custom_call.1} parent=0
    _
  %s15 = ssub.s32 1, %s13
  %s16 = scalar_select 0, %s15, %s13
  loop: start=0, step=1, limit=4
  $region2: #{tpu_custom_call.1} parent=0 // loop_pre_header
    _
  $region3: #{tpu_custom_call.1} parent=0 // loop_header
    %s18 = sphi 0, %s22
    %p19 = scmp.ge.s32.totalorder %s18, 4
    %s28 = sphi 0, %s30
    %s31 = sphi 0, %s28
    %s32 = sphi 0, %s31
    %s48 = sphi 0, %s32
    %s54 = sphi 0, %s56
    %s57 = sphi 0, %s54
    %s58 = sphi 0, %s57
    %s74 = sphi 0, %s58
    %s80 = sphi 0, %s82
    %s83 = sphi 0, %s80
    %s84 = sphi 0, %s83
    %s100 = sphi 0, %s84
    %s106 = sphi 0, %s108
    %s109 = sphi 0, %s106
    %s110 = sphi 0, %s109
    %s126 = sphi 0, %s110
    %s130 = sphi 0, %s130
    %s132 = sphi 0, %s130
    %s133 = sphi 0, %s132
    %s147 = sphi 0, %s133
    %s151 = sphi 0, %s151
    %s153 = sphi 0, %s151
    %s154 = sphi 0, %s153
    %s168 = sphi 0, %s154
    %s172 = sphi 0, %s172
    %s174 = sphi 0, %s172
    %s175 = sphi 0, %s174
    %s189 = sphi 0, %s175
    %s193 = sphi 0, %s193
    %s195 = sphi 0, %s193
    %s196 = sphi 0, %s195
    %s210 = sphi 0, %s196
    %s214 = sphi 0, %s214
    %s216 = sphi 0, %s214
    %s217 = sphi 0, %s216
    %s231 = sphi 0, %s217
    %s235 = sphi 0, %s235
    %s237 = sphi 0, %s235
    %s238 = sphi 0, %s237
    %s252 = sphi 0, %s238
    %s256 = sphi 0, %s256
    %s258 = sphi 0, %s256
    %s259 = sphi 0, %s258
    %s273 = sphi 0, %s259
    %s277 = sphi 0, %s277
    %s279 = sphi 0, %s277
    %s280 = sphi 0, %s279
    %s294 = sphi 0, %s280
    %s298 = sphi 0, %s298
    %s300 = sphi 0, %s298
    %s301 = sphi 0, %s300
    %s315 = sphi 0, %s301
  $region4: #{tpu_custom_call.1} parent=0 // loop_header_branch
    %21 = sbr.rel (%p19) target = $region8
  $region5: #{tpu_custom_call.1} parent=0 // loop_body
    %s23 = ssub.s32 %s18, 1
    %s24 = ssub.s32 %s18, 2
    %s25 = sadd.s32 %s18, 1
    %s26 = ssub.s32 %s18, %s25
    %p27 = scmp.eq.s32.totalorder %s26, 0
    %s29 = sadd.s32 %s28, 1
    %s30 = scalar_select %p27, %s28, %s29
    %p33 = pneg %p27
    %p34 = scmp.eq.s32.totalorder %s18, 1
    %p35 = por %p33, %p34
    %p36 = scmp.ne.s32.totalorder %s28, %s31
    %p37 = scmp.eq.s32.totalorder %s18, 0
    %p38 = por %p36, %p37
    %p39 = scmp.ne.s32.totalorder %s28, %s31
    %p40 = scmp.eq.s32.totalorder %s23, 1
    %p41 = por %p39, %p40
    %p42 = scmp.ne.s32.totalorder %s31, %s32
    %p43 = scmp.eq.s32.totalorder %s23, 0
    %p44 = por %p42, %p43
    %p45 = scmp.ne.s32.totalorder %s31, %s32
    %p46 = scmp.eq.s32.totalorder %s24, 1
    %p47 = por %p45, %p46
    %p49 = scmp.ne.s32.totalorder %s32, %s48
    %p50 = scmp.eq.s32.totalorder %s24, 0
    %p51 = por %p49, %p50
    %s52 = ssub.s32 %s18, %s25
    %p53 = scmp.eq.s32.totalorder %s52, 0
    %s55 = sadd.s32 %s54, 1
    %s56 = scalar_select %p53, %s54, %s55
    %p59 = pneg %p53
    %p60 = scmp.eq.s32.totalorder %s18, 1
    %p61 = por %p59, %p60
    %p62 = scmp.ne.s32.totalorder %s54, %s57
    %p63 = scmp.eq.s32.totalorder %s18, 0
    %p64 = por %p62, %p63
    %p65 = scmp.ne.s32.totalorder %s54, %s57
    %p66 = scmp.eq.s32.totalorder %s23, 1
    %p67 = por %p65, %p66
    %p68 = scmp.ne.s32.totalorder %s57, %s58
    %p69 = scmp.eq.s32.totalorder %s23, 0
    %p70 = por %p68, %p69
    %p71 = scmp.ne.s32.totalorder %s57, %s58
    %p72 = scmp.eq.s32.totalorder %s24, 1
    %p73 = por %p71, %p72
    %p75 = scmp.ne.s32.totalorder %s58, %s74
    %p76 = scmp.eq.s32.totalorder %s24, 0
    %p77 = por %p75, %p76
    %s78 = ssub.s32 %s18, %s25
    %p79 = scmp.eq.s32.totalorder %s78, 0
    %s81 = sadd.s32 %s80, 1
    %s82 = scalar_select %p79, %s80, %s81
    %p85 = pneg %p79
    %p86 = scmp.eq.s32.totalorder %s18, 1
    %p87 = por %p85, %p86
    %p88 = scmp.ne.s32.totalorder %s80, %s83
    %p89 = scmp.eq.s32.totalorder %s18, 0
    %p90 = por %p88, %p89
    %p91 = scmp.ne.s32.totalorder %s80, %s83
    %p92 = scmp.eq.s32.totalorder %s23, 1
    %p93 = por %p91, %p92
    %p94 = scmp.ne.s32.totalorder %s83, %s84
    %p95 = scmp.eq.s32.totalorder %s23, 0
    %p96 = por %p94, %p95
    %p97 = scmp.ne.s32.totalorder %s83, %s84
    %p98 = scmp.eq.s32.totalorder %s24, 1
    %p99 = por %p97, %p98
    %p101 = scmp.ne.s32.totalorder %s84, %s100
    %p102 = scmp.eq.s32.totalorder %s24, 0
    %p103 = por %p101, %p102
    %s104 = ssub.s32 %s18, %s25
    %p105 = scmp.eq.s32.totalorder %s104, 0
    %s107 = sadd.s32 %s106, 1
    %s108 = scalar_select %p105, %s106, %s107
    %p111 = pneg %p105
    %p112 = scmp.eq.s32.totalorder %s18, 1
    %p113 = por %p111, %p112
    %p114 = scmp.ne.s32.totalorder %s106, %s109
    %p115 = scmp.eq.s32.totalorder %s18, 0
    %p116 = por %p114, %p115
    %p117 = scmp.ne.s32.totalorder %s106, %s109
    %p118 = scmp.eq.s32.totalorder %s23, 1
    %p119 = por %p117, %p118
    %p120 = scmp.ne.s32.totalorder %s109, %s110
    %p121 = scmp.eq.s32.totalorder %s23, 0
    %p122 = por %p120, %p121
    %p123 = scmp.ne.s32.totalorder %s109, %s110
    %p124 = scmp.eq.s32.totalorder %s24, 1
    %p125 = por %p123, %p124
    %p127 = scmp.ne.s32.totalorder %s110, %s126
    %p128 = scmp.eq.s32.totalorder %s24, 0
    %p129 = por %p127, %p128
    %s131 = sadd.s32 %s130, 1
    %p134 = scmp.eq.s32.totalorder %s18, 1
    %p135 = scmp.ne.s32.totalorder %s130, %s132
    %p136 = scmp.eq.s32.totalorder %s18, 0
    %p137 = por %p135, %p136
    %p138 = scmp.ne.s32.totalorder %s130, %s132
    %p139 = scmp.eq.s32.totalorder %s23, 1
    %p140 = por %p138, %p139
    %p141 = scmp.ne.s32.totalorder %s132, %s133
    %p142 = scmp.eq.s32.totalorder %s23, 0
    %p143 = por %p141, %p142
    %p144 = scmp.ne.s32.totalorder %s132, %s133
    %p145 = scmp.eq.s32.totalorder %s24, 1
    %p146 = por %p144, %p145
    %p148 = scmp.ne.s32.totalorder %s133, %s147
    %p149 = scmp.eq.s32.totalorder %s24, 0
    %p150 = por %p148, %p149
    %s152 = sadd.s32 %s151, 1
    %p155 = scmp.eq.s32.totalorder %s18, 1
    %p156 = scmp.ne.s32.totalorder %s151, %s153
    %p157 = scmp.eq.s32.totalorder %s18, 0
    %p158 = por %p156, %p157
    %p159 = scmp.ne.s32.totalorder %s151, %s153
    %p160 = scmp.eq.s32.totalorder %s23, 1
    %p161 = por %p159, %p160
    %p162 = scmp.ne.s32.totalorder %s153, %s154
    %p163 = scmp.eq.s32.totalorder %s23, 0
    %p164 = por %p162, %p163
    %p165 = scmp.ne.s32.totalorder %s153, %s154
    %p166 = scmp.eq.s32.totalorder %s24, 1
    %p167 = por %p165, %p166
    %p169 = scmp.ne.s32.totalorder %s154, %s168
    %p170 = scmp.eq.s32.totalorder %s24, 0
    %p171 = por %p169, %p170
    %s173 = sadd.s32 %s172, 1
    %p176 = scmp.eq.s32.totalorder %s18, 1
    %p177 = scmp.ne.s32.totalorder %s172, %s174
    %p178 = scmp.eq.s32.totalorder %s18, 0
    %p179 = por %p177, %p178
    %p180 = scmp.ne.s32.totalorder %s172, %s174
    %p181 = scmp.eq.s32.totalorder %s23, 1
    %p182 = por %p180, %p181
    %p183 = scmp.ne.s32.totalorder %s174, %s175
    %p184 = scmp.eq.s32.totalorder %s23, 0
    %p185 = por %p183, %p184
    %p186 = scmp.ne.s32.totalorder %s174, %s175
    %p187 = scmp.eq.s32.totalorder %s24, 1
    %p188 = por %p186, %p187
    %p190 = scmp.ne.s32.totalorder %s175, %s189
    %p191 = scmp.eq.s32.totalorder %s24, 0
    %p192 = por %p190, %p191
    %s194 = sadd.s32 %s193, 1
    %p197 = scmp.eq.s32.totalorder %s18, 1
    %p198 = scmp.ne.s32.totalorder %s193, %s195
    %p199 = scmp.eq.s32.totalorder %s18, 0
    %p200 = por %p198, %p199
    %p201 = scmp.ne.s32.totalorder %s193, %s195
    %p202 = scmp.eq.s32.totalorder %s23, 1
    %p203 = por %p201, %p202
    %p204 = scmp.ne.s32.totalorder %s195, %s196
    %p205 = scmp.eq.s32.totalorder %s23, 0
    %p206 = por %p204, %p205
    %p207 = scmp.ne.s32.totalorder %s195, %s196
    %p208 = scmp.eq.s32.totalorder %s24, 1
    %p209 = por %p207, %p208
    %p211 = scmp.ne.s32.totalorder %s196, %s210
    %p212 = scmp.eq.s32.totalorder %s24, 0
    %p213 = por %p211, %p212
    %s215 = sadd.s32 %s214, 1
    %p218 = scmp.eq.s32.totalorder %s18, 1
    %p219 = scmp.ne.s32.totalorder %s214, %s216
    %p220 = scmp.eq.s32.totalorder %s18, 0
    %p221 = por %p219, %p220
    %p222 = scmp.ne.s32.totalorder %s214, %s216
    %p223 = scmp.eq.s32.totalorder %s23, 1
    %p224 = por %p222, %p223
    %p225 = scmp.ne.s32.totalorder %s216, %s217
    %p226 = scmp.eq.s32.totalorder %s23, 0
    %p227 = por %p225, %p226
    %p228 = scmp.ne.s32.totalorder %s216, %s217
    %p229 = scmp.eq.s32.totalorder %s24, 1
    %p230 = por %p228, %p229
    %p232 = scmp.ne.s32.totalorder %s217, %s231
    %p233 = scmp.eq.s32.totalorder %s24, 0
    %p234 = por %p232, %p233
    %s236 = sadd.s32 %s235, 1
    %p239 = scmp.eq.s32.totalorder %s18, 1
    %p240 = scmp.ne.s32.totalorder %s235, %s237
    %p241 = scmp.eq.s32.totalorder %s18, 0
    %p242 = por %p240, %p241
    %p243 = scmp.ne.s32.totalorder %s235, %s237
    %p244 = scmp.eq.s32.totalorder %s23, 1
    %p245 = por %p243, %p244
    %p246 = scmp.ne.s32.totalorder %s237, %s238
    %p247 = scmp.eq.s32.totalorder %s23, 0
    %p248 = por %p246, %p247
    %p249 = scmp.ne.s32.totalorder %s237, %s238
    %p250 = scmp.eq.s32.totalorder %s24, 1
    %p251 = por %p249, %p250
    %p253 = scmp.ne.s32.totalorder %s238, %s252
    %p254 = scmp.eq.s32.totalorder %s24, 0
    %p255 = por %p253, %p254
    %s257 = sadd.s32 %s256, 1
    %p260 = scmp.eq.s32.totalorder %s18, 1
    %p261 = scmp.ne.s32.totalorder %s256, %s258
    %p262 = scmp.eq.s32.totalorder %s18, 0
    %p263 = por %p261, %p262
    %p264 = scmp.ne.s32.totalorder %s256, %s258
    %p265 = scmp.eq.s32.totalorder %s23, 1
    %p266 = por %p264, %p265
    %p267 = scmp.ne.s32.totalorder %s258, %s259
    %p268 = scmp.eq.s32.totalorder %s23, 0
    %p269 = por %p267, %p268
    %p270 = scmp.ne.s32.totalorder %s258, %s259
    %p271 = scmp.eq.s32.totalorder %s24, 1
    %p272 = por %p270, %p271
    %p274 = scmp.ne.s32.totalorder %s259, %s273
    %p275 = scmp.eq.s32.totalorder %s24, 0
    %p276 = por %p274, %p275
    %s278 = sadd.s32 %s277, 1
    %p281 = scmp.eq.s32.totalorder %s18, 1
    %p282 = scmp.ne.s32.totalorder %s277, %s279
    %p283 = scmp.eq.s32.totalorder %s18, 0
    %p284 = por %p282, %p283
    %p285 = scmp.ne.s32.totalorder %s277, %s279
    %p286 = scmp.eq.s32.totalorder %s23, 1
    %p287 = por %p285, %p286
    %p288 = scmp.ne.s32.totalorder %s279, %s280
    %p289 = scmp.eq.s32.totalorder %s23, 0
    %p290 = por %p288, %p289
    %p291 = scmp.ne.s32.totalorder %s279, %s280
    %p292 = scmp.eq.s32.totalorder %s24, 1
    %p293 = por %p291, %p292
    %p295 = scmp.ne.s32.totalorder %s280, %s294
    %p296 = scmp.eq.s32.totalorder %s24, 0
    %p297 = por %p295, %p296
    %s299 = sadd.s32 %s298, 1
    %p302 = scmp.eq.s32.totalorder %s18, 1
    %p303 = scmp.ne.s32.totalorder %s298, %s300
    %p304 = scmp.eq.s32.totalorder %s18, 0
    %p305 = por %p303, %p304
    %p306 = scmp.ne.s32.totalorder %s298, %s300
    %p307 = scmp.eq.s32.totalorder %s23, 1
    %p308 = por %p306, %p307
    %p309 = scmp.ne.s32.totalorder %s300, %s301
    %p310 = scmp.eq.s32.totalorder %s23, 0
    %p311 = por %p309, %p310
    %p312 = scmp.ne.s32.totalorder %s300, %s301
    %p313 = scmp.eq.s32.totalorder %s24, 1
    %p314 = por %p312, %p313
    %p316 = scmp.ne.s32.totalorder %s301, %s315
    %p317 = scmp.eq.s32.totalorder %s24, 0
    %p318 = por %p316, %p317
    %p319 = scmp.le.s32.totalorder 1, %s18
    %p320 = scmp.lt.s32.totalorder %s18, 3
    %p321 = pnand %p319, %p320
    %p322 = pneg %p321
    // Predicated region
    $region9: #{tpu_custom_call.1} parent=5 // pred_check
      _
    $region10: #{tpu_custom_call.1} parent=5 // pred_check_branch
      %324 = sbr.rel (%p321) target = $region12
    $region11: #{tpu_custom_call.1} parent=5 // pred_region
      %s325 = ssub.s32 %s18, 1
      // Predicated region
      $region13: #{tpu_custom_call.1} parent=11 // pred_check
        %p326 = pneg %p143
      $region14: #{tpu_custom_call.1} parent=11 // pred_check_branch
        %328 = sbr.rel (%p326) target = $region16
      $region15: #{tpu_custom_call.1} parent=11 // pred_region
        _
      $region16: #{tpu_custom_call.1} parent=11 // pred_fallthru
        _
      // Predicated region
      $region17: #{tpu_custom_call.1} parent=11 // pred_check
        %p329 = pneg %p164
      $region18: #{tpu_custom_call.1} parent=11 // pred_check_branch
        %331 = sbr.rel (%p329) target = $region20
      $region19: #{tpu_custom_call.1} parent=11 // pred_region
        _
      $region20: #{tpu_custom_call.1} parent=11 // pred_fallthru
        _
      // Predicated region
      $region21: #{tpu_custom_call.1} parent=11 // pred_check
        %p332 = pneg %p185
      $region22: #{tpu_custom_call.1} parent=11 // pred_check_branch
        %334 = sbr.rel (%p332) target = $region24
      $region23: #{tpu_custom_call.1} parent=11 // pred_region
        _
      $region24: #{tpu_custom_call.1} parent=11 // pred_fallthru
        _
      // Predicated region
      $region25: #{tpu_custom_call.1} parent=11 // pred_check
        %p335 = pneg %p206
      $region26: #{tpu_custom_call.1} parent=11 // pred_check_branch
        %337 = sbr.rel (%p335) target = $region28
      $region27: #{tpu_custom_call.1} parent=11 // pred_region
        _
      $region28: #{tpu_custom_call.1} parent=11 // pred_fallthru
        _
      // Predicated region
      $region29: #{tpu_custom_call.1} parent=11 // pred_check
        %p338 = pneg %p227
      $region30: #{tpu_custom_call.1} parent=11 // pred_check_branch
        %340 = sbr.rel (%p338) target = $region32
      $region31: #{tpu_custom_call.1} parent=11 // pred_region
        _
      $region32: #{tpu_custom_call.1} parent=11 // pred_fallthru
        _
      // Predicated region
      $region33: #{tpu_custom_call.1} parent=11 // pred_check
        %p341 = pneg %p248
      $region34: #{tpu_custom_call.1} parent=11 // pred_check_branch
        %343 = sbr.rel (%p341) target = $region36
      $region35: #{tpu_custom_call.1} parent=11 // pred_region
        _
      $region36: #{tpu_custom_call.1} parent=11 // pred_fallthru
        _
      // Predicated region
      $region37: #{tpu_custom_call.1} parent=11 // pred_check
        %p344 = pneg %p269
      $region38: #{tpu_custom_call.1} parent=11 // pred_check_branch
        %346 = sbr.rel (%p344) target = $region40
      $region39: #{tpu_custom_call.1} parent=11 // pred_region
        _
      $region40: #{tpu_custom_call.1} parent=11 // pred_fallthru
        _
      // Predicated region
      $region41: #{tpu_custom_call.1} parent=11 // pred_check
        %p347 = pneg %p290
      $region42: #{tpu_custom_call.1} parent=11 // pred_check_branch
        %349 = sbr.rel (%p347) target = $region44
      $region43: #{tpu_custom_call.1} parent=11 // pred_region
        _
      $region44: #{tpu_custom_call.1} parent=11 // pred_fallthru
        _
    $region12: #{tpu_custom_call.1} parent=5 // pred_fallthru
      _
    %p350 = scmp.lt.s32.totalorder %s18, 2
    // Predicated region
    $region45: #{tpu_custom_call.1} parent=5 // pred_check
      %p351 = pneg %p350
    $region46: #{tpu_custom_call.1} parent=5 // pred_check_branch
      %353 = sbr.rel (%p351) target = $region48
    $region47: #{tpu_custom_call.1} parent=5 // pred_region
      // Predicated region
      $region49: #{tpu_custom_call.1} parent=47 // pred_check
        %p354 = pneg %p38
      $region50: #{tpu_custom_call.1} parent=47 // pred_check_branch
        %356 = sbr.rel (%p354) target = $region52
      $region51: #{tpu_custom_call.1} parent=47 // pred_region
        %s357 = smul.u32 2, %s18
        %p358 = scmp.lt.s32.totalorder %s357, 3
        %s359 = scalar_select %p358, %s357, 3
        %s360 = smul.addr %s359, 2
        %s361 = scalar_lea.vmem %s0, %s360
        %s362 = smul.u32 2, %s18
      $region52: #{tpu_custom_call.1} parent=47 // pred_fallthru
        _
      // Predicated region
      $region53: #{tpu_custom_call.1} parent=47 // pred_check
        %p363 = pneg %p64
      $region54: #{tpu_custom_call.1} parent=47 // pred_check_branch
        %365 = sbr.rel (%p363) target = $region56
      $region55: #{tpu_custom_call.1} parent=47 // pred_region
        %s366 = smul.u32 32, %s18
        %p367 = scmp.lt.s32.totalorder %s366, 63
        %s368 = scalar_select %p367, %s366, 63
        %s369 = smul.addr %s368, 8
        %s370 = scalar_lea.vmem %s1, %s369
        %s371 = smul.u32 32, %s18
      $region56: #{tpu_custom_call.1} parent=47 // pred_fallthru
        _
      // Predicated region
      $region57: #{tpu_custom_call.1} parent=47 // pred_check
        %p372 = pneg %p90
      $region58: #{tpu_custom_call.1} parent=47 // pred_check_branch
        %374 = sbr.rel (%p372) target = $region60
      $region59: #{tpu_custom_call.1} parent=47 // pred_region
        %s375 = smul.u32 32, %s18
        %p376 = scmp.lt.s32.totalorder %s375, 63
        %s377 = scalar_select %p376, %s375, 63
        %s378 = smul.addr %s377, 8
        %s379 = scalar_lea.vmem %s2, %s378
        %s380 = smul.u32 32, %s18
      $region60: #{tpu_custom_call.1} parent=47 // pred_fallthru
        _
      // Predicated region
      $region61: #{tpu_custom_call.1} parent=47 // pred_check
        %p381 = pneg %p116
      $region62: #{tpu_custom_call.1} parent=47 // pred_check_branch
        %383 = sbr.rel (%p381) target = $region64
      $region63: #{tpu_custom_call.1} parent=47 // pred_region
        %s384 = smul.u32 32, %s18
        %p385 = scmp.lt.s32.totalorder %s384, 63
        %s386 = scalar_select %p385, %s384, 63
        %s387 = smul.addr %s386, 4
        %s388 = scalar_lea.vmem %s3, %s387
        %s389 = smul.u32 32, %s18
      $region64: #{tpu_custom_call.1} parent=47 // pred_fallthru
        _
    $region48: #{tpu_custom_call.1} parent=5 // pred_fallthru
      _
    %p390 = scmp.le.s32.totalorder 1, %s18
    %p391 = scmp.lt.s32.totalorder %s18, 3
    %p392 = pnand %p390, %p391
    %p393 = pneg %p392
    // Predicated region
    $region65: #{tpu_custom_call.1} parent=5 // pred_check
      _
    $region66: #{tpu_custom_call.1} parent=5 // pred_check_branch
      %395 = sbr.rel (%p392) target = $region68
    $region67: #{tpu_custom_call.1} parent=5 // pred_region
      %s396 = ssub.s32 %s18, 1
      %s397 = smul.u32 2, %s23
      %p398 = scmp.lt.s32.totalorder %s397, 3
      %s399 = scalar_select %p398, %s397, 3
      %s400 = smul.addr %s399, 2
      %s401 = scalar_lea.vmem %s0, %s400
      %p402 = pneg %p44
      %p403 = pneg %p41
      %s404 = smul.u32 32, %s23
      %p405 = scmp.lt.s32.totalorder %s404, 63
      %s406 = scalar_select %p405, %s404, 63
      %s407 = smul.addr %s406, 8
      %s408 = scalar_lea.vmem %s1, %s407
      %p409 = pneg %p70
      %p410 = pneg %p67
      %s411 = smul.u32 32, %s23
      %p412 = scmp.lt.s32.totalorder %s411, 63
      %s413 = scalar_select %p412, %s411, 63
      %s414 = smul.addr %s413, 8
      %s415 = scalar_lea.vmem %s2, %s414
      %p416 = pneg %p96
      %p417 = pneg %p93
      %s418 = smul.u32 32, %s23
      %p419 = scmp.lt.s32.totalorder %s418, 63
      %s420 = scalar_select %p419, %s418, 63
      %s421 = smul.addr %s420, 4
      %s422 = scalar_lea.vmem %s3, %s421
      %p423 = pneg %p122
      %p424 = pneg %p119
      %p425 = pneg %p143
      %p426 = pneg %p140
      %p427 = pneg %p164
      %p428 = pneg %p161
      %p429 = pneg %p185
      %p430 = pneg %p182
      %p431 = pneg %p206
      %p432 = pneg %p203
      %p433 = pneg %p227
      %p434 = pneg %p224
      %p435 = pneg %p248
      %p436 = pneg %p245
      %p437 = pneg %p269
      %p438 = pneg %p266
      %p439 = pneg %p290
      %p440 = pneg %p287
      %p441 = pneg %p311
      %p442 = pneg %p308
      %s443 = smul.u32 2, %s23
      %p444 = scmp.lt.s32.totalorder %s443, 3
      %s445 = scalar_select %p444, %s443, 3
      %s446 = smul.addr %s445, 2
      %s447 = scalar_lea.vmem %s0, %s446
      %s448 = smul.u32 2, %s23
      %s449 = smul.u32 32, %s23
      %p450 = scmp.lt.s32.totalorder %s449, 63
      %s451 = scalar_select %p450, %s449, 63
      %s452 = smul.addr %s451, 8
      %s453 = scalar_lea.vmem %s1, %s452
      %s454 = smul.u32 32, %s23
      %s455 = smul.u32 32, %s23
      %p456 = scmp.lt.s32.totalorder %s455, 63
      %s457 = scalar_select %p456, %s455, 63
      %s458 = smul.addr %s457, 8
      %s459 = scalar_lea.vmem %s2, %s458
      %s460 = smul.u32 32, %s23
      %s461 = smul.u32 32, %s23
      %p462 = scmp.lt.s32.totalorder %s461, 63
      %s463 = scalar_select %p462, %s461, 63
      %s464 = smul.addr %s463, 4
      %s465 = scalar_lea.vmem %s3, %s464
      %s466 = smul.u32 32, %s23
      %p468 = scmp.eq.s32.totalorder %s23, 0
      // Predicated region
      $region69: #{tpu_custom_call.1} parent=67 // pred_check
        %p469 = pneg %p468
      $region70: #{tpu_custom_call.1} parent=67 // pred_check_branch
        %471 = sbr.rel (%p469) target = $region72
      $region71: #{tpu_custom_call.1} parent=67 // pred_region
        %v472 = vld [vmem:[%s4] sm:$0xff]
        %v473 = vld [vmem:[%s4 + $0x8] sm:$0xff]
        %v474 = vld [vmem:[%s4 + $0x10] sm:$0xff]
        %v475 = vld [vmem:[%s4 + $0x18] sm:$0xff]
        %v476 = vld [vmem:[%s4 + $0x20] sm:$0xff]
        %v477 = vld [vmem:[%s4 + $0x28] sm:$0xff]
        %v478 = vld [vmem:[%s4 + $0x30] sm:$0xff]
        %v479 = vld [vmem:[%s4 + $0x38] sm:$0xff]
        %v480 = vpack.c.bf16 %v473, %v472
        %v481 = vpack.c.bf16 %v475, %v474
        %v482 = vpack.c.bf16 %v477, %v476
        %v483 = vpack.c.bf16 %v479, %v478
        %v484 = vld [vmem:[%s6] sm:$0xf]
        %v485 = vld [vmem:[%s6 + $0x4] sm:$0xf]
        %v486 = vld [vmem:[%s6 + $0x8] sm:$0xf]
        %v487 = vld [vmem:[%s6 + $0xc] sm:$0xf]
        %v488 = vld [vmem:[%s7] sm:$0x1]
        %v490 = vlaneseq
        %v491 = vshrl.u32 %v490, 7
        %v492 = vsub.s32 0, %v491
        %v493 = vrot.slane %v488, %v492
        %v499 = vunpack.c.l.b16 %v484
        %v500 = vunpack.c.l.b16 %v485
        %v501 = vunpack.c.l.b16 %v486
        %v502 = vunpack.c.l.b16 %v487
        %v503 = vpack.c.b16 %v500, %v499
        %v504 = vpack.c.b16 %v502, %v501
        %vm507 = vcmask 261120
        %v509 = vsel %vm507, %v480, 0
        %v512 = vsel %vm507, %v481, 0
        %v515 = vsel %vm507, %v482, 0
        %v518 = vsel %vm507, %v483, 0
        %520 = vmatprep.subr.bf16.mxu0 0
        %521 = vmatpush1.bf16.msra.mxu0 0
        %522 = vmatprep.subr.bf16.mxu0 0
        %523 = vmatpush1.bf16.msra.mxu0 0
        %524 = vmatprep.subr.bf16.mxu0 0
        %525 = vmatpush1.bf16.msra.mxu0 0
        %526 = vmatprep.subr.bf16.mxu0 0
        %527 = vmatpush1.bf16.msra.mxu0 0
        %528 = vmatprep.subr.bf16.mxu0 0
        %529 = vmatpush1.bf16.msra.mxu0 0
        %530 = vmatprep.subr.bf16.mxu0 0
        %531 = vmatpush1.bf16.msra.mxu0 0
        %532 = vmatprep.subr.bf16.mxu0 0
        %533 = vmatpush1.bf16.msra.mxu0 %v504
        %534 = vmatprep.subr.bf16.mxu0 0
        %535 = vmatpush1.bf16.msra.mxu0 %v503
        %536 = vmatprep.subr.bf16.mxu0 0
        %537 = vmatpush2.bf16.msra.mxu0 0
        %538 = vmatprep.subr.bf16.mxu0 0
        %539 = vmatpush2.bf16.msra.mxu0 0
        %540 = vmatprep.subr.bf16.mxu0 0
        %541 = vmatpush2.bf16.msra.mxu0 0
        %542 = vmatprep.subr.bf16.mxu0 0
        %543 = vmatpush2.bf16.msra.mxu0 0
        %544 = vmatprep.subr.bf16.mxu0 0
        %545 = vmatpush2.bf16.msra.mxu0 0
        %546 = vmatprep.subr.bf16.mxu0 0
        %547 = vmatpush2.bf16.msra.mxu0 0
        %548 = vmatprep.subr.bf16.mxu0 0
        %549 = vmatpush2.bf16.msra.mxu0 0
        %550 = vmatprep.subr.bf16.mxu0 0
        %551 = vmatpush2.bf16.msra.mxu0 0
        %552 = vmatprep.mubr.bf16.mxu0 0
        %553 = vmatmul.mubr.bf16.gmra.mxu0 %v509
        %v554 = vpop.f32.mrf.mxu0
        %v555 = vadd.f32 %v493, %v554
        %v556 = vpop.f32.mrf.mxu0
        %v557 = vpop.f32.mrf.mxu0
        %v558 = vadd.f32 %v493, %v557
        %v559 = vpop.f32.mrf.mxu0
        %560 = vmatprep.mubr.bf16.mxu0 0
        %561 = vmatmul.mubr.bf16.gmra.mxu0 %v512
        %v562 = vpop.f32.mrf.mxu0
        %v563 = vadd.f32 %v493, %v562
        %v564 = vpop.f32.mrf.mxu0
        %v565 = vpop.f32.mrf.mxu0
        %v566 = vadd.f32 %v493, %v565
        %v567 = vpop.f32.mrf.mxu0
        %568 = vmatprep.mubr.bf16.mxu0 0
        %569 = vmatmul.mubr.bf16.gmra.mxu0 %v515
        %v570 = vpop.f32.mrf.mxu0
        %v571 = vadd.f32 %v493, %v570
        %v572 = vpop.f32.mrf.mxu0
        %v573 = vpop.f32.mrf.mxu0
        %v574 = vadd.f32 %v493, %v573
        %v575 = vpop.f32.mrf.mxu0
        %576 = vmatprep.mubr.bf16.mxu0 0
        %577 = vmatmul.mubr.bf16.gmra.mxu0 %v518
        %v578 = vpop.f32.mrf.mxu0
        %v579 = vadd.f32 %v493, %v578
        %v580 = vpop.f32.mrf.mxu0
        %v581 = vpop.f32.mrf.mxu0
        %v582 = vadd.f32 %v493, %v581
        %v583 = vpop.f32.mrf.mxu0
        %584 = vdwg.mxu0
        %v585 = vpack.c.bf16 %v558, %v555
        %v586 = vpack.c.bf16 %v566, %v563
        %v587 = vpack.c.bf16 %v574, %v571
        %v588 = vpack.c.bf16 %v582, %v579
        %v593 = vunpack.c.l.b16 %v585
        %v594 = vunpack.c.h.b16 %v585
        %v595 = vunpack.c.l.b16 %v586
        %v596 = vunpack.c.h.b16 %v586
        %v597 = vunpack.c.l.b16 %v587
        %v598 = vunpack.c.h.b16 %v587
        %v599 = vunpack.c.l.b16 %v588
        %v600 = vunpack.c.h.b16 %v588
        %v601 = vpack.c.b16 %v593, %v593
        %v602 = vpack.c.b16 %v594, %v594
        %v603 = vpack.c.b16 %v595, %v595
        %v604 = vpack.c.b16 %v596, %v596
        %v605 = vpack.c.b16 %v597, %v597
        %v606 = vpack.c.b16 %v598, %v598
        %v607 = vpack.c.b16 %v599, %v599
        %v608 = vpack.c.b16 %v600, %v600
        %vm617 = vcmask 257024
        %618 = vst.msk [vmem:[#allocation2] sm:$0xf] %vm617, %v601
        %619 = vst.msk [vmem:[#allocation2 + $0x4] sm:$0xf] %vm617, %v602
        %620 = vst.msk [vmem:[#allocation2 + $0x8] sm:$0xf] %vm617, %v603
        %621 = vst.msk [vmem:[#allocation2 + $0xc] sm:$0xf] %vm617, %v604
        %622 = vst.msk [vmem:[#allocation2 + $0x10] sm:$0xf] %vm617, %v605
        %623 = vst.msk [vmem:[#allocation2 + $0x14] sm:$0xf] %vm617, %v606
        %624 = vst.msk [vmem:[#allocation2 + $0x18] sm:$0xf] %vm617, %v607
        %625 = vst.msk [vmem:[#allocation2 + $0x1c] sm:$0xf] %vm617, %v608
        %634 = vrot.lane.b32.xlu0 %v555, 96
        %v635 = vpop.permute.xlu0 %634
        %636 = vrot.lane.b32.xlu0 %v558, 96
        %v637 = vpop.permute.xlu0 %636
        %638 = vrot.lane.b32.xlu0 %v563, 96
        %v639 = vpop.permute.xlu0 %638
        %640 = vrot.lane.b32.xlu0 %v566, 96
        %v641 = vpop.permute.xlu0 %640
        %642 = vrot.lane.b32.xlu0 %v571, 96
        %v643 = vpop.permute.xlu0 %642
        %644 = vrot.lane.b32.xlu0 %v574, 96
        %v645 = vpop.permute.xlu0 %644
        %646 = vrot.lane.b32.xlu0 %v579, 96
        %v647 = vpop.permute.xlu0 %646
        %648 = vrot.lane.b32.xlu0 %v582, 96
        %v649 = vpop.permute.xlu0 %648
        %658 = vst.msk [vmem:[#allocation4] sm:$0xff] %vm507, %v635
        %659 = vst.msk [vmem:[#allocation4 + $0x8] sm:$0xff] %vm507, %v637
        %660 = vst.msk [vmem:[#allocation4 + $0x10] sm:$0xff] %vm507, %v639
        %661 = vst.msk [vmem:[#allocation4 + $0x18] sm:$0xff] %vm507, %v641
        %662 = vst.msk [vmem:[#allocation4 + $0x20] sm:$0xff] %vm507, %v643
        %663 = vst.msk [vmem:[#allocation4 + $0x28] sm:$0xff] %vm507, %v645
        %664 = vst.msk [vmem:[#allocation4 + $0x30] sm:$0xff] %vm507, %v647
        %665 = vst.msk [vmem:[#allocation4 + $0x38] sm:$0xff] %vm507, %v649
        %v666 = vld [vmem:[%s5] sm:$0xff]
        %v667 = vld [vmem:[%s5 + $0x8] sm:$0xff]
        %v668 = vld [vmem:[%s5 + $0x10] sm:$0xff]
        %v669 = vld [vmem:[%s5 + $0x18] sm:$0xff]
        %v670 = vld [vmem:[%s5 + $0x20] sm:$0xff]
        %v671 = vld [vmem:[%s5 + $0x28] sm:$0xff]
        %v672 = vld [vmem:[%s5 + $0x30] sm:$0xff]
        %v673 = vld [vmem:[%s5 + $0x38] sm:$0xff]
        %v674 = vld [vmem:[%s8] sm:$0x1]
        %676 = vset.pattern.permute.xlu0 0
        %677 = vperm.xlu0 %676, %v666
        %v678 = vpop.permute.xlu0 %677
        %681 = vset.pattern.permute.xlu0 0
        %682 = vperm.xlu0 %681, %v667
        %v683 = vpop.permute.xlu0 %682
        %686 = vset.pattern.permute.xlu0 0
        %687 = vperm.xlu0 %686, %v668
        %v688 = vpop.permute.xlu0 %687
        %691 = vset.pattern.permute.xlu0 0
        %692 = vperm.xlu0 %691, %v669
        %v693 = vpop.permute.xlu0 %692
        %696 = vset.pattern.permute.xlu0 0
        %697 = vperm.xlu0 %696, %v670
        %v698 = vpop.permute.xlu0 %697
        %701 = vset.pattern.permute.xlu0 0
        %702 = vperm.xlu0 %701, %v671
        %v703 = vpop.permute.xlu0 %702
        %706 = vset.pattern.permute.xlu0 0
        %707 = vperm.xlu0 %706, %v672
        %v708 = vpop.permute.xlu0 %707
        %711 = vset.pattern.permute.xlu0 0
        %712 = vperm.xlu0 %711, %v673
        %v713 = vpop.permute.xlu0 %712
        %v716 = vlaneseq
        %v717 = vshrl.u32 %v716, 7
        %v718 = vsub.s32 0, %v717
        %v719 = vrot.slane %v674, %v718
        %v721 = vmul.f32 %v678, %v719
        %v722 = vmul.f32 %v683, %v719
        %v723 = vmul.f32 %v688, %v719
        %v724 = vmul.f32 %v693, %v719
        %v725 = vmul.f32 %v698, %v719
        %v726 = vmul.f32 %v703, %v719
        %v727 = vmul.f32 %v708, %v719
        %v728 = vmul.f32 %v713, %v719
        %729 = vrot.lane.b32.xlu0 %v555, 64
        %v730 = vpop.permute.xlu0 %729
        %731 = vrot.lane.b32.xlu0 %v558, 64
        %v732 = vpop.permute.xlu0 %731
        %733 = vrot.lane.b32.xlu0 %v563, 64
        %v734 = vpop.permute.xlu0 %733
        %735 = vrot.lane.b32.xlu0 %v566, 64
        %v736 = vpop.permute.xlu0 %735
        %737 = vrot.lane.b32.xlu0 %v571, 64
        %v738 = vpop.permute.xlu0 %737
        %739 = vrot.lane.b32.xlu0 %v574, 64
        %v740 = vpop.permute.xlu0 %739
        %741 = vrot.lane.b32.xlu0 %v579, 64
        %v742 = vpop.permute.xlu0 %741
        %743 = vrot.lane.b32.xlu0 %v582, 64
        %v744 = vpop.permute.xlu0 %743
        %761 = vrot.lane.b32.xlu0 %v721, 64
        %v762 = vpop.permute.xlu0 %761
        %763 = vrot.lane.b32.xlu0 %v722, 64
        %v764 = vpop.permute.xlu0 %763
        %765 = vrot.lane.b32.xlu0 %v723, 64
        %v766 = vpop.permute.xlu0 %765
        %767 = vrot.lane.b32.xlu0 %v724, 64
        %v768 = vpop.permute.xlu0 %767
        %769 = vrot.lane.b32.xlu0 %v725, 64
        %v770 = vpop.permute.xlu0 %769
        %771 = vrot.lane.b32.xlu0 %v726, 64
        %v772 = vpop.permute.xlu0 %771
        %773 = vrot.lane.b32.xlu0 %v727, 64
        %v774 = vpop.permute.xlu0 %773
        %775 = vrot.lane.b32.xlu0 %v728, 64
        %v776 = vpop.permute.xlu0 %775
        %vm785 = vcmask 523264
        %v786 = vsel %vm785, %v730, %v762
        %v787 = vsel %vm785, %v732, %v764
        %v788 = vsel %vm785, %v734, %v766
        %v789 = vsel %vm785, %v736, %v768
        %v790 = vsel %vm785, %v738, %v770
        %v791 = vsel %vm785, %v740, %v772
        %v792 = vsel %vm785, %v742, %v774
        %v793 = vsel %vm785, %v744, %v776
        %v794 = vpack.c.bf16 %v787, %v786
        %v795 = vpack.c.bf16 %v789, %v788
        %v796 = vpack.c.bf16 %v791, %v790
        %v797 = vpack.c.bf16 %v793, %v792
        %v802 = vunpack.c.l.b16 %v794
        %v803 = vunpack.c.h.b16 %v794
        %v804 = vunpack.c.l.b16 %v795
        %v805 = vunpack.c.h.b16 %v795
        %v806 = vunpack.c.l.b16 %v796
        %v807 = vunpack.c.h.b16 %v796
        %v808 = vunpack.c.l.b16 %v797
        %v809 = vunpack.c.h.b16 %v797
        %v810 = vpack.c.b16 %v802, %v802
        %v811 = vpack.c.b16 %v803, %v803
        %v812 = vpack.c.b16 %v804, %v804
        %v813 = vpack.c.b16 %v805, %v805
        %v814 = vpack.c.b16 %v806, %v806
        %v815 = vpack.c.b16 %v807, %v807
        %v816 = vpack.c.b16 %v808, %v808
        %v817 = vpack.c.b16 %v809, %v809
        %vm826 = vcmask 650240
        %827 = vst.msk [vmem:[#allocation3] sm:$0xf] %vm826, %v810
        %828 = vst.msk [vmem:[#allocation3 + $0x4] sm:$0xf] %vm826, %v811
        %829 = vst.msk [vmem:[#allocation3 + $0x8] sm:$0xf] %vm826, %v812
        %830 = vst.msk [vmem:[#allocation3 + $0xc] sm:$0xf] %vm826, %v813
        %831 = vst.msk [vmem:[#allocation3 + $0x10] sm:$0xf] %vm826, %v814
        %832 = vst.msk [vmem:[#allocation3 + $0x14] sm:$0xf] %vm826, %v815
        %833 = vst.msk [vmem:[#allocation3 + $0x18] sm:$0xf] %vm826, %v816
        %834 = vst.msk [vmem:[#allocation3 + $0x1c] sm:$0xf] %vm826, %v817
        %vm835 = vcmask 15360
        %836 = vst.msk [vmem:[#allocation5] sm:$0xff] %vm835, -1.2676506e+30
        %837 = vst.msk [vmem:[#allocation5 + $0x8] sm:$0xff] %vm835, -1.2676506e+30
        %838 = vst.msk [vmem:[#allocation5 + $0x10] sm:$0xff] %vm835, -1.2676506e+30
        %839 = vst.msk [vmem:[#allocation5 + $0x18] sm:$0xff] %vm835, -1.2676506e+30
        %840 = vst.msk [vmem:[#allocation5 + $0x20] sm:$0xff] %vm835, -1.2676506e+30
        %841 = vst.msk [vmem:[#allocation5 + $0x28] sm:$0xff] %vm835, -1.2676506e+30
        %842 = vst.msk [vmem:[#allocation5 + $0x30] sm:$0xff] %vm835, -1.2676506e+30
        %843 = vst.msk [vmem:[#allocation5 + $0x38] sm:$0xff] %vm835, -1.2676506e+30
        %844 = vst.msk [vmem:[#allocation6] sm:$0xff] %vm835, 0.0
        %845 = vst.msk [vmem:[#allocation6 + $0x8] sm:$0xff] %vm835, 0.0
        %846 = vst.msk [vmem:[#allocation6 + $0x10] sm:$0xff] %vm835, 0.0
        %847 = vst.msk [vmem:[#allocation6 + $0x18] sm:$0xff] %vm835, 0.0
        %848 = vst.msk [vmem:[#allocation6 + $0x20] sm:$0xff] %vm835, 0.0
        %849 = vst.msk [vmem:[#allocation6 + $0x28] sm:$0xff] %vm835, 0.0
        %850 = vst.msk [vmem:[#allocation6 + $0x30] sm:$0xff] %vm835, 0.0
        %851 = vst.msk [vmem:[#allocation6 + $0x38] sm:$0xff] %vm835, 0.0
        %852 = vst.msk [vmem:[#allocation7] sm:$0xff] %vm507, 0.0
        %853 = vst.msk [vmem:[#allocation7 + $0x8] sm:$0xff] %vm507, 0.0
        %854 = vst.msk [vmem:[#allocation7 + $0x10] sm:$0xff] %vm507, 0.0
        %855 = vst.msk [vmem:[#allocation7 + $0x18] sm:$0xff] %vm507, 0.0
        %856 = vst.msk [vmem:[#allocation7 + $0x20] sm:$0xff] %vm507, 0.0
        %857 = vst.msk [vmem:[#allocation7 + $0x28] sm:$0xff] %vm507, 0.0
        %858 = vst.msk [vmem:[#allocation7 + $0x30] sm:$0xff] %vm507, 0.0
        %859 = vst.msk [vmem:[#allocation7 + $0x38] sm:$0xff] %vm507, 0.0
      $region72: #{tpu_custom_call.1} parent=67 // pred_fallthru
        _
      %v860 = vld [vmem:[%s453] sm:$0xff]
      %v861 = vld [vmem:[%s453 + $0x8] sm:$0xff]
      %v862 = vld [vmem:[%s453 + $0x10] sm:$0xff]
      %v863 = vld [vmem:[%s453 + $0x18] sm:$0xff]
      %v864 = vld [vmem:[%s453 + $0x20] sm:$0xff]
      %v865 = vld [vmem:[%s453 + $0x28] sm:$0xff]
      %v866 = vld [vmem:[%s453 + $0x30] sm:$0xff]
      %v867 = vld [vmem:[%s453 + $0x38] sm:$0xff]
      %v868 = vld [vmem:[%s453 + $0x40] sm:$0xff]
      %v869 = vld [vmem:[%s453 + $0x48] sm:$0xff]
      %v870 = vld [vmem:[%s453 + $0x50] sm:$0xff]
      %v871 = vld [vmem:[%s453 + $0x58] sm:$0xff]
      %v872 = vld [vmem:[%s453 + $0x60] sm:$0xff]
      %v873 = vld [vmem:[%s453 + $0x68] sm:$0xff]
      %v874 = vld [vmem:[%s453 + $0x70] sm:$0xff]
      %v875 = vld [vmem:[%s453 + $0x78] sm:$0xff]
      %v876 = vld [vmem:[%s453 + $0x80] sm:$0xff]
      %v877 = vld [vmem:[%s453 + $0x88] sm:$0xff]
      %v878 = vld [vmem:[%s453 + $0x90] sm:$0xff]
      %v879 = vld [vmem:[%s453 + $0x98] sm:$0xff]
      %v880 = vld [vmem:[%s453 + $0xa0] sm:$0xff]
      %v881 = vld [vmem:[%s453 + $0xa8] sm:$0xff]
      %v882 = vld [vmem:[%s453 + $0xb0] sm:$0xff]
      %v883 = vld [vmem:[%s453 + $0xb8] sm:$0xff]
      %v884 = vld [vmem:[%s453 + $0xc0] sm:$0xff]
      %v885 = vld [vmem:[%s453 + $0xc8] sm:$0xff]
      %v886 = vld [vmem:[%s453 + $0xd0] sm:$0xff]
      %v887 = vld [vmem:[%s453 + $0xd8] sm:$0xff]
      %v888 = vld [vmem:[%s453 + $0xe0] sm:$0xff]
      %v889 = vld [vmem:[%s453 + $0xe8] sm:$0xff]
      %v890 = vld [vmem:[%s453 + $0xf0] sm:$0xff]
      %v891 = vld [vmem:[%s453 + $0xf8] sm:$0xff]
      %s892 = scalar_lea.vmem %s447, 1
      %v893 = vld [vmem:[%s892] ss:$2 sm:$0x3]
      %v894 = vlaneseq
      %v895 = vand.u32 %v894, 127
      %896 = vset.pattern.permute.xlu0 0
      %897 = vperm.xlu0 %896, %v860
      %v898 = vpop.permute.xlu0 %897
      %899 = vset.pattern.permute.xlu0 0
      %900 = vperm.xlu0 %899, %v861
      %v901 = vpop.permute.xlu0 %900
      %902 = vset.pattern.permute.xlu0 0
      %903 = vperm.xlu0 %902, %v862
      %v904 = vpop.permute.xlu0 %903
      %905 = vset.pattern.permute.xlu0 0
      %906 = vperm.xlu0 %905, %v863
      %v907 = vpop.permute.xlu0 %906
      %908 = vset.pattern.permute.xlu0 0
      %909 = vperm.xlu0 %908, %v864
      %v910 = vpop.permute.xlu0 %909
      %911 = vset.pattern.permute.xlu0 0
      %912 = vperm.xlu0 %911, %v865
      %v913 = vpop.permute.xlu0 %912
      %914 = vset.pattern.permute.xlu0 0
      %915 = vperm.xlu0 %914, %v866
      %v916 = vpop.permute.xlu0 %915
      %917 = vset.pattern.permute.xlu0 0
      %918 = vperm.xlu0 %917, %v867
      %v919 = vpop.permute.xlu0 %918
      %920 = vset.pattern.permute.xlu0 0
      %921 = vperm.xlu0 %920, %v868
      %v922 = vpop.permute.xlu0 %921
      %923 = vset.pattern.permute.xlu0 0
      %924 = vperm.xlu0 %923, %v869
      %v925 = vpop.permute.xlu0 %924
      %926 = vset.pattern.permute.xlu0 0
      %927 = vperm.xlu0 %926, %v870
      %v928 = vpop.permute.xlu0 %927
      %929 = vset.pattern.permute.xlu0 0
      %930 = vperm.xlu0 %929, %v871
      %v931 = vpop.permute.xlu0 %930
      %932 = vset.pattern.permute.xlu0 0
      %933 = vperm.xlu0 %932, %v872
      %v934 = vpop.permute.xlu0 %933
      %935 = vset.pattern.permute.xlu0 0
      %936 = vperm.xlu0 %935, %v873
      %v937 = vpop.permute.xlu0 %936
      %938 = vset.pattern.permute.xlu0 0
      %939 = vperm.xlu0 %938, %v874
      %v940 = vpop.permute.xlu0 %939
      %941 = vset.pattern.permute.xlu0 0
      %942 = vperm.xlu0 %941, %v875
      %v943 = vpop.permute.xlu0 %942
      %944 = vset.pattern.permute.xlu0 0
      %945 = vperm.xlu0 %944, %v876
      %v946 = vpop.permute.xlu0 %945
      %947 = vset.pattern.permute.xlu0 0
      %948 = vperm.xlu0 %947, %v877
      %v949 = vpop.permute.xlu0 %948
      %950 = vset.pattern.permute.xlu0 0
      %951 = vperm.xlu0 %950, %v878
      %v952 = vpop.permute.xlu0 %951
      %953 = vset.pattern.permute.xlu0 0
      %954 = vperm.xlu0 %953, %v879
      %v955 = vpop.permute.xlu0 %954
      %956 = vset.pattern.permute.xlu0 0
      %957 = vperm.xlu0 %956, %v880
      %v958 = vpop.permute.xlu0 %957
      %959 = vset.pattern.permute.xlu0 0
      %960 = vperm.xlu0 %959, %v881
      %v961 = vpop.permute.xlu0 %960
      %962 = vset.pattern.permute.xlu0 0
      %963 = vperm.xlu0 %962, %v882
      %v964 = vpop.permute.xlu0 %963
      %965 = vset.pattern.permute.xlu0 0
      %966 = vperm.xlu0 %965, %v883
      %v967 = vpop.permute.xlu0 %966
      %968 = vset.pattern.permute.xlu0 0
      %969 = vperm.xlu0 %968, %v884
      %v970 = vpop.permute.xlu0 %969
      %971 = vset.pattern.permute.xlu0 0
      %972 = vperm.xlu0 %971, %v885
      %v973 = vpop.permute.xlu0 %972
      %974 = vset.pattern.permute.xlu0 0
      %975 = vperm.xlu0 %974, %v886
      %v976 = vpop.permute.xlu0 %975
      %977 = vset.pattern.permute.xlu0 0
      %978 = vperm.xlu0 %977, %v887
      %v979 = vpop.permute.xlu0 %978
      %980 = vset.pattern.permute.xlu0 0
      %981 = vperm.xlu0 %980, %v888
      %v982 = vpop.permute.xlu0 %981
      %983 = vset.pattern.permute.xlu0 0
      %984 = vperm.xlu0 %983, %v889
      %v985 = vpop.permute.xlu0 %984
      %986 = vset.pattern.permute.xlu0 0
      %987 = vperm.xlu0 %986, %v890
      %v988 = vpop.permute.xlu0 %987
      %989 = vset.pattern.permute.xlu0 0
      %990 = vperm.xlu0 %989, %v891
      %v991 = vpop.permute.xlu0 %990
      %vm992 = vcmp.eq.s32.totalorder %v895, %v898
      %vm993 = vcmp.eq.s32.totalorder %v895, %v901
      %vm994 = vcmp.eq.s32.totalorder %v895, %v904
      %vm995 = vcmp.eq.s32.totalorder %v895, %v907
      %vm996 = vcmp.eq.s32.totalorder %v895, %v910
      %vm997 = vcmp.eq.s32.totalorder %v895, %v913
      %vm998 = vcmp.eq.s32.totalorder %v895, %v916
      %vm999 = vcmp.eq.s32.totalorder %v895, %v919
      %vm1000 = vcmp.eq.s32.totalorder %v895, %v922
      %vm1001 = vcmp.eq.s32.totalorder %v895, %v925
      %vm1002 = vcmp.eq.s32.totalorder %v895, %v928
      %vm1003 = vcmp.eq.s32.totalorder %v895, %v931
      %vm1004 = vcmp.eq.s32.totalorder %v895, %v934
      %vm1005 = vcmp.eq.s32.totalorder %v895, %v937
      %vm1006 = vcmp.eq.s32.totalorder %v895, %v940
      %vm1007 = vcmp.eq.s32.totalorder %v895, %v943
      %vm1008 = vcmp.eq.s32.totalorder %v895, %v946
      %vm1009 = vcmp.eq.s32.totalorder %v895, %v949
      %vm1010 = vcmp.eq.s32.totalorder %v895, %v952
      %vm1011 = vcmp.eq.s32.totalorder %v895, %v955
      %vm1012 = vcmp.eq.s32.totalorder %v895, %v958
      %vm1013 = vcmp.eq.s32.totalorder %v895, %v961
      %vm1014 = vcmp.eq.s32.totalorder %v895, %v964
      %vm1015 = vcmp.eq.s32.totalorder %v895, %v967
      %vm1016 = vcmp.eq.s32.totalorder %v895, %v970
      %vm1017 = vcmp.eq.s32.totalorder %v895, %v973
      %vm1018 = vcmp.eq.s32.totalorder %v895, %v976
      %vm1019 = vcmp.eq.s32.totalorder %v895, %v979
      %vm1020 = vcmp.eq.s32.totalorder %v895, %v982
      %vm1021 = vcmp.eq.s32.totalorder %v895, %v985
      %vm1022 = vcmp.eq.s32.totalorder %v895, %v988
      %vm1023 = vcmp.eq.s32.totalorder %v895, %v991
      %v1024 = vsel %vm992, 1, 0
      %v1025 = vsel %vm993, 1, 0
      %v1026 = vsel %vm994, 1, 0
      %v1027 = vsel %vm995, 1, 0
      %v1028 = vsel %vm996, 1, 0
      %v1029 = vsel %vm997, 1, 0
      %v1030 = vsel %vm998, 1, 0
      %v1031 = vsel %vm999, 1, 0
      %v1032 = vsel %vm1000, 1, 0
      %v1033 = vsel %vm1001, 1, 0
      %v1034 = vsel %vm1002, 1, 0
      %v1035 = vsel %vm1003, 1, 0
      %v1036 = vsel %vm1004, 1, 0
      %v1037 = vsel %vm1005, 1, 0
      %v1038 = vsel %vm1006, 1, 0
      %v1039 = vsel %vm1007, 1, 0
      %v1040 = vsel %vm1008, 1, 0
      %v1041 = vsel %vm1009, 1, 0
      %v1042 = vsel %vm1010, 1, 0
      %v1043 = vsel %vm1011, 1, 0
      %v1044 = vsel %vm1012, 1, 0
      %v1045 = vsel %vm1013, 1, 0
      %v1046 = vsel %vm1014, 1, 0
      %v1047 = vsel %vm1015, 1, 0
      %v1048 = vsel %vm1016, 1, 0
      %v1049 = vsel %vm1017, 1, 0
      %v1050 = vsel %vm1018, 1, 0
      %v1051 = vsel %vm1019, 1, 0
      %v1052 = vsel %vm1020, 1, 0
      %v1053 = vsel %vm1021, 1, 0
      %v1054 = vsel %vm1022, 1, 0
      %v1055 = vsel %vm1023, 1, 0
      %v1056 = vcvt.s32.f32 %v1024
      %v1057 = vcvt.s32.f32 %v1025
      %v1058 = vcvt.s32.f32 %v1026
      %v1059 = vcvt.s32.f32 %v1027
      %v1060 = vcvt.s32.f32 %v1028
      %v1061 = vcvt.s32.f32 %v1029
      %v1062 = vcvt.s32.f32 %v1030
      %v1063 = vcvt.s32.f32 %v1031
      %v1064 = vcvt.s32.f32 %v1032
      %v1065 = vcvt.s32.f32 %v1033
      %v1066 = vcvt.s32.f32 %v1034
      %v1067 = vcvt.s32.f32 %v1035
      %v1068 = vcvt.s32.f32 %v1036
      %v1069 = vcvt.s32.f32 %v1037
      %v1070 = vcvt.s32.f32 %v1038
      %v1071 = vcvt.s32.f32 %v1039
      %v1072 = vcvt.s32.f32 %v1040
      %v1073 = vcvt.s32.f32 %v1041
      %v1074 = vcvt.s32.f32 %v1042
      %v1075 = vcvt.s32.f32 %v1043
      %v1076 = vcvt.s32.f32 %v1044
      %v1077 = vcvt.s32.f32 %v1045
      %v1078 = vcvt.s32.f32 %v1046
      %v1079 = vcvt.s32.f32 %v1047
      %v1080 = vcvt.s32.f32 %v1048
      %v1081 = vcvt.s32.f32 %v1049
      %v1082 = vcvt.s32.f32 %v1050
      %v1083 = vcvt.s32.f32 %v1051
      %v1084 = vcvt.s32.f32 %v1052
      %v1085 = vcvt.s32.f32 %v1053
      %v1086 = vcvt.s32.f32 %v1054
      %v1087 = vcvt.s32.f32 %v1055
      %v1088 = vpack.c.bf16 %v1057, %v1056
      %v1089 = vpack.c.bf16 %v1059, %v1058
      %v1090 = vpack.c.bf16 %v1061, %v1060
      %v1091 = vpack.c.bf16 %v1063, %v1062
      %v1092 = vpack.c.bf16 %v1065, %v1064
      %v1093 = vpack.c.bf16 %v1067, %v1066
      %v1094 = vpack.c.bf16 %v1069, %v1068
      %v1095 = vpack.c.bf16 %v1071, %v1070
      %v1096 = vpack.c.bf16 %v1073, %v1072
      %v1097 = vpack.c.bf16 %v1075, %v1074
      %v1098 = vpack.c.bf16 %v1077, %v1076
      %v1099 = vpack.c.bf16 %v1079, %v1078
      %v1100 = vpack.c.bf16 %v1081, %v1080
      %v1101 = vpack.c.bf16 %v1083, %v1082
      %v1102 = vpack.c.bf16 %v1085, %v1084
      %v1103 = vpack.c.bf16 %v1087, %v1086
      %1104 = vset.pattern.permute.xlu0 1
      %1105 = vperm.xlu0 %1104, %v860
      %v1106 = vpop.permute.xlu0 %1105
      %1107 = vset.pattern.permute.xlu0 1
      %1108 = vperm.xlu0 %1107, %v861
      %v1109 = vpop.permute.xlu0 %1108
      %1110 = vset.pattern.permute.xlu0 1
      %1111 = vperm.xlu0 %1110, %v862
      %v1112 = vpop.permute.xlu0 %1111
      %1113 = vset.pattern.permute.xlu0 1
      %1114 = vperm.xlu0 %1113, %v863
      %v1115 = vpop.permute.xlu0 %1114
      %1116 = vset.pattern.permute.xlu0 1
      %1117 = vperm.xlu0 %1116, %v864
      %v1118 = vpop.permute.xlu0 %1117
      %1119 = vset.pattern.permute.xlu0 1
      %1120 = vperm.xlu0 %1119, %v865
      %v1121 = vpop.permute.xlu0 %1120
      %1122 = vset.pattern.permute.xlu0 1
      %1123 = vperm.xlu0 %1122, %v866
      %v1124 = vpop.permute.xlu0 %1123
      %1125 = vset.pattern.permute.xlu0 1
      %1126 = vperm.xlu0 %1125, %v867
      %v1127 = vpop.permute.xlu0 %1126
      %1128 = vset.pattern.permute.xlu0 1
      %1129 = vperm.xlu0 %1128, %v868
      %v1130 = vpop.permute.xlu0 %1129
      %1131 = vset.pattern.permute.xlu0 1
      %1132 = vperm.xlu0 %1131, %v869
      %v1133 = vpop.permute.xlu0 %1132
      %1134 = vset.pattern.permute.xlu0 1
      %1135 = vperm.xlu0 %1134, %v870
      %v1136 = vpop.permute.xlu0 %1135
      %1137 = vset.pattern.permute.xlu0 1
      %1138 = vperm.xlu0 %1137, %v871
      %v1139 = vpop.permute.xlu0 %1138
      %1140 = vset.pattern.permute.xlu0 1
      %1141 = vperm.xlu0 %1140, %v872
      %v1142 = vpop.permute.xlu0 %1141
      %1143 = vset.pattern.permute.xlu0 1
      %1144 = vperm.xlu0 %1143, %v873
      %v1145 = vpop.permute.xlu0 %1144
      %1146 = vset.pattern.permute.xlu0 1
      %1147 = vperm.xlu0 %1146, %v874
      %v1148 = vpop.permute.xlu0 %1147
      %1149 = vset.pattern.permute.xlu0 1
      %1150 = vperm.xlu0 %1149, %v875
      %v1151 = vpop.permute.xlu0 %1150
      %1152 = vset.pattern.permute.xlu0 1
      %1153 = vperm.xlu0 %1152, %v876
      %v1154 = vpop.permute.xlu0 %1153
      %1155 = vset.pattern.permute.xlu0 1
      %1156 = vperm.xlu0 %1155, %v877
      %v1157 = vpop.permute.xlu0 %1156
      %1158 = vset.pattern.permute.xlu0 1
      %1159 = vperm.xlu0 %1158, %v878
      %v1160 = vpop.permute.xlu0 %1159
      %1161 = vset.pattern.permute.xlu0 1
      %1162 = vperm.xlu0 %1161, %v879
      %v1163 = vpop.permute.xlu0 %1162
      %1164 = vset.pattern.permute.xlu0 1
      %1165 = vperm.xlu0 %1164, %v880
      %v1166 = vpop.permute.xlu0 %1165
      %1167 = vset.pattern.permute.xlu0 1
      %1168 = vperm.xlu0 %1167, %v881
      %v1169 = vpop.permute.xlu0 %1168
      %1170 = vset.pattern.permute.xlu0 1
      %1171 = vperm.xlu0 %1170, %v882
      %v1172 = vpop.permute.xlu0 %1171
      %1173 = vset.pattern.permute.xlu0 1
      %1174 = vperm.xlu0 %1173, %v883
      %v1175 = vpop.permute.xlu0 %1174
      %1176 = vset.pattern.permute.xlu0 1
      %1177 = vperm.xlu0 %1176, %v884
      %v1178 = vpop.permute.xlu0 %1177
      %1179 = vset.pattern.permute.xlu0 1
      %1180 = vperm.xlu0 %1179, %v885
      %v1181 = vpop.permute.xlu0 %1180
      %1182 = vset.pattern.permute.xlu0 1
      %1183 = vperm.xlu0 %1182, %v886
      %v1184 = vpop.permute.xlu0 %1183
      %1185 = vset.pattern.permute.xlu0 1
      %1186 = vperm.xlu0 %1185, %v887
      %v1187 = vpop.permute.xlu0 %1186
      %1188 = vset.pattern.permute.xlu0 1
      %1189 = vperm.xlu0 %1188, %v888
      %v1190 = vpop.permute.xlu0 %1189
      %1191 = vset.pattern.permute.xlu0 1
      %1192 = vperm.xlu0 %1191, %v889
      %v1193 = vpop.permute.xlu0 %1192
      %1194 = vset.pattern.permute.xlu0 1
      %1195 = vperm.xlu0 %1194, %v890
      %v1196 = vpop.permute.xlu0 %1195
      %1197 = vset.pattern.permute.xlu0 1
      %1198 = vperm.xlu0 %1197, %v891
      %v1199 = vpop.permute.xlu0 %1198
      %vm1200 = vcmp.eq.s32.totalorder %v895, %v1106
      %vm1201 = vcmp.eq.s32.totalorder %v895, %v1109
      %vm1202 = vcmp.eq.s32.totalorder %v895, %v1112
      %vm1203 = vcmp.eq.s32.totalorder %v895, %v1115
      %vm1204 = vcmp.eq.s32.totalorder %v895, %v1118
      %vm1205 = vcmp.eq.s32.totalorder %v895, %v1121
      %vm1206 = vcmp.eq.s32.totalorder %v895, %v1124
      %vm1207 = vcmp.eq.s32.totalorder %v895, %v1127
      %vm1208 = vcmp.eq.s32.totalorder %v895, %v1130
      %vm1209 = vcmp.eq.s32.totalorder %v895, %v1133
      %vm1210 = vcmp.eq.s32.totalorder %v895, %v1136
      %vm1211 = vcmp.eq.s32.totalorder %v895, %v1139
      %vm1212 = vcmp.eq.s32.totalorder %v895, %v1142
      %vm1213 = vcmp.eq.s32.totalorder %v895, %v1145
      %vm1214 = vcmp.eq.s32.totalorder %v895, %v1148
      %vm1215 = vcmp.eq.s32.totalorder %v895, %v1151
      %vm1216 = vcmp.eq.s32.totalorder %v895, %v1154
      %vm1217 = vcmp.eq.s32.totalorder %v895, %v1157
      %vm1218 = vcmp.eq.s32.totalorder %v895, %v1160
      %vm1219 = vcmp.eq.s32.totalorder %v895, %v1163
      %vm1220 = vcmp.eq.s32.totalorder %v895, %v1166
      %vm1221 = vcmp.eq.s32.totalorder %v895, %v1169
      %vm1222 = vcmp.eq.s32.totalorder %v895, %v1172
      %vm1223 = vcmp.eq.s32.totalorder %v895, %v1175
      %vm1224 = vcmp.eq.s32.totalorder %v895, %v1178
      %vm1225 = vcmp.eq.s32.totalorder %v895, %v1181
      %vm1226 = vcmp.eq.s32.totalorder %v895, %v1184
      %vm1227 = vcmp.eq.s32.totalorder %v895, %v1187
      %vm1228 = vcmp.eq.s32.totalorder %v895, %v1190
      %vm1229 = vcmp.eq.s32.totalorder %v895, %v1193
      %vm1230 = vcmp.eq.s32.totalorder %v895, %v1196
      %vm1231 = vcmp.eq.s32.totalorder %v895, %v1199
      %v1232 = vsel %vm1200, 1, 0
      %v1233 = vsel %vm1201, 1, 0
      %v1234 = vsel %vm1202, 1, 0
      %v1235 = vsel %vm1203, 1, 0
      %v1236 = vsel %vm1204, 1, 0
      %v1237 = vsel %vm1205, 1, 0
      %v1238 = vsel %vm1206, 1, 0
      %v1239 = vsel %vm1207, 1, 0
      %v1240 = vsel %vm1208, 1, 0
      %v1241 = vsel %vm1209, 1, 0
      %v1242 = vsel %vm1210, 1, 0
      %v1243 = vsel %vm1211, 1, 0
      %v1244 = vsel %vm1212, 1, 0
      %v1245 = vsel %vm1213, 1, 0
      %v1246 = vsel %vm1214, 1, 0
      %v1247 = vsel %vm1215, 1, 0
      %v1248 = vsel %vm1216, 1, 0
      %v1249 = vsel %vm1217, 1, 0
      %v1250 = vsel %vm1218, 1, 0
      %v1251 = vsel %vm1219, 1, 0
      %v1252 = vsel %vm1220, 1, 0
      %v1253 = vsel %vm1221, 1, 0
      %v1254 = vsel %vm1222, 1, 0
      %v1255 = vsel %vm1223, 1, 0
      %v1256 = vsel %vm1224, 1, 0
      %v1257 = vsel %vm1225, 1, 0
      %v1258 = vsel %vm1226, 1, 0
      %v1259 = vsel %vm1227, 1, 0
      %v1260 = vsel %vm1228, 1, 0
      %v1261 = vsel %vm1229, 1, 0
      %v1262 = vsel %vm1230, 1, 0
      %v1263 = vsel %vm1231, 1, 0
      %v1264 = vcvt.s32.f32 %v1232
      %v1265 = vcvt.s32.f32 %v1233
      %v1266 = vcvt.s32.f32 %v1234
      %v1267 = vcvt.s32.f32 %v1235
      %v1268 = vcvt.s32.f32 %v1236
      %v1269 = vcvt.s32.f32 %v1237
      %v1270 = vcvt.s32.f32 %v1238
      %v1271 = vcvt.s32.f32 %v1239
      %v1272 = vcvt.s32.f32 %v1240
      %v1273 = vcvt.s32.f32 %v1241
      %v1274 = vcvt.s32.f32 %v1242
      %v1275 = vcvt.s32.f32 %v1243
      %v1276 = vcvt.s32.f32 %v1244
      %v1277 = vcvt.s32.f32 %v1245
      %v1278 = vcvt.s32.f32 %v1246
      %v1279 = vcvt.s32.f32 %v1247
      %v1280 = vcvt.s32.f32 %v1248
      %v1281 = vcvt.s32.f32 %v1249
      %v1282 = vcvt.s32.f32 %v1250
      %v1283 = vcvt.s32.f32 %v1251
      %v1284 = vcvt.s32.f32 %v1252
      %v1285 = vcvt.s32.f32 %v1253
      %v1286 = vcvt.s32.f32 %v1254
      %v1287 = vcvt.s32.f32 %v1255
      %v1288 = vcvt.s32.f32 %v1256
      %v1289 = vcvt.s32.f32 %v1257
      %v1290 = vcvt.s32.f32 %v1258
      %v1291 = vcvt.s32.f32 %v1259
      %v1292 = vcvt.s32.f32 %v1260
      %v1293 = vcvt.s32.f32 %v1261
      %v1294 = vcvt.s32.f32 %v1262
      %v1295 = vcvt.s32.f32 %v1263
      %v1296 = vpack.c.bf16 %v1265, %v1264
      %v1297 = vpack.c.bf16 %v1267, %v1266
      %v1298 = vpack.c.bf16 %v1269, %v1268
      %v1299 = vpack.c.bf16 %v1271, %v1270
      %v1300 = vpack.c.bf16 %v1273, %v1272
      %v1301 = vpack.c.bf16 %v1275, %v1274
      %v1302 = vpack.c.bf16 %v1277, %v1276
      %v1303 = vpack.c.bf16 %v1279, %v1278
      %v1304 = vpack.c.bf16 %v1281, %v1280
      %v1305 = vpack.c.bf16 %v1283, %v1282
      %v1306 = vpack.c.bf16 %v1285, %v1284
      %v1307 = vpack.c.bf16 %v1287, %v1286
      %v1308 = vpack.c.bf16 %v1289, %v1288
      %v1309 = vpack.c.bf16 %v1291, %v1290
      %v1310 = vpack.c.bf16 %v1293, %v1292
      %v1311 = vpack.c.bf16 %v1295, %v1294
      %v1312 = vlaneseq
      %v1313 = vshrl.u32 %v1312, 7
      %v1314 = vadd.s32 %v1313, 8
      %v1315 = vadd.s32 %v1313, 16
      %v1316 = vadd.s32 %v1313, 24
      %v1317 = vadd.s32 %v1313, 32
      %v1318 = vadd.s32 %v1313, 40
      %v1319 = vadd.s32 %v1313, 48
      %v1320 = vadd.s32 %v1313, 56
      %v1321 = vlaneseq
      %v1322 = vshrl.u32 %v1321, 7
      %v1323 = vsub.s32 0, %v1322
      %v1324 = vrot.slane %v893, %v1323
      %v1325 = vlaneseq
      %v1326 = vshrl.u32 %v1325, 7
      %v1327 = vsub.s32 1, %v1326
      %v1328 = vrot.slane %v893, %v1327
      %vm1329 = vcmp.eq.s32.totalorder %v1313, %v1324
      %vm1330 = vcmp.eq.s32.totalorder %v1313, %v1328
      %vm1331 = vcmp.eq.s32.totalorder %v1314, %v1324
      %vm1332 = vcmp.eq.s32.totalorder %v1314, %v1328
      %vm1333 = vcmp.eq.s32.totalorder %v1315, %v1324
      %vm1334 = vcmp.eq.s32.totalorder %v1315, %v1328
      %vm1335 = vcmp.eq.s32.totalorder %v1316, %v1324
      %vm1336 = vcmp.eq.s32.totalorder %v1316, %v1328
      %vm1337 = vcmp.eq.s32.totalorder %v1317, %v1324
      %vm1338 = vcmp.eq.s32.totalorder %v1317, %v1328
      %vm1339 = vcmp.eq.s32.totalorder %v1318, %v1324
      %vm1340 = vcmp.eq.s32.totalorder %v1318, %v1328
      %vm1341 = vcmp.eq.s32.totalorder %v1319, %v1324
      %vm1342 = vcmp.eq.s32.totalorder %v1319, %v1328
      %vm1343 = vcmp.eq.s32.totalorder %v1320, %v1324
      %vm1344 = vcmp.eq.s32.totalorder %v1320, %v1328
      %v1345 = vld [vmem:[#allocation2] sm:$0xf]
      %v1346 = vld [vmem:[#allocation2 + $0x4] sm:$0xf]
      %v1347 = vld [vmem:[#allocation2 + $0x8] sm:$0xf]
      %v1348 = vld [vmem:[#allocation2 + $0xc] sm:$0xf]
      %v1349 = vld [vmem:[#allocation2 + $0x10] sm:$0xf]
      %v1350 = vld [vmem:[#allocation2 + $0x14] sm:$0xf]
      %v1351 = vld [vmem:[#allocation2 + $0x18] sm:$0xf]
      %v1352 = vld [vmem:[#allocation2 + $0x1c] sm:$0xf]
      %v1361 = vunpack.c.l.b16 %v1345
      %v1362 = vunpack.c.l.b16 %v1346
      %v1363 = vunpack.c.l.b16 %v1347
      %v1364 = vunpack.c.l.b16 %v1348
      %v1365 = vunpack.c.l.b16 %v1349
      %v1366 = vunpack.c.l.b16 %v1350
      %v1367 = vunpack.c.l.b16 %v1351
      %v1368 = vunpack.c.l.b16 %v1352
      %v1369 = vpack.c.b16 %v1362, %v1361
      %v1370 = vpack.c.b16 %v1364, %v1363
      %v1371 = vpack.c.b16 %v1366, %v1365
      %v1372 = vpack.c.b16 %v1368, %v1367
      %vm1377 = vcmask 523264
      %v1379 = vsel %vm1377, %v1296, 0
      %v1382 = vsel %vm1377, %v1297, 0
      %v1385 = vsel %vm1377, %v1298, 0
      %v1388 = vsel %vm1377, %v1299, 0
      %v1391 = vsel %vm1377, %v1300, 0
      %v1394 = vsel %vm1377, %v1301, 0
      %v1397 = vsel %vm1377, %v1302, 0
      %v1400 = vsel %vm1377, %v1303, 0
      %v1403 = vsel %vm1377, %v1304, 0
      %v1406 = vsel %vm1377, %v1305, 0
      %v1409 = vsel %vm1377, %v1306, 0
      %v1412 = vsel %vm1377, %v1307, 0
      %v1415 = vsel %vm1377, %v1308, 0
      %v1418 = vsel %vm1377, %v1309, 0
      %v1421 = vsel %vm1377, %v1310, 0
      %v1424 = vsel %vm1377, %v1311, 0
      %1426 = vmatprep.subr.bf16.mxu0 0
      %1427 = vmatpush1.bf16.msra.mxu0 0
      %1428 = vmatprep.subr.bf16.mxu0 0
      %1429 = vmatpush1.bf16.msra.mxu0 0
      %1430 = vmatprep.subr.bf16.mxu0 0
      %1431 = vmatpush1.bf16.msra.mxu0 0
      %1432 = vmatprep.subr.bf16.mxu0 0
      %1433 = vmatpush1.bf16.msra.mxu0 0
      %1434 = vmatprep.subr.bf16.mxu0 0
      %1435 = vmatpush1.bf16.msra.mxu0 %v1372
      %1436 = vmatprep.subr.bf16.mxu0 0
      %1437 = vmatpush1.bf16.msra.mxu0 %v1371
      %1438 = vmatprep.subr.bf16.mxu0 0
      %1439 = vmatpush1.bf16.msra.mxu0 %v1370
      %1440 = vmatprep.subr.bf16.mxu0 0
      %1441 = vmatpush1.bf16.msra.mxu0 %v1369
      %1442 = vmatprep.subr.bf16.mxu0 0
      %1443 = vmatpush2.bf16.msra.mxu0 0
      %1444 = vmatprep.subr.bf16.mxu0 0
      %1445 = vmatpush2.bf16.msra.mxu0 0
      %1446 = vmatprep.subr.bf16.mxu0 0
      %1447 = vmatpush2.bf16.msra.mxu0 0
      %1448 = vmatprep.subr.bf16.mxu0 0
      %1449 = vmatpush2.bf16.msra.mxu0 0
      %1450 = vmatprep.subr.bf16.mxu0 0
      %1451 = vmatpush2.bf16.msra.mxu0 0
      %1452 = vmatprep.subr.bf16.mxu0 0
      %1453 = vmatpush2.bf16.msra.mxu0 0
      %1454 = vmatprep.subr.bf16.mxu0 0
      %1455 = vmatpush2.bf16.msra.mxu0 0
      %1456 = vmatprep.subr.bf16.mxu0 0
      %1457 = vmatpush2.bf16.msra.mxu0 0
      %1458 = vmatprep.mubr.bf16.mxu0 0
      %1459 = vmatmul.mubr.bf16.gmra.mxu0 %v1379
      %v1460 = vpop.f32.mrf.mxu0
      %v1461 = vadd.f32 0.0, %v1460
      %v1462 = vpop.f32.mrf.mxu0
      %v1463 = vpop.f32.mrf.mxu0
      %v1464 = vadd.f32 0.0, %v1463
      %v1465 = vpop.f32.mrf.mxu0
      %1466 = vmatprep.mubr.bf16.mxu0 0
      %1467 = vmatmul.mubr.bf16.gmra.mxu0 %v1382
      %v1468 = vpop.f32.mrf.mxu0
      %v1469 = vadd.f32 0.0, %v1468
      %v1470 = vpop.f32.mrf.mxu0
      %v1471 = vpop.f32.mrf.mxu0
      %v1472 = vadd.f32 0.0, %v1471
      %v1473 = vpop.f32.mrf.mxu0
      %1474 = vmatprep.mubr.bf16.mxu0 0
      %1475 = vmatmul.mubr.bf16.gmra.mxu0 %v1385
      %v1476 = vpop.f32.mrf.mxu0
      %v1477 = vadd.f32 0.0, %v1476
      %v1478 = vpop.f32.mrf.mxu0
      %v1479 = vpop.f32.mrf.mxu0
      %v1480 = vadd.f32 0.0, %v1479
      %v1481 = vpop.f32.mrf.mxu0
      %1482 = vmatprep.mubr.bf16.mxu0 0
      %1483 = vmatmul.mubr.bf16.gmra.mxu0 %v1388
      %v1484 = vpop.f32.mrf.mxu0
      %v1485 = vadd.f32 0.0, %v1484
      %v1486 = vpop.f32.mrf.mxu0
      %v1487 = vpop.f32.mrf.mxu0
      %v1488 = vadd.f32 0.0, %v1487
      %v1489 = vpop.f32.mrf.mxu0
      %1490 = vmatprep.mubr.bf16.mxu0 0
      %1491 = vmatmul.mubr.bf16.gmra.mxu0 %v1391
      %v1492 = vpop.f32.mrf.mxu0
      %v1493 = vadd.f32 0.0, %v1492
      %v1494 = vpop.f32.mrf.mxu0
      %v1495 = vpop.f32.mrf.mxu0
      %v1496 = vadd.f32 0.0, %v1495
      %v1497 = vpop.f32.mrf.mxu0
      %1498 = vmatprep.mubr.bf16.mxu0 0
      %1499 = vmatmul.mubr.bf16.gmra.mxu0 %v1394
      %v1500 = vpop.f32.mrf.mxu0
      %v1501 = vadd.f32 0.0, %v1500
      %v1502 = vpop.f32.mrf.mxu0
      %v1503 = vpop.f32.mrf.mxu0
      %v1504 = vadd.f32 0.0, %v1503
      %v1505 = vpop.f32.mrf.mxu0
      %1506 = vmatprep.mubr.bf16.mxu0 0
      %1507 = vmatmul.mubr.bf16.gmra.mxu0 %v1397
      %v1508 = vpop.f32.mrf.mxu0
      %v1509 = vadd.f32 0.0, %v1508
      %v1510 = vpop.f32.mrf.mxu0
      %v1511 = vpop.f32.mrf.mxu0
      %v1512 = vadd.f32 0.0, %v1511
      %v1513 = vpop.f32.mrf.mxu0
      %1514 = vmatprep.mubr.bf16.mxu0 0
      %1515 = vmatmul.mubr.bf16.gmra.mxu0 %v1400
      %v1516 = vpop.f32.mrf.mxu0
      %v1517 = vadd.f32 0.0, %v1516
      %v1518 = vpop.f32.mrf.mxu0
      %v1519 = vpop.f32.mrf.mxu0
      %v1520 = vadd.f32 0.0, %v1519
      %v1521 = vpop.f32.mrf.mxu0
      %1522 = vmatprep.mubr.bf16.mxu0 0
      %1523 = vmatmul.mubr.bf16.gmra.mxu0 %v1403
      %v1524 = vpop.f32.mrf.mxu0
      %v1525 = vadd.f32 0.0, %v1524
      %v1526 = vpop.f32.mrf.mxu0
      %v1527 = vpop.f32.mrf.mxu0
      %v1528 = vadd.f32 0.0, %v1527
      %v1529 = vpop.f32.mrf.mxu0
      %1530 = vmatprep.mubr.bf16.mxu0 0
      %1531 = vmatmul.mubr.bf16.gmra.mxu0 %v1406
      %v1532 = vpop.f32.mrf.mxu0
      %v1533 = vadd.f32 0.0, %v1532
      %v1534 = vpop.f32.mrf.mxu0
      %v1535 = vpop.f32.mrf.mxu0
      %v1536 = vadd.f32 0.0, %v1535
      %v1537 = vpop.f32.mrf.mxu0
      %1538 = vmatprep.mubr.bf16.mxu0 0
      %1539 = vmatmul.mubr.bf16.gmra.mxu0 %v1409
      %v1540 = vpop.f32.mrf.mxu0
      %v1541 = vadd.f32 0.0, %v1540
      %v1542 = vpop.f32.mrf.mxu0
      %v1543 = vpop.f32.mrf.mxu0
      %v1544 = vadd.f32 0.0, %v1543
      %v1545 = vpop.f32.mrf.mxu0
      %1546 = vmatprep.mubr.bf16.mxu0 0
      %1547 = vmatmul.mubr.bf16.gmra.mxu0 %v1412
      %v1548 = vpop.f32.mrf.mxu0
      %v1549 = vadd.f32 0.0, %v1548
      %v1550 = vpop.f32.mrf.mxu0
      %v1551 = vpop.f32.mrf.mxu0
      %v1552 = vadd.f32 0.0, %v1551
      %v1553 = vpop.f32.mrf.mxu0
      %1554 = vmatprep.mubr.bf16.mxu0 0
      %1555 = vmatmul.mubr.bf16.gmra.mxu0 %v1415
      %v1556 = vpop.f32.mrf.mxu0
      %v1557 = vadd.f32 0.0, %v1556
      %v1558 = vpop.f32.mrf.mxu0
      %v1559 = vpop.f32.mrf.mxu0
      %v1560 = vadd.f32 0.0, %v1559
      %v1561 = vpop.f32.mrf.mxu0
      %1562 = vmatprep.mubr.bf16.mxu0 0
      %1563 = vmatmul.mubr.bf16.gmra.mxu0 %v1418
      %v1564 = vpop.f32.mrf.mxu0
      %v1565 = vadd.f32 0.0, %v1564
      %v1566 = vpop.f32.mrf.mxu0
      %v1567 = vpop.f32.mrf.mxu0
      %v1568 = vadd.f32 0.0, %v1567
      %v1569 = vpop.f32.mrf.mxu0
      %1570 = vmatprep.mubr.bf16.mxu0 0
      %1571 = vmatmul.mubr.bf16.gmra.mxu0 %v1421
      %v1572 = vpop.f32.mrf.mxu0
      %v1573 = vadd.f32 0.0, %v1572
      %v1574 = vpop.f32.mrf.mxu0
      %v1575 = vpop.f32.mrf.mxu0
      %v1576 = vadd.f32 0.0, %v1575
      %v1577 = vpop.f32.mrf.mxu0
      %1578 = vmatprep.mubr.bf16.mxu0 0
      %1579 = vmatmul.mubr.bf16.gmra.mxu0 %v1424
      %v1580 = vpop.f32.mrf.mxu0
      %v1581 = vadd.f32 0.0, %v1580
      %v1582 = vpop.f32.mrf.mxu0
      %v1583 = vpop.f32.mrf.mxu0
      %v1584 = vadd.f32 0.0, %v1583
      %v1585 = vpop.f32.mrf.mxu0
      %1586 = vdwg.mxu0
      %v1587 = vld [vmem:[#allocation3] sm:$0xf]
      %v1588 = vld [vmem:[#allocation3 + $0x4] sm:$0xf]
      %v1589 = vld [vmem:[#allocation3 + $0x8] sm:$0xf]
      %v1590 = vld [vmem:[#allocation3 + $0xc] sm:$0xf]
      %v1591 = vld [vmem:[#allocation3 + $0x10] sm:$0xf]
      %v1592 = vld [vmem:[#allocation3 + $0x14] sm:$0xf]
      %v1593 = vld [vmem:[#allocation3 + $0x18] sm:$0xf]
      %v1594 = vld [vmem:[#allocation3 + $0x1c] sm:$0xf]
      %v1603 = vunpack.c.l.b16 %v1587
      %v1604 = vunpack.c.l.b16 %v1588
      %v1605 = vunpack.c.l.b16 %v1589
      %v1606 = vunpack.c.l.b16 %v1590
      %v1607 = vunpack.c.l.b16 %v1591
      %v1608 = vunpack.c.l.b16 %v1592
      %v1609 = vunpack.c.l.b16 %v1593
      %v1610 = vunpack.c.l.b16 %v1594
      %v1611 = vpack.c.b16 %v1604, %v1603
      %v1612 = vpack.c.b16 %v1606, %v1605
      %v1613 = vpack.c.b16 %v1608, %v1607
      %v1614 = vpack.c.b16 %v1610, %v1609
      %v1620 = vsel %vm1377, %v1088, 0
      %v1623 = vsel %vm1377, %v1089, 0
      %v1626 = vsel %vm1377, %v1090, 0
      %v1629 = vsel %vm1377, %v1091, 0
      %v1632 = vsel %vm1377, %v1092, 0
      %v1635 = vsel %vm1377, %v1093, 0
      %v1638 = vsel %vm1377, %v1094, 0
      %v1641 = vsel %vm1377, %v1095, 0
      %v1644 = vsel %vm1377, %v1096, 0
      %v1647 = vsel %vm1377, %v1097, 0
      %v1650 = vsel %vm1377, %v1098, 0
      %v1653 = vsel %vm1377, %v1099, 0
      %v1656 = vsel %vm1377, %v1100, 0
      %v1659 = vsel %vm1377, %v1101, 0
      %v1662 = vsel %vm1377, %v1102, 0
      %v1665 = vsel %vm1377, %v1103, 0
      %1667 = vmatprep.subr.bf16.mxu0 0
      %1668 = vmatpush1.bf16.msra.mxu0 0
      %1669 = vmatprep.subr.bf16.mxu0 0
      %1670 = vmatpush1.bf16.msra.mxu0 0
      %1671 = vmatprep.subr.bf16.mxu0 0
      %1672 = vmatpush1.bf16.msra.mxu0 0
      %1673 = vmatprep.subr.bf16.mxu0 0
      %1674 = vmatpush1.bf16.msra.mxu0 0
      %1675 = vmatprep.subr.bf16.mxu0 0
      %1676 = vmatpush1.bf16.msra.mxu0 %v1614
      %1677 = vmatprep.subr.bf16.mxu0 0
      %1678 = vmatpush1.bf16.msra.mxu0 %v1613
      %1679 = vmatprep.subr.bf16.mxu0 0
      %1680 = vmatpush1.bf16.msra.mxu0 %v1612
      %1681 = vmatprep.subr.bf16.mxu0 0
      %1682 = vmatpush1.bf16.msra.mxu0 %v1611
      %1683 = vmatprep.subr.bf16.mxu0 0
      %1684 = vmatpush2.bf16.msra.mxu0 0
      %1685 = vmatprep.subr.bf16.mxu0 0
      %1686 = vmatpush2.bf16.msra.mxu0 0
      %1687 = vmatprep.subr.bf16.mxu0 0
      %1688 = vmatpush2.bf16.msra.mxu0 0
      %1689 = vmatprep.subr.bf16.mxu0 0
      %1690 = vmatpush2.bf16.msra.mxu0 0
      %1691 = vmatprep.subr.bf16.mxu0 0
      %1692 = vmatpush2.bf16.msra.mxu0 0
      %1693 = vmatprep.subr.bf16.mxu0 0
      %1694 = vmatpush2.bf16.msra.mxu0 0
      %1695 = vmatprep.subr.bf16.mxu0 0
      %1696 = vmatpush2.bf16.msra.mxu0 0
      %1697 = vmatprep.subr.bf16.mxu0 0
      %1698 = vmatpush2.bf16.msra.mxu0 0
      %1699 = vmatprep.mubr.bf16.mxu0 0
      %1700 = vmatmul.mubr.bf16.gmra.mxu0 %v1620
      %v1701 = vpop.f32.mrf.mxu0
      %v1702 = vadd.f32 0.0, %v1701
      %v1703 = vpop.f32.mrf.mxu0
      %v1704 = vpop.f32.mrf.mxu0
      %v1705 = vadd.f32 0.0, %v1704
      %v1706 = vpop.f32.mrf.mxu0
      %1707 = vmatprep.mubr.bf16.mxu0 0
      %1708 = vmatmul.mubr.bf16.gmra.mxu0 %v1623
      %v1709 = vpop.f32.mrf.mxu0
      %v1710 = vadd.f32 0.0, %v1709
      %v1711 = vpop.f32.mrf.mxu0
      %v1712 = vpop.f32.mrf.mxu0
      %v1713 = vadd.f32 0.0, %v1712
      %v1714 = vpop.f32.mrf.mxu0
      %1715 = vmatprep.mubr.bf16.mxu0 0
      %1716 = vmatmul.mubr.bf16.gmra.mxu0 %v1626
      %v1717 = vpop.f32.mrf.mxu0
      %v1718 = vadd.f32 0.0, %v1717
      %v1719 = vpop.f32.mrf.mxu0
      %v1720 = vpop.f32.mrf.mxu0
      %v1721 = vadd.f32 0.0, %v1720
      %v1722 = vpop.f32.mrf.mxu0
      %1723 = vmatprep.mubr.bf16.mxu0 0
      %1724 = vmatmul.mubr.bf16.gmra.mxu0 %v1629
      %v1725 = vpop.f32.mrf.mxu0
      %v1726 = vadd.f32 0.0, %v1725
      %v1727 = vpop.f32.mrf.mxu0
      %v1728 = vpop.f32.mrf.mxu0
      %v1729 = vadd.f32 0.0, %v1728
      %v1730 = vpop.f32.mrf.mxu0
      %1731 = vmatprep.mubr.bf16.mxu0 0
      %1732 = vmatmul.mubr.bf16.gmra.mxu0 %v1632
      %v1733 = vpop.f32.mrf.mxu0
      %v1734 = vadd.f32 0.0, %v1733
      %v1735 = vpop.f32.mrf.mxu0
      %v1736 = vpop.f32.mrf.mxu0
      %v1737 = vadd.f32 0.0, %v1736
      %v1738 = vpop.f32.mrf.mxu0
      %1739 = vmatprep.mubr.bf16.mxu0 0
      %1740 = vmatmul.mubr.bf16.gmra.mxu0 %v1635
      %v1741 = vpop.f32.mrf.mxu0
      %v1742 = vadd.f32 0.0, %v1741
      %v1743 = vpop.f32.mrf.mxu0
      %v1744 = vpop.f32.mrf.mxu0
      %v1745 = vadd.f32 0.0, %v1744
      %v1746 = vpop.f32.mrf.mxu0
      %1747 = vmatprep.mubr.bf16.mxu0 0
      %1748 = vmatmul.mubr.bf16.gmra.mxu0 %v1638
      %v1749 = vpop.f32.mrf.mxu0
      %v1750 = vadd.f32 0.0, %v1749
      %v1751 = vpop.f32.mrf.mxu0
      %v1752 = vpop.f32.mrf.mxu0
      %v1753 = vadd.f32 0.0, %v1752
      %v1754 = vpop.f32.mrf.mxu0
      %1755 = vmatprep.mubr.bf16.mxu0 0
      %1756 = vmatmul.mubr.bf16.gmra.mxu0 %v1641
      %v1757 = vpop.f32.mrf.mxu0
      %v1758 = vadd.f32 0.0, %v1757
      %v1759 = vpop.f32.mrf.mxu0
      %v1760 = vpop.f32.mrf.mxu0
      %v1761 = vadd.f32 0.0, %v1760
      %v1762 = vpop.f32.mrf.mxu0
      %1763 = vmatprep.mubr.bf16.mxu0 0
      %1764 = vmatmul.mubr.bf16.gmra.mxu0 %v1644
      %v1765 = vpop.f32.mrf.mxu0
      %v1766 = vadd.f32 0.0, %v1765
      %v1767 = vpop.f32.mrf.mxu0
      %v1768 = vpop.f32.mrf.mxu0
      %v1769 = vadd.f32 0.0, %v1768
      %v1770 = vpop.f32.mrf.mxu0
      %1771 = vmatprep.mubr.bf16.mxu0 0
      %1772 = vmatmul.mubr.bf16.gmra.mxu0 %v1647
      %v1773 = vpop.f32.mrf.mxu0
      %v1774 = vadd.f32 0.0, %v1773
      %v1775 = vpop.f32.mrf.mxu0
      %v1776 = vpop.f32.mrf.mxu0
      %v1777 = vadd.f32 0.0, %v1776
      %v1778 = vpop.f32.mrf.mxu0
      %1779 = vmatprep.mubr.bf16.mxu0 0
      %1780 = vmatmul.mubr.bf16.gmra.mxu0 %v1650
      %v1781 = vpop.f32.mrf.mxu0
      %v1782 = vadd.f32 0.0, %v1781
      %v1783 = vpop.f32.mrf.mxu0
      %v1784 = vpop.f32.mrf.mxu0
      %v1785 = vadd.f32 0.0, %v1784
      %v1786 = vpop.f32.mrf.mxu0
      %1787 = vmatprep.mubr.bf16.mxu0 0
      %1788 = vmatmul.mubr.bf16.gmra.mxu0 %v1653
      %v1789 = vpop.f32.mrf.mxu0
      %v1790 = vadd.f32 0.0, %v1789
      %v1791 = vpop.f32.mrf.mxu0
      %v1792 = vpop.f32.mrf.mxu0
      %v1793 = vadd.f32 0.0, %v1792
      %v1794 = vpop.f32.mrf.mxu0
      %1795 = vmatprep.mubr.bf16.mxu0 0
      %1796 = vmatmul.mubr.bf16.gmra.mxu0 %v1656
      %v1797 = vpop.f32.mrf.mxu0
      %v1798 = vadd.f32 0.0, %v1797
      %v1799 = vpop.f32.mrf.mxu0
      %v1800 = vpop.f32.mrf.mxu0
      %v1801 = vadd.f32 0.0, %v1800
      %v1802 = vpop.f32.mrf.mxu0
      %1803 = vmatprep.mubr.bf16.mxu0 0
      %1804 = vmatmul.mubr.bf16.gmra.mxu0 %v1659
      %v1805 = vpop.f32.mrf.mxu0
      %v1806 = vadd.f32 0.0, %v1805
      %v1807 = vpop.f32.mrf.mxu0
      %v1808 = vpop.f32.mrf.mxu0
      %v1809 = vadd.f32 0.0, %v1808
      %v1810 = vpop.f32.mrf.mxu0
      %1811 = vmatprep.mubr.bf16.mxu0 0
      %1812 = vmatmul.mubr.bf16.gmra.mxu0 %v1662
      %v1813 = vpop.f32.mrf.mxu0
      %v1814 = vadd.f32 0.0, %v1813
      %v1815 = vpop.f32.mrf.mxu0
      %v1816 = vpop.f32.mrf.mxu0
      %v1817 = vadd.f32 0.0, %v1816
      %v1818 = vpop.f32.mrf.mxu0
      %1819 = vmatprep.mubr.bf16.mxu0 0
      %1820 = vmatmul.mubr.bf16.gmra.mxu0 %v1665
      %v1821 = vpop.f32.mrf.mxu0
      %v1822 = vadd.f32 0.0, %v1821
      %v1823 = vpop.f32.mrf.mxu0
      %v1824 = vpop.f32.mrf.mxu0
      %v1825 = vadd.f32 0.0, %v1824
      %v1826 = vpop.f32.mrf.mxu0
      %1827 = vdwg.mxu0
      %v1828 = vld [vmem:[%s459] sm:$0xff]
      %v1829 = vld [vmem:[%s459 + $0x8] sm:$0xff]
      %v1830 = vld [vmem:[%s459 + $0x10] sm:$0xff]
      %v1831 = vld [vmem:[%s459 + $0x18] sm:$0xff]
      %v1832 = vld [vmem:[%s459 + $0x20] sm:$0xff]
      %v1833 = vld [vmem:[%s459 + $0x28] sm:$0xff]
      %v1834 = vld [vmem:[%s459 + $0x30] sm:$0xff]
      %v1835 = vld [vmem:[%s459 + $0x38] sm:$0xff]
      %v1836 = vld [vmem:[%s459 + $0x40] sm:$0xff]
      %v1837 = vld [vmem:[%s459 + $0x48] sm:$0xff]
      %v1838 = vld [vmem:[%s459 + $0x50] sm:$0xff]
      %v1839 = vld [vmem:[%s459 + $0x58] sm:$0xff]
      %v1840 = vld [vmem:[%s459 + $0x60] sm:$0xff]
      %v1841 = vld [vmem:[%s459 + $0x68] sm:$0xff]
      %v1842 = vld [vmem:[%s459 + $0x70] sm:$0xff]
      %v1843 = vld [vmem:[%s459 + $0x78] sm:$0xff]
      %v1844 = vld [vmem:[%s459 + $0x80] sm:$0xff]
      %v1845 = vld [vmem:[%s459 + $0x88] sm:$0xff]
      %v1846 = vld [vmem:[%s459 + $0x90] sm:$0xff]
      %v1847 = vld [vmem:[%s459 + $0x98] sm:$0xff]
      %v1848 = vld [vmem:[%s459 + $0xa0] sm:$0xff]
      %v1849 = vld [vmem:[%s459 + $0xa8] sm:$0xff]
      %v1850 = vld [vmem:[%s459 + $0xb0] sm:$0xff]
      %v1851 = vld [vmem:[%s459 + $0xb8] sm:$0xff]
      %v1852 = vld [vmem:[%s459 + $0xc0] sm:$0xff]
      %v1853 = vld [vmem:[%s459 + $0xc8] sm:$0xff]
      %v1854 = vld [vmem:[%s459 + $0xd0] sm:$0xff]
      %v1855 = vld [vmem:[%s459 + $0xd8] sm:$0xff]
      %v1856 = vld [vmem:[%s459 + $0xe0] sm:$0xff]
      %v1857 = vld [vmem:[%s459 + $0xe8] sm:$0xff]
      %v1858 = vld [vmem:[%s459 + $0xf0] sm:$0xff]
      %v1859 = vld [vmem:[%s459 + $0xf8] sm:$0xff]
      %v1860 = vld [vmem:[%s8] sm:$0x1]
      %1862 = vset.pattern.permute.xlu0 0
      %1863 = vperm.xlu0 %1862, %v1828
      %v1864 = vpop.permute.xlu0 %1863
      %1867 = vset.pattern.permute.xlu0 0
      %1868 = vperm.xlu0 %1867, %v1829
      %v1869 = vpop.permute.xlu0 %1868
      %1872 = vset.pattern.permute.xlu0 0
      %1873 = vperm.xlu0 %1872, %v1830
      %v1874 = vpop.permute.xlu0 %1873
      %1877 = vset.pattern.permute.xlu0 0
      %1878 = vperm.xlu0 %1877, %v1831
      %v1879 = vpop.permute.xlu0 %1878
      %1882 = vset.pattern.permute.xlu0 0
      %1883 = vperm.xlu0 %1882, %v1832
      %v1884 = vpop.permute.xlu0 %1883
      %1887 = vset.pattern.permute.xlu0 0
      %1888 = vperm.xlu0 %1887, %v1833
      %v1889 = vpop.permute.xlu0 %1888
      %1892 = vset.pattern.permute.xlu0 0
      %1893 = vperm.xlu0 %1892, %v1834
      %v1894 = vpop.permute.xlu0 %1893
      %1897 = vset.pattern.permute.xlu0 0
      %1898 = vperm.xlu0 %1897, %v1835
      %v1899 = vpop.permute.xlu0 %1898
      %1902 = vset.pattern.permute.xlu0 0
      %1903 = vperm.xlu0 %1902, %v1836
      %v1904 = vpop.permute.xlu0 %1903
      %1907 = vset.pattern.permute.xlu0 0
      %1908 = vperm.xlu0 %1907, %v1837
      %v1909 = vpop.permute.xlu0 %1908
      %1912 = vset.pattern.permute.xlu0 0
      %1913 = vperm.xlu0 %1912, %v1838
      %v1914 = vpop.permute.xlu0 %1913
      %1917 = vset.pattern.permute.xlu0 0
      %1918 = vperm.xlu0 %1917, %v1839
      %v1919 = vpop.permute.xlu0 %1918
      %1922 = vset.pattern.permute.xlu0 0
      %1923 = vperm.xlu0 %1922, %v1840
      %v1924 = vpop.permute.xlu0 %1923
      %1927 = vset.pattern.permute.xlu0 0
      %1928 = vperm.xlu0 %1927, %v1841
      %v1929 = vpop.permute.xlu0 %1928
      %1932 = vset.pattern.permute.xlu0 0
      %1933 = vperm.xlu0 %1932, %v1842
      %v1934 = vpop.permute.xlu0 %1933
      %1937 = vset.pattern.permute.xlu0 0
      %1938 = vperm.xlu0 %1937, %v1843
      %v1939 = vpop.permute.xlu0 %1938
      %1942 = vset.pattern.permute.xlu0 0
      %1943 = vperm.xlu0 %1942, %v1844
      %v1944 = vpop.permute.xlu0 %1943
      %1947 = vset.pattern.permute.xlu0 0
      %1948 = vperm.xlu0 %1947, %v1845
      %v1949 = vpop.permute.xlu0 %1948
      %1952 = vset.pattern.permute.xlu0 0
      %1953 = vperm.xlu0 %1952, %v1846
      %v1954 = vpop.permute.xlu0 %1953
      %1957 = vset.pattern.permute.xlu0 0
      %1958 = vperm.xlu0 %1957, %v1847
      %v1959 = vpop.permute.xlu0 %1958
      %1962 = vset.pattern.permute.xlu0 0
      %1963 = vperm.xlu0 %1962, %v1848
      %v1964 = vpop.permute.xlu0 %1963
      %1967 = vset.pattern.permute.xlu0 0
      %1968 = vperm.xlu0 %1967, %v1849
      %v1969 = vpop.permute.xlu0 %1968
      %1972 = vset.pattern.permute.xlu0 0
      %1973 = vperm.xlu0 %1972, %v1850
      %v1974 = vpop.permute.xlu0 %1973
      %1977 = vset.pattern.permute.xlu0 0
      %1978 = vperm.xlu0 %1977, %v1851
      %v1979 = vpop.permute.xlu0 %1978
      %1982 = vset.pattern.permute.xlu0 0
      %1983 = vperm.xlu0 %1982, %v1852
      %v1984 = vpop.permute.xlu0 %1983
      %1987 = vset.pattern.permute.xlu0 0
      %1988 = vperm.xlu0 %1987, %v1853
      %v1989 = vpop.permute.xlu0 %1988
      %1992 = vset.pattern.permute.xlu0 0
      %1993 = vperm.xlu0 %1992, %v1854
      %v1994 = vpop.permute.xlu0 %1993
      %1997 = vset.pattern.permute.xlu0 0
      %1998 = vperm.xlu0 %1997, %v1855
      %v1999 = vpop.permute.xlu0 %1998
      %2002 = vset.pattern.permute.xlu0 0
      %2003 = vperm.xlu0 %2002, %v1856
      %v2004 = vpop.permute.xlu0 %2003
      %2007 = vset.pattern.permute.xlu0 0
      %2008 = vperm.xlu0 %2007, %v1857
      %v2009 = vpop.permute.xlu0 %2008
      %2012 = vset.pattern.permute.xlu0 0
      %2013 = vperm.xlu0 %2012, %v1858
      %v2014 = vpop.permute.xlu0 %2013
      %2017 = vset.pattern.permute.xlu0 0
      %2018 = vperm.xlu0 %2017, %v1859
      %v2019 = vpop.permute.xlu0 %2018
      %v2022 = vlaneseq
      %v2023 = vshrl.u32 %v2022, 7
      %v2024 = vsub.s32 0, %v2023
      %v2025 = vrot.slane %v1860, %v2024
      %v2027 = vmul.f32 %v1864, %v2025
      %v2028 = vmul.f32 %v1869, %v2025
      %v2029 = vmul.f32 %v1874, %v2025
      %v2030 = vmul.f32 %v1879, %v2025
      %v2031 = vmul.f32 %v1884, %v2025
      %v2032 = vmul.f32 %v1889, %v2025
      %v2033 = vmul.f32 %v1894, %v2025
      %v2034 = vmul.f32 %v1899, %v2025
      %v2035 = vmul.f32 %v1904, %v2025
      %v2036 = vmul.f32 %v1909, %v2025
      %v2037 = vmul.f32 %v1914, %v2025
      %v2038 = vmul.f32 %v1919, %v2025
      %v2039 = vmul.f32 %v1924, %v2025
      %v2040 = vmul.f32 %v1929, %v2025
      %v2041 = vmul.f32 %v1934, %v2025
      %v2042 = vmul.f32 %v1939, %v2025
      %v2043 = vmul.f32 %v1944, %v2025
      %v2044 = vmul.f32 %v1949, %v2025
      %v2045 = vmul.f32 %v1954, %v2025
      %v2046 = vmul.f32 %v1959, %v2025
      %v2047 = vmul.f32 %v1964, %v2025
      %v2048 = vmul.f32 %v1969, %v2025
      %v2049 = vmul.f32 %v1974, %v2025
      %v2050 = vmul.f32 %v1979, %v2025
      %v2051 = vmul.f32 %v1984, %v2025
      %v2052 = vmul.f32 %v1989, %v2025
      %v2053 = vmul.f32 %v1994, %v2025
      %v2054 = vmul.f32 %v1999, %v2025
      %v2055 = vmul.f32 %v2004, %v2025
      %v2056 = vmul.f32 %v2009, %v2025
      %v2057 = vmul.f32 %v2014, %v2025
      %v2058 = vmul.f32 %v2019, %v2025
      %2091 = vrot.lane.b32.xlu0 %v2027, 64
      %v2092 = vpop.permute.xlu0 %2091
      %2093 = vrot.lane.b32.xlu0 %v2028, 64
      %v2094 = vpop.permute.xlu0 %2093
      %2095 = vrot.lane.b32.xlu0 %v2029, 64
      %v2096 = vpop.permute.xlu0 %2095
      %2097 = vrot.lane.b32.xlu0 %v2030, 64
      %v2098 = vpop.permute.xlu0 %2097
      %2099 = vrot.lane.b32.xlu0 %v2031, 64
      %v2100 = vpop.permute.xlu0 %2099
      %2101 = vrot.lane.b32.xlu0 %v2032, 64
      %v2102 = vpop.permute.xlu0 %2101
      %2103 = vrot.lane.b32.xlu0 %v2033, 64
      %v2104 = vpop.permute.xlu0 %2103
      %2105 = vrot.lane.b32.xlu0 %v2034, 64
      %v2106 = vpop.permute.xlu0 %2105
      %2107 = vrot.lane.b32.xlu0 %v2035, 64
      %v2108 = vpop.permute.xlu0 %2107
      %2109 = vrot.lane.b32.xlu0 %v2036, 64
      %v2110 = vpop.permute.xlu0 %2109
      %2111 = vrot.lane.b32.xlu0 %v2037, 64
      %v2112 = vpop.permute.xlu0 %2111
      %2113 = vrot.lane.b32.xlu0 %v2038, 64
      %v2114 = vpop.permute.xlu0 %2113
      %2115 = vrot.lane.b32.xlu0 %v2039, 64
      %v2116 = vpop.permute.xlu0 %2115
      %2117 = vrot.lane.b32.xlu0 %v2040, 64
      %v2118 = vpop.permute.xlu0 %2117
      %2119 = vrot.lane.b32.xlu0 %v2041, 64
      %v2120 = vpop.permute.xlu0 %2119
      %2121 = vrot.lane.b32.xlu0 %v2042, 64
      %v2122 = vpop.permute.xlu0 %2121
      %2123 = vrot.lane.b32.xlu0 %v2043, 64
      %v2124 = vpop.permute.xlu0 %2123
      %2125 = vrot.lane.b32.xlu0 %v2044, 64
      %v2126 = vpop.permute.xlu0 %2125
      %2127 = vrot.lane.b32.xlu0 %v2045, 64
      %v2128 = vpop.permute.xlu0 %2127
      %2129 = vrot.lane.b32.xlu0 %v2046, 64
      %v2130 = vpop.permute.xlu0 %2129
      %2131 = vrot.lane.b32.xlu0 %v2047, 64
      %v2132 = vpop.permute.xlu0 %2131
      %2133 = vrot.lane.b32.xlu0 %v2048, 64
      %v2134 = vpop.permute.xlu0 %2133
      %2135 = vrot.lane.b32.xlu0 %v2049, 64
      %v2136 = vpop.permute.xlu0 %2135
      %2137 = vrot.lane.b32.xlu0 %v2050, 64
      %v2138 = vpop.permute.xlu0 %2137
      %2139 = vrot.lane.b32.xlu0 %v2051, 64
      %v2140 = vpop.permute.xlu0 %2139
      %2141 = vrot.lane.b32.xlu0 %v2052, 64
      %v2142 = vpop.permute.xlu0 %2141
      %2143 = vrot.lane.b32.xlu0 %v2053, 64
      %v2144 = vpop.permute.xlu0 %2143
      %2145 = vrot.lane.b32.xlu0 %v2054, 64
      %v2146 = vpop.permute.xlu0 %2145
      %2147 = vrot.lane.b32.xlu0 %v2055, 64
      %v2148 = vpop.permute.xlu0 %2147
      %2149 = vrot.lane.b32.xlu0 %v2056, 64
      %v2150 = vpop.permute.xlu0 %2149
      %2151 = vrot.lane.b32.xlu0 %v2057, 64
      %v2152 = vpop.permute.xlu0 %2151
      %2153 = vrot.lane.b32.xlu0 %v2058, 64
      %v2154 = vpop.permute.xlu0 %2153
      %v2187 = vsub.f32 %v1702, %v2092
      %v2188 = vsub.f32 %v1705, %v2094
      %v2189 = vsub.f32 %v1710, %v2096
      %v2190 = vsub.f32 %v1713, %v2098
      %v2191 = vsub.f32 %v1718, %v2100
      %v2192 = vsub.f32 %v1721, %v2102
      %v2193 = vsub.f32 %v1726, %v2104
      %v2194 = vsub.f32 %v1729, %v2106
      %v2195 = vsub.f32 %v1734, %v2108
      %v2196 = vsub.f32 %v1737, %v2110
      %v2197 = vsub.f32 %v1742, %v2112
      %v2198 = vsub.f32 %v1745, %v2114
      %v2199 = vsub.f32 %v1750, %v2116
      %v2200 = vsub.f32 %v1753, %v2118
      %v2201 = vsub.f32 %v1758, %v2120
      %v2202 = vsub.f32 %v1761, %v2122
      %v2203 = vsub.f32 %v1766, %v2124
      %v2204 = vsub.f32 %v1769, %v2126
      %v2205 = vsub.f32 %v1774, %v2128
      %v2206 = vsub.f32 %v1777, %v2130
      %v2207 = vsub.f32 %v1782, %v2132
      %v2208 = vsub.f32 %v1785, %v2134
      %v2209 = vsub.f32 %v1790, %v2136
      %v2210 = vsub.f32 %v1793, %v2138
      %v2211 = vsub.f32 %v1798, %v2140
      %v2212 = vsub.f32 %v1801, %v2142
      %v2213 = vsub.f32 %v1806, %v2144
      %v2214 = vsub.f32 %v1809, %v2146
      %v2215 = vsub.f32 %v1814, %v2148
      %v2216 = vsub.f32 %v1817, %v2150
      %v2217 = vsub.f32 %v1822, %v2152
      %v2218 = vsub.f32 %v1825, %v2154
      %v2219 = vld [vmem:[%s9] sm:$0x1]
      %v2221 = vlaneseq
      %v2222 = vshrl.u32 %v2221, 7
      %v2223 = vsub.s32 0, %v2222
      %v2224 = vrot.slane %v2219, %v2223
      %2225 = vrot.lane.b32.xlu0 %v2224, 64
      %v2226 = vpop.permute.xlu0 %2225
      %v2228 = vadd.f32 %v2187, %v2226
      %v2229 = vadd.f32 %v2188, %v2226
      %v2230 = vadd.f32 %v2189, %v2226
      %v2231 = vadd.f32 %v2190, %v2226
      %v2232 = vadd.f32 %v2191, %v2226
      %v2233 = vadd.f32 %v2192, %v2226
      %v2234 = vadd.f32 %v2193, %v2226
      %v2235 = vadd.f32 %v2194, %v2226
      %v2236 = vadd.f32 %v2195, %v2226
      %v2237 = vadd.f32 %v2196, %v2226
      %v2238 = vadd.f32 %v2197, %v2226
      %v2239 = vadd.f32 %v2198, %v2226
      %v2240 = vadd.f32 %v2199, %v2226
      %v2241 = vadd.f32 %v2200, %v2226
      %v2242 = vadd.f32 %v2201, %v2226
      %v2243 = vadd.f32 %v2202, %v2226
      %v2244 = vadd.f32 %v2203, %v2226
      %v2245 = vadd.f32 %v2204, %v2226
      %v2246 = vadd.f32 %v2205, %v2226
      %v2247 = vadd.f32 %v2206, %v2226
      %v2248 = vadd.f32 %v2207, %v2226
      %v2249 = vadd.f32 %v2208, %v2226
      %v2250 = vadd.f32 %v2209, %v2226
      %v2251 = vadd.f32 %v2210, %v2226
      %v2252 = vadd.f32 %v2211, %v2226
      %v2253 = vadd.f32 %v2212, %v2226
      %v2254 = vadd.f32 %v2213, %v2226
      %v2255 = vadd.f32 %v2214, %v2226
      %v2256 = vadd.f32 %v2215, %v2226
      %v2257 = vadd.f32 %v2216, %v2226
      %v2258 = vadd.f32 %v2217, %v2226
      %v2259 = vadd.f32 %v2218, %v2226
      %v2260 = vand.u32 2147483647, %v2228
      %vm2261 = vcmp.le.f32.partialorder %v2260, 0.7853982
      %vm2262 = vcmp.lt.s32.totalorder %v2228, 0
      %v2263 = vand.u32 %v2228, 2139095040
      %v2264 = vshrl.u32 %v2263, 23
      %v2265 = vsub.s32 %v2264, 127
      %v2266 = vand.u32 2147483647, %v2228
      %v2267 = vand.u32 %v2266, 8388607
      %v2268 = vor.u32 %v2267, 8388608
      %v2269 = vsub.s32 0, %v2268
      %v2270 = vadd.s32 %v2265, 1
      %vm2271 = vcmp.gt.s32.totalorder %v2270, 0
      %v2272 = vsel %vm2271, %v2270, 0
      %v2273 = vshrl.u32 %v2272, 5
      %v2274 = vand.u32 %v2272, 31
      %v2275 = vsub.s32 32, %v2274
      %v2276 = vshrl.u32 683565275, %v2275
      %v2277 = vshll.u32 683565275, %v2274
      %v2278 = vshrl.u32 2475754826, %v2275
      %v2279 = vor.u32 %v2277, %v2278
      %v2280 = vshll.u32 2475754826, %v2274
      %v2281 = vshrl.u32 2131351028, %v2275
      %v2282 = vor.u32 %v2280, %v2281
      %v2283 = vshll.u32 2131351028, %v2274
      %v2284 = vshrl.u32 2102212464, %v2275
      %v2285 = vor.u32 %v2283, %v2284
      %v2286 = vshll.u32 2102212464, %v2274
      %v2287 = vshrl.u32 920167782, %v2275
      %v2288 = vor.u32 %v2286, %v2287
      %v2289 = vshll.u32 920167782, %v2274
      %v2290 = vshrl.u32 1326507024, %v2275
      %v2291 = vor.u32 %v2289, %v2290
      %vm2292 = vcmp.lt.s32.totalorder %v2273, 1
      %vm2293 = vcmp.lt.s32.totalorder %v2273, 2
      %vm2294 = vcmp.lt.s32.totalorder %v2273, 3
      %vm2295 = vcmp.lt.s32.totalorder %v2273, 4
      %v2296 = vsel %vm2292, %v2276, %v2279
      %v2297 = vsel %vm2295, %v2285, 2102212464
      %v2298 = vsel %vm2294, %v2282, %v2297
      %v2299 = vsel %vm2293, %v2296, %v2298
      %v2300 = vsel %vm2292, %v2279, %v2282
      %v2301 = vsel %vm2295, %v2288, 920167782
      %v2302 = vsel %vm2294, %v2285, %v2301
      %v2303 = vsel %vm2293, %v2300, %v2302
      %v2304 = vsel %vm2292, %v2282, %v2285
      %v2305 = vsel %vm2295, %v2291, 1326507024
      %v2306 = vsel %vm2294, %v2288, %v2305
      %v2307 = vsel %vm2293, %v2304, %v2306
      %v2308 = vshll.u32 %v2268, 8
      %v2309 = vmul.u32.u64.compose %v2308, %v2307
      %v2310 = vextract.low.u32 %v2309
      %v2311 = vextract.high.u32 %v2309
      %v2312 = vmul.u32.u64.compose %v2308, %v2303
      %v2313 = vextract.low.u32 %v2312
      %v2314 = vextract.high.u32 %v2312
      %v2315 = vmul.u32 %v2308, %v2299
      %v2316 = vadd.s32 %v2311, %v2313
      %vm2317 = vc.u32 %v2311, %v2313
      %v2318 = vadd.s32 %v2314, 1
      %v2319 = vsel %vm2317, %v2318, %v2314
      %v2320 = vadd.s32 %v2315, %v2319
      %v2321 = vadd.s32 %v2320, 536870912
      %v2322 = vshrl.u32 %v2321, 30
      %v2323 = vshll.u32 %v2322, 30
      %v2324 = vsub.s32 %v2320, %v2323
      %vm2325 = vcmp.lt.s32.totalorder %v2324, 0
      %v2326 = vsub.s32 0, %v2324
      %v2327 = vsel %vm2325, %v2326, %v2324
      %v2328 = vclz %v2327
      %v2329 = vsub.s32 %v2328, 2
      %vm2330 = vcmp.gt.s32.totalorder 0, %v2329
      %v2331 = vsel %vm2330, 0, %v2329
      %v2332 = vsub.s32 32, %v2331
      %v2333 = vshll.u32 %v2324, %v2331
      %v2334 = vshrl.u32 %v2316, %v2332
      %v2335 = vor.u32 %v2333, %v2334
      %v2336 = vsub.s32 4294967266, %v2331
      %v2337 = vadd.s32 %v2336, 127
      %v2338 = vshll.u32 %v2337, 23
      %v2339 = vor.u32 4788187, %v2338
      %v2340 = vand.u32 2147483647, %v2339
      %v2342 = vcvt.s32.f32 %v2335
      %v2343 = vmul.f32 %v2342, %v2340
      %v2344 = vxor.u32 %v2343, 2147483648
      %v2345 = vsel %vm2262, %v2344, %v2343
      %v2346 = vsub.s32 4, %v2322
      %v2347 = vsel %vm2262, %v2346, %v2322
      %v2348 = vsel %vm2261, %v2228, %v2345
      %v2349 = vsel %vm2261, 0, %v2347
      %v2350 = vcosq.f32.pop %v2348
      %v2351 = vsinq.f32.pop %v2348
      %vm2352 = vweird.f32 %v2228
      %v2353 = vand.u32 %v2349, 3
      %vm2354 = vcmp.lt.s32.totalorder %v2353, 2
      %vm2355 = vcmp.eq.s32.totalorder %v2353, 0
      %v2356 = vxor.u32 %v2351, 2147483648
      %v2357 = vsel %vm2355, %v2350, %v2356
      %vm2358 = vcmp.eq.s32.totalorder %v2353, 2
      %v2359 = vxor.u32 %v2350, 2147483648
      %v2360 = vsel %vm2358, %v2359, %v2351
      %v2361 = vsel %vm2354, %v2357, %v2360
      %v2362 = vsel %vm2352, nan, %v2361
      %v2363 = vand.u32 2147483647, %v2229
      %vm2364 = vcmp.le.f32.partialorder %v2363, 0.7853982
      %vm2365 = vcmp.lt.s32.totalorder %v2229, 0
      %v2366 = vand.u32 %v2229, 2139095040
      %v2367 = vshrl.u32 %v2366, 23
      %v2368 = vsub.s32 %v2367, 127
      %v2369 = vand.u32 2147483647, %v2229
      %v2370 = vand.u32 %v2369, 8388607
      %v2371 = vor.u32 %v2370, 8388608
      %v2372 = vsub.s32 0, %v2371
      %v2373 = vadd.s32 %v2368, 1
      %vm2374 = vcmp.gt.s32.totalorder %v2373, 0
      %v2375 = vsel %vm2374, %v2373, 0
      %v2376 = vshrl.u32 %v2375, 5
      %v2377 = vand.u32 %v2375, 31
      %v2378 = vsub.s32 32, %v2377
      %v2379 = vshrl.u32 683565275, %v2378
      %v2380 = vshll.u32 683565275, %v2377
      %v2381 = vshrl.u32 2475754826, %v2378
      %v2382 = vor.u32 %v2380, %v2381
      %v2383 = vshll.u32 2475754826, %v2377
      %v2384 = vshrl.u32 2131351028, %v2378
      %v2385 = vor.u32 %v2383, %v2384
      %v2386 = vshll.u32 2131351028, %v2377
      %v2387 = vshrl.u32 2102212464, %v2378
      %v2388 = vor.u32 %v2386, %v2387
      %v2389 = vshll.u32 2102212464, %v2377
      %v2390 = vshrl.u32 920167782, %v2378
      %v2391 = vor.u32 %v2389, %v2390
      %v2392 = vshll.u32 920167782, %v2377
      %v2393 = vshrl.u32 1326507024, %v2378
      %v2394 = vor.u32 %v2392, %v2393
      %vm2395 = vcmp.lt.s32.totalorder %v2376, 1
      %vm2396 = vcmp.lt.s32.totalorder %v2376, 2
      %vm2397 = vcmp.lt.s32.totalorder %v2376, 3
      %vm2398 = vcmp.lt.s32.totalorder %v2376, 4
      %v2399 = vsel %vm2395, %v2379, %v2382
      %v2400 = vsel %vm2398, %v2388, 2102212464
      %v2401 = vsel %vm2397, %v2385, %v2400
      %v2402 = vsel %vm2396, %v2399, %v2401
      %v2403 = vsel %vm2395, %v2382, %v2385
      %v2404 = vsel %vm2398, %v2391, 920167782
      %v2405 = vsel %vm2397, %v2388, %v2404
      %v2406 = vsel %vm2396, %v2403, %v2405
      %v2407 = vsel %vm2395, %v2385, %v2388
      %v2408 = vsel %vm2398, %v2394, 1326507024
      %v2409 = vsel %vm2397, %v2391, %v2408
      %v2410 = vsel %vm2396, %v2407, %v2409
      %v2411 = vshll.u32 %v2371, 8
      %v2412 = vmul.u32.u64.compose %v2411, %v2410
      %v2413 = vextract.low.u32 %v2412
      %v2414 = vextract.high.u32 %v2412
      %v2415 = vmul.u32.u64.compose %v2411, %v2406
      %v2416 = vextract.low.u32 %v2415
      %v2417 = vextract.high.u32 %v2415
      %v2418 = vmul.u32 %v2411, %v2402
      %v2419 = vadd.s32 %v2414, %v2416
      %vm2420 = vc.u32 %v2414, %v2416
      %v2421 = vadd.s32 %v2417, 1
      %v2422 = vsel %vm2420, %v2421, %v2417
      %v2423 = vadd.s32 %v2418, %v2422
      %v2424 = vadd.s32 %v2423, 536870912
      %v2425 = vshrl.u32 %v2424, 30
      %v2426 = vshll.u32 %v2425, 30
      %v2427 = vsub.s32 %v2423, %v2426
      %vm2428 = vcmp.lt.s32.totalorder %v2427, 0
      %v2429 = vsub.s32 0, %v2427
      %v2430 = vsel %vm2428, %v2429, %v2427
      %v2431 = vclz %v2430
      %v2432 = vsub.s32 %v2431, 2
      %vm2433 = vcmp.gt.s32.totalorder 0, %v2432
      %v2434 = vsel %vm2433, 0, %v2432
      %v2435 = vsub.s32 32, %v2434
      %v2436 = vshll.u32 %v2427, %v2434
      %v2437 = vshrl.u32 %v2419, %v2435
      %v2438 = vor.u32 %v2436, %v2437
      %v2439 = vsub.s32 4294967266, %v2434
      %v2440 = vadd.s32 %v2439, 127
      %v2441 = vshll.u32 %v2440, 23
      %v2442 = vor.u32 4788187, %v2441
      %v2443 = vand.u32 2147483647, %v2442
      %v2445 = vcvt.s32.f32 %v2438
      %v2446 = vmul.f32 %v2445, %v2443
      %v2447 = vxor.u32 %v2446, 2147483648
      %v2448 = vsel %vm2365, %v2447, %v2446
      %v2449 = vsub.s32 4, %v2425
      %v2450 = vsel %vm2365, %v2449, %v2425
      %v2451 = vsel %vm2364, %v2229, %v2448
      %v2452 = vsel %vm2364, 0, %v2450
      %v2453 = vcosq.f32.pop %v2451
      %v2454 = vsinq.f32.pop %v2451
      %vm2455 = vweird.f32 %v2229
      %v2456 = vand.u32 %v2452, 3
      %vm2457 = vcmp.lt.s32.totalorder %v2456, 2
      %vm2458 = vcmp.eq.s32.totalorder %v2456, 0
      %v2459 = vxor.u32 %v2454, 2147483648
      %v2460 = vsel %vm2458, %v2453, %v2459
      %vm2461 = vcmp.eq.s32.totalorder %v2456, 2
      %v2462 = vxor.u32 %v2453, 2147483648
      %v2463 = vsel %vm2461, %v2462, %v2454
      %v2464 = vsel %vm2457, %v2460, %v2463
      %v2465 = vsel %vm2455, nan, %v2464
      %v2466 = vand.u32 2147483647, %v2230
      %vm2467 = vcmp.le.f32.partialorder %v2466, 0.7853982
      %vm2468 = vcmp.lt.s32.totalorder %v2230, 0
      %v2469 = vand.u32 %v2230, 2139095040
      %v2470 = vshrl.u32 %v2469, 23
      %v2471 = vsub.s32 %v2470, 127
      %v2472 = vand.u32 2147483647, %v2230
      %v2473 = vand.u32 %v2472, 8388607
      %v2474 = vor.u32 %v2473, 8388608
      %v2475 = vsub.s32 0, %v2474
      %v2476 = vadd.s32 %v2471, 1
      %vm2477 = vcmp.gt.s32.totalorder %v2476, 0
      %v2478 = vsel %vm2477, %v2476, 0
      %v2479 = vshrl.u32 %v2478, 5
      %v2480 = vand.u32 %v2478, 31
      %v2481 = vsub.s32 32, %v2480
      %v2482 = vshrl.u32 683565275, %v2481
      %v2483 = vshll.u32 683565275, %v2480
      %v2484 = vshrl.u32 2475754826, %v2481
      %v2485 = vor.u32 %v2483, %v2484
      %v2486 = vshll.u32 2475754826, %v2480
      %v2487 = vshrl.u32 2131351028, %v2481
      %v2488 = vor.u32 %v2486, %v2487
      %v2489 = vshll.u32 2131351028, %v2480
      %v2490 = vshrl.u32 2102212464, %v2481
      %v2491 = vor.u32 %v2489, %v2490
      %v2492 = vshll.u32 2102212464, %v2480
      %v2493 = vshrl.u32 920167782, %v2481
      %v2494 = vor.u32 %v2492, %v2493
      %v2495 = vshll.u32 920167782, %v2480
      %v2496 = vshrl.u32 1326507024, %v2481
      %v2497 = vor.u32 %v2495, %v2496
      %vm2498 = vcmp.lt.s32.totalorder %v2479, 1
      %vm2499 = vcmp.lt.s32.totalorder %v2479, 2
      %vm2500 = vcmp.lt.s32.totalorder %v2479, 3
      %vm2501 = vcmp.lt.s32.totalorder %v2479, 4
      %v2502 = vsel %vm2498, %v2482, %v2485
      %v2503 = vsel %vm2501, %v2491, 2102212464
      %v2504 = vsel %vm2500, %v2488, %v2503
      %v2505 = vsel %vm2499, %v2502, %v2504
      %v2506 = vsel %vm2498, %v2485, %v2488
      %v2507 = vsel %vm2501, %v2494, 920167782
      %v2508 = vsel %vm2500, %v2491, %v2507
      %v2509 = vsel %vm2499, %v2506, %v2508
      %v2510 = vsel %vm2498, %v2488, %v2491
      %v2511 = vsel %vm2501, %v2497, 1326507024
      %v2512 = vsel %vm2500, %v2494, %v2511
      %v2513 = vsel %vm2499, %v2510, %v2512
      %v2514 = vshll.u32 %v2474, 8
      %v2515 = vmul.u32.u64.compose %v2514, %v2513
      %v2516 = vextract.low.u32 %v2515
      %v2517 = vextract.high.u32 %v2515
      %v2518 = vmul.u32.u64.compose %v2514, %v2509
      %v2519 = vextract.low.u32 %v2518
      %v2520 = vextract.high.u32 %v2518
      %v2521 = vmul.u32 %v2514, %v2505
      %v2522 = vadd.s32 %v2517, %v2519
      %vm2523 = vc.u32 %v2517, %v2519
      %v2524 = vadd.s32 %v2520, 1
      %v2525 = vsel %vm2523, %v2524, %v2520
      %v2526 = vadd.s32 %v2521, %v2525
      %v2527 = vadd.s32 %v2526, 536870912
      %v2528 = vshrl.u32 %v2527, 30
      %v2529 = vshll.u32 %v2528, 30
      %v2530 = vsub.s32 %v2526, %v2529
      %vm2531 = vcmp.lt.s32.totalorder %v2530, 0
      %v2532 = vsub.s32 0, %v2530
      %v2533 = vsel %vm2531, %v2532, %v2530
      %v2534 = vclz %v2533
      %v2535 = vsub.s32 %v2534, 2
      %vm2536 = vcmp.gt.s32.totalorder 0, %v2535
      %v2537 = vsel %vm2536, 0, %v2535
      %v2538 = vsub.s32 32, %v2537
      %v2539 = vshll.u32 %v2530, %v2537
      %v2540 = vshrl.u32 %v2522, %v2538
      %v2541 = vor.u32 %v2539, %v2540
      %v2542 = vsub.s32 4294967266, %v2537
      %v2543 = vadd.s32 %v2542, 127
      %v2544 = vshll.u32 %v2543, 23
      %v2545 = vor.u32 4788187, %v2544
      %v2546 = vand.u32 2147483647, %v2545
      %v2548 = vcvt.s32.f32 %v2541
      %v2549 = vmul.f32 %v2548, %v2546
      %v2550 = vxor.u32 %v2549, 2147483648
      %v2551 = vsel %vm2468, %v2550, %v2549
      %v2552 = vsub.s32 4, %v2528
      %v2553 = vsel %vm2468, %v2552, %v2528
      %v2554 = vsel %vm2467, %v2230, %v2551
      %v2555 = vsel %vm2467, 0, %v2553
      %v2556 = vcosq.f32.pop %v2554
      %v2557 = vsinq.f32.pop %v2554
      %vm2558 = vweird.f32 %v2230
      %v2559 = vand.u32 %v2555, 3
      %vm2560 = vcmp.lt.s32.totalorder %v2559, 2
      %vm2561 = vcmp.eq.s32.totalorder %v2559, 0
      %v2562 = vxor.u32 %v2557, 2147483648
      %v2563 = vsel %vm2561, %v2556, %v2562
      %vm2564 = vcmp.eq.s32.totalorder %v2559, 2
      %v2565 = vxor.u32 %v2556, 2147483648
      %v2566 = vsel %vm2564, %v2565, %v2557
      %v2567 = vsel %vm2560, %v2563, %v2566
      %v2568 = vsel %vm2558, nan, %v2567
      %v2569 = vand.u32 2147483647, %v2231
      %vm2570 = vcmp.le.f32.partialorder %v2569, 0.7853982
      %vm2571 = vcmp.lt.s32.totalorder %v2231, 0
      %v2572 = vand.u32 %v2231, 2139095040
      %v2573 = vshrl.u32 %v2572, 23
      %v2574 = vsub.s32 %v2573, 127
      %v2575 = vand.u32 2147483647, %v2231
      %v2576 = vand.u32 %v2575, 8388607
      %v2577 = vor.u32 %v2576, 8388608
      %v2578 = vsub.s32 0, %v2577
      %v2579 = vadd.s32 %v2574, 1
      %vm2580 = vcmp.gt.s32.totalorder %v2579, 0
      %v2581 = vsel %vm2580, %v2579, 0
      %v2582 = vshrl.u32 %v2581, 5
      %v2583 = vand.u32 %v2581, 31
      %v2584 = vsub.s32 32, %v2583
      %v2585 = vshrl.u32 683565275, %v2584
      %v2586 = vshll.u32 683565275, %v2583
      %v2587 = vshrl.u32 2475754826, %v2584
      %v2588 = vor.u32 %v2586, %v2587
      %v2589 = vshll.u32 2475754826, %v2583
      %v2590 = vshrl.u32 2131351028, %v2584
      %v2591 = vor.u32 %v2589, %v2590
      %v2592 = vshll.u32 2131351028, %v2583
      %v2593 = vshrl.u32 2102212464, %v2584
      %v2594 = vor.u32 %v2592, %v2593
      %v2595 = vshll.u32 2102212464, %v2583
      %v2596 = vshrl.u32 920167782, %v2584
      %v2597 = vor.u32 %v2595, %v2596
      %v2598 = vshll.u32 920167782, %v2583
      %v2599 = vshrl.u32 1326507024, %v2584
      %v2600 = vor.u32 %v2598, %v2599
      %vm2601 = vcmp.lt.s32.totalorder %v2582, 1
      %vm2602 = vcmp.lt.s32.totalorder %v2582, 2
      %vm2603 = vcmp.lt.s32.totalorder %v2582, 3
      %vm2604 = vcmp.lt.s32.totalorder %v2582, 4
      %v2605 = vsel %vm2601, %v2585, %v2588
      %v2606 = vsel %vm2604, %v2594, 2102212464
      %v2607 = vsel %vm2603, %v2591, %v2606
      %v2608 = vsel %vm2602, %v2605, %v2607
      %v2609 = vsel %vm2601, %v2588, %v2591
      %v2610 = vsel %vm2604, %v2597, 920167782
      %v2611 = vsel %vm2603, %v2594, %v2610
      %v2612 = vsel %vm2602, %v2609, %v2611
      %v2613 = vsel %vm2601, %v2591, %v2594
      %v2614 = vsel %vm2604, %v2600, 1326507024
      %v2615 = vsel %vm2603, %v2597, %v2614
      %v2616 = vsel %vm2602, %v2613, %v2615
      %v2617 = vshll.u32 %v2577, 8
      %v2618 = vmul.u32.u64.compose %v2617, %v2616
      %v2619 = vextract.low.u32 %v2618
      %v2620 = vextract.high.u32 %v2618
      %v2621 = vmul.u32.u64.compose %v2617, %v2612
      %v2622 = vextract.low.u32 %v2621
      %v2623 = vextract.high.u32 %v2621
      %v2624 = vmul.u32 %v2617, %v2608
      %v2625 = vadd.s32 %v2620, %v2622
      %vm2626 = vc.u32 %v2620, %v2622
      %v2627 = vadd.s32 %v2623, 1
      %v2628 = vsel %vm2626, %v2627, %v2623
      %v2629 = vadd.s32 %v2624, %v2628
      %v2630 = vadd.s32 %v2629, 536870912
      %v2631 = vshrl.u32 %v2630, 30
      %v2632 = vshll.u32 %v2631, 30
      %v2633 = vsub.s32 %v2629, %v2632
      %vm2634 = vcmp.lt.s32.totalorder %v2633, 0
      %v2635 = vsub.s32 0, %v2633
      %v2636 = vsel %vm2634, %v2635, %v2633
      %v2637 = vclz %v2636
      %v2638 = vsub.s32 %v2637, 2
      %vm2639 = vcmp.gt.s32.totalorder 0, %v2638
      %v2640 = vsel %vm2639, 0, %v2638
      %v2641 = vsub.s32 32, %v2640
      %v2642 = vshll.u32 %v2633, %v2640
      %v2643 = vshrl.u32 %v2625, %v2641
      %v2644 = vor.u32 %v2642, %v2643
      %v2645 = vsub.s32 4294967266, %v2640
      %v2646 = vadd.s32 %v2645, 127
      %v2647 = vshll.u32 %v2646, 23
      %v2648 = vor.u32 4788187, %v2647
      %v2649 = vand.u32 2147483647, %v2648
      %v2651 = vcvt.s32.f32 %v2644
      %v2652 = vmul.f32 %v2651, %v2649
      %v2653 = vxor.u32 %v2652, 2147483648
      %v2654 = vsel %vm2571, %v2653, %v2652
      %v2655 = vsub.s32 4, %v2631
      %v2656 = vsel %vm2571, %v2655, %v2631
      %v2657 = vsel %vm2570, %v2231, %v2654
      %v2658 = vsel %vm2570, 0, %v2656
      %v2659 = vcosq.f32.pop %v2657
      %v2660 = vsinq.f32.pop %v2657
      %vm2661 = vweird.f32 %v2231
      %v2662 = vand.u32 %v2658, 3
      %vm2663 = vcmp.lt.s32.totalorder %v2662, 2
      %vm2664 = vcmp.eq.s32.totalorder %v2662, 0
      %v2665 = vxor.u32 %v2660, 2147483648
      %v2666 = vsel %vm2664, %v2659, %v2665
      %vm2667 = vcmp.eq.s32.totalorder %v2662, 2
      %v2668 = vxor.u32 %v2659, 2147483648
      %v2669 = vsel %vm2667, %v2668, %v2660
      %v2670 = vsel %vm2663, %v2666, %v2669
      %v2671 = vsel %vm2661, nan, %v2670
      %v2672 = vand.u32 2147483647, %v2232
      %vm2673 = vcmp.le.f32.partialorder %v2672, 0.7853982
      %vm2674 = vcmp.lt.s32.totalorder %v2232, 0
      %v2675 = vand.u32 %v2232, 2139095040
      %v2676 = vshrl.u32 %v2675, 23
      %v2677 = vsub.s32 %v2676, 127
      %v2678 = vand.u32 2147483647, %v2232
      %v2679 = vand.u32 %v2678, 8388607
      %v2680 = vor.u32 %v2679, 8388608
      %v2681 = vsub.s32 0, %v2680
      %v2682 = vadd.s32 %v2677, 1
      %vm2683 = vcmp.gt.s32.totalorder %v2682, 0
      %v2684 = vsel %vm2683, %v2682, 0
      %v2685 = vshrl.u32 %v2684, 5
      %v2686 = vand.u32 %v2684, 31
      %v2687 = vsub.s32 32, %v2686
      %v2688 = vshrl.u32 683565275, %v2687
      %v2689 = vshll.u32 683565275, %v2686
      %v2690 = vshrl.u32 2475754826, %v2687
      %v2691 = vor.u32 %v2689, %v2690
      %v2692 = vshll.u32 2475754826, %v2686
      %v2693 = vshrl.u32 2131351028, %v2687
      %v2694 = vor.u32 %v2692, %v2693
      %v2695 = vshll.u32 2131351028, %v2686
      %v2696 = vshrl.u32 2102212464, %v2687
      %v2697 = vor.u32 %v2695, %v2696
      %v2698 = vshll.u32 2102212464, %v2686
      %v2699 = vshrl.u32 920167782, %v2687
      %v2700 = vor.u32 %v2698, %v2699
      %v2701 = vshll.u32 920167782, %v2686
      %v2702 = vshrl.u32 1326507024, %v2687
      %v2703 = vor.u32 %v2701, %v2702
      %vm2704 = vcmp.lt.s32.totalorder %v2685, 1
      %vm2705 = vcmp.lt.s32.totalorder %v2685, 2
      %vm2706 = vcmp.lt.s32.totalorder %v2685, 3
      %vm2707 = vcmp.lt.s32.totalorder %v2685, 4
      %v2708 = vsel %vm2704, %v2688, %v2691
      %v2709 = vsel %vm2707, %v2697, 2102212464
      %v2710 = vsel %vm2706, %v2694, %v2709
      %v2711 = vsel %vm2705, %v2708, %v2710
      %v2712 = vsel %vm2704, %v2691, %v2694
      %v2713 = vsel %vm2707, %v2700, 920167782
      %v2714 = vsel %vm2706, %v2697, %v2713
      %v2715 = vsel %vm2705, %v2712, %v2714
      %v2716 = vsel %vm2704, %v2694, %v2697
      %v2717 = vsel %vm2707, %v2703, 1326507024
      %v2718 = vsel %vm2706, %v2700, %v2717
      %v2719 = vsel %vm2705, %v2716, %v2718
      %v2720 = vshll.u32 %v2680, 8
      %v2721 = vmul.u32.u64.compose %v2720, %v2719
      %v2722 = vextract.low.u32 %v2721
      %v2723 = vextract.high.u32 %v2721
      %v2724 = vmul.u32.u64.compose %v2720, %v2715
      %v2725 = vextract.low.u32 %v2724
      %v2726 = vextract.high.u32 %v2724
      %v2727 = vmul.u32 %v2720, %v2711
      %v2728 = vadd.s32 %v2723, %v2725
      %vm2729 = vc.u32 %v2723, %v2725
      %v2730 = vadd.s32 %v2726, 1
      %v2731 = vsel %vm2729, %v2730, %v2726
      %v2732 = vadd.s32 %v2727, %v2731
      %v2733 = vadd.s32 %v2732, 536870912
      %v2734 = vshrl.u32 %v2733, 30
      %v2735 = vshll.u32 %v2734, 30
      %v2736 = vsub.s32 %v2732, %v2735
      %vm2737 = vcmp.lt.s32.totalorder %v2736, 0
      %v2738 = vsub.s32 0, %v2736
      %v2739 = vsel %vm2737, %v2738, %v2736
      %v2740 = vclz %v2739
      %v2741 = vsub.s32 %v2740, 2
      %vm2742 = vcmp.gt.s32.totalorder 0, %v2741
      %v2743 = vsel %vm2742, 0, %v2741
      %v2744 = vsub.s32 32, %v2743
      %v2745 = vshll.u32 %v2736, %v2743
      %v2746 = vshrl.u32 %v2728, %v2744
      %v2747 = vor.u32 %v2745, %v2746
      %v2748 = vsub.s32 4294967266, %v2743
      %v2749 = vadd.s32 %v2748, 127
      %v2750 = vshll.u32 %v2749, 23
      %v2751 = vor.u32 4788187, %v2750
      %v2752 = vand.u32 2147483647, %v2751
      %v2754 = vcvt.s32.f32 %v2747
      %v2755 = vmul.f32 %v2754, %v2752
      %v2756 = vxor.u32 %v2755, 2147483648
      %v2757 = vsel %vm2674, %v2756, %v2755
      %v2758 = vsub.s32 4, %v2734
      %v2759 = vsel %vm2674, %v2758, %v2734
      %v2760 = vsel %vm2673, %v2232, %v2757
      %v2761 = vsel %vm2673, 0, %v2759
      %v2762 = vcosq.f32.pop %v2760
      %v2763 = vsinq.f32.pop %v2760
      %vm2764 = vweird.f32 %v2232
      %v2765 = vand.u32 %v2761, 3
      %vm2766 = vcmp.lt.s32.totalorder %v2765, 2
      %vm2767 = vcmp.eq.s32.totalorder %v2765, 0
      %v2768 = vxor.u32 %v2763, 2147483648
      %v2769 = vsel %vm2767, %v2762, %v2768
      %vm2770 = vcmp.eq.s32.totalorder %v2765, 2
      %v2771 = vxor.u32 %v2762, 2147483648
      %v2772 = vsel %vm2770, %v2771, %v2763
      %v2773 = vsel %vm2766, %v2769, %v2772
      %v2774 = vsel %vm2764, nan, %v2773
      %v2775 = vand.u32 2147483647, %v2233
      %vm2776 = vcmp.le.f32.partialorder %v2775, 0.7853982
      %vm2777 = vcmp.lt.s32.totalorder %v2233, 0
      %v2778 = vand.u32 %v2233, 2139095040
      %v2779 = vshrl.u32 %v2778, 23
      %v2780 = vsub.s32 %v2779, 127
      %v2781 = vand.u32 2147483647, %v2233
      %v2782 = vand.u32 %v2781, 8388607
      %v2783 = vor.u32 %v2782, 8388608
      %v2784 = vsub.s32 0, %v2783
      %v2785 = vadd.s32 %v2780, 1
      %vm2786 = vcmp.gt.s32.totalorder %v2785, 0
      %v2787 = vsel %vm2786, %v2785, 0
      %v2788 = vshrl.u32 %v2787, 5
      %v2789 = vand.u32 %v2787, 31
      %v2790 = vsub.s32 32, %v2789
      %v2791 = vshrl.u32 683565275, %v2790
      %v2792 = vshll.u32 683565275, %v2789
      %v2793 = vshrl.u32 2475754826, %v2790
      %v2794 = vor.u32 %v2792, %v2793
      %v2795 = vshll.u32 2475754826, %v2789
      %v2796 = vshrl.u32 2131351028, %v2790
      %v2797 = vor.u32 %v2795, %v2796
      %v2798 = vshll.u32 2131351028, %v2789
      %v2799 = vshrl.u32 2102212464, %v2790
      %v2800 = vor.u32 %v2798, %v2799
      %v2801 = vshll.u32 2102212464, %v2789
      %v2802 = vshrl.u32 920167782, %v2790
      %v2803 = vor.u32 %v2801, %v2802
      %v2804 = vshll.u32 920167782, %v2789
      %v2805 = vshrl.u32 1326507024, %v2790
      %v2806 = vor.u32 %v2804, %v2805
      %vm2807 = vcmp.lt.s32.totalorder %v2788, 1
      %vm2808 = vcmp.lt.s32.totalorder %v2788, 2
      %vm2809 = vcmp.lt.s32.totalorder %v2788, 3
      %vm2810 = vcmp.lt.s32.totalorder %v2788, 4
      %v2811 = vsel %vm2807, %v2791, %v2794
      %v2812 = vsel %vm2810, %v2800, 2102212464
      %v2813 = vsel %vm2809, %v2797, %v2812
      %v2814 = vsel %vm2808, %v2811, %v2813
      %v2815 = vsel %vm2807, %v2794, %v2797
      %v2816 = vsel %vm2810, %v2803, 920167782
      %v2817 = vsel %vm2809, %v2800, %v2816
      %v2818 = vsel %vm2808, %v2815, %v2817
      %v2819 = vsel %vm2807, %v2797, %v2800
      %v2820 = vsel %vm2810, %v2806, 1326507024
      %v2821 = vsel %vm2809, %v2803, %v2820
      %v2822 = vsel %vm2808, %v2819, %v2821
      %v2823 = vshll.u32 %v2783, 8
      %v2824 = vmul.u32.u64.compose %v2823, %v2822
      %v2825 = vextract.low.u32 %v2824
      %v2826 = vextract.high.u32 %v2824
      %v2827 = vmul.u32.u64.compose %v2823, %v2818
      %v2828 = vextract.low.u32 %v2827
      %v2829 = vextract.high.u32 %v2827
      %v2830 = vmul.u32 %v2823, %v2814
      %v2831 = vadd.s32 %v2826, %v2828
      %vm2832 = vc.u32 %v2826, %v2828
      %v2833 = vadd.s32 %v2829, 1
      %v2834 = vsel %vm2832, %v2833, %v2829
      %v2835 = vadd.s32 %v2830, %v2834
      %v2836 = vadd.s32 %v2835, 536870912
      %v2837 = vshrl.u32 %v2836, 30
      %v2838 = vshll.u32 %v2837, 30
      %v2839 = vsub.s32 %v2835, %v2838
      %vm2840 = vcmp.lt.s32.totalorder %v2839, 0
      %v2841 = vsub.s32 0, %v2839
      %v2842 = vsel %vm2840, %v2841, %v2839
      %v2843 = vclz %v2842
      %v2844 = vsub.s32 %v2843, 2
      %vm2845 = vcmp.gt.s32.totalorder 0, %v2844
      %v2846 = vsel %vm2845, 0, %v2844
      %v2847 = vsub.s32 32, %v2846
      %v2848 = vshll.u32 %v2839, %v2846
      %v2849 = vshrl.u32 %v2831, %v2847
      %v2850 = vor.u32 %v2848, %v2849
      %v2851 = vsub.s32 4294967266, %v2846
      %v2852 = vadd.s32 %v2851, 127
      %v2853 = vshll.u32 %v2852, 23
      %v2854 = vor.u32 4788187, %v2853
      %v2855 = vand.u32 2147483647, %v2854
      %v2857 = vcvt.s32.f32 %v2850
      %v2858 = vmul.f32 %v2857, %v2855
      %v2859 = vxor.u32 %v2858, 2147483648
      %v2860 = vsel %vm2777, %v2859, %v2858
      %v2861 = vsub.s32 4, %v2837
      %v2862 = vsel %vm2777, %v2861, %v2837
      %v2863 = vsel %vm2776, %v2233, %v2860
      %v2864 = vsel %vm2776, 0, %v2862
      %v2865 = vcosq.f32.pop %v2863
      %v2866 = vsinq.f32.pop %v2863
      %vm2867 = vweird.f32 %v2233
      %v2868 = vand.u32 %v2864, 3
      %vm2869 = vcmp.lt.s32.totalorder %v2868, 2
      %vm2870 = vcmp.eq.s32.totalorder %v2868, 0
      %v2871 = vxor.u32 %v2866, 2147483648
      %v2872 = vsel %vm2870, %v2865, %v2871
      %vm2873 = vcmp.eq.s32.totalorder %v2868, 2
      %v2874 = vxor.u32 %v2865, 2147483648
      %v2875 = vsel %vm2873, %v2874, %v2866
      %v2876 = vsel %vm2869, %v2872, %v2875
      %v2877 = vsel %vm2867, nan, %v2876
      %v2878 = vand.u32 2147483647, %v2234
      %vm2879 = vcmp.le.f32.partialorder %v2878, 0.7853982
      %vm2880 = vcmp.lt.s32.totalorder %v2234, 0
      %v2881 = vand.u32 %v2234, 2139095040
      %v2882 = vshrl.u32 %v2881, 23
      %v2883 = vsub.s32 %v2882, 127
      %v2884 = vand.u32 2147483647, %v2234
      %v2885 = vand.u32 %v2884, 8388607
      %v2886 = vor.u32 %v2885, 8388608
      %v2887 = vsub.s32 0, %v2886
      %v2888 = vadd.s32 %v2883, 1
      %vm2889 = vcmp.gt.s32.totalorder %v2888, 0
      %v2890 = vsel %vm2889, %v2888, 0
      %v2891 = vshrl.u32 %v2890, 5
      %v2892 = vand.u32 %v2890, 31
      %v2893 = vsub.s32 32, %v2892
      %v2894 = vshrl.u32 683565275, %v2893
      %v2895 = vshll.u32 683565275, %v2892
      %v2896 = vshrl.u32 2475754826, %v2893
      %v2897 = vor.u32 %v2895, %v2896
      %v2898 = vshll.u32 2475754826, %v2892
      %v2899 = vshrl.u32 2131351028, %v2893
      %v2900 = vor.u32 %v2898, %v2899
      %v2901 = vshll.u32 2131351028, %v2892
      %v2902 = vshrl.u32 2102212464, %v2893
      %v2903 = vor.u32 %v2901, %v2902
      %v2904 = vshll.u32 2102212464, %v2892
      %v2905 = vshrl.u32 920167782, %v2893
      %v2906 = vor.u32 %v2904, %v2905
      %v2907 = vshll.u32 920167782, %v2892
      %v2908 = vshrl.u32 1326507024, %v2893
      %v2909 = vor.u32 %v2907, %v2908
      %vm2910 = vcmp.lt.s32.totalorder %v2891, 1
      %vm2911 = vcmp.lt.s32.totalorder %v2891, 2
      %vm2912 = vcmp.lt.s32.totalorder %v2891, 3
      %vm2913 = vcmp.lt.s32.totalorder %v2891, 4
      %v2914 = vsel %vm2910, %v2894, %v2897
      %v2915 = vsel %vm2913, %v2903, 2102212464
      %v2916 = vsel %vm2912, %v2900, %v2915
      %v2917 = vsel %vm2911, %v2914, %v2916
      %v2918 = vsel %vm2910, %v2897, %v2900
      %v2919 = vsel %vm2913, %v2906, 920167782
      %v2920 = vsel %vm2912, %v2903, %v2919
      %v2921 = vsel %vm2911, %v2918, %v2920
      %v2922 = vsel %vm2910, %v2900, %v2903
      %v2923 = vsel %vm2913, %v2909, 1326507024
      %v2924 = vsel %vm2912, %v2906, %v2923
      %v2925 = vsel %vm2911, %v2922, %v2924
      %v2926 = vshll.u32 %v2886, 8
      %v2927 = vmul.u32.u64.compose %v2926, %v2925
      %v2928 = vextract.low.u32 %v2927
      %v2929 = vextract.high.u32 %v2927
      %v2930 = vmul.u32.u64.compose %v2926, %v2921
      %v2931 = vextract.low.u32 %v2930
      %v2932 = vextract.high.u32 %v2930
      %v2933 = vmul.u32 %v2926, %v2917
      %v2934 = vadd.s32 %v2929, %v2931
      %vm2935 = vc.u32 %v2929, %v2931
      %v2936 = vadd.s32 %v2932, 1
      %v2937 = vsel %vm2935, %v2936, %v2932
      %v2938 = vadd.s32 %v2933, %v2937
      %v2939 = vadd.s32 %v2938, 536870912
      %v2940 = vshrl.u32 %v2939, 30
      %v2941 = vshll.u32 %v2940, 30
      %v2942 = vsub.s32 %v2938, %v2941
      %vm2943 = vcmp.lt.s32.totalorder %v2942, 0
      %v2944 = vsub.s32 0, %v2942
      %v2945 = vsel %vm2943, %v2944, %v2942
      %v2946 = vclz %v2945
      %v2947 = vsub.s32 %v2946, 2
      %vm2948 = vcmp.gt.s32.totalorder 0, %v2947
      %v2949 = vsel %vm2948, 0, %v2947
      %v2950 = vsub.s32 32, %v2949
      %v2951 = vshll.u32 %v2942, %v2949
      %v2952 = vshrl.u32 %v2934, %v2950
      %v2953 = vor.u32 %v2951, %v2952
      %v2954 = vsub.s32 4294967266, %v2949
      %v2955 = vadd.s32 %v2954, 127
      %v2956 = vshll.u32 %v2955, 23
      %v2957 = vor.u32 4788187, %v2956
      %v2958 = vand.u32 2147483647, %v2957
      %v2960 = vcvt.s32.f32 %v2953
      %v2961 = vmul.f32 %v2960, %v2958
      %v2962 = vxor.u32 %v2961, 2147483648
      %v2963 = vsel %vm2880, %v2962, %v2961
      %v2964 = vsub.s32 4, %v2940
      %v2965 = vsel %vm2880, %v2964, %v2940
      %v2966 = vsel %vm2879, %v2234, %v2963
      %v2967 = vsel %vm2879, 0, %v2965
      %v2968 = vcosq.f32.pop %v2966
      %v2969 = vsinq.f32.pop %v2966
      %vm2970 = vweird.f32 %v2234
      %v2971 = vand.u32 %v2967, 3
      %vm2972 = vcmp.lt.s32.totalorder %v2971, 2
      %vm2973 = vcmp.eq.s32.totalorder %v2971, 0
      %v2974 = vxor.u32 %v2969, 2147483648
      %v2975 = vsel %vm2973, %v2968, %v2974
      %vm2976 = vcmp.eq.s32.totalorder %v2971, 2
      %v2977 = vxor.u32 %v2968, 2147483648
      %v2978 = vsel %vm2976, %v2977, %v2969
      %v2979 = vsel %vm2972, %v2975, %v2978
      %v2980 = vsel %vm2970, nan, %v2979
      %v2981 = vand.u32 2147483647, %v2235
      %vm2982 = vcmp.le.f32.partialorder %v2981, 0.7853982
      %vm2983 = vcmp.lt.s32.totalorder %v2235, 0
      %v2984 = vand.u32 %v2235, 2139095040
      %v2985 = vshrl.u32 %v2984, 23
      %v2986 = vsub.s32 %v2985, 127
      %v2987 = vand.u32 2147483647, %v2235
      %v2988 = vand.u32 %v2987, 8388607
      %v2989 = vor.u32 %v2988, 8388608
      %v2990 = vsub.s32 0, %v2989
      %v2991 = vadd.s32 %v2986, 1
      %vm2992 = vcmp.gt.s32.totalorder %v2991, 0
      %v2993 = vsel %vm2992, %v2991, 0
      %v2994 = vshrl.u32 %v2993, 5
      %v2995 = vand.u32 %v2993, 31
      %v2996 = vsub.s32 32, %v2995
      %v2997 = vshrl.u32 683565275, %v2996
      %v2998 = vshll.u32 683565275, %v2995
      %v2999 = vshrl.u32 2475754826, %v2996
      %v3000 = vor.u32 %v2998, %v2999
      %v3001 = vshll.u32 2475754826, %v2995
      %v3002 = vshrl.u32 2131351028, %v2996
      %v3003 = vor.u32 %v3001, %v3002
      %v3004 = vshll.u32 2131351028, %v2995
      %v3005 = vshrl.u32 2102212464, %v2996
      %v3006 = vor.u32 %v3004, %v3005
      %v3007 = vshll.u32 2102212464, %v2995
      %v3008 = vshrl.u32 920167782, %v2996
      %v3009 = vor.u32 %v3007, %v3008
      %v3010 = vshll.u32 920167782, %v2995
      %v3011 = vshrl.u32 1326507024, %v2996
      %v3012 = vor.u32 %v3010, %v3011
      %vm3013 = vcmp.lt.s32.totalorder %v2994, 1
      %vm3014 = vcmp.lt.s32.totalorder %v2994, 2
      %vm3015 = vcmp.lt.s32.totalorder %v2994, 3
      %vm3016 = vcmp.lt.s32.totalorder %v2994, 4
      %v3017 = vsel %vm3013, %v2997, %v3000
      %v3018 = vsel %vm3016, %v3006, 2102212464
      %v3019 = vsel %vm3015, %v3003, %v3018
      %v3020 = vsel %vm3014, %v3017, %v3019
      %v3021 = vsel %vm3013, %v3000, %v3003
      %v3022 = vsel %vm3016, %v3009, 920167782
      %v3023 = vsel %vm3015, %v3006, %v3022
      %v3024 = vsel %vm3014, %v3021, %v3023
      %v3025 = vsel %vm3013, %v3003, %v3006
      %v3026 = vsel %vm3016, %v3012, 1326507024
      %v3027 = vsel %vm3015, %v3009, %v3026
      %v3028 = vsel %vm3014, %v3025, %v3027
      %v3029 = vshll.u32 %v2989, 8
      %v3030 = vmul.u32.u64.compose %v3029, %v3028
      %v3031 = vextract.low.u32 %v3030
      %v3032 = vextract.high.u32 %v3030
      %v3033 = vmul.u32.u64.compose %v3029, %v3024
      %v3034 = vextract.low.u32 %v3033
      %v3035 = vextract.high.u32 %v3033
      %v3036 = vmul.u32 %v3029, %v3020
      %v3037 = vadd.s32 %v3032, %v3034
      %vm3038 = vc.u32 %v3032, %v3034
      %v3039 = vadd.s32 %v3035, 1
      %v3040 = vsel %vm3038, %v3039, %v3035
      %v3041 = vadd.s32 %v3036, %v3040
      %v3042 = vadd.s32 %v3041, 536870912
      %v3043 = vshrl.u32 %v3042, 30
      %v3044 = vshll.u32 %v3043, 30
      %v3045 = vsub.s32 %v3041, %v3044
      %vm3046 = vcmp.lt.s32.totalorder %v3045, 0
      %v3047 = vsub.s32 0, %v3045
      %v3048 = vsel %vm3046, %v3047, %v3045
      %v3049 = vclz %v3048
      %v3050 = vsub.s32 %v3049, 2
      %vm3051 = vcmp.gt.s32.totalorder 0, %v3050
      %v3052 = vsel %vm3051, 0, %v3050
      %v3053 = vsub.s32 32, %v3052
      %v3054 = vshll.u32 %v3045, %v3052
      %v3055 = vshrl.u32 %v3037, %v3053
      %v3056 = vor.u32 %v3054, %v3055
      %v3057 = vsub.s32 4294967266, %v3052
      %v3058 = vadd.s32 %v3057, 127
      %v3059 = vshll.u32 %v3058, 23
      %v3060 = vor.u32 4788187, %v3059
      %v3061 = vand.u32 2147483647, %v3060
      %v3063 = vcvt.s32.f32 %v3056
      %v3064 = vmul.f32 %v3063, %v3061
      %v3065 = vxor.u32 %v3064, 2147483648
      %v3066 = vsel %vm2983, %v3065, %v3064
      %v3067 = vsub.s32 4, %v3043
      %v3068 = vsel %vm2983, %v3067, %v3043
      %v3069 = vsel %vm2982, %v2235, %v3066
      %v3070 = vsel %vm2982, 0, %v3068
      %v3071 = vcosq.f32.pop %v3069
      %v3072 = vsinq.f32.pop %v3069
      %vm3073 = vweird.f32 %v2235
      %v3074 = vand.u32 %v3070, 3
      %vm3075 = vcmp.lt.s32.totalorder %v3074, 2
      %vm3076 = vcmp.eq.s32.totalorder %v3074, 0
      %v3077 = vxor.u32 %v3072, 2147483648
      %v3078 = vsel %vm3076, %v3071, %v3077
      %vm3079 = vcmp.eq.s32.totalorder %v3074, 2
      %v3080 = vxor.u32 %v3071, 2147483648
      %v3081 = vsel %vm3079, %v3080, %v3072
      %v3082 = vsel %vm3075, %v3078, %v3081
      %v3083 = vsel %vm3073, nan, %v3082
      %v3084 = vand.u32 2147483647, %v2236
      %vm3085 = vcmp.le.f32.partialorder %v3084, 0.7853982
      %vm3086 = vcmp.lt.s32.totalorder %v2236, 0
      %v3087 = vand.u32 %v2236, 2139095040
      %v3088 = vshrl.u32 %v3087, 23
      %v3089 = vsub.s32 %v3088, 127
      %v3090 = vand.u32 2147483647, %v2236
      %v3091 = vand.u32 %v3090, 8388607
      %v3092 = vor.u32 %v3091, 8388608
      %v3093 = vsub.s32 0, %v3092
      %v3094 = vadd.s32 %v3089, 1
      %vm3095 = vcmp.gt.s32.totalorder %v3094, 0
      %v3096 = vsel %vm3095, %v3094, 0
      %v3097 = vshrl.u32 %v3096, 5
      %v3098 = vand.u32 %v3096, 31
      %v3099 = vsub.s32 32, %v3098
      %v3100 = vshrl.u32 683565275, %v3099
      %v3101 = vshll.u32 683565275, %v3098
      %v3102 = vshrl.u32 2475754826, %v3099
      %v3103 = vor.u32 %v3101, %v3102
      %v3104 = vshll.u32 2475754826, %v3098
      %v3105 = vshrl.u32 2131351028, %v3099
      %v3106 = vor.u32 %v3104, %v3105
      %v3107 = vshll.u32 2131351028, %v3098
      %v3108 = vshrl.u32 2102212464, %v3099
      %v3109 = vor.u32 %v3107, %v3108
      %v3110 = vshll.u32 2102212464, %v3098
      %v3111 = vshrl.u32 920167782, %v3099
      %v3112 = vor.u32 %v3110, %v3111
      %v3113 = vshll.u32 920167782, %v3098
      %v3114 = vshrl.u32 1326507024, %v3099
      %v3115 = vor.u32 %v3113, %v3114
      %vm3116 = vcmp.lt.s32.totalorder %v3097, 1
      %vm3117 = vcmp.lt.s32.totalorder %v3097, 2
      %vm3118 = vcmp.lt.s32.totalorder %v3097, 3
      %vm3119 = vcmp.lt.s32.totalorder %v3097, 4
      %v3120 = vsel %vm3116, %v3100, %v3103
      %v3121 = vsel %vm3119, %v3109, 2102212464
      %v3122 = vsel %vm3118, %v3106, %v3121
      %v3123 = vsel %vm3117, %v3120, %v3122
      %v3124 = vsel %vm3116, %v3103, %v3106
      %v3125 = vsel %vm3119, %v3112, 920167782
      %v3126 = vsel %vm3118, %v3109, %v3125
      %v3127 = vsel %vm3117, %v3124, %v3126
      %v3128 = vsel %vm3116, %v3106, %v3109
      %v3129 = vsel %vm3119, %v3115, 1326507024
      %v3130 = vsel %vm3118, %v3112, %v3129
      %v3131 = vsel %vm3117, %v3128, %v3130
      %v3132 = vshll.u32 %v3092, 8
      %v3133 = vmul.u32.u64.compose %v3132, %v3131
      %v3134 = vextract.low.u32 %v3133
      %v3135 = vextract.high.u32 %v3133
      %v3136 = vmul.u32.u64.compose %v3132, %v3127
      %v3137 = vextract.low.u32 %v3136
      %v3138 = vextract.high.u32 %v3136
      %v3139 = vmul.u32 %v3132, %v3123
      %v3140 = vadd.s32 %v3135, %v3137
      %vm3141 = vc.u32 %v3135, %v3137
      %v3142 = vadd.s32 %v3138, 1
      %v3143 = vsel %vm3141, %v3142, %v3138
      %v3144 = vadd.s32 %v3139, %v3143
      %v3145 = vadd.s32 %v3144, 536870912
      %v3146 = vshrl.u32 %v3145, 30
      %v3147 = vshll.u32 %v3146, 30
      %v3148 = vsub.s32 %v3144, %v3147
      %vm3149 = vcmp.lt.s32.totalorder %v3148, 0
      %v3150 = vsub.s32 0, %v3148
      %v3151 = vsel %vm3149, %v3150, %v3148
      %v3152 = vclz %v3151
      %v3153 = vsub.s32 %v3152, 2
      %vm3154 = vcmp.gt.s32.totalorder 0, %v3153
      %v3155 = vsel %vm3154, 0, %v3153
      %v3156 = vsub.s32 32, %v3155
      %v3157 = vshll.u32 %v3148, %v3155
      %v3158 = vshrl.u32 %v3140, %v3156
      %v3159 = vor.u32 %v3157, %v3158
      %v3160 = vsub.s32 4294967266, %v3155
      %v3161 = vadd.s32 %v3160, 127
      %v3162 = vshll.u32 %v3161, 23
      %v3163 = vor.u32 4788187, %v3162
      %v3164 = vand.u32 2147483647, %v3163
      %v3166 = vcvt.s32.f32 %v3159
      %v3167 = vmul.f32 %v3166, %v3164
      %v3168 = vxor.u32 %v3167, 2147483648
      %v3169 = vsel %vm3086, %v3168, %v3167
      %v3170 = vsub.s32 4, %v3146
      %v3171 = vsel %vm3086, %v3170, %v3146
      %v3172 = vsel %vm3085, %v2236, %v3169
      %v3173 = vsel %vm3085, 0, %v3171
      %v3174 = vcosq.f32.pop %v3172
      %v3175 = vsinq.f32.pop %v3172
      %vm3176 = vweird.f32 %v2236
      %v3177 = vand.u32 %v3173, 3
      %vm3178 = vcmp.lt.s32.totalorder %v3177, 2
      %vm3179 = vcmp.eq.s32.totalorder %v3177, 0
      %v3180 = vxor.u32 %v3175, 2147483648
      %v3181 = vsel %vm3179, %v3174, %v3180
      %vm3182 = vcmp.eq.s32.totalorder %v3177, 2
      %v3183 = vxor.u32 %v3174, 2147483648
      %v3184 = vsel %vm3182, %v3183, %v3175
      %v3185 = vsel %vm3178, %v3181, %v3184
      %v3186 = vsel %vm3176, nan, %v3185
      %v3187 = vand.u32 2147483647, %v2237
      %vm3188 = vcmp.le.f32.partialorder %v3187, 0.7853982
      %vm3189 = vcmp.lt.s32.totalorder %v2237, 0
      %v3190 = vand.u32 %v2237, 2139095040
      %v3191 = vshrl.u32 %v3190, 23
      %v3192 = vsub.s32 %v3191, 127
      %v3193 = vand.u32 2147483647, %v2237
      %v3194 = vand.u32 %v3193, 8388607
      %v3195 = vor.u32 %v3194, 8388608
      %v3196 = vsub.s32 0, %v3195
      %v3197 = vadd.s32 %v3192, 1
      %vm3198 = vcmp.gt.s32.totalorder %v3197, 0
      %v3199 = vsel %vm3198, %v3197, 0
      %v3200 = vshrl.u32 %v3199, 5
      %v3201 = vand.u32 %v3199, 31
      %v3202 = vsub.s32 32, %v3201
      %v3203 = vshrl.u32 683565275, %v3202
      %v3204 = vshll.u32 683565275, %v3201
      %v3205 = vshrl.u32 2475754826, %v3202
      %v3206 = vor.u32 %v3204, %v3205
      %v3207 = vshll.u32 2475754826, %v3201
      %v3208 = vshrl.u32 2131351028, %v3202
      %v3209 = vor.u32 %v3207, %v3208
      %v3210 = vshll.u32 2131351028, %v3201
      %v3211 = vshrl.u32 2102212464, %v3202
      %v3212 = vor.u32 %v3210, %v3211
      %v3213 = vshll.u32 2102212464, %v3201
      %v3214 = vshrl.u32 920167782, %v3202
      %v3215 = vor.u32 %v3213, %v3214
      %v3216 = vshll.u32 920167782, %v3201
      %v3217 = vshrl.u32 1326507024, %v3202
      %v3218 = vor.u32 %v3216, %v3217
      %vm3219 = vcmp.lt.s32.totalorder %v3200, 1
      %vm3220 = vcmp.lt.s32.totalorder %v3200, 2
      %vm3221 = vcmp.lt.s32.totalorder %v3200, 3
      %vm3222 = vcmp.lt.s32.totalorder %v3200, 4
      %v3223 = vsel %vm3219, %v3203, %v3206
      %v3224 = vsel %vm3222, %v3212, 2102212464
      %v3225 = vsel %vm3221, %v3209, %v3224
      %v3226 = vsel %vm3220, %v3223, %v3225
      %v3227 = vsel %vm3219, %v3206, %v3209
      %v3228 = vsel %vm3222, %v3215, 920167782
      %v3229 = vsel %vm3221, %v3212, %v3228
      %v3230 = vsel %vm3220, %v3227, %v3229
      %v3231 = vsel %vm3219, %v3209, %v3212
      %v3232 = vsel %vm3222, %v3218, 1326507024
      %v3233 = vsel %vm3221, %v3215, %v3232
      %v3234 = vsel %vm3220, %v3231, %v3233
      %v3235 = vshll.u32 %v3195, 8
      %v3236 = vmul.u32.u64.compose %v3235, %v3234
      %v3237 = vextract.low.u32 %v3236
      %v3238 = vextract.high.u32 %v3236
      %v3239 = vmul.u32.u64.compose %v3235, %v3230
      %v3240 = vextract.low.u32 %v3239
      %v3241 = vextract.high.u32 %v3239
      %v3242 = vmul.u32 %v3235, %v3226
      %v3243 = vadd.s32 %v3238, %v3240
      %vm3244 = vc.u32 %v3238, %v3240
      %v3245 = vadd.s32 %v3241, 1
      %v3246 = vsel %vm3244, %v3245, %v3241
      %v3247 = vadd.s32 %v3242, %v3246
      %v3248 = vadd.s32 %v3247, 536870912
      %v3249 = vshrl.u32 %v3248, 30
      %v3250 = vshll.u32 %v3249, 30
      %v3251 = vsub.s32 %v3247, %v3250
      %vm3252 = vcmp.lt.s32.totalorder %v3251, 0
      %v3253 = vsub.s32 0, %v3251
      %v3254 = vsel %vm3252, %v3253, %v3251
      %v3255 = vclz %v3254
      %v3256 = vsub.s32 %v3255, 2
      %vm3257 = vcmp.gt.s32.totalorder 0, %v3256
      %v3258 = vsel %vm3257, 0, %v3256
      %v3259 = vsub.s32 32, %v3258
      %v3260 = vshll.u32 %v3251, %v3258
      %v3261 = vshrl.u32 %v3243, %v3259
      %v3262 = vor.u32 %v3260, %v3261
      %v3263 = vsub.s32 4294967266, %v3258
      %v3264 = vadd.s32 %v3263, 127
      %v3265 = vshll.u32 %v3264, 23
      %v3266 = vor.u32 4788187, %v3265
      %v3267 = vand.u32 2147483647, %v3266
      %v3269 = vcvt.s32.f32 %v3262
      %v3270 = vmul.f32 %v3269, %v3267
      %v3271 = vxor.u32 %v3270, 2147483648
      %v3272 = vsel %vm3189, %v3271, %v3270
      %v3273 = vsub.s32 4, %v3249
      %v3274 = vsel %vm3189, %v3273, %v3249
      %v3275 = vsel %vm3188, %v2237, %v3272
      %v3276 = vsel %vm3188, 0, %v3274
      %v3277 = vcosq.f32.pop %v3275
      %v3278 = vsinq.f32.pop %v3275
      %vm3279 = vweird.f32 %v2237
      %v3280 = vand.u32 %v3276, 3
      %vm3281 = vcmp.lt.s32.totalorder %v3280, 2
      %vm3282 = vcmp.eq.s32.totalorder %v3280, 0
      %v3283 = vxor.u32 %v3278, 2147483648
      %v3284 = vsel %vm3282, %v3277, %v3283
      %vm3285 = vcmp.eq.s32.totalorder %v3280, 2
      %v3286 = vxor.u32 %v3277, 2147483648
      %v3287 = vsel %vm3285, %v3286, %v3278
      %v3288 = vsel %vm3281, %v3284, %v3287
      %v3289 = vsel %vm3279, nan, %v3288
      %v3290 = vand.u32 2147483647, %v2238
      %vm3291 = vcmp.le.f32.partialorder %v3290, 0.7853982
      %vm3292 = vcmp.lt.s32.totalorder %v2238, 0
      %v3293 = vand.u32 %v2238, 2139095040
      %v3294 = vshrl.u32 %v3293, 23
      %v3295 = vsub.s32 %v3294, 127
      %v3296 = vand.u32 2147483647, %v2238
      %v3297 = vand.u32 %v3296, 8388607
      %v3298 = vor.u32 %v3297, 8388608
      %v3299 = vsub.s32 0, %v3298
      %v3300 = vadd.s32 %v3295, 1
      %vm3301 = vcmp.gt.s32.totalorder %v3300, 0
      %v3302 = vsel %vm3301, %v3300, 0
      %v3303 = vshrl.u32 %v3302, 5
      %v3304 = vand.u32 %v3302, 31
      %v3305 = vsub.s32 32, %v3304
      %v3306 = vshrl.u32 683565275, %v3305
      %v3307 = vshll.u32 683565275, %v3304
      %v3308 = vshrl.u32 2475754826, %v3305
      %v3309 = vor.u32 %v3307, %v3308
      %v3310 = vshll.u32 2475754826, %v3304
      %v3311 = vshrl.u32 2131351028, %v3305
      %v3312 = vor.u32 %v3310, %v3311
      %v3313 = vshll.u32 2131351028, %v3304
      %v3314 = vshrl.u32 2102212464, %v3305
      %v3315 = vor.u32 %v3313, %v3314
      %v3316 = vshll.u32 2102212464, %v3304
      %v3317 = vshrl.u32 920167782, %v3305
      %v3318 = vor.u32 %v3316, %v3317
      %v3319 = vshll.u32 920167782, %v3304
      %v3320 = vshrl.u32 1326507024, %v3305
      %v3321 = vor.u32 %v3319, %v3320
      %vm3322 = vcmp.lt.s32.totalorder %v3303, 1
      %vm3323 = vcmp.lt.s32.totalorder %v3303, 2
      %vm3324 = vcmp.lt.s32.totalorder %v3303, 3
      %vm3325 = vcmp.lt.s32.totalorder %v3303, 4
      %v3326 = vsel %vm3322, %v3306, %v3309
      %v3327 = vsel %vm3325, %v3315, 2102212464
      %v3328 = vsel %vm3324, %v3312, %v3327
      %v3329 = vsel %vm3323, %v3326, %v3328
      %v3330 = vsel %vm3322, %v3309, %v3312
      %v3331 = vsel %vm3325, %v3318, 920167782
      %v3332 = vsel %vm3324, %v3315, %v3331
      %v3333 = vsel %vm3323, %v3330, %v3332
      %v3334 = vsel %vm3322, %v3312, %v3315
      %v3335 = vsel %vm3325, %v3321, 1326507024
      %v3336 = vsel %vm3324, %v3318, %v3335
      %v3337 = vsel %vm3323, %v3334, %v3336
      %v3338 = vshll.u32 %v3298, 8
      %v3339 = vmul.u32.u64.compose %v3338, %v3337
      %v3340 = vextract.low.u32 %v3339
      %v3341 = vextract.high.u32 %v3339
      %v3342 = vmul.u32.u64.compose %v3338, %v3333
      %v3343 = vextract.low.u32 %v3342
      %v3344 = vextract.high.u32 %v3342
      %v3345 = vmul.u32 %v3338, %v3329
      %v3346 = vadd.s32 %v3341, %v3343
      %vm3347 = vc.u32 %v3341, %v3343
      %v3348 = vadd.s32 %v3344, 1
      %v3349 = vsel %vm3347, %v3348, %v3344
      %v3350 = vadd.s32 %v3345, %v3349
      %v3351 = vadd.s32 %v3350, 536870912
      %v3352 = vshrl.u32 %v3351, 30
      %v3353 = vshll.u32 %v3352, 30
      %v3354 = vsub.s32 %v3350, %v3353
      %vm3355 = vcmp.lt.s32.totalorder %v3354, 0
      %v3356 = vsub.s32 0, %v3354
      %v3357 = vsel %vm3355, %v3356, %v3354
      %v3358 = vclz %v3357
      %v3359 = vsub.s32 %v3358, 2
      %vm3360 = vcmp.gt.s32.totalorder 0, %v3359
      %v3361 = vsel %vm3360, 0, %v3359
      %v3362 = vsub.s32 32, %v3361
      %v3363 = vshll.u32 %v3354, %v3361
      %v3364 = vshrl.u32 %v3346, %v3362
      %v3365 = vor.u32 %v3363, %v3364
      %v3366 = vsub.s32 4294967266, %v3361
      %v3367 = vadd.s32 %v3366, 127
      %v3368 = vshll.u32 %v3367, 23
      %v3369 = vor.u32 4788187, %v3368
      %v3370 = vand.u32 2147483647, %v3369
      %v3372 = vcvt.s32.f32 %v3365
      %v3373 = vmul.f32 %v3372, %v3370
      %v3374 = vxor.u32 %v3373, 2147483648
      %v3375 = vsel %vm3292, %v3374, %v3373
      %v3376 = vsub.s32 4, %v3352
      %v3377 = vsel %vm3292, %v3376, %v3352
      %v3378 = vsel %vm3291, %v2238, %v3375
      %v3379 = vsel %vm3291, 0, %v3377
      %v3380 = vcosq.f32.pop %v3378
      %v3381 = vsinq.f32.pop %v3378
      %vm3382 = vweird.f32 %v2238
      %v3383 = vand.u32 %v3379, 3
      %vm3384 = vcmp.lt.s32.totalorder %v3383, 2
      %vm3385 = vcmp.eq.s32.totalorder %v3383, 0
      %v3386 = vxor.u32 %v3381, 2147483648
      %v3387 = vsel %vm3385, %v3380, %v3386
      %vm3388 = vcmp.eq.s32.totalorder %v3383, 2
      %v3389 = vxor.u32 %v3380, 2147483648
      %v3390 = vsel %vm3388, %v3389, %v3381
      %v3391 = vsel %vm3384, %v3387, %v3390
      %v3392 = vsel %vm3382, nan, %v3391
      %v3393 = vand.u32 2147483647, %v2239
      %vm3394 = vcmp.le.f32.partialorder %v3393, 0.7853982
      %vm3395 = vcmp.lt.s32.totalorder %v2239, 0
      %v3396 = vand.u32 %v2239, 2139095040
      %v3397 = vshrl.u32 %v3396, 23
      %v3398 = vsub.s32 %v3397, 127
      %v3399 = vand.u32 2147483647, %v2239
      %v3400 = vand.u32 %v3399, 8388607
      %v3401 = vor.u32 %v3400, 8388608
      %v3402 = vsub.s32 0, %v3401
      %v3403 = vadd.s32 %v3398, 1
      %vm3404 = vcmp.gt.s32.totalorder %v3403, 0
      %v3405 = vsel %vm3404, %v3403, 0
      %v3406 = vshrl.u32 %v3405, 5
      %v3407 = vand.u32 %v3405, 31
      %v3408 = vsub.s32 32, %v3407
      %v3409 = vshrl.u32 683565275, %v3408
      %v3410 = vshll.u32 683565275, %v3407
      %v3411 = vshrl.u32 2475754826, %v3408
      %v3412 = vor.u32 %v3410, %v3411
      %v3413 = vshll.u32 2475754826, %v3407
      %v3414 = vshrl.u32 2131351028, %v3408
      %v3415 = vor.u32 %v3413, %v3414
      %v3416 = vshll.u32 2131351028, %v3407
      %v3417 = vshrl.u32 2102212464, %v3408
      %v3418 = vor.u32 %v3416, %v3417
      %v3419 = vshll.u32 2102212464, %v3407
      %v3420 = vshrl.u32 920167782, %v3408
      %v3421 = vor.u32 %v3419, %v3420
      %v3422 = vshll.u32 920167782, %v3407
      %v3423 = vshrl.u32 1326507024, %v3408
      %v3424 = vor.u32 %v3422, %v3423
      %vm3425 = vcmp.lt.s32.totalorder %v3406, 1
      %vm3426 = vcmp.lt.s32.totalorder %v3406, 2
      %vm3427 = vcmp.lt.s32.totalorder %v3406, 3
      %vm3428 = vcmp.lt.s32.totalorder %v3406, 4
      %v3429 = vsel %vm3425, %v3409, %v3412
      %v3430 = vsel %vm3428, %v3418, 2102212464
      %v3431 = vsel %vm3427, %v3415, %v3430
      %v3432 = vsel %vm3426, %v3429, %v3431
      %v3433 = vsel %vm3425, %v3412, %v3415
      %v3434 = vsel %vm3428, %v3421, 920167782
      %v3435 = vsel %vm3427, %v3418, %v3434
      %v3436 = vsel %vm3426, %v3433, %v3435
      %v3437 = vsel %vm3425, %v3415, %v3418
      %v3438 = vsel %vm3428, %v3424, 1326507024
      %v3439 = vsel %vm3427, %v3421, %v3438
      %v3440 = vsel %vm3426, %v3437, %v3439
      %v3441 = vshll.u32 %v3401, 8
      %v3442 = vmul.u32.u64.compose %v3441, %v3440
      %v3443 = vextract.low.u32 %v3442
      %v3444 = vextract.high.u32 %v3442
      %v3445 = vmul.u32.u64.compose %v3441, %v3436
      %v3446 = vextract.low.u32 %v3445
      %v3447 = vextract.high.u32 %v3445
      %v3448 = vmul.u32 %v3441, %v3432
      %v3449 = vadd.s32 %v3444, %v3446
      %vm3450 = vc.u32 %v3444, %v3446
      %v3451 = vadd.s32 %v3447, 1
      %v3452 = vsel %vm3450, %v3451, %v3447
      %v3453 = vadd.s32 %v3448, %v3452
      %v3454 = vadd.s32 %v3453, 536870912
      %v3455 = vshrl.u32 %v3454, 30
      %v3456 = vshll.u32 %v3455, 30
      %v3457 = vsub.s32 %v3453, %v3456
      %vm3458 = vcmp.lt.s32.totalorder %v3457, 0
      %v3459 = vsub.s32 0, %v3457
      %v3460 = vsel %vm3458, %v3459, %v3457
      %v3461 = vclz %v3460
      %v3462 = vsub.s32 %v3461, 2
      %vm3463 = vcmp.gt.s32.totalorder 0, %v3462
      %v3464 = vsel %vm3463, 0, %v3462
      %v3465 = vsub.s32 32, %v3464
      %v3466 = vshll.u32 %v3457, %v3464
      %v3467 = vshrl.u32 %v3449, %v3465
      %v3468 = vor.u32 %v3466, %v3467
      %v3469 = vsub.s32 4294967266, %v3464
      %v3470 = vadd.s32 %v3469, 127
      %v3471 = vshll.u32 %v3470, 23
      %v3472 = vor.u32 4788187, %v3471
      %v3473 = vand.u32 2147483647, %v3472
      %v3475 = vcvt.s32.f32 %v3468
      %v3476 = vmul.f32 %v3475, %v3473
      %v3477 = vxor.u32 %v3476, 2147483648
      %v3478 = vsel %vm3395, %v3477, %v3476
      %v3479 = vsub.s32 4, %v3455
      %v3480 = vsel %vm3395, %v3479, %v3455
      %v3481 = vsel %vm3394, %v2239, %v3478
      %v3482 = vsel %vm3394, 0, %v3480
      %v3483 = vcosq.f32.pop %v3481
      %v3484 = vsinq.f32.pop %v3481
      %vm3485 = vweird.f32 %v2239
      %v3486 = vand.u32 %v3482, 3
      %vm3487 = vcmp.lt.s32.totalorder %v3486, 2
      %vm3488 = vcmp.eq.s32.totalorder %v3486, 0
      %v3489 = vxor.u32 %v3484, 2147483648
      %v3490 = vsel %vm3488, %v3483, %v3489
      %vm3491 = vcmp.eq.s32.totalorder %v3486, 2
      %v3492 = vxor.u32 %v3483, 2147483648
      %v3493 = vsel %vm3491, %v3492, %v3484
      %v3494 = vsel %vm3487, %v3490, %v3493
      %v3495 = vsel %vm3485, nan, %v3494
      %v3496 = vand.u32 2147483647, %v2240
      %vm3497 = vcmp.le.f32.partialorder %v3496, 0.7853982
      %vm3498 = vcmp.lt.s32.totalorder %v2240, 0
      %v3499 = vand.u32 %v2240, 2139095040
      %v3500 = vshrl.u32 %v3499, 23
      %v3501 = vsub.s32 %v3500, 127
      %v3502 = vand.u32 2147483647, %v2240
      %v3503 = vand.u32 %v3502, 8388607
      %v3504 = vor.u32 %v3503, 8388608
      %v3505 = vsub.s32 0, %v3504
      %v3506 = vadd.s32 %v3501, 1
      %vm3507 = vcmp.gt.s32.totalorder %v3506, 0
      %v3508 = vsel %vm3507, %v3506, 0
      %v3509 = vshrl.u32 %v3508, 5
      %v3510 = vand.u32 %v3508, 31
      %v3511 = vsub.s32 32, %v3510
      %v3512 = vshrl.u32 683565275, %v3511
      %v3513 = vshll.u32 683565275, %v3510
      %v3514 = vshrl.u32 2475754826, %v3511
      %v3515 = vor.u32 %v3513, %v3514
      %v3516 = vshll.u32 2475754826, %v3510
      %v3517 = vshrl.u32 2131351028, %v3511
      %v3518 = vor.u32 %v3516, %v3517
      %v3519 = vshll.u32 2131351028, %v3510
      %v3520 = vshrl.u32 2102212464, %v3511
      %v3521 = vor.u32 %v3519, %v3520
      %v3522 = vshll.u32 2102212464, %v3510
      %v3523 = vshrl.u32 920167782, %v3511
      %v3524 = vor.u32 %v3522, %v3523
      %v3525 = vshll.u32 920167782, %v3510
      %v3526 = vshrl.u32 1326507024, %v3511
      %v3527 = vor.u32 %v3525, %v3526
      %vm3528 = vcmp.lt.s32.totalorder %v3509, 1
      %vm3529 = vcmp.lt.s32.totalorder %v3509, 2
      %vm3530 = vcmp.lt.s32.totalorder %v3509, 3
      %vm3531 = vcmp.lt.s32.totalorder %v3509, 4
      %v3532 = vsel %vm3528, %v3512, %v3515
      %v3533 = vsel %vm3531, %v3521, 2102212464
      %v3534 = vsel %vm3530, %v3518, %v3533
      %v3535 = vsel %vm3529, %v3532, %v3534
      %v3536 = vsel %vm3528, %v3515, %v3518
      %v3537 = vsel %vm3531, %v3524, 920167782
      %v3538 = vsel %vm3530, %v3521, %v3537
      %v3539 = vsel %vm3529, %v3536, %v3538
      %v3540 = vsel %vm3528, %v3518, %v3521
      %v3541 = vsel %vm3531, %v3527, 1326507024
      %v3542 = vsel %vm3530, %v3524, %v3541
      %v3543 = vsel %vm3529, %v3540, %v3542
      %v3544 = vshll.u32 %v3504, 8
      %v3545 = vmul.u32.u64.compose %v3544, %v3543
      %v3546 = vextract.low.u32 %v3545
      %v3547 = vextract.high.u32 %v3545
      %v3548 = vmul.u32.u64.compose %v3544, %v3539
      %v3549 = vextract.low.u32 %v3548
      %v3550 = vextract.high.u32 %v3548
      %v3551 = vmul.u32 %v3544, %v3535
      %v3552 = vadd.s32 %v3547, %v3549
      %vm3553 = vc.u32 %v3547, %v3549
      %v3554 = vadd.s32 %v3550, 1
      %v3555 = vsel %vm3553, %v3554, %v3550
      %v3556 = vadd.s32 %v3551, %v3555
      %v3557 = vadd.s32 %v3556, 536870912
      %v3558 = vshrl.u32 %v3557, 30
      %v3559 = vshll.u32 %v3558, 30
      %v3560 = vsub.s32 %v3556, %v3559
      %vm3561 = vcmp.lt.s32.totalorder %v3560, 0
      %v3562 = vsub.s32 0, %v3560
      %v3563 = vsel %vm3561, %v3562, %v3560
      %v3564 = vclz %v3563
      %v3565 = vsub.s32 %v3564, 2
      %vm3566 = vcmp.gt.s32.totalorder 0, %v3565
      %v3567 = vsel %vm3566, 0, %v3565
      %v3568 = vsub.s32 32, %v3567
      %v3569 = vshll.u32 %v3560, %v3567
      %v3570 = vshrl.u32 %v3552, %v3568
      %v3571 = vor.u32 %v3569, %v3570
      %v3572 = vsub.s32 4294967266, %v3567
      %v3573 = vadd.s32 %v3572, 127
      %v3574 = vshll.u32 %v3573, 23
      %v3575 = vor.u32 4788187, %v3574
      %v3576 = vand.u32 2147483647, %v3575
      %v3578 = vcvt.s32.f32 %v3571
      %v3579 = vmul.f32 %v3578, %v3576
      %v3580 = vxor.u32 %v3579, 2147483648
      %v3581 = vsel %vm3498, %v3580, %v3579
      %v3582 = vsub.s32 4, %v3558
      %v3583 = vsel %vm3498, %v3582, %v3558
      %v3584 = vsel %vm3497, %v2240, %v3581
      %v3585 = vsel %vm3497, 0, %v3583
      %v3586 = vcosq.f32.pop %v3584
      %v3587 = vsinq.f32.pop %v3584
      %vm3588 = vweird.f32 %v2240
      %v3589 = vand.u32 %v3585, 3
      %vm3590 = vcmp.lt.s32.totalorder %v3589, 2
      %vm3591 = vcmp.eq.s32.totalorder %v3589, 0
      %v3592 = vxor.u32 %v3587, 2147483648
      %v3593 = vsel %vm3591, %v3586, %v3592
      %vm3594 = vcmp.eq.s32.totalorder %v3589, 2
      %v3595 = vxor.u32 %v3586, 2147483648
      %v3596 = vsel %vm3594, %v3595, %v3587
      %v3597 = vsel %vm3590, %v3593, %v3596
      %v3598 = vsel %vm3588, nan, %v3597
      %v3599 = vand.u32 2147483647, %v2241
      %vm3600 = vcmp.le.f32.partialorder %v3599, 0.7853982
      %vm3601 = vcmp.lt.s32.totalorder %v2241, 0
      %v3602 = vand.u32 %v2241, 2139095040
      %v3603 = vshrl.u32 %v3602, 23
      %v3604 = vsub.s32 %v3603, 127
      %v3605 = vand.u32 2147483647, %v2241
      %v3606 = vand.u32 %v3605, 8388607
      %v3607 = vor.u32 %v3606, 8388608
      %v3608 = vsub.s32 0, %v3607
      %v3609 = vadd.s32 %v3604, 1
      %vm3610 = vcmp.gt.s32.totalorder %v3609, 0
      %v3611 = vsel %vm3610, %v3609, 0
      %v3612 = vshrl.u32 %v3611, 5
      %v3613 = vand.u32 %v3611, 31
      %v3614 = vsub.s32 32, %v3613
      %v3615 = vshrl.u32 683565275, %v3614
      %v3616 = vshll.u32 683565275, %v3613
      %v3617 = vshrl.u32 2475754826, %v3614
      %v3618 = vor.u32 %v3616, %v3617
      %v3619 = vshll.u32 2475754826, %v3613
      %v3620 = vshrl.u32 2131351028, %v3614
      %v3621 = vor.u32 %v3619, %v3620
      %v3622 = vshll.u32 2131351028, %v3613
      %v3623 = vshrl.u32 2102212464, %v3614
      %v3624 = vor.u32 %v3622, %v3623
      %v3625 = vshll.u32 2102212464, %v3613
      %v3626 = vshrl.u32 920167782, %v3614
      %v3627 = vor.u32 %v3625, %v3626
      %v3628 = vshll.u32 920167782, %v3613
      %v3629 = vshrl.u32 1326507024, %v3614
      %v3630 = vor.u32 %v3628, %v3629
      %vm3631 = vcmp.lt.s32.totalorder %v3612, 1
      %vm3632 = vcmp.lt.s32.totalorder %v3612, 2
      %vm3633 = vcmp.lt.s32.totalorder %v3612, 3
      %vm3634 = vcmp.lt.s32.totalorder %v3612, 4
      %v3635 = vsel %vm3631, %v3615, %v3618
      %v3636 = vsel %vm3634, %v3624, 2102212464
      %v3637 = vsel %vm3633, %v3621, %v3636
      %v3638 = vsel %vm3632, %v3635, %v3637
      %v3639 = vsel %vm3631, %v3618, %v3621
      %v3640 = vsel %vm3634, %v3627, 920167782
      %v3641 = vsel %vm3633, %v3624, %v3640
      %v3642 = vsel %vm3632, %v3639, %v3641
      %v3643 = vsel %vm3631, %v3621, %v3624
      %v3644 = vsel %vm3634, %v3630, 1326507024
      %v3645 = vsel %vm3633, %v3627, %v3644
      %v3646 = vsel %vm3632, %v3643, %v3645
      %v3647 = vshll.u32 %v3607, 8
      %v3648 = vmul.u32.u64.compose %v3647, %v3646
      %v3649 = vextract.low.u32 %v3648
      %v3650 = vextract.high.u32 %v3648
      %v3651 = vmul.u32.u64.compose %v3647, %v3642
      %v3652 = vextract.low.u32 %v3651
      %v3653 = vextract.high.u32 %v3651
      %v3654 = vmul.u32 %v3647, %v3638
      %v3655 = vadd.s32 %v3650, %v3652
      %vm3656 = vc.u32 %v3650, %v3652
      %v3657 = vadd.s32 %v3653, 1
      %v3658 = vsel %vm3656, %v3657, %v3653
      %v3659 = vadd.s32 %v3654, %v3658
      %v3660 = vadd.s32 %v3659, 536870912
      %v3661 = vshrl.u32 %v3660, 30
      %v3662 = vshll.u32 %v3661, 30
      %v3663 = vsub.s32 %v3659, %v3662
      %vm3664 = vcmp.lt.s32.totalorder %v3663, 0
      %v3665 = vsub.s32 0, %v3663
      %v3666 = vsel %vm3664, %v3665, %v3663
      %v3667 = vclz %v3666
      %v3668 = vsub.s32 %v3667, 2
      %vm3669 = vcmp.gt.s32.totalorder 0, %v3668
      %v3670 = vsel %vm3669, 0, %v3668
      %v3671 = vsub.s32 32, %v3670
      %v3672 = vshll.u32 %v3663, %v3670
      %v3673 = vshrl.u32 %v3655, %v3671
      %v3674 = vor.u32 %v3672, %v3673
      %v3675 = vsub.s32 4294967266, %v3670
      %v3676 = vadd.s32 %v3675, 127
      %v3677 = vshll.u32 %v3676, 23
      %v3678 = vor.u32 4788187, %v3677
      %v3679 = vand.u32 2147483647, %v3678
      %v3681 = vcvt.s32.f32 %v3674
      %v3682 = vmul.f32 %v3681, %v3679
      %v3683 = vxor.u32 %v3682, 2147483648
      %v3684 = vsel %vm3601, %v3683, %v3682
      %v3685 = vsub.s32 4, %v3661
      %v3686 = vsel %vm3601, %v3685, %v3661
      %v3687 = vsel %vm3600, %v2241, %v3684
      %v3688 = vsel %vm3600, 0, %v3686
      %v3689 = vcosq.f32.pop %v3687
      %v3690 = vsinq.f32.pop %v3687
      %vm3691 = vweird.f32 %v2241
      %v3692 = vand.u32 %v3688, 3
      %vm3693 = vcmp.lt.s32.totalorder %v3692, 2
      %vm3694 = vcmp.eq.s32.totalorder %v3692, 0
      %v3695 = vxor.u32 %v3690, 2147483648
      %v3696 = vsel %vm3694, %v3689, %v3695
      %vm3697 = vcmp.eq.s32.totalorder %v3692, 2
      %v3698 = vxor.u32 %v3689, 2147483648
      %v3699 = vsel %vm3697, %v3698, %v3690
      %v3700 = vsel %vm3693, %v3696, %v3699
      %v3701 = vsel %vm3691, nan, %v3700
      %v3702 = vand.u32 2147483647, %v2242
      %vm3703 = vcmp.le.f32.partialorder %v3702, 0.7853982
      %vm3704 = vcmp.lt.s32.totalorder %v2242, 0
      %v3705 = vand.u32 %v2242, 2139095040
      %v3706 = vshrl.u32 %v3705, 23
      %v3707 = vsub.s32 %v3706, 127
      %v3708 = vand.u32 2147483647, %v2242
      %v3709 = vand.u32 %v3708, 8388607
      %v3710 = vor.u32 %v3709, 8388608
      %v3711 = vsub.s32 0, %v3710
      %v3712 = vadd.s32 %v3707, 1
      %vm3713 = vcmp.gt.s32.totalorder %v3712, 0
      %v3714 = vsel %vm3713, %v3712, 0
      %v3715 = vshrl.u32 %v3714, 5
      %v3716 = vand.u32 %v3714, 31
      %v3717 = vsub.s32 32, %v3716
      %v3718 = vshrl.u32 683565275, %v3717
      %v3719 = vshll.u32 683565275, %v3716
      %v3720 = vshrl.u32 2475754826, %v3717
      %v3721 = vor.u32 %v3719, %v3720
      %v3722 = vshll.u32 2475754826, %v3716
      %v3723 = vshrl.u32 2131351028, %v3717
      %v3724 = vor.u32 %v3722, %v3723
      %v3725 = vshll.u32 2131351028, %v3716
      %v3726 = vshrl.u32 2102212464, %v3717
      %v3727 = vor.u32 %v3725, %v3726
      %v3728 = vshll.u32 2102212464, %v3716
      %v3729 = vshrl.u32 920167782, %v3717
      %v3730 = vor.u32 %v3728, %v3729
      %v3731 = vshll.u32 920167782, %v3716
      %v3732 = vshrl.u32 1326507024, %v3717
      %v3733 = vor.u32 %v3731, %v3732
      %vm3734 = vcmp.lt.s32.totalorder %v3715, 1
      %vm3735 = vcmp.lt.s32.totalorder %v3715, 2
      %vm3736 = vcmp.lt.s32.totalorder %v3715, 3
      %vm3737 = vcmp.lt.s32.totalorder %v3715, 4
      %v3738 = vsel %vm3734, %v3718, %v3721
      %v3739 = vsel %vm3737, %v3727, 2102212464
      %v3740 = vsel %vm3736, %v3724, %v3739
      %v3741 = vsel %vm3735, %v3738, %v3740
      %v3742 = vsel %vm3734, %v3721, %v3724
      %v3743 = vsel %vm3737, %v3730, 920167782
      %v3744 = vsel %vm3736, %v3727, %v3743
      %v3745 = vsel %vm3735, %v3742, %v3744
      %v3746 = vsel %vm3734, %v3724, %v3727
      %v3747 = vsel %vm3737, %v3733, 1326507024
      %v3748 = vsel %vm3736, %v3730, %v3747
      %v3749 = vsel %vm3735, %v3746, %v3748
      %v3750 = vshll.u32 %v3710, 8
      %v3751 = vmul.u32.u64.compose %v3750, %v3749
      %v3752 = vextract.low.u32 %v3751
      %v3753 = vextract.high.u32 %v3751
      %v3754 = vmul.u32.u64.compose %v3750, %v3745
      %v3755 = vextract.low.u32 %v3754
      %v3756 = vextract.high.u32 %v3754
      %v3757 = vmul.u32 %v3750, %v3741
      %v3758 = vadd.s32 %v3753, %v3755
      %vm3759 = vc.u32 %v3753, %v3755
      %v3760 = vadd.s32 %v3756, 1
      %v3761 = vsel %vm3759, %v3760, %v3756
      %v3762 = vadd.s32 %v3757, %v3761
      %v3763 = vadd.s32 %v3762, 536870912
      %v3764 = vshrl.u32 %v3763, 30
      %v3765 = vshll.u32 %v3764, 30
      %v3766 = vsub.s32 %v3762, %v3765
      %vm3767 = vcmp.lt.s32.totalorder %v3766, 0
      %v3768 = vsub.s32 0, %v3766
      %v3769 = vsel %vm3767, %v3768, %v3766
      %v3770 = vclz %v3769
      %v3771 = vsub.s32 %v3770, 2
      %vm3772 = vcmp.gt.s32.totalorder 0, %v3771
      %v3773 = vsel %vm3772, 0, %v3771
      %v3774 = vsub.s32 32, %v3773
      %v3775 = vshll.u32 %v3766, %v3773
      %v3776 = vshrl.u32 %v3758, %v3774
      %v3777 = vor.u32 %v3775, %v3776
      %v3778 = vsub.s32 4294967266, %v3773
      %v3779 = vadd.s32 %v3778, 127
      %v3780 = vshll.u32 %v3779, 23
      %v3781 = vor.u32 4788187, %v3780
      %v3782 = vand.u32 2147483647, %v3781
      %v3784 = vcvt.s32.f32 %v3777
      %v3785 = vmul.f32 %v3784, %v3782
      %v3786 = vxor.u32 %v3785, 2147483648
      %v3787 = vsel %vm3704, %v3786, %v3785
      %v3788 = vsub.s32 4, %v3764
      %v3789 = vsel %vm3704, %v3788, %v3764
      %v3790 = vsel %vm3703, %v2242, %v3787
      %v3791 = vsel %vm3703, 0, %v3789
      %v3792 = vcosq.f32.pop %v3790
      %v3793 = vsinq.f32.pop %v3790
      %vm3794 = vweird.f32 %v2242
      %v3795 = vand.u32 %v3791, 3
      %vm3796 = vcmp.lt.s32.totalorder %v3795, 2
      %vm3797 = vcmp.eq.s32.totalorder %v3795, 0
      %v3798 = vxor.u32 %v3793, 2147483648
      %v3799 = vsel %vm3797, %v3792, %v3798
      %vm3800 = vcmp.eq.s32.totalorder %v3795, 2
      %v3801 = vxor.u32 %v3792, 2147483648
      %v3802 = vsel %vm3800, %v3801, %v3793
      %v3803 = vsel %vm3796, %v3799, %v3802
      %v3804 = vsel %vm3794, nan, %v3803
      %v3805 = vand.u32 2147483647, %v2243
      %vm3806 = vcmp.le.f32.partialorder %v3805, 0.7853982
      %vm3807 = vcmp.lt.s32.totalorder %v2243, 0
      %v3808 = vand.u32 %v2243, 2139095040
      %v3809 = vshrl.u32 %v3808, 23
      %v3810 = vsub.s32 %v3809, 127
      %v3811 = vand.u32 2147483647, %v2243
      %v3812 = vand.u32 %v3811, 8388607
      %v3813 = vor.u32 %v3812, 8388608
      %v3814 = vsub.s32 0, %v3813
      %v3815 = vadd.s32 %v3810, 1
      %vm3816 = vcmp.gt.s32.totalorder %v3815, 0
      %v3817 = vsel %vm3816, %v3815, 0
      %v3818 = vshrl.u32 %v3817, 5
      %v3819 = vand.u32 %v3817, 31
      %v3820 = vsub.s32 32, %v3819
      %v3821 = vshrl.u32 683565275, %v3820
      %v3822 = vshll.u32 683565275, %v3819
      %v3823 = vshrl.u32 2475754826, %v3820
      %v3824 = vor.u32 %v3822, %v3823
      %v3825 = vshll.u32 2475754826, %v3819
      %v3826 = vshrl.u32 2131351028, %v3820
      %v3827 = vor.u32 %v3825, %v3826
      %v3828 = vshll.u32 2131351028, %v3819
      %v3829 = vshrl.u32 2102212464, %v3820
      %v3830 = vor.u32 %v3828, %v3829
      %v3831 = vshll.u32 2102212464, %v3819
      %v3832 = vshrl.u32 920167782, %v3820
      %v3833 = vor.u32 %v3831, %v3832
      %v3834 = vshll.u32 920167782, %v3819
      %v3835 = vshrl.u32 1326507024, %v3820
      %v3836 = vor.u32 %v3834, %v3835
      %vm3837 = vcmp.lt.s32.totalorder %v3818, 1
      %vm3838 = vcmp.lt.s32.totalorder %v3818, 2
      %vm3839 = vcmp.lt.s32.totalorder %v3818, 3
      %vm3840 = vcmp.lt.s32.totalorder %v3818, 4
      %v3841 = vsel %vm3837, %v3821, %v3824
      %v3842 = vsel %vm3840, %v3830, 2102212464
      %v3843 = vsel %vm3839, %v3827, %v3842
      %v3844 = vsel %vm3838, %v3841, %v3843
      %v3845 = vsel %vm3837, %v3824, %v3827
      %v3846 = vsel %vm3840, %v3833, 920167782
      %v3847 = vsel %vm3839, %v3830, %v3846
      %v3848 = vsel %vm3838, %v3845, %v3847
      %v3849 = vsel %vm3837, %v3827, %v3830
      %v3850 = vsel %vm3840, %v3836, 1326507024
      %v3851 = vsel %vm3839, %v3833, %v3850
      %v3852 = vsel %vm3838, %v3849, %v3851
      %v3853 = vshll.u32 %v3813, 8
      %v3854 = vmul.u32.u64.compose %v3853, %v3852
      %v3855 = vextract.low.u32 %v3854
      %v3856 = vextract.high.u32 %v3854
      %v3857 = vmul.u32.u64.compose %v3853, %v3848
      %v3858 = vextract.low.u32 %v3857
      %v3859 = vextract.high.u32 %v3857
      %v3860 = vmul.u32 %v3853, %v3844
      %v3861 = vadd.s32 %v3856, %v3858
      %vm3862 = vc.u32 %v3856, %v3858
      %v3863 = vadd.s32 %v3859, 1
      %v3864 = vsel %vm3862, %v3863, %v3859
      %v3865 = vadd.s32 %v3860, %v3864
      %v3866 = vadd.s32 %v3865, 536870912
      %v3867 = vshrl.u32 %v3866, 30
      %v3868 = vshll.u32 %v3867, 30
      %v3869 = vsub.s32 %v3865, %v3868
      %vm3870 = vcmp.lt.s32.totalorder %v3869, 0
      %v3871 = vsub.s32 0, %v3869
      %v3872 = vsel %vm3870, %v3871, %v3869
      %v3873 = vclz %v3872
      %v3874 = vsub.s32 %v3873, 2
      %vm3875 = vcmp.gt.s32.totalorder 0, %v3874
      %v3876 = vsel %vm3875, 0, %v3874
      %v3877 = vsub.s32 32, %v3876
      %v3878 = vshll.u32 %v3869, %v3876
      %v3879 = vshrl.u32 %v3861, %v3877
      %v3880 = vor.u32 %v3878, %v3879
      %v3881 = vsub.s32 4294967266, %v3876
      %v3882 = vadd.s32 %v3881, 127
      %v3883 = vshll.u32 %v3882, 23
      %v3884 = vor.u32 4788187, %v3883
      %v3885 = vand.u32 2147483647, %v3884
      %v3887 = vcvt.s32.f32 %v3880
      %v3888 = vmul.f32 %v3887, %v3885
      %v3889 = vxor.u32 %v3888, 2147483648
      %v3890 = vsel %vm3807, %v3889, %v3888
      %v3891 = vsub.s32 4, %v3867
      %v3892 = vsel %vm3807, %v3891, %v3867
      %v3893 = vsel %vm3806, %v2243, %v3890
      %v3894 = vsel %vm3806, 0, %v3892
      %v3895 = vcosq.f32.pop %v3893
      %v3896 = vsinq.f32.pop %v3893
      %vm3897 = vweird.f32 %v2243
      %v3898 = vand.u32 %v3894, 3
      %vm3899 = vcmp.lt.s32.totalorder %v3898, 2
      %vm3900 = vcmp.eq.s32.totalorder %v3898, 0
      %v3901 = vxor.u32 %v3896, 2147483648
      %v3902 = vsel %vm3900, %v3895, %v3901
      %vm3903 = vcmp.eq.s32.totalorder %v3898, 2
      %v3904 = vxor.u32 %v3895, 2147483648
      %v3905 = vsel %vm3903, %v3904, %v3896
      %v3906 = vsel %vm3899, %v3902, %v3905
      %v3907 = vsel %vm3897, nan, %v3906
      %v3908 = vand.u32 2147483647, %v2244
      %vm3909 = vcmp.le.f32.partialorder %v3908, 0.7853982
      %vm3910 = vcmp.lt.s32.totalorder %v2244, 0
      %v3911 = vand.u32 %v2244, 2139095040
      %v3912 = vshrl.u32 %v3911, 23
      %v3913 = vsub.s32 %v3912, 127
      %v3914 = vand.u32 2147483647, %v2244
      %v3915 = vand.u32 %v3914, 8388607
      %v3916 = vor.u32 %v3915, 8388608
      %v3917 = vsub.s32 0, %v3916
      %v3918 = vadd.s32 %v3913, 1
      %vm3919 = vcmp.gt.s32.totalorder %v3918, 0
      %v3920 = vsel %vm3919, %v3918, 0
      %v3921 = vshrl.u32 %v3920, 5
      %v3922 = vand.u32 %v3920, 31
      %v3923 = vsub.s32 32, %v3922
      %v3924 = vshrl.u32 683565275, %v3923
      %v3925 = vshll.u32 683565275, %v3922
      %v3926 = vshrl.u32 2475754826, %v3923
      %v3927 = vor.u32 %v3925, %v3926
      %v3928 = vshll.u32 2475754826, %v3922
      %v3929 = vshrl.u32 2131351028, %v3923
      %v3930 = vor.u32 %v3928, %v3929
      %v3931 = vshll.u32 2131351028, %v3922
      %v3932 = vshrl.u32 2102212464, %v3923
      %v3933 = vor.u32 %v3931, %v3932
      %v3934 = vshll.u32 2102212464, %v3922
      %v3935 = vshrl.u32 920167782, %v3923
      %v3936 = vor.u32 %v3934, %v3935
      %v3937 = vshll.u32 920167782, %v3922
      %v3938 = vshrl.u32 1326507024, %v3923
      %v3939 = vor.u32 %v3937, %v3938
      %vm3940 = vcmp.lt.s32.totalorder %v3921, 1
      %vm3941 = vcmp.lt.s32.totalorder %v3921, 2
      %vm3942 = vcmp.lt.s32.totalorder %v3921, 3
      %vm3943 = vcmp.lt.s32.totalorder %v3921, 4
      %v3944 = vsel %vm3940, %v3924, %v3927
      %v3945 = vsel %vm3943, %v3933, 2102212464
      %v3946 = vsel %vm3942, %v3930, %v3945
      %v3947 = vsel %vm3941, %v3944, %v3946
      %v3948 = vsel %vm3940, %v3927, %v3930
      %v3949 = vsel %vm3943, %v3936, 920167782
      %v3950 = vsel %vm3942, %v3933, %v3949
      %v3951 = vsel %vm3941, %v3948, %v3950
      %v3952 = vsel %vm3940, %v3930, %v3933
      %v3953 = vsel %vm3943, %v3939, 1326507024
      %v3954 = vsel %vm3942, %v3936, %v3953
      %v3955 = vsel %vm3941, %v3952, %v3954
      %v3956 = vshll.u32 %v3916, 8
      %v3957 = vmul.u32.u64.compose %v3956, %v3955
      %v3958 = vextract.low.u32 %v3957
      %v3959 = vextract.high.u32 %v3957
      %v3960 = vmul.u32.u64.compose %v3956, %v3951
      %v3961 = vextract.low.u32 %v3960
      %v3962 = vextract.high.u32 %v3960
      %v3963 = vmul.u32 %v3956, %v3947
      %v3964 = vadd.s32 %v3959, %v3961
      %vm3965 = vc.u32 %v3959, %v3961
      %v3966 = vadd.s32 %v3962, 1
      %v3967 = vsel %vm3965, %v3966, %v3962
      %v3968 = vadd.s32 %v3963, %v3967
      %v3969 = vadd.s32 %v3968, 536870912
      %v3970 = vshrl.u32 %v3969, 30
      %v3971 = vshll.u32 %v3970, 30
      %v3972 = vsub.s32 %v3968, %v3971
      %vm3973 = vcmp.lt.s32.totalorder %v3972, 0
      %v3974 = vsub.s32 0, %v3972
      %v3975 = vsel %vm3973, %v3974, %v3972
      %v3976 = vclz %v3975
      %v3977 = vsub.s32 %v3976, 2
      %vm3978 = vcmp.gt.s32.totalorder 0, %v3977
      %v3979 = vsel %vm3978, 0, %v3977
      %v3980 = vsub.s32 32, %v3979
      %v3981 = vshll.u32 %v3972, %v3979
      %v3982 = vshrl.u32 %v3964, %v3980
      %v3983 = vor.u32 %v3981, %v3982
      %v3984 = vsub.s32 4294967266, %v3979
      %v3985 = vadd.s32 %v3984, 127
      %v3986 = vshll.u32 %v3985, 23
      %v3987 = vor.u32 4788187, %v3986
      %v3988 = vand.u32 2147483647, %v3987
      %v3990 = vcvt.s32.f32 %v3983
      %v3991 = vmul.f32 %v3990, %v3988
      %v3992 = vxor.u32 %v3991, 2147483648
      %v3993 = vsel %vm3910, %v3992, %v3991
      %v3994 = vsub.s32 4, %v3970
      %v3995 = vsel %vm3910, %v3994, %v3970
      %v3996 = vsel %vm3909, %v2244, %v3993
      %v3997 = vsel %vm3909, 0, %v3995
      %v3998 = vcosq.f32.pop %v3996
      %v3999 = vsinq.f32.pop %v3996
      %vm4000 = vweird.f32 %v2244
      %v4001 = vand.u32 %v3997, 3
      %vm4002 = vcmp.lt.s32.totalorder %v4001, 2
      %vm4003 = vcmp.eq.s32.totalorder %v4001, 0
      %v4004 = vxor.u32 %v3999, 2147483648
      %v4005 = vsel %vm4003, %v3998, %v4004
      %vm4006 = vcmp.eq.s32.totalorder %v4001, 2
      %v4007 = vxor.u32 %v3998, 2147483648
      %v4008 = vsel %vm4006, %v4007, %v3999
      %v4009 = vsel %vm4002, %v4005, %v4008
      %v4010 = vsel %vm4000, nan, %v4009
      %v4011 = vand.u32 2147483647, %v2245
      %vm4012 = vcmp.le.f32.partialorder %v4011, 0.7853982
      %vm4013 = vcmp.lt.s32.totalorder %v2245, 0
      %v4014 = vand.u32 %v2245, 2139095040
      %v4015 = vshrl.u32 %v4014, 23
      %v4016 = vsub.s32 %v4015, 127
      %v4017 = vand.u32 2147483647, %v2245
      %v4018 = vand.u32 %v4017, 8388607
      %v4019 = vor.u32 %v4018, 8388608
      %v4020 = vsub.s32 0, %v4019
      %v4021 = vadd.s32 %v4016, 1
      %vm4022 = vcmp.gt.s32.totalorder %v4021, 0
      %v4023 = vsel %vm4022, %v4021, 0
      %v4024 = vshrl.u32 %v4023, 5
      %v4025 = vand.u32 %v4023, 31
      %v4026 = vsub.s32 32, %v4025
      %v4027 = vshrl.u32 683565275, %v4026
      %v4028 = vshll.u32 683565275, %v4025
      %v4029 = vshrl.u32 2475754826, %v4026
      %v4030 = vor.u32 %v4028, %v4029
      %v4031 = vshll.u32 2475754826, %v4025
      %v4032 = vshrl.u32 2131351028, %v4026
      %v4033 = vor.u32 %v4031, %v4032
      %v4034 = vshll.u32 2131351028, %v4025
      %v4035 = vshrl.u32 2102212464, %v4026
      %v4036 = vor.u32 %v4034, %v4035
      %v4037 = vshll.u32 2102212464, %v4025
      %v4038 = vshrl.u32 920167782, %v4026
      %v4039 = vor.u32 %v4037, %v4038
      %v4040 = vshll.u32 920167782, %v4025
      %v4041 = vshrl.u32 1326507024, %v4026
      %v4042 = vor.u32 %v4040, %v4041
      %vm4043 = vcmp.lt.s32.totalorder %v4024, 1
      %vm4044 = vcmp.lt.s32.totalorder %v4024, 2
      %vm4045 = vcmp.lt.s32.totalorder %v4024, 3
      %vm4046 = vcmp.lt.s32.totalorder %v4024, 4
      %v4047 = vsel %vm4043, %v4027, %v4030
      %v4048 = vsel %vm4046, %v4036, 2102212464
      %v4049 = vsel %vm4045, %v4033, %v4048
      %v4050 = vsel %vm4044, %v4047, %v4049
      %v4051 = vsel %vm4043, %v4030, %v4033
      %v4052 = vsel %vm4046, %v4039, 920167782
      %v4053 = vsel %vm4045, %v4036, %v4052
      %v4054 = vsel %vm4044, %v4051, %v4053
      %v4055 = vsel %vm4043, %v4033, %v4036
      %v4056 = vsel %vm4046, %v4042, 1326507024
      %v4057 = vsel %vm4045, %v4039, %v4056
      %v4058 = vsel %vm4044, %v4055, %v4057
      %v4059 = vshll.u32 %v4019, 8
      %v4060 = vmul.u32.u64.compose %v4059, %v4058
      %v4061 = vextract.low.u32 %v4060
      %v4062 = vextract.high.u32 %v4060
      %v4063 = vmul.u32.u64.compose %v4059, %v4054
      %v4064 = vextract.low.u32 %v4063
      %v4065 = vextract.high.u32 %v4063
      %v4066 = vmul.u32 %v4059, %v4050
      %v4067 = vadd.s32 %v4062, %v4064
      %vm4068 = vc.u32 %v4062, %v4064
      %v4069 = vadd.s32 %v4065, 1
      %v4070 = vsel %vm4068, %v4069, %v4065
      %v4071 = vadd.s32 %v4066, %v4070
      %v4072 = vadd.s32 %v4071, 536870912
      %v4073 = vshrl.u32 %v4072, 30
      %v4074 = vshll.u32 %v4073, 30
      %v4075 = vsub.s32 %v4071, %v4074
      %vm4076 = vcmp.lt.s32.totalorder %v4075, 0
      %v4077 = vsub.s32 0, %v4075
      %v4078 = vsel %vm4076, %v4077, %v4075
      %v4079 = vclz %v4078
      %v4080 = vsub.s32 %v4079, 2
      %vm4081 = vcmp.gt.s32.totalorder 0, %v4080
      %v4082 = vsel %vm4081, 0, %v4080
      %v4083 = vsub.s32 32, %v4082
      %v4084 = vshll.u32 %v4075, %v4082
      %v4085 = vshrl.u32 %v4067, %v4083
      %v4086 = vor.u32 %v4084, %v4085
      %v4087 = vsub.s32 4294967266, %v4082
      %v4088 = vadd.s32 %v4087, 127
      %v4089 = vshll.u32 %v4088, 23
      %v4090 = vor.u32 4788187, %v4089
      %v4091 = vand.u32 2147483647, %v4090
      %v4093 = vcvt.s32.f32 %v4086
      %v4094 = vmul.f32 %v4093, %v4091
      %v4095 = vxor.u32 %v4094, 2147483648
      %v4096 = vsel %vm4013, %v4095, %v4094
      %v4097 = vsub.s32 4, %v4073
      %v4098 = vsel %vm4013, %v4097, %v4073
      %v4099 = vsel %vm4012, %v2245, %v4096
      %v4100 = vsel %vm4012, 0, %v4098
      %v4101 = vcosq.f32.pop %v4099
      %v4102 = vsinq.f32.pop %v4099
      %vm4103 = vweird.f32 %v2245
      %v4104 = vand.u32 %v4100, 3
      %vm4105 = vcmp.lt.s32.totalorder %v4104, 2
      %vm4106 = vcmp.eq.s32.totalorder %v4104, 0
      %v4107 = vxor.u32 %v4102, 2147483648
      %v4108 = vsel %vm4106, %v4101, %v4107
      %vm4109 = vcmp.eq.s32.totalorder %v4104, 2
      %v4110 = vxor.u32 %v4101, 2147483648
      %v4111 = vsel %vm4109, %v4110, %v4102
      %v4112 = vsel %vm4105, %v4108, %v4111
      %v4113 = vsel %vm4103, nan, %v4112
      %v4114 = vand.u32 2147483647, %v2246
      %vm4115 = vcmp.le.f32.partialorder %v4114, 0.7853982
      %vm4116 = vcmp.lt.s32.totalorder %v2246, 0
      %v4117 = vand.u32 %v2246, 2139095040
      %v4118 = vshrl.u32 %v4117, 23
      %v4119 = vsub.s32 %v4118, 127
      %v4120 = vand.u32 2147483647, %v2246
      %v4121 = vand.u32 %v4120, 8388607
      %v4122 = vor.u32 %v4121, 8388608
      %v4123 = vsub.s32 0, %v4122
      %v4124 = vadd.s32 %v4119, 1
      %vm4125 = vcmp.gt.s32.totalorder %v4124, 0
      %v4126 = vsel %vm4125, %v4124, 0
      %v4127 = vshrl.u32 %v4126, 5
      %v4128 = vand.u32 %v4126, 31
      %v4129 = vsub.s32 32, %v4128
      %v4130 = vshrl.u32 683565275, %v4129
      %v4131 = vshll.u32 683565275, %v4128
      %v4132 = vshrl.u32 2475754826, %v4129
      %v4133 = vor.u32 %v4131, %v4132
      %v4134 = vshll.u32 2475754826, %v4128
      %v4135 = vshrl.u32 2131351028, %v4129
      %v4136 = vor.u32 %v4134, %v4135
      %v4137 = vshll.u32 2131351028, %v4128
      %v4138 = vshrl.u32 2102212464, %v4129
      %v4139 = vor.u32 %v4137, %v4138
      %v4140 = vshll.u32 2102212464, %v4128
      %v4141 = vshrl.u32 920167782, %v4129
      %v4142 = vor.u32 %v4140, %v4141
      %v4143 = vshll.u32 920167782, %v4128
      %v4144 = vshrl.u32 1326507024, %v4129
      %v4145 = vor.u32 %v4143, %v4144
      %vm4146 = vcmp.lt.s32.totalorder %v4127, 1
      %vm4147 = vcmp.lt.s32.totalorder %v4127, 2
      %vm4148 = vcmp.lt.s32.totalorder %v4127, 3
      %vm4149 = vcmp.lt.s32.totalorder %v4127, 4
      %v4150 = vsel %vm4146, %v4130, %v4133
      %v4151 = vsel %vm4149, %v4139, 2102212464
      %v4152 = vsel %vm4148, %v4136, %v4151
      %v4153 = vsel %vm4147, %v4150, %v4152
      %v4154 = vsel %vm4146, %v4133, %v4136
      %v4155 = vsel %vm4149, %v4142, 920167782
      %v4156 = vsel %vm4148, %v4139, %v4155
      %v4157 = vsel %vm4147, %v4154, %v4156
      %v4158 = vsel %vm4146, %v4136, %v4139
      %v4159 = vsel %vm4149, %v4145, 1326507024
      %v4160 = vsel %vm4148, %v4142, %v4159
      %v4161 = vsel %vm4147, %v4158, %v4160
      %v4162 = vshll.u32 %v4122, 8
      %v4163 = vmul.u32.u64.compose %v4162, %v4161
      %v4164 = vextract.low.u32 %v4163
      %v4165 = vextract.high.u32 %v4163
      %v4166 = vmul.u32.u64.compose %v4162, %v4157
      %v4167 = vextract.low.u32 %v4166
      %v4168 = vextract.high.u32 %v4166
      %v4169 = vmul.u32 %v4162, %v4153
      %v4170 = vadd.s32 %v4165, %v4167
      %vm4171 = vc.u32 %v4165, %v4167
      %v4172 = vadd.s32 %v4168, 1
      %v4173 = vsel %vm4171, %v4172, %v4168
      %v4174 = vadd.s32 %v4169, %v4173
      %v4175 = vadd.s32 %v4174, 536870912
      %v4176 = vshrl.u32 %v4175, 30
      %v4177 = vshll.u32 %v4176, 30
      %v4178 = vsub.s32 %v4174, %v4177
      %vm4179 = vcmp.lt.s32.totalorder %v4178, 0
      %v4180 = vsub.s32 0, %v4178
      %v4181 = vsel %vm4179, %v4180, %v4178
      %v4182 = vclz %v4181
      %v4183 = vsub.s32 %v4182, 2
      %vm4184 = vcmp.gt.s32.totalorder 0, %v4183
      %v4185 = vsel %vm4184, 0, %v4183
      %v4186 = vsub.s32 32, %v4185
      %v4187 = vshll.u32 %v4178, %v4185
      %v4188 = vshrl.u32 %v4170, %v4186
      %v4189 = vor.u32 %v4187, %v4188
      %v4190 = vsub.s32 4294967266, %v4185
      %v4191 = vadd.s32 %v4190, 127
      %v4192 = vshll.u32 %v4191, 23
      %v4193 = vor.u32 4788187, %v4192
      %v4194 = vand.u32 2147483647, %v4193
      %v4196 = vcvt.s32.f32 %v4189
      %v4197 = vmul.f32 %v4196, %v4194
      %v4198 = vxor.u32 %v4197, 2147483648
      %v4199 = vsel %vm4116, %v4198, %v4197
      %v4200 = vsub.s32 4, %v4176
      %v4201 = vsel %vm4116, %v4200, %v4176
      %v4202 = vsel %vm4115, %v2246, %v4199
      %v4203 = vsel %vm4115, 0, %v4201
      %v4204 = vcosq.f32.pop %v4202
      %v4205 = vsinq.f32.pop %v4202
      %vm4206 = vweird.f32 %v2246
      %v4207 = vand.u32 %v4203, 3
      %vm4208 = vcmp.lt.s32.totalorder %v4207, 2
      %vm4209 = vcmp.eq.s32.totalorder %v4207, 0
      %v4210 = vxor.u32 %v4205, 2147483648
      %v4211 = vsel %vm4209, %v4204, %v4210
      %vm4212 = vcmp.eq.s32.totalorder %v4207, 2
      %v4213 = vxor.u32 %v4204, 2147483648
      %v4214 = vsel %vm4212, %v4213, %v4205
      %v4215 = vsel %vm4208, %v4211, %v4214
      %v4216 = vsel %vm4206, nan, %v4215
      %v4217 = vand.u32 2147483647, %v2247
      %vm4218 = vcmp.le.f32.partialorder %v4217, 0.7853982
      %vm4219 = vcmp.lt.s32.totalorder %v2247, 0
      %v4220 = vand.u32 %v2247, 2139095040
      %v4221 = vshrl.u32 %v4220, 23
      %v4222 = vsub.s32 %v4221, 127
      %v4223 = vand.u32 2147483647, %v2247
      %v4224 = vand.u32 %v4223, 8388607
      %v4225 = vor.u32 %v4224, 8388608
      %v4226 = vsub.s32 0, %v4225
      %v4227 = vadd.s32 %v4222, 1
      %vm4228 = vcmp.gt.s32.totalorder %v4227, 0
      %v4229 = vsel %vm4228, %v4227, 0
      %v4230 = vshrl.u32 %v4229, 5
      %v4231 = vand.u32 %v4229, 31
      %v4232 = vsub.s32 32, %v4231
      %v4233 = vshrl.u32 683565275, %v4232
      %v4234 = vshll.u32 683565275, %v4231
      %v4235 = vshrl.u32 2475754826, %v4232
      %v4236 = vor.u32 %v4234, %v4235
      %v4237 = vshll.u32 2475754826, %v4231
      %v4238 = vshrl.u32 2131351028, %v4232
      %v4239 = vor.u32 %v4237, %v4238
      %v4240 = vshll.u32 2131351028, %v4231
      %v4241 = vshrl.u32 2102212464, %v4232
      %v4242 = vor.u32 %v4240, %v4241
      %v4243 = vshll.u32 2102212464, %v4231
      %v4244 = vshrl.u32 920167782, %v4232
      %v4245 = vor.u32 %v4243, %v4244
      %v4246 = vshll.u32 920167782, %v4231
      %v4247 = vshrl.u32 1326507024, %v4232
      %v4248 = vor.u32 %v4246, %v4247
      %vm4249 = vcmp.lt.s32.totalorder %v4230, 1
      %vm4250 = vcmp.lt.s32.totalorder %v4230, 2
      %vm4251 = vcmp.lt.s32.totalorder %v4230, 3
      %vm4252 = vcmp.lt.s32.totalorder %v4230, 4
      %v4253 = vsel %vm4249, %v4233, %v4236
      %v4254 = vsel %vm4252, %v4242, 2102212464
      %v4255 = vsel %vm4251, %v4239, %v4254
      %v4256 = vsel %vm4250, %v4253, %v4255
      %v4257 = vsel %vm4249, %v4236, %v4239
      %v4258 = vsel %vm4252, %v4245, 920167782
      %v4259 = vsel %vm4251, %v4242, %v4258
      %v4260 = vsel %vm4250, %v4257, %v4259
      %v4261 = vsel %vm4249, %v4239, %v4242
      %v4262 = vsel %vm4252, %v4248, 1326507024
      %v4263 = vsel %vm4251, %v4245, %v4262
      %v4264 = vsel %vm4250, %v4261, %v4263
      %v4265 = vshll.u32 %v4225, 8
      %v4266 = vmul.u32.u64.compose %v4265, %v4264
      %v4267 = vextract.low.u32 %v4266
      %v4268 = vextract.high.u32 %v4266
      %v4269 = vmul.u32.u64.compose %v4265, %v4260
      %v4270 = vextract.low.u32 %v4269
      %v4271 = vextract.high.u32 %v4269
      %v4272 = vmul.u32 %v4265, %v4256
      %v4273 = vadd.s32 %v4268, %v4270
      %vm4274 = vc.u32 %v4268, %v4270
      %v4275 = vadd.s32 %v4271, 1
      %v4276 = vsel %vm4274, %v4275, %v4271
      %v4277 = vadd.s32 %v4272, %v4276
      %v4278 = vadd.s32 %v4277, 536870912
      %v4279 = vshrl.u32 %v4278, 30
      %v4280 = vshll.u32 %v4279, 30
      %v4281 = vsub.s32 %v4277, %v4280
      %vm4282 = vcmp.lt.s32.totalorder %v4281, 0
      %v4283 = vsub.s32 0, %v4281
      %v4284 = vsel %vm4282, %v4283, %v4281
      %v4285 = vclz %v4284
      %v4286 = vsub.s32 %v4285, 2
      %vm4287 = vcmp.gt.s32.totalorder 0, %v4286
      %v4288 = vsel %vm4287, 0, %v4286
      %v4289 = vsub.s32 32, %v4288
      %v4290 = vshll.u32 %v4281, %v4288
      %v4291 = vshrl.u32 %v4273, %v4289
      %v4292 = vor.u32 %v4290, %v4291
      %v4293 = vsub.s32 4294967266, %v4288
      %v4294 = vadd.s32 %v4293, 127
      %v4295 = vshll.u32 %v4294, 23
      %v4296 = vor.u32 4788187, %v4295
      %v4297 = vand.u32 2147483647, %v4296
      %v4299 = vcvt.s32.f32 %v4292
      %v4300 = vmul.f32 %v4299, %v4297
      %v4301 = vxor.u32 %v4300, 2147483648
      %v4302 = vsel %vm4219, %v4301, %v4300
      %v4303 = vsub.s32 4, %v4279
      %v4304 = vsel %vm4219, %v4303, %v4279
      %v4305 = vsel %vm4218, %v2247, %v4302
      %v4306 = vsel %vm4218, 0, %v4304
      %v4307 = vcosq.f32.pop %v4305
      %v4308 = vsinq.f32.pop %v4305
      %vm4309 = vweird.f32 %v2247
      %v4310 = vand.u32 %v4306, 3
      %vm4311 = vcmp.lt.s32.totalorder %v4310, 2
      %vm4312 = vcmp.eq.s32.totalorder %v4310, 0
      %v4313 = vxor.u32 %v4308, 2147483648
      %v4314 = vsel %vm4312, %v4307, %v4313
      %vm4315 = vcmp.eq.s32.totalorder %v4310, 2
      %v4316 = vxor.u32 %v4307, 2147483648
      %v4317 = vsel %vm4315, %v4316, %v4308
      %v4318 = vsel %vm4311, %v4314, %v4317
      %v4319 = vsel %vm4309, nan, %v4318
      %v4320 = vand.u32 2147483647, %v2248
      %vm4321 = vcmp.le.f32.partialorder %v4320, 0.7853982
      %vm4322 = vcmp.lt.s32.totalorder %v2248, 0
      %v4323 = vand.u32 %v2248, 2139095040
      %v4324 = vshrl.u32 %v4323, 23
      %v4325 = vsub.s32 %v4324, 127
      %v4326 = vand.u32 2147483647, %v2248
      %v4327 = vand.u32 %v4326, 8388607
      %v4328 = vor.u32 %v4327, 8388608
      %v4329 = vsub.s32 0, %v4328
      %v4330 = vadd.s32 %v4325, 1
      %vm4331 = vcmp.gt.s32.totalorder %v4330, 0
      %v4332 = vsel %vm4331, %v4330, 0
      %v4333 = vshrl.u32 %v4332, 5
      %v4334 = vand.u32 %v4332, 31
      %v4335 = vsub.s32 32, %v4334
      %v4336 = vshrl.u32 683565275, %v4335
      %v4337 = vshll.u32 683565275, %v4334
      %v4338 = vshrl.u32 2475754826, %v4335
      %v4339 = vor.u32 %v4337, %v4338
      %v4340 = vshll.u32 2475754826, %v4334
      %v4341 = vshrl.u32 2131351028, %v4335
      %v4342 = vor.u32 %v4340, %v4341
      %v4343 = vshll.u32 2131351028, %v4334
      %v4344 = vshrl.u32 2102212464, %v4335
      %v4345 = vor.u32 %v4343, %v4344
      %v4346 = vshll.u32 2102212464, %v4334
      %v4347 = vshrl.u32 920167782, %v4335
      %v4348 = vor.u32 %v4346, %v4347
      %v4349 = vshll.u32 920167782, %v4334
      %v4350 = vshrl.u32 1326507024, %v4335
      %v4351 = vor.u32 %v4349, %v4350
      %vm4352 = vcmp.lt.s32.totalorder %v4333, 1
      %vm4353 = vcmp.lt.s32.totalorder %v4333, 2
      %vm4354 = vcmp.lt.s32.totalorder %v4333, 3
      %vm4355 = vcmp.lt.s32.totalorder %v4333, 4
      %v4356 = vsel %vm4352, %v4336, %v4339
      %v4357 = vsel %vm4355, %v4345, 2102212464
      %v4358 = vsel %vm4354, %v4342, %v4357
      %v4359 = vsel %vm4353, %v4356, %v4358
      %v4360 = vsel %vm4352, %v4339, %v4342
      %v4361 = vsel %vm4355, %v4348, 920167782
      %v4362 = vsel %vm4354, %v4345, %v4361
      %v4363 = vsel %vm4353, %v4360, %v4362
      %v4364 = vsel %vm4352, %v4342, %v4345
      %v4365 = vsel %vm4355, %v4351, 1326507024
      %v4366 = vsel %vm4354, %v4348, %v4365
      %v4367 = vsel %vm4353, %v4364, %v4366
      %v4368 = vshll.u32 %v4328, 8
      %v4369 = vmul.u32.u64.compose %v4368, %v4367
      %v4370 = vextract.low.u32 %v4369
      %v4371 = vextract.high.u32 %v4369
      %v4372 = vmul.u32.u64.compose %v4368, %v4363
      %v4373 = vextract.low.u32 %v4372
      %v4374 = vextract.high.u32 %v4372
      %v4375 = vmul.u32 %v4368, %v4359
      %v4376 = vadd.s32 %v4371, %v4373
      %vm4377 = vc.u32 %v4371, %v4373
      %v4378 = vadd.s32 %v4374, 1
      %v4379 = vsel %vm4377, %v4378, %v4374
      %v4380 = vadd.s32 %v4375, %v4379
      %v4381 = vadd.s32 %v4380, 536870912
      %v4382 = vshrl.u32 %v4381, 30
      %v4383 = vshll.u32 %v4382, 30
      %v4384 = vsub.s32 %v4380, %v4383
      %vm4385 = vcmp.lt.s32.totalorder %v4384, 0
      %v4386 = vsub.s32 0, %v4384
      %v4387 = vsel %vm4385, %v4386, %v4384
      %v4388 = vclz %v4387
      %v4389 = vsub.s32 %v4388, 2
      %vm4390 = vcmp.gt.s32.totalorder 0, %v4389
      %v4391 = vsel %vm4390, 0, %v4389
      %v4392 = vsub.s32 32, %v4391
      %v4393 = vshll.u32 %v4384, %v4391
      %v4394 = vshrl.u32 %v4376, %v4392
      %v4395 = vor.u32 %v4393, %v4394
      %v4396 = vsub.s32 4294967266, %v4391
      %v4397 = vadd.s32 %v4396, 127
      %v4398 = vshll.u32 %v4397, 23
      %v4399 = vor.u32 4788187, %v4398
      %v4400 = vand.u32 2147483647, %v4399
      %v4402 = vcvt.s32.f32 %v4395
      %v4403 = vmul.f32 %v4402, %v4400
      %v4404 = vxor.u32 %v4403, 2147483648
      %v4405 = vsel %vm4322, %v4404, %v4403
      %v4406 = vsub.s32 4, %v4382
      %v4407 = vsel %vm4322, %v4406, %v4382
      %v4408 = vsel %vm4321, %v2248, %v4405
      %v4409 = vsel %vm4321, 0, %v4407
      %v4410 = vcosq.f32.pop %v4408
      %v4411 = vsinq.f32.pop %v4408
      %vm4412 = vweird.f32 %v2248
      %v4413 = vand.u32 %v4409, 3
      %vm4414 = vcmp.lt.s32.totalorder %v4413, 2
      %vm4415 = vcmp.eq.s32.totalorder %v4413, 0
      %v4416 = vxor.u32 %v4411, 2147483648
      %v4417 = vsel %vm4415, %v4410, %v4416
      %vm4418 = vcmp.eq.s32.totalorder %v4413, 2
      %v4419 = vxor.u32 %v4410, 2147483648
      %v4420 = vsel %vm4418, %v4419, %v4411
      %v4421 = vsel %vm4414, %v4417, %v4420
      %v4422 = vsel %vm4412, nan, %v4421
      %v4423 = vand.u32 2147483647, %v2249
      %vm4424 = vcmp.le.f32.partialorder %v4423, 0.7853982
      %vm4425 = vcmp.lt.s32.totalorder %v2249, 0
      %v4426 = vand.u32 %v2249, 2139095040
      %v4427 = vshrl.u32 %v4426, 23
      %v4428 = vsub.s32 %v4427, 127
      %v4429 = vand.u32 2147483647, %v2249
      %v4430 = vand.u32 %v4429, 8388607
      %v4431 = vor.u32 %v4430, 8388608
      %v4432 = vsub.s32 0, %v4431
      %v4433 = vadd.s32 %v4428, 1
      %vm4434 = vcmp.gt.s32.totalorder %v4433, 0
      %v4435 = vsel %vm4434, %v4433, 0
      %v4436 = vshrl.u32 %v4435, 5
      %v4437 = vand.u32 %v4435, 31
      %v4438 = vsub.s32 32, %v4437
      %v4439 = vshrl.u32 683565275, %v4438
      %v4440 = vshll.u32 683565275, %v4437
      %v4441 = vshrl.u32 2475754826, %v4438
      %v4442 = vor.u32 %v4440, %v4441
      %v4443 = vshll.u32 2475754826, %v4437
      %v4444 = vshrl.u32 2131351028, %v4438
      %v4445 = vor.u32 %v4443, %v4444
      %v4446 = vshll.u32 2131351028, %v4437
      %v4447 = vshrl.u32 2102212464, %v4438
      %v4448 = vor.u32 %v4446, %v4447
      %v4449 = vshll.u32 2102212464, %v4437
      %v4450 = vshrl.u32 920167782, %v4438
      %v4451 = vor.u32 %v4449, %v4450
      %v4452 = vshll.u32 920167782, %v4437
      %v4453 = vshrl.u32 1326507024, %v4438
      %v4454 = vor.u32 %v4452, %v4453
      %vm4455 = vcmp.lt.s32.totalorder %v4436, 1
      %vm4456 = vcmp.lt.s32.totalorder %v4436, 2
      %vm4457 = vcmp.lt.s32.totalorder %v4436, 3
      %vm4458 = vcmp.lt.s32.totalorder %v4436, 4
      %v4459 = vsel %vm4455, %v4439, %v4442
      %v4460 = vsel %vm4458, %v4448, 2102212464
      %v4461 = vsel %vm4457, %v4445, %v4460
      %v4462 = vsel %vm4456, %v4459, %v4461
      %v4463 = vsel %vm4455, %v4442, %v4445
      %v4464 = vsel %vm4458, %v4451, 920167782
      %v4465 = vsel %vm4457, %v4448, %v4464
      %v4466 = vsel %vm4456, %v4463, %v4465
      %v4467 = vsel %vm4455, %v4445, %v4448
      %v4468 = vsel %vm4458, %v4454, 1326507024
      %v4469 = vsel %vm4457, %v4451, %v4468
      %v4470 = vsel %vm4456, %v4467, %v4469
      %v4471 = vshll.u32 %v4431, 8
      %v4472 = vmul.u32.u64.compose %v4471, %v4470
      %v4473 = vextract.low.u32 %v4472
      %v4474 = vextract.high.u32 %v4472
      %v4475 = vmul.u32.u64.compose %v4471, %v4466
      %v4476 = vextract.low.u32 %v4475
      %v4477 = vextract.high.u32 %v4475
      %v4478 = vmul.u32 %v4471, %v4462
      %v4479 = vadd.s32 %v4474, %v4476
      %vm4480 = vc.u32 %v4474, %v4476
      %v4481 = vadd.s32 %v4477, 1
      %v4482 = vsel %vm4480, %v4481, %v4477
      %v4483 = vadd.s32 %v4478, %v4482
      %v4484 = vadd.s32 %v4483, 536870912
      %v4485 = vshrl.u32 %v4484, 30
      %v4486 = vshll.u32 %v4485, 30
      %v4487 = vsub.s32 %v4483, %v4486
      %vm4488 = vcmp.lt.s32.totalorder %v4487, 0
      %v4489 = vsub.s32 0, %v4487
      %v4490 = vsel %vm4488, %v4489, %v4487
      %v4491 = vclz %v4490
      %v4492 = vsub.s32 %v4491, 2
      %vm4493 = vcmp.gt.s32.totalorder 0, %v4492
      %v4494 = vsel %vm4493, 0, %v4492
      %v4495 = vsub.s32 32, %v4494
      %v4496 = vshll.u32 %v4487, %v4494
      %v4497 = vshrl.u32 %v4479, %v4495
      %v4498 = vor.u32 %v4496, %v4497
      %v4499 = vsub.s32 4294967266, %v4494
      %v4500 = vadd.s32 %v4499, 127
      %v4501 = vshll.u32 %v4500, 23
      %v4502 = vor.u32 4788187, %v4501
      %v4503 = vand.u32 2147483647, %v4502
      %v4505 = vcvt.s32.f32 %v4498
      %v4506 = vmul.f32 %v4505, %v4503
      %v4507 = vxor.u32 %v4506, 2147483648
      %v4508 = vsel %vm4425, %v4507, %v4506
      %v4509 = vsub.s32 4, %v4485
      %v4510 = vsel %vm4425, %v4509, %v4485
      %v4511 = vsel %vm4424, %v2249, %v4508
      %v4512 = vsel %vm4424, 0, %v4510
      %v4513 = vcosq.f32.pop %v4511
      %v4514 = vsinq.f32.pop %v4511
      %vm4515 = vweird.f32 %v2249
      %v4516 = vand.u32 %v4512, 3
      %vm4517 = vcmp.lt.s32.totalorder %v4516, 2
      %vm4518 = vcmp.eq.s32.totalorder %v4516, 0
      %v4519 = vxor.u32 %v4514, 2147483648
      %v4520 = vsel %vm4518, %v4513, %v4519
      %vm4521 = vcmp.eq.s32.totalorder %v4516, 2
      %v4522 = vxor.u32 %v4513, 2147483648
      %v4523 = vsel %vm4521, %v4522, %v4514
      %v4524 = vsel %vm4517, %v4520, %v4523
      %v4525 = vsel %vm4515, nan, %v4524
      %v4526 = vand.u32 2147483647, %v2250
      %vm4527 = vcmp.le.f32.partialorder %v4526, 0.7853982
      %vm4528 = vcmp.lt.s32.totalorder %v2250, 0
      %v4529 = vand.u32 %v2250, 2139095040
      %v4530 = vshrl.u32 %v4529, 23
      %v4531 = vsub.s32 %v4530, 127
      %v4532 = vand.u32 2147483647, %v2250
      %v4533 = vand.u32 %v4532, 8388607
      %v4534 = vor.u32 %v4533, 8388608
      %v4535 = vsub.s32 0, %v4534
      %v4536 = vadd.s32 %v4531, 1
      %vm4537 = vcmp.gt.s32.totalorder %v4536, 0
      %v4538 = vsel %vm4537, %v4536, 0
      %v4539 = vshrl.u32 %v4538, 5
      %v4540 = vand.u32 %v4538, 31
      %v4541 = vsub.s32 32, %v4540
      %v4542 = vshrl.u32 683565275, %v4541
      %v4543 = vshll.u32 683565275, %v4540
      %v4544 = vshrl.u32 2475754826, %v4541
      %v4545 = vor.u32 %v4543, %v4544
      %v4546 = vshll.u32 2475754826, %v4540
      %v4547 = vshrl.u32 2131351028, %v4541
      %v4548 = vor.u32 %v4546, %v4547
      %v4549 = vshll.u32 2131351028, %v4540
      %v4550 = vshrl.u32 2102212464, %v4541
      %v4551 = vor.u32 %v4549, %v4550
      %v4552 = vshll.u32 2102212464, %v4540
      %v4553 = vshrl.u32 920167782, %v4541
      %v4554 = vor.u32 %v4552, %v4553
      %v4555 = vshll.u32 920167782, %v4540
      %v4556 = vshrl.u32 1326507024, %v4541
      %v4557 = vor.u32 %v4555, %v4556
      %vm4558 = vcmp.lt.s32.totalorder %v4539, 1
      %vm4559 = vcmp.lt.s32.totalorder %v4539, 2
      %vm4560 = vcmp.lt.s32.totalorder %v4539, 3
      %vm4561 = vcmp.lt.s32.totalorder %v4539, 4
      %v4562 = vsel %vm4558, %v4542, %v4545
      %v4563 = vsel %vm4561, %v4551, 2102212464
      %v4564 = vsel %vm4560, %v4548, %v4563
      %v4565 = vsel %vm4559, %v4562, %v4564
      %v4566 = vsel %vm4558, %v4545, %v4548
      %v4567 = vsel %vm4561, %v4554, 920167782
      %v4568 = vsel %vm4560, %v4551, %v4567
      %v4569 = vsel %vm4559, %v4566, %v4568
      %v4570 = vsel %vm4558, %v4548, %v4551
      %v4571 = vsel %vm4561, %v4557, 1326507024
      %v4572 = vsel %vm4560, %v4554, %v4571
      %v4573 = vsel %vm4559, %v4570, %v4572
      %v4574 = vshll.u32 %v4534, 8
      %v4575 = vmul.u32.u64.compose %v4574, %v4573
      %v4576 = vextract.low.u32 %v4575
      %v4577 = vextract.high.u32 %v4575
      %v4578 = vmul.u32.u64.compose %v4574, %v4569
      %v4579 = vextract.low.u32 %v4578
      %v4580 = vextract.high.u32 %v4578
      %v4581 = vmul.u32 %v4574, %v4565
      %v4582 = vadd.s32 %v4577, %v4579
      %vm4583 = vc.u32 %v4577, %v4579
      %v4584 = vadd.s32 %v4580, 1
      %v4585 = vsel %vm4583, %v4584, %v4580
      %v4586 = vadd.s32 %v4581, %v4585
      %v4587 = vadd.s32 %v4586, 536870912
      %v4588 = vshrl.u32 %v4587, 30
      %v4589 = vshll.u32 %v4588, 30
      %v4590 = vsub.s32 %v4586, %v4589
      %vm4591 = vcmp.lt.s32.totalorder %v4590, 0
      %v4592 = vsub.s32 0, %v4590
      %v4593 = vsel %vm4591, %v4592, %v4590
      %v4594 = vclz %v4593
      %v4595 = vsub.s32 %v4594, 2
      %vm4596 = vcmp.gt.s32.totalorder 0, %v4595
      %v4597 = vsel %vm4596, 0, %v4595
      %v4598 = vsub.s32 32, %v4597
      %v4599 = vshll.u32 %v4590, %v4597
      %v4600 = vshrl.u32 %v4582, %v4598
      %v4601 = vor.u32 %v4599, %v4600
      %v4602 = vsub.s32 4294967266, %v4597
      %v4603 = vadd.s32 %v4602, 127
      %v4604 = vshll.u32 %v4603, 23
      %v4605 = vor.u32 4788187, %v4604
      %v4606 = vand.u32 2147483647, %v4605
      %v4608 = vcvt.s32.f32 %v4601
      %v4609 = vmul.f32 %v4608, %v4606
      %v4610 = vxor.u32 %v4609, 2147483648
      %v4611 = vsel %vm4528, %v4610, %v4609
      %v4612 = vsub.s32 4, %v4588
      %v4613 = vsel %vm4528, %v4612, %v4588
      %v4614 = vsel %vm4527, %v2250, %v4611
      %v4615 = vsel %vm4527, 0, %v4613
      %v4616 = vcosq.f32.pop %v4614
      %v4617 = vsinq.f32.pop %v4614
      %vm4618 = vweird.f32 %v2250
      %v4619 = vand.u32 %v4615, 3
      %vm4620 = vcmp.lt.s32.totalorder %v4619, 2
      %vm4621 = vcmp.eq.s32.totalorder %v4619, 0
      %v4622 = vxor.u32 %v4617, 2147483648
      %v4623 = vsel %vm4621, %v4616, %v4622
      %vm4624 = vcmp.eq.s32.totalorder %v4619, 2
      %v4625 = vxor.u32 %v4616, 2147483648
      %v4626 = vsel %vm4624, %v4625, %v4617
      %v4627 = vsel %vm4620, %v4623, %v4626
      %v4628 = vsel %vm4618, nan, %v4627
      %v4629 = vand.u32 2147483647, %v2251
      %vm4630 = vcmp.le.f32.partialorder %v4629, 0.7853982
      %vm4631 = vcmp.lt.s32.totalorder %v2251, 0
      %v4632 = vand.u32 %v2251, 2139095040
      %v4633 = vshrl.u32 %v4632, 23
      %v4634 = vsub.s32 %v4633, 127
      %v4635 = vand.u32 2147483647, %v2251
      %v4636 = vand.u32 %v4635, 8388607
      %v4637 = vor.u32 %v4636, 8388608
      %v4638 = vsub.s32 0, %v4637
      %v4639 = vadd.s32 %v4634, 1
      %vm4640 = vcmp.gt.s32.totalorder %v4639, 0
      %v4641 = vsel %vm4640, %v4639, 0
      %v4642 = vshrl.u32 %v4641, 5
      %v4643 = vand.u32 %v4641, 31
      %v4644 = vsub.s32 32, %v4643
      %v4645 = vshrl.u32 683565275, %v4644
      %v4646 = vshll.u32 683565275, %v4643
      %v4647 = vshrl.u32 2475754826, %v4644
      %v4648 = vor.u32 %v4646, %v4647
      %v4649 = vshll.u32 2475754826, %v4643
      %v4650 = vshrl.u32 2131351028, %v4644
      %v4651 = vor.u32 %v4649, %v4650
      %v4652 = vshll.u32 2131351028, %v4643
      %v4653 = vshrl.u32 2102212464, %v4644
      %v4654 = vor.u32 %v4652, %v4653
      %v4655 = vshll.u32 2102212464, %v4643
      %v4656 = vshrl.u32 920167782, %v4644
      %v4657 = vor.u32 %v4655, %v4656
      %v4658 = vshll.u32 920167782, %v4643
      %v4659 = vshrl.u32 1326507024, %v4644
      %v4660 = vor.u32 %v4658, %v4659
      %vm4661 = vcmp.lt.s32.totalorder %v4642, 1
      %vm4662 = vcmp.lt.s32.totalorder %v4642, 2
      %vm4663 = vcmp.lt.s32.totalorder %v4642, 3
      %vm4664 = vcmp.lt.s32.totalorder %v4642, 4
      %v4665 = vsel %vm4661, %v4645, %v4648
      %v4666 = vsel %vm4664, %v4654, 2102212464
      %v4667 = vsel %vm4663, %v4651, %v4666
      %v4668 = vsel %vm4662, %v4665, %v4667
      %v4669 = vsel %vm4661, %v4648, %v4651
      %v4670 = vsel %vm4664, %v4657, 920167782
      %v4671 = vsel %vm4663, %v4654, %v4670
      %v4672 = vsel %vm4662, %v4669, %v4671
      %v4673 = vsel %vm4661, %v4651, %v4654
      %v4674 = vsel %vm4664, %v4660, 1326507024
      %v4675 = vsel %vm4663, %v4657, %v4674
      %v4676 = vsel %vm4662, %v4673, %v4675
      %v4677 = vshll.u32 %v4637, 8
      %v4678 = vmul.u32.u64.compose %v4677, %v4676
      %v4679 = vextract.low.u32 %v4678
      %v4680 = vextract.high.u32 %v4678
      %v4681 = vmul.u32.u64.compose %v4677, %v4672
      %v4682 = vextract.low.u32 %v4681
      %v4683 = vextract.high.u32 %v4681
      %v4684 = vmul.u32 %v4677, %v4668
      %v4685 = vadd.s32 %v4680, %v4682
      %vm4686 = vc.u32 %v4680, %v4682
      %v4687 = vadd.s32 %v4683, 1
      %v4688 = vsel %vm4686, %v4687, %v4683
      %v4689 = vadd.s32 %v4684, %v4688
      %v4690 = vadd.s32 %v4689, 536870912
      %v4691 = vshrl.u32 %v4690, 30
      %v4692 = vshll.u32 %v4691, 30
      %v4693 = vsub.s32 %v4689, %v4692
      %vm4694 = vcmp.lt.s32.totalorder %v4693, 0
      %v4695 = vsub.s32 0, %v4693
      %v4696 = vsel %vm4694, %v4695, %v4693
      %v4697 = vclz %v4696
      %v4698 = vsub.s32 %v4697, 2
      %vm4699 = vcmp.gt.s32.totalorder 0, %v4698
      %v4700 = vsel %vm4699, 0, %v4698
      %v4701 = vsub.s32 32, %v4700
      %v4702 = vshll.u32 %v4693, %v4700
      %v4703 = vshrl.u32 %v4685, %v4701
      %v4704 = vor.u32 %v4702, %v4703
      %v4705 = vsub.s32 4294967266, %v4700
      %v4706 = vadd.s32 %v4705, 127
      %v4707 = vshll.u32 %v4706, 23
      %v4708 = vor.u32 4788187, %v4707
      %v4709 = vand.u32 2147483647, %v4708
      %v4711 = vcvt.s32.f32 %v4704
      %v4712 = vmul.f32 %v4711, %v4709
      %v4713 = vxor.u32 %v4712, 2147483648
      %v4714 = vsel %vm4631, %v4713, %v4712
      %v4715 = vsub.s32 4, %v4691
      %v4716 = vsel %vm4631, %v4715, %v4691
      %v4717 = vsel %vm4630, %v2251, %v4714
      %v4718 = vsel %vm4630, 0, %v4716
      %v4719 = vcosq.f32.pop %v4717
      %v4720 = vsinq.f32.pop %v4717
      %vm4721 = vweird.f32 %v2251
      %v4722 = vand.u32 %v4718, 3
      %vm4723 = vcmp.lt.s32.totalorder %v4722, 2
      %vm4724 = vcmp.eq.s32.totalorder %v4722, 0
      %v4725 = vxor.u32 %v4720, 2147483648
      %v4726 = vsel %vm4724, %v4719, %v4725
      %vm4727 = vcmp.eq.s32.totalorder %v4722, 2
      %v4728 = vxor.u32 %v4719, 2147483648
      %v4729 = vsel %vm4727, %v4728, %v4720
      %v4730 = vsel %vm4723, %v4726, %v4729
      %v4731 = vsel %vm4721, nan, %v4730
      %v4732 = vand.u32 2147483647, %v2252
      %vm4733 = vcmp.le.f32.partialorder %v4732, 0.7853982
      %vm4734 = vcmp.lt.s32.totalorder %v2252, 0
      %v4735 = vand.u32 %v2252, 2139095040
      %v4736 = vshrl.u32 %v4735, 23
      %v4737 = vsub.s32 %v4736, 127
      %v4738 = vand.u32 2147483647, %v2252
      %v4739 = vand.u32 %v4738, 8388607
      %v4740 = vor.u32 %v4739, 8388608
      %v4741 = vsub.s32 0, %v4740
      %v4742 = vadd.s32 %v4737, 1
      %vm4743 = vcmp.gt.s32.totalorder %v4742, 0
      %v4744 = vsel %vm4743, %v4742, 0
      %v4745 = vshrl.u32 %v4744, 5
      %v4746 = vand.u32 %v4744, 31
      %v4747 = vsub.s32 32, %v4746
      %v4748 = vshrl.u32 683565275, %v4747
      %v4749 = vshll.u32 683565275, %v4746
      %v4750 = vshrl.u32 2475754826, %v4747
      %v4751 = vor.u32 %v4749, %v4750
      %v4752 = vshll.u32 2475754826, %v4746
      %v4753 = vshrl.u32 2131351028, %v4747
      %v4754 = vor.u32 %v4752, %v4753
      %v4755 = vshll.u32 2131351028, %v4746
      %v4756 = vshrl.u32 2102212464, %v4747
      %v4757 = vor.u32 %v4755, %v4756
      %v4758 = vshll.u32 2102212464, %v4746
      %v4759 = vshrl.u32 920167782, %v4747
      %v4760 = vor.u32 %v4758, %v4759
      %v4761 = vshll.u32 920167782, %v4746
      %v4762 = vshrl.u32 1326507024, %v4747
      %v4763 = vor.u32 %v4761, %v4762
      %vm4764 = vcmp.lt.s32.totalorder %v4745, 1
      %vm4765 = vcmp.lt.s32.totalorder %v4745, 2
      %vm4766 = vcmp.lt.s32.totalorder %v4745, 3
      %vm4767 = vcmp.lt.s32.totalorder %v4745, 4
      %v4768 = vsel %vm4764, %v4748, %v4751
      %v4769 = vsel %vm4767, %v4757, 2102212464
      %v4770 = vsel %vm4766, %v4754, %v4769
      %v4771 = vsel %vm4765, %v4768, %v4770
      %v4772 = vsel %vm4764, %v4751, %v4754
      %v4773 = vsel %vm4767, %v4760, 920167782
      %v4774 = vsel %vm4766, %v4757, %v4773
      %v4775 = vsel %vm4765, %v4772, %v4774
      %v4776 = vsel %vm4764, %v4754, %v4757
      %v4777 = vsel %vm4767, %v4763, 1326507024
      %v4778 = vsel %vm4766, %v4760, %v4777
      %v4779 = vsel %vm4765, %v4776, %v4778
      %v4780 = vshll.u32 %v4740, 8
      %v4781 = vmul.u32.u64.compose %v4780, %v4779
      %v4782 = vextract.low.u32 %v4781
      %v4783 = vextract.high.u32 %v4781
      %v4784 = vmul.u32.u64.compose %v4780, %v4775
      %v4785 = vextract.low.u32 %v4784
      %v4786 = vextract.high.u32 %v4784
      %v4787 = vmul.u32 %v4780, %v4771
      %v4788 = vadd.s32 %v4783, %v4785
      %vm4789 = vc.u32 %v4783, %v4785
      %v4790 = vadd.s32 %v4786, 1
      %v4791 = vsel %vm4789, %v4790, %v4786
      %v4792 = vadd.s32 %v4787, %v4791
      %v4793 = vadd.s32 %v4792, 536870912
      %v4794 = vshrl.u32 %v4793, 30
      %v4795 = vshll.u32 %v4794, 30
      %v4796 = vsub.s32 %v4792, %v4795
      %vm4797 = vcmp.lt.s32.totalorder %v4796, 0
      %v4798 = vsub.s32 0, %v4796
      %v4799 = vsel %vm4797, %v4798, %v4796
      %v4800 = vclz %v4799
      %v4801 = vsub.s32 %v4800, 2
      %vm4802 = vcmp.gt.s32.totalorder 0, %v4801
      %v4803 = vsel %vm4802, 0, %v4801
      %v4804 = vsub.s32 32, %v4803
      %v4805 = vshll.u32 %v4796, %v4803
      %v4806 = vshrl.u32 %v4788, %v4804
      %v4807 = vor.u32 %v4805, %v4806
      %v4808 = vsub.s32 4294967266, %v4803
      %v4809 = vadd.s32 %v4808, 127
      %v4810 = vshll.u32 %v4809, 23
      %v4811 = vor.u32 4788187, %v4810
      %v4812 = vand.u32 2147483647, %v4811
      %v4814 = vcvt.s32.f32 %v4807
      %v4815 = vmul.f32 %v4814, %v4812
      %v4816 = vxor.u32 %v4815, 2147483648
      %v4817 = vsel %vm4734, %v4816, %v4815
      %v4818 = vsub.s32 4, %v4794
      %v4819 = vsel %vm4734, %v4818, %v4794
      %v4820 = vsel %vm4733, %v2252, %v4817
      %v4821 = vsel %vm4733, 0, %v4819
      %v4822 = vcosq.f32.pop %v4820
      %v4823 = vsinq.f32.pop %v4820
      %vm4824 = vweird.f32 %v2252
      %v4825 = vand.u32 %v4821, 3
      %vm4826 = vcmp.lt.s32.totalorder %v4825, 2
      %vm4827 = vcmp.eq.s32.totalorder %v4825, 0
      %v4828 = vxor.u32 %v4823, 2147483648
      %v4829 = vsel %vm4827, %v4822, %v4828
      %vm4830 = vcmp.eq.s32.totalorder %v4825, 2
      %v4831 = vxor.u32 %v4822, 2147483648
      %v4832 = vsel %vm4830, %v4831, %v4823
      %v4833 = vsel %vm4826, %v4829, %v4832
      %v4834 = vsel %vm4824, nan, %v4833
      %v4835 = vand.u32 2147483647, %v2253
      %vm4836 = vcmp.le.f32.partialorder %v4835, 0.7853982
      %vm4837 = vcmp.lt.s32.totalorder %v2253, 0
      %v4838 = vand.u32 %v2253, 2139095040
      %v4839 = vshrl.u32 %v4838, 23
      %v4840 = vsub.s32 %v4839, 127
      %v4841 = vand.u32 2147483647, %v2253
      %v4842 = vand.u32 %v4841, 8388607
      %v4843 = vor.u32 %v4842, 8388608
      %v4844 = vsub.s32 0, %v4843
      %v4845 = vadd.s32 %v4840, 1
      %vm4846 = vcmp.gt.s32.totalorder %v4845, 0
      %v4847 = vsel %vm4846, %v4845, 0
      %v4848 = vshrl.u32 %v4847, 5
      %v4849 = vand.u32 %v4847, 31
      %v4850 = vsub.s32 32, %v4849
      %v4851 = vshrl.u32 683565275, %v4850
      %v4852 = vshll.u32 683565275, %v4849
      %v4853 = vshrl.u32 2475754826, %v4850
      %v4854 = vor.u32 %v4852, %v4853
      %v4855 = vshll.u32 2475754826, %v4849
      %v4856 = vshrl.u32 2131351028, %v4850
      %v4857 = vor.u32 %v4855, %v4856
      %v4858 = vshll.u32 2131351028, %v4849
      %v4859 = vshrl.u32 2102212464, %v4850
      %v4860 = vor.u32 %v4858, %v4859
      %v4861 = vshll.u32 2102212464, %v4849
      %v4862 = vshrl.u32 920167782, %v4850
      %v4863 = vor.u32 %v4861, %v4862
      %v4864 = vshll.u32 920167782, %v4849
      %v4865 = vshrl.u32 1326507024, %v4850
      %v4866 = vor.u32 %v4864, %v4865
      %vm4867 = vcmp.lt.s32.totalorder %v4848, 1
      %vm4868 = vcmp.lt.s32.totalorder %v4848, 2
      %vm4869 = vcmp.lt.s32.totalorder %v4848, 3
      %vm4870 = vcmp.lt.s32.totalorder %v4848, 4
      %v4871 = vsel %vm4867, %v4851, %v4854
      %v4872 = vsel %vm4870, %v4860, 2102212464
      %v4873 = vsel %vm4869, %v4857, %v4872
      %v4874 = vsel %vm4868, %v4871, %v4873
      %v4875 = vsel %vm4867, %v4854, %v4857
      %v4876 = vsel %vm4870, %v4863, 920167782
      %v4877 = vsel %vm4869, %v4860, %v4876
      %v4878 = vsel %vm4868, %v4875, %v4877
      %v4879 = vsel %vm4867, %v4857, %v4860
      %v4880 = vsel %vm4870, %v4866, 1326507024
      %v4881 = vsel %vm4869, %v4863, %v4880
      %v4882 = vsel %vm4868, %v4879, %v4881
      %v4883 = vshll.u32 %v4843, 8
      %v4884 = vmul.u32.u64.compose %v4883, %v4882
      %v4885 = vextract.low.u32 %v4884
      %v4886 = vextract.high.u32 %v4884
      %v4887 = vmul.u32.u64.compose %v4883, %v4878
      %v4888 = vextract.low.u32 %v4887
      %v4889 = vextract.high.u32 %v4887
      %v4890 = vmul.u32 %v4883, %v4874
      %v4891 = vadd.s32 %v4886, %v4888
      %vm4892 = vc.u32 %v4886, %v4888
      %v4893 = vadd.s32 %v4889, 1
      %v4894 = vsel %vm4892, %v4893, %v4889
      %v4895 = vadd.s32 %v4890, %v4894
      %v4896 = vadd.s32 %v4895, 536870912
      %v4897 = vshrl.u32 %v4896, 30
      %v4898 = vshll.u32 %v4897, 30
      %v4899 = vsub.s32 %v4895, %v4898
      %vm4900 = vcmp.lt.s32.totalorder %v4899, 0
      %v4901 = vsub.s32 0, %v4899
      %v4902 = vsel %vm4900, %v4901, %v4899
      %v4903 = vclz %v4902
      %v4904 = vsub.s32 %v4903, 2
      %vm4905 = vcmp.gt.s32.totalorder 0, %v4904
      %v4906 = vsel %vm4905, 0, %v4904
      %v4907 = vsub.s32 32, %v4906
      %v4908 = vshll.u32 %v4899, %v4906
      %v4909 = vshrl.u32 %v4891, %v4907
      %v4910 = vor.u32 %v4908, %v4909
      %v4911 = vsub.s32 4294967266, %v4906
      %v4912 = vadd.s32 %v4911, 127
      %v4913 = vshll.u32 %v4912, 23
      %v4914 = vor.u32 4788187, %v4913
      %v4915 = vand.u32 2147483647, %v4914
      %v4917 = vcvt.s32.f32 %v4910
      %v4918 = vmul.f32 %v4917, %v4915
      %v4919 = vxor.u32 %v4918, 2147483648
      %v4920 = vsel %vm4837, %v4919, %v4918
      %v4921 = vsub.s32 4, %v4897
      %v4922 = vsel %vm4837, %v4921, %v4897
      %v4923 = vsel %vm4836, %v2253, %v4920
      %v4924 = vsel %vm4836, 0, %v4922
      %v4925 = vcosq.f32.pop %v4923
      %v4926 = vsinq.f32.pop %v4923
      %vm4927 = vweird.f32 %v2253
      %v4928 = vand.u32 %v4924, 3
      %vm4929 = vcmp.lt.s32.totalorder %v4928, 2
      %vm4930 = vcmp.eq.s32.totalorder %v4928, 0
      %v4931 = vxor.u32 %v4926, 2147483648
      %v4932 = vsel %vm4930, %v4925, %v4931
      %vm4933 = vcmp.eq.s32.totalorder %v4928, 2
      %v4934 = vxor.u32 %v4925, 2147483648
      %v4935 = vsel %vm4933, %v4934, %v4926
      %v4936 = vsel %vm4929, %v4932, %v4935
      %v4937 = vsel %vm4927, nan, %v4936
      %v4938 = vand.u32 2147483647, %v2254
      %vm4939 = vcmp.le.f32.partialorder %v4938, 0.7853982
      %vm4940 = vcmp.lt.s32.totalorder %v2254, 0
      %v4941 = vand.u32 %v2254, 2139095040
      %v4942 = vshrl.u32 %v4941, 23
      %v4943 = vsub.s32 %v4942, 127
      %v4944 = vand.u32 2147483647, %v2254
      %v4945 = vand.u32 %v4944, 8388607
      %v4946 = vor.u32 %v4945, 8388608
      %v4947 = vsub.s32 0, %v4946
      %v4948 = vadd.s32 %v4943, 1
      %vm4949 = vcmp.gt.s32.totalorder %v4948, 0
      %v4950 = vsel %vm4949, %v4948, 0
      %v4951 = vshrl.u32 %v4950, 5
      %v4952 = vand.u32 %v4950, 31
      %v4953 = vsub.s32 32, %v4952
      %v4954 = vshrl.u32 683565275, %v4953
      %v4955 = vshll.u32 683565275, %v4952
      %v4956 = vshrl.u32 2475754826, %v4953
      %v4957 = vor.u32 %v4955, %v4956
      %v4958 = vshll.u32 2475754826, %v4952
      %v4959 = vshrl.u32 2131351028, %v4953
      %v4960 = vor.u32 %v4958, %v4959
      %v4961 = vshll.u32 2131351028, %v4952
      %v4962 = vshrl.u32 2102212464, %v4953
      %v4963 = vor.u32 %v4961, %v4962
      %v4964 = vshll.u32 2102212464, %v4952
      %v4965 = vshrl.u32 920167782, %v4953
      %v4966 = vor.u32 %v4964, %v4965
      %v4967 = vshll.u32 920167782, %v4952
      %v4968 = vshrl.u32 1326507024, %v4953
      %v4969 = vor.u32 %v4967, %v4968
      %vm4970 = vcmp.lt.s32.totalorder %v4951, 1
      %vm4971 = vcmp.lt.s32.totalorder %v4951, 2
      %vm4972 = vcmp.lt.s32.totalorder %v4951, 3
      %vm4973 = vcmp.lt.s32.totalorder %v4951, 4
      %v4974 = vsel %vm4970, %v4954, %v4957
      %v4975 = vsel %vm4973, %v4963, 2102212464
      %v4976 = vsel %vm4972, %v4960, %v4975
      %v4977 = vsel %vm4971, %v4974, %v4976
      %v4978 = vsel %vm4970, %v4957, %v4960
      %v4979 = vsel %vm4973, %v4966, 920167782
      %v4980 = vsel %vm4972, %v4963, %v4979
      %v4981 = vsel %vm4971, %v4978, %v4980
      %v4982 = vsel %vm4970, %v4960, %v4963
      %v4983 = vsel %vm4973, %v4969, 1326507024
      %v4984 = vsel %vm4972, %v4966, %v4983
      %v4985 = vsel %vm4971, %v4982, %v4984
      %v4986 = vshll.u32 %v4946, 8
      %v4987 = vmul.u32.u64.compose %v4986, %v4985
      %v4988 = vextract.low.u32 %v4987
      %v4989 = vextract.high.u32 %v4987
      %v4990 = vmul.u32.u64.compose %v4986, %v4981
      %v4991 = vextract.low.u32 %v4990
      %v4992 = vextract.high.u32 %v4990
      %v4993 = vmul.u32 %v4986, %v4977
      %v4994 = vadd.s32 %v4989, %v4991
      %vm4995 = vc.u32 %v4989, %v4991
      %v4996 = vadd.s32 %v4992, 1
      %v4997 = vsel %vm4995, %v4996, %v4992
      %v4998 = vadd.s32 %v4993, %v4997
      %v4999 = vadd.s32 %v4998, 536870912
      %v5000 = vshrl.u32 %v4999, 30
      %v5001 = vshll.u32 %v5000, 30
      %v5002 = vsub.s32 %v4998, %v5001
      %vm5003 = vcmp.lt.s32.totalorder %v5002, 0
      %v5004 = vsub.s32 0, %v5002
      %v5005 = vsel %vm5003, %v5004, %v5002
      %v5006 = vclz %v5005
      %v5007 = vsub.s32 %v5006, 2
      %vm5008 = vcmp.gt.s32.totalorder 0, %v5007
      %v5009 = vsel %vm5008, 0, %v5007
      %v5010 = vsub.s32 32, %v5009
      %v5011 = vshll.u32 %v5002, %v5009
      %v5012 = vshrl.u32 %v4994, %v5010
      %v5013 = vor.u32 %v5011, %v5012
      %v5014 = vsub.s32 4294967266, %v5009
      %v5015 = vadd.s32 %v5014, 127
      %v5016 = vshll.u32 %v5015, 23
      %v5017 = vor.u32 4788187, %v5016
      %v5018 = vand.u32 2147483647, %v5017
      %v5020 = vcvt.s32.f32 %v5013
      %v5021 = vmul.f32 %v5020, %v5018
      %v5022 = vxor.u32 %v5021, 2147483648
      %v5023 = vsel %vm4940, %v5022, %v5021
      %v5024 = vsub.s32 4, %v5000
      %v5025 = vsel %vm4940, %v5024, %v5000
      %v5026 = vsel %vm4939, %v2254, %v5023
      %v5027 = vsel %vm4939, 0, %v5025
      %v5028 = vcosq.f32.pop %v5026
      %v5029 = vsinq.f32.pop %v5026
      %vm5030 = vweird.f32 %v2254
      %v5031 = vand.u32 %v5027, 3
      %vm5032 = vcmp.lt.s32.totalorder %v5031, 2
      %vm5033 = vcmp.eq.s32.totalorder %v5031, 0
      %v5034 = vxor.u32 %v5029, 2147483648
      %v5035 = vsel %vm5033, %v5028, %v5034
      %vm5036 = vcmp.eq.s32.totalorder %v5031, 2
      %v5037 = vxor.u32 %v5028, 2147483648
      %v5038 = vsel %vm5036, %v5037, %v5029
      %v5039 = vsel %vm5032, %v5035, %v5038
      %v5040 = vsel %vm5030, nan, %v5039
      %v5041 = vand.u32 2147483647, %v2255
      %vm5042 = vcmp.le.f32.partialorder %v5041, 0.7853982
      %vm5043 = vcmp.lt.s32.totalorder %v2255, 0
      %v5044 = vand.u32 %v2255, 2139095040
      %v5045 = vshrl.u32 %v5044, 23
      %v5046 = vsub.s32 %v5045, 127
      %v5047 = vand.u32 2147483647, %v2255
      %v5048 = vand.u32 %v5047, 8388607
      %v5049 = vor.u32 %v5048, 8388608
      %v5050 = vsub.s32 0, %v5049
      %v5051 = vadd.s32 %v5046, 1
      %vm5052 = vcmp.gt.s32.totalorder %v5051, 0
      %v5053 = vsel %vm5052, %v5051, 0
      %v5054 = vshrl.u32 %v5053, 5
      %v5055 = vand.u32 %v5053, 31
      %v5056 = vsub.s32 32, %v5055
      %v5057 = vshrl.u32 683565275, %v5056
      %v5058 = vshll.u32 683565275, %v5055
      %v5059 = vshrl.u32 2475754826, %v5056
      %v5060 = vor.u32 %v5058, %v5059
      %v5061 = vshll.u32 2475754826, %v5055
      %v5062 = vshrl.u32 2131351028, %v5056
      %v5063 = vor.u32 %v5061, %v5062
      %v5064 = vshll.u32 2131351028, %v5055
      %v5065 = vshrl.u32 2102212464, %v5056
      %v5066 = vor.u32 %v5064, %v5065
      %v5067 = vshll.u32 2102212464, %v5055
      %v5068 = vshrl.u32 920167782, %v5056
      %v5069 = vor.u32 %v5067, %v5068
      %v5070 = vshll.u32 920167782, %v5055
      %v5071 = vshrl.u32 1326507024, %v5056
      %v5072 = vor.u32 %v5070, %v5071
      %vm5073 = vcmp.lt.s32.totalorder %v5054, 1
      %vm5074 = vcmp.lt.s32.totalorder %v5054, 2
      %vm5075 = vcmp.lt.s32.totalorder %v5054, 3
      %vm5076 = vcmp.lt.s32.totalorder %v5054, 4
      %v5077 = vsel %vm5073, %v5057, %v5060
      %v5078 = vsel %vm5076, %v5066, 2102212464
      %v5079 = vsel %vm5075, %v5063, %v5078
      %v5080 = vsel %vm5074, %v5077, %v5079
      %v5081 = vsel %vm5073, %v5060, %v5063
      %v5082 = vsel %vm5076, %v5069, 920167782
      %v5083 = vsel %vm5075, %v5066, %v5082
      %v5084 = vsel %vm5074, %v5081, %v5083
      %v5085 = vsel %vm5073, %v5063, %v5066
      %v5086 = vsel %vm5076, %v5072, 1326507024
      %v5087 = vsel %vm5075, %v5069, %v5086
      %v5088 = vsel %vm5074, %v5085, %v5087
      %v5089 = vshll.u32 %v5049, 8
      %v5090 = vmul.u32.u64.compose %v5089, %v5088
      %v5091 = vextract.low.u32 %v5090
      %v5092 = vextract.high.u32 %v5090
      %v5093 = vmul.u32.u64.compose %v5089, %v5084
      %v5094 = vextract.low.u32 %v5093
      %v5095 = vextract.high.u32 %v5093
      %v5096 = vmul.u32 %v5089, %v5080
      %v5097 = vadd.s32 %v5092, %v5094
      %vm5098 = vc.u32 %v5092, %v5094
      %v5099 = vadd.s32 %v5095, 1
      %v5100 = vsel %vm5098, %v5099, %v5095
      %v5101 = vadd.s32 %v5096, %v5100
      %v5102 = vadd.s32 %v5101, 536870912
      %v5103 = vshrl.u32 %v5102, 30
      %v5104 = vshll.u32 %v5103, 30
      %v5105 = vsub.s32 %v5101, %v5104
      %vm5106 = vcmp.lt.s32.totalorder %v5105, 0
      %v5107 = vsub.s32 0, %v5105
      %v5108 = vsel %vm5106, %v5107, %v5105
      %v5109 = vclz %v5108
      %v5110 = vsub.s32 %v5109, 2
      %vm5111 = vcmp.gt.s32.totalorder 0, %v5110
      %v5112 = vsel %vm5111, 0, %v5110
      %v5113 = vsub.s32 32, %v5112
      %v5114 = vshll.u32 %v5105, %v5112
      %v5115 = vshrl.u32 %v5097, %v5113
      %v5116 = vor.u32 %v5114, %v5115
      %v5117 = vsub.s32 4294967266, %v5112
      %v5118 = vadd.s32 %v5117, 127
      %v5119 = vshll.u32 %v5118, 23
      %v5120 = vor.u32 4788187, %v5119
      %v5121 = vand.u32 2147483647, %v5120
      %v5123 = vcvt.s32.f32 %v5116
      %v5124 = vmul.f32 %v5123, %v5121
      %v5125 = vxor.u32 %v5124, 2147483648
      %v5126 = vsel %vm5043, %v5125, %v5124
      %v5127 = vsub.s32 4, %v5103
      %v5128 = vsel %vm5043, %v5127, %v5103
      %v5129 = vsel %vm5042, %v2255, %v5126
      %v5130 = vsel %vm5042, 0, %v5128
      %v5131 = vcosq.f32.pop %v5129
      %v5132 = vsinq.f32.pop %v5129
      %vm5133 = vweird.f32 %v2255
      %v5134 = vand.u32 %v5130, 3
      %vm5135 = vcmp.lt.s32.totalorder %v5134, 2
      %vm5136 = vcmp.eq.s32.totalorder %v5134, 0
      %v5137 = vxor.u32 %v5132, 2147483648
      %v5138 = vsel %vm5136, %v5131, %v5137
      %vm5139 = vcmp.eq.s32.totalorder %v5134, 2
      %v5140 = vxor.u32 %v5131, 2147483648
      %v5141 = vsel %vm5139, %v5140, %v5132
      %v5142 = vsel %vm5135, %v5138, %v5141
      %v5143 = vsel %vm5133, nan, %v5142
      %v5144 = vand.u32 2147483647, %v2256
      %vm5145 = vcmp.le.f32.partialorder %v5144, 0.7853982
      %vm5146 = vcmp.lt.s32.totalorder %v2256, 0
      %v5147 = vand.u32 %v2256, 2139095040
      %v5148 = vshrl.u32 %v5147, 23
      %v5149 = vsub.s32 %v5148, 127
      %v5150 = vand.u32 2147483647, %v2256
      %v5151 = vand.u32 %v5150, 8388607
      %v5152 = vor.u32 %v5151, 8388608
      %v5153 = vsub.s32 0, %v5152
      %v5154 = vadd.s32 %v5149, 1
      %vm5155 = vcmp.gt.s32.totalorder %v5154, 0
      %v5156 = vsel %vm5155, %v5154, 0
      %v5157 = vshrl.u32 %v5156, 5
      %v5158 = vand.u32 %v5156, 31
      %v5159 = vsub.s32 32, %v5158
      %v5160 = vshrl.u32 683565275, %v5159
      %v5161 = vshll.u32 683565275, %v5158
      %v5162 = vshrl.u32 2475754826, %v5159
      %v5163 = vor.u32 %v5161, %v5162
      %v5164 = vshll.u32 2475754826, %v5158
      %v5165 = vshrl.u32 2131351028, %v5159
      %v5166 = vor.u32 %v5164, %v5165
      %v5167 = vshll.u32 2131351028, %v5158
      %v5168 = vshrl.u32 2102212464, %v5159
      %v5169 = vor.u32 %v5167, %v5168
      %v5170 = vshll.u32 2102212464, %v5158
      %v5171 = vshrl.u32 920167782, %v5159
      %v5172 = vor.u32 %v5170, %v5171
      %v5173 = vshll.u32 920167782, %v5158
      %v5174 = vshrl.u32 1326507024, %v5159
      %v5175 = vor.u32 %v5173, %v5174
      %vm5176 = vcmp.lt.s32.totalorder %v5157, 1
      %vm5177 = vcmp.lt.s32.totalorder %v5157, 2
      %vm5178 = vcmp.lt.s32.totalorder %v5157, 3
      %vm5179 = vcmp.lt.s32.totalorder %v5157, 4
      %v5180 = vsel %vm5176, %v5160, %v5163
      %v5181 = vsel %vm5179, %v5169, 2102212464
      %v5182 = vsel %vm5178, %v5166, %v5181
      %v5183 = vsel %vm5177, %v5180, %v5182
      %v5184 = vsel %vm5176, %v5163, %v5166
      %v5185 = vsel %vm5179, %v5172, 920167782
      %v5186 = vsel %vm5178, %v5169, %v5185
      %v5187 = vsel %vm5177, %v5184, %v5186
      %v5188 = vsel %vm5176, %v5166, %v5169
      %v5189 = vsel %vm5179, %v5175, 1326507024
      %v5190 = vsel %vm5178, %v5172, %v5189
      %v5191 = vsel %vm5177, %v5188, %v5190
      %v5192 = vshll.u32 %v5152, 8
      %v5193 = vmul.u32.u64.compose %v5192, %v5191
      %v5194 = vextract.low.u32 %v5193
      %v5195 = vextract.high.u32 %v5193
      %v5196 = vmul.u32.u64.compose %v5192, %v5187
      %v5197 = vextract.low.u32 %v5196
      %v5198 = vextract.high.u32 %v5196
      %v5199 = vmul.u32 %v5192, %v5183
      %v5200 = vadd.s32 %v5195, %v5197
      %vm5201 = vc.u32 %v5195, %v5197
      %v5202 = vadd.s32 %v5198, 1
      %v5203 = vsel %vm5201, %v5202, %v5198
      %v5204 = vadd.s32 %v5199, %v5203
      %v5205 = vadd.s32 %v5204, 536870912
      %v5206 = vshrl.u32 %v5205, 30
      %v5207 = vshll.u32 %v5206, 30
      %v5208 = vsub.s32 %v5204, %v5207
      %vm5209 = vcmp.lt.s32.totalorder %v5208, 0
      %v5210 = vsub.s32 0, %v5208
      %v5211 = vsel %vm5209, %v5210, %v5208
      %v5212 = vclz %v5211
      %v5213 = vsub.s32 %v5212, 2
      %vm5214 = vcmp.gt.s32.totalorder 0, %v5213
      %v5215 = vsel %vm5214, 0, %v5213
      %v5216 = vsub.s32 32, %v5215
      %v5217 = vshll.u32 %v5208, %v5215
      %v5218 = vshrl.u32 %v5200, %v5216
      %v5219 = vor.u32 %v5217, %v5218
      %v5220 = vsub.s32 4294967266, %v5215
      %v5221 = vadd.s32 %v5220, 127
      %v5222 = vshll.u32 %v5221, 23
      %v5223 = vor.u32 4788187, %v5222
      %v5224 = vand.u32 2147483647, %v5223
      %v5226 = vcvt.s32.f32 %v5219
      %v5227 = vmul.f32 %v5226, %v5224
      %v5228 = vxor.u32 %v5227, 2147483648
      %v5229 = vsel %vm5146, %v5228, %v5227
      %v5230 = vsub.s32 4, %v5206
      %v5231 = vsel %vm5146, %v5230, %v5206
      %v5232 = vsel %vm5145, %v2256, %v5229
      %v5233 = vsel %vm5145, 0, %v5231
      %v5234 = vcosq.f32.pop %v5232
      %v5235 = vsinq.f32.pop %v5232
      %vm5236 = vweird.f32 %v2256
      %v5237 = vand.u32 %v5233, 3
      %vm5238 = vcmp.lt.s32.totalorder %v5237, 2
      %vm5239 = vcmp.eq.s32.totalorder %v5237, 0
      %v5240 = vxor.u32 %v5235, 2147483648
      %v5241 = vsel %vm5239, %v5234, %v5240
      %vm5242 = vcmp.eq.s32.totalorder %v5237, 2
      %v5243 = vxor.u32 %v5234, 2147483648
      %v5244 = vsel %vm5242, %v5243, %v5235
      %v5245 = vsel %vm5238, %v5241, %v5244
      %v5246 = vsel %vm5236, nan, %v5245
      %v5247 = vand.u32 2147483647, %v2257
      %vm5248 = vcmp.le.f32.partialorder %v5247, 0.7853982
      %vm5249 = vcmp.lt.s32.totalorder %v2257, 0
      %v5250 = vand.u32 %v2257, 2139095040
      %v5251 = vshrl.u32 %v5250, 23
      %v5252 = vsub.s32 %v5251, 127
      %v5253 = vand.u32 2147483647, %v2257
      %v5254 = vand.u32 %v5253, 8388607
      %v5255 = vor.u32 %v5254, 8388608
      %v5256 = vsub.s32 0, %v5255
      %v5257 = vadd.s32 %v5252, 1
      %vm5258 = vcmp.gt.s32.totalorder %v5257, 0
      %v5259 = vsel %vm5258, %v5257, 0
      %v5260 = vshrl.u32 %v5259, 5
      %v5261 = vand.u32 %v5259, 31
      %v5262 = vsub.s32 32, %v5261
      %v5263 = vshrl.u32 683565275, %v5262
      %v5264 = vshll.u32 683565275, %v5261
      %v5265 = vshrl.u32 2475754826, %v5262
      %v5266 = vor.u32 %v5264, %v5265
      %v5267 = vshll.u32 2475754826, %v5261
      %v5268 = vshrl.u32 2131351028, %v5262
      %v5269 = vor.u32 %v5267, %v5268
      %v5270 = vshll.u32 2131351028, %v5261
      %v5271 = vshrl.u32 2102212464, %v5262
      %v5272 = vor.u32 %v5270, %v5271
      %v5273 = vshll.u32 2102212464, %v5261
      %v5274 = vshrl.u32 920167782, %v5262
      %v5275 = vor.u32 %v5273, %v5274
      %v5276 = vshll.u32 920167782, %v5261
      %v5277 = vshrl.u32 1326507024, %v5262
      %v5278 = vor.u32 %v5276, %v5277
      %vm5279 = vcmp.lt.s32.totalorder %v5260, 1
      %vm5280 = vcmp.lt.s32.totalorder %v5260, 2
      %vm5281 = vcmp.lt.s32.totalorder %v5260, 3
      %vm5282 = vcmp.lt.s32.totalorder %v5260, 4
      %v5283 = vsel %vm5279, %v5263, %v5266
      %v5284 = vsel %vm5282, %v5272, 2102212464
      %v5285 = vsel %vm5281, %v5269, %v5284
      %v5286 = vsel %vm5280, %v5283, %v5285
      %v5287 = vsel %vm5279, %v5266, %v5269
      %v5288 = vsel %vm5282, %v5275, 920167782
      %v5289 = vsel %vm5281, %v5272, %v5288
      %v5290 = vsel %vm5280, %v5287, %v5289
      %v5291 = vsel %vm5279, %v5269, %v5272
      %v5292 = vsel %vm5282, %v5278, 1326507024
      %v5293 = vsel %vm5281, %v5275, %v5292
      %v5294 = vsel %vm5280, %v5291, %v5293
      %v5295 = vshll.u32 %v5255, 8
      %v5296 = vmul.u32.u64.compose %v5295, %v5294
      %v5297 = vextract.low.u32 %v5296
      %v5298 = vextract.high.u32 %v5296
      %v5299 = vmul.u32.u64.compose %v5295, %v5290
      %v5300 = vextract.low.u32 %v5299
      %v5301 = vextract.high.u32 %v5299
      %v5302 = vmul.u32 %v5295, %v5286
      %v5303 = vadd.s32 %v5298, %v5300
      %vm5304 = vc.u32 %v5298, %v5300
      %v5305 = vadd.s32 %v5301, 1
      %v5306 = vsel %vm5304, %v5305, %v5301
      %v5307 = vadd.s32 %v5302, %v5306
      %v5308 = vadd.s32 %v5307, 536870912
      %v5309 = vshrl.u32 %v5308, 30
      %v5310 = vshll.u32 %v5309, 30
      %v5311 = vsub.s32 %v5307, %v5310
      %vm5312 = vcmp.lt.s32.totalorder %v5311, 0
      %v5313 = vsub.s32 0, %v5311
      %v5314 = vsel %vm5312, %v5313, %v5311
      %v5315 = vclz %v5314
      %v5316 = vsub.s32 %v5315, 2
      %vm5317 = vcmp.gt.s32.totalorder 0, %v5316
      %v5318 = vsel %vm5317, 0, %v5316
      %v5319 = vsub.s32 32, %v5318
      %v5320 = vshll.u32 %v5311, %v5318
      %v5321 = vshrl.u32 %v5303, %v5319
      %v5322 = vor.u32 %v5320, %v5321
      %v5323 = vsub.s32 4294967266, %v5318
      %v5324 = vadd.s32 %v5323, 127
      %v5325 = vshll.u32 %v5324, 23
      %v5326 = vor.u32 4788187, %v5325
      %v5327 = vand.u32 2147483647, %v5326
      %v5329 = vcvt.s32.f32 %v5322
      %v5330 = vmul.f32 %v5329, %v5327
      %v5331 = vxor.u32 %v5330, 2147483648
      %v5332 = vsel %vm5249, %v5331, %v5330
      %v5333 = vsub.s32 4, %v5309
      %v5334 = vsel %vm5249, %v5333, %v5309
      %v5335 = vsel %vm5248, %v2257, %v5332
      %v5336 = vsel %vm5248, 0, %v5334
      %v5337 = vcosq.f32.pop %v5335
      %v5338 = vsinq.f32.pop %v5335
      %vm5339 = vweird.f32 %v2257
      %v5340 = vand.u32 %v5336, 3
      %vm5341 = vcmp.lt.s32.totalorder %v5340, 2
      %vm5342 = vcmp.eq.s32.totalorder %v5340, 0
      %v5343 = vxor.u32 %v5338, 2147483648
      %v5344 = vsel %vm5342, %v5337, %v5343
      %vm5345 = vcmp.eq.s32.totalorder %v5340, 2
      %v5346 = vxor.u32 %v5337, 2147483648
      %v5347 = vsel %vm5345, %v5346, %v5338
      %v5348 = vsel %vm5341, %v5344, %v5347
      %v5349 = vsel %vm5339, nan, %v5348
      %v5350 = vand.u32 2147483647, %v2258
      %vm5351 = vcmp.le.f32.partialorder %v5350, 0.7853982
      %vm5352 = vcmp.lt.s32.totalorder %v2258, 0
      %v5353 = vand.u32 %v2258, 2139095040
      %v5354 = vshrl.u32 %v5353, 23
      %v5355 = vsub.s32 %v5354, 127
      %v5356 = vand.u32 2147483647, %v2258
      %v5357 = vand.u32 %v5356, 8388607
      %v5358 = vor.u32 %v5357, 8388608
      %v5359 = vsub.s32 0, %v5358
      %v5360 = vadd.s32 %v5355, 1
      %vm5361 = vcmp.gt.s32.totalorder %v5360, 0
      %v5362 = vsel %vm5361, %v5360, 0
      %v5363 = vshrl.u32 %v5362, 5
      %v5364 = vand.u32 %v5362, 31
      %v5365 = vsub.s32 32, %v5364
      %v5366 = vshrl.u32 683565275, %v5365
      %v5367 = vshll.u32 683565275, %v5364
      %v5368 = vshrl.u32 2475754826, %v5365
      %v5369 = vor.u32 %v5367, %v5368
      %v5370 = vshll.u32 2475754826, %v5364
      %v5371 = vshrl.u32 2131351028, %v5365
      %v5372 = vor.u32 %v5370, %v5371
      %v5373 = vshll.u32 2131351028, %v5364
      %v5374 = vshrl.u32 2102212464, %v5365
      %v5375 = vor.u32 %v5373, %v5374
      %v5376 = vshll.u32 2102212464, %v5364
      %v5377 = vshrl.u32 920167782, %v5365
      %v5378 = vor.u32 %v5376, %v5377
      %v5379 = vshll.u32 920167782, %v5364
      %v5380 = vshrl.u32 1326507024, %v5365
      %v5381 = vor.u32 %v5379, %v5380
      %vm5382 = vcmp.lt.s32.totalorder %v5363, 1
      %vm5383 = vcmp.lt.s32.totalorder %v5363, 2
      %vm5384 = vcmp.lt.s32.totalorder %v5363, 3
      %vm5385 = vcmp.lt.s32.totalorder %v5363, 4
      %v5386 = vsel %vm5382, %v5366, %v5369
      %v5387 = vsel %vm5385, %v5375, 2102212464
      %v5388 = vsel %vm5384, %v5372, %v5387
      %v5389 = vsel %vm5383, %v5386, %v5388
      %v5390 = vsel %vm5382, %v5369, %v5372
      %v5391 = vsel %vm5385, %v5378, 920167782
      %v5392 = vsel %vm5384, %v5375, %v5391
      %v5393 = vsel %vm5383, %v5390, %v5392
      %v5394 = vsel %vm5382, %v5372, %v5375
      %v5395 = vsel %vm5385, %v5381, 1326507024
      %v5396 = vsel %vm5384, %v5378, %v5395
      %v5397 = vsel %vm5383, %v5394, %v5396
      %v5398 = vshll.u32 %v5358, 8
      %v5399 = vmul.u32.u64.compose %v5398, %v5397
      %v5400 = vextract.low.u32 %v5399
      %v5401 = vextract.high.u32 %v5399
      %v5402 = vmul.u32.u64.compose %v5398, %v5393
      %v5403 = vextract.low.u32 %v5402
      %v5404 = vextract.high.u32 %v5402
      %v5405 = vmul.u32 %v5398, %v5389
      %v5406 = vadd.s32 %v5401, %v5403
      %vm5407 = vc.u32 %v5401, %v5403
      %v5408 = vadd.s32 %v5404, 1
      %v5409 = vsel %vm5407, %v5408, %v5404
      %v5410 = vadd.s32 %v5405, %v5409
      %v5411 = vadd.s32 %v5410, 536870912
      %v5412 = vshrl.u32 %v5411, 30
      %v5413 = vshll.u32 %v5412, 30
      %v5414 = vsub.s32 %v5410, %v5413
      %vm5415 = vcmp.lt.s32.totalorder %v5414, 0
      %v5416 = vsub.s32 0, %v5414
      %v5417 = vsel %vm5415, %v5416, %v5414
      %v5418 = vclz %v5417
      %v5419 = vsub.s32 %v5418, 2
      %vm5420 = vcmp.gt.s32.totalorder 0, %v5419
      %v5421 = vsel %vm5420, 0, %v5419
      %v5422 = vsub.s32 32, %v5421
      %v5423 = vshll.u32 %v5414, %v5421
      %v5424 = vshrl.u32 %v5406, %v5422
      %v5425 = vor.u32 %v5423, %v5424
      %v5426 = vsub.s32 4294967266, %v5421
      %v5427 = vadd.s32 %v5426, 127
      %v5428 = vshll.u32 %v5427, 23
      %v5429 = vor.u32 4788187, %v5428
      %v5430 = vand.u32 2147483647, %v5429
      %v5432 = vcvt.s32.f32 %v5425
      %v5433 = vmul.f32 %v5432, %v5430
      %v5434 = vxor.u32 %v5433, 2147483648
      %v5435 = vsel %vm5352, %v5434, %v5433
      %v5436 = vsub.s32 4, %v5412
      %v5437 = vsel %vm5352, %v5436, %v5412
      %v5438 = vsel %vm5351, %v2258, %v5435
      %v5439 = vsel %vm5351, 0, %v5437
      %v5440 = vcosq.f32.pop %v5438
      %v5441 = vsinq.f32.pop %v5438
      %vm5442 = vweird.f32 %v2258
      %v5443 = vand.u32 %v5439, 3
      %vm5444 = vcmp.lt.s32.totalorder %v5443, 2
      %vm5445 = vcmp.eq.s32.totalorder %v5443, 0
      %v5446 = vxor.u32 %v5441, 2147483648
      %v5447 = vsel %vm5445, %v5440, %v5446
      %vm5448 = vcmp.eq.s32.totalorder %v5443, 2
      %v5449 = vxor.u32 %v5440, 2147483648
      %v5450 = vsel %vm5448, %v5449, %v5441
      %v5451 = vsel %vm5444, %v5447, %v5450
      %v5452 = vsel %vm5442, nan, %v5451
      %v5453 = vand.u32 2147483647, %v2259
      %vm5454 = vcmp.le.f32.partialorder %v5453, 0.7853982
      %vm5455 = vcmp.lt.s32.totalorder %v2259, 0
      %v5456 = vand.u32 %v2259, 2139095040
      %v5457 = vshrl.u32 %v5456, 23
      %v5458 = vsub.s32 %v5457, 127
      %v5459 = vand.u32 2147483647, %v2259
      %v5460 = vand.u32 %v5459, 8388607
      %v5461 = vor.u32 %v5460, 8388608
      %v5462 = vsub.s32 0, %v5461
      %v5463 = vadd.s32 %v5458, 1
      %vm5464 = vcmp.gt.s32.totalorder %v5463, 0
      %v5465 = vsel %vm5464, %v5463, 0
      %v5466 = vshrl.u32 %v5465, 5
      %v5467 = vand.u32 %v5465, 31
      %v5468 = vsub.s32 32, %v5467
      %v5469 = vshrl.u32 683565275, %v5468
      %v5470 = vshll.u32 683565275, %v5467
      %v5471 = vshrl.u32 2475754826, %v5468
      %v5472 = vor.u32 %v5470, %v5471
      %v5473 = vshll.u32 2475754826, %v5467
      %v5474 = vshrl.u32 2131351028, %v5468
      %v5475 = vor.u32 %v5473, %v5474
      %v5476 = vshll.u32 2131351028, %v5467
      %v5477 = vshrl.u32 2102212464, %v5468
      %v5478 = vor.u32 %v5476, %v5477
      %v5479 = vshll.u32 2102212464, %v5467
      %v5480 = vshrl.u32 920167782, %v5468
      %v5481 = vor.u32 %v5479, %v5480
      %v5482 = vshll.u32 920167782, %v5467
      %v5483 = vshrl.u32 1326507024, %v5468
      %v5484 = vor.u32 %v5482, %v5483
      %vm5485 = vcmp.lt.s32.totalorder %v5466, 1
      %vm5486 = vcmp.lt.s32.totalorder %v5466, 2
      %vm5487 = vcmp.lt.s32.totalorder %v5466, 3
      %vm5488 = vcmp.lt.s32.totalorder %v5466, 4
      %v5489 = vsel %vm5485, %v5469, %v5472
      %v5490 = vsel %vm5488, %v5478, 2102212464
      %v5491 = vsel %vm5487, %v5475, %v5490
      %v5492 = vsel %vm5486, %v5489, %v5491
      %v5493 = vsel %vm5485, %v5472, %v5475
      %v5494 = vsel %vm5488, %v5481, 920167782
      %v5495 = vsel %vm5487, %v5478, %v5494
      %v5496 = vsel %vm5486, %v5493, %v5495
      %v5497 = vsel %vm5485, %v5475, %v5478
      %v5498 = vsel %vm5488, %v5484, 1326507024
      %v5499 = vsel %vm5487, %v5481, %v5498
      %v5500 = vsel %vm5486, %v5497, %v5499
      %v5501 = vshll.u32 %v5461, 8
      %v5502 = vmul.u32.u64.compose %v5501, %v5500
      %v5503 = vextract.low.u32 %v5502
      %v5504 = vextract.high.u32 %v5502
      %v5505 = vmul.u32.u64.compose %v5501, %v5496
      %v5506 = vextract.low.u32 %v5505
      %v5507 = vextract.high.u32 %v5505
      %v5508 = vmul.u32 %v5501, %v5492
      %v5509 = vadd.s32 %v5504, %v5506
      %vm5510 = vc.u32 %v5504, %v5506
      %v5511 = vadd.s32 %v5507, 1
      %v5512 = vsel %vm5510, %v5511, %v5507
      %v5513 = vadd.s32 %v5508, %v5512
      %v5514 = vadd.s32 %v5513, 536870912
      %v5515 = vshrl.u32 %v5514, 30
      %v5516 = vshll.u32 %v5515, 30
      %v5517 = vsub.s32 %v5513, %v5516
      %vm5518 = vcmp.lt.s32.totalorder %v5517, 0
      %v5519 = vsub.s32 0, %v5517
      %v5520 = vsel %vm5518, %v5519, %v5517
      %v5521 = vclz %v5520
      %v5522 = vsub.s32 %v5521, 2
      %vm5523 = vcmp.gt.s32.totalorder 0, %v5522
      %v5524 = vsel %vm5523, 0, %v5522
      %v5525 = vsub.s32 32, %v5524
      %v5526 = vshll.u32 %v5517, %v5524
      %v5527 = vshrl.u32 %v5509, %v5525
      %v5528 = vor.u32 %v5526, %v5527
      %v5529 = vsub.s32 4294967266, %v5524
      %v5530 = vadd.s32 %v5529, 127
      %v5531 = vshll.u32 %v5530, 23
      %v5532 = vor.u32 4788187, %v5531
      %v5533 = vand.u32 2147483647, %v5532
      %v5535 = vcvt.s32.f32 %v5528
      %v5536 = vmul.f32 %v5535, %v5533
      %v5537 = vxor.u32 %v5536, 2147483648
      %v5538 = vsel %vm5455, %v5537, %v5536
      %v5539 = vsub.s32 4, %v5515
      %v5540 = vsel %vm5455, %v5539, %v5515
      %v5541 = vsel %vm5454, %v2259, %v5538
      %v5542 = vsel %vm5454, 0, %v5540
      %v5543 = vcosq.f32.pop %v5541
      %v5544 = vsinq.f32.pop %v5541
      %vm5545 = vweird.f32 %v2259
      %v5546 = vand.u32 %v5542, 3
      %vm5547 = vcmp.lt.s32.totalorder %v5546, 2
      %vm5548 = vcmp.eq.s32.totalorder %v5546, 0
      %v5549 = vxor.u32 %v5544, 2147483648
      %v5550 = vsel %vm5548, %v5543, %v5549
      %vm5551 = vcmp.eq.s32.totalorder %v5546, 2
      %v5552 = vxor.u32 %v5543, 2147483648
      %v5553 = vsel %vm5551, %v5552, %v5544
      %v5554 = vsel %vm5547, %v5550, %v5553
      %v5555 = vsel %vm5545, nan, %v5554
      %v5556 = vpack.c.bf16 %v2465, %v2362
      %v5557 = vpack.c.bf16 %v2671, %v2568
      %v5558 = vpack.c.bf16 %v2877, %v2774
      %v5559 = vpack.c.bf16 %v3083, %v2980
      %v5560 = vpack.c.bf16 %v3289, %v3186
      %v5561 = vpack.c.bf16 %v3495, %v3392
      %v5562 = vpack.c.bf16 %v3701, %v3598
      %v5563 = vpack.c.bf16 %v3907, %v3804
      %v5564 = vpack.c.bf16 %v4113, %v4010
      %v5565 = vpack.c.bf16 %v4319, %v4216
      %v5566 = vpack.c.bf16 %v4525, %v4422
      %v5567 = vpack.c.bf16 %v4731, %v4628
      %v5568 = vpack.c.bf16 %v4937, %v4834
      %v5569 = vpack.c.bf16 %v5143, %v5040
      %v5570 = vpack.c.bf16 %v5349, %v5246
      %v5571 = vpack.c.bf16 %v5555, %v5452
      %v5572 = vld [vmem:[%s10] sm:$0xf]
      %v5573 = vld [vmem:[%s10 + $0x4] sm:$0xf]
      %v5574 = vld [vmem:[%s465] sm:$0xf]
      %v5575 = vld [vmem:[%s465 + $0x4] sm:$0xf]
      %v5576 = vld [vmem:[%s465 + $0x8] sm:$0xf]
      %v5577 = vld [vmem:[%s465 + $0xc] sm:$0xf]
      %v5578 = vld [vmem:[%s465 + $0x10] sm:$0xf]
      %v5579 = vld [vmem:[%s465 + $0x14] sm:$0xf]
      %v5580 = vld [vmem:[%s465 + $0x18] sm:$0xf]
      %v5581 = vld [vmem:[%s465 + $0x1c] sm:$0xf]
      %v5582 = vld [vmem:[%s465 + $0x20] sm:$0xf]
      %v5583 = vld [vmem:[%s465 + $0x24] sm:$0xf]
      %v5584 = vld [vmem:[%s465 + $0x28] sm:$0xf]
      %v5585 = vld [vmem:[%s465 + $0x2c] sm:$0xf]
      %v5586 = vld [vmem:[%s465 + $0x30] sm:$0xf]
      %v5587 = vld [vmem:[%s465 + $0x34] sm:$0xf]
      %v5588 = vld [vmem:[%s465 + $0x38] sm:$0xf]
      %v5589 = vld [vmem:[%s465 + $0x3c] sm:$0xf]
      %v5590 = vld [vmem:[%s465 + $0x40] sm:$0xf]
      %v5591 = vld [vmem:[%s465 + $0x44] sm:$0xf]
      %v5592 = vld [vmem:[%s465 + $0x48] sm:$0xf]
      %v5593 = vld [vmem:[%s465 + $0x4c] sm:$0xf]
      %v5594 = vld [vmem:[%s465 + $0x50] sm:$0xf]
      %v5595 = vld [vmem:[%s465 + $0x54] sm:$0xf]
      %v5596 = vld [vmem:[%s465 + $0x58] sm:$0xf]
      %v5597 = vld [vmem:[%s465 + $0x5c] sm:$0xf]
      %v5598 = vld [vmem:[%s465 + $0x60] sm:$0xf]
      %v5599 = vld [vmem:[%s465 + $0x64] sm:$0xf]
      %v5600 = vld [vmem:[%s465 + $0x68] sm:$0xf]
      %v5601 = vld [vmem:[%s465 + $0x6c] sm:$0xf]
      %v5602 = vld [vmem:[%s465 + $0x70] sm:$0xf]
      %v5603 = vld [vmem:[%s465 + $0x74] sm:$0xf]
      %v5604 = vld [vmem:[%s465 + $0x78] sm:$0xf]
      %v5605 = vld [vmem:[%s465 + $0x7c] sm:$0xf]
      %v5606 = vld [vmem:[%s11] sm:$0xf]
      %v5607 = vld [vmem:[%s11 + $0x4] sm:$0xf]
      %v5640 = vunpack.c.l.b16 %v5574
      %v5641 = vunpack.c.l.b16 %v5575
      %v5642 = vunpack.c.l.b16 %v5576
      %v5643 = vunpack.c.l.b16 %v5577
      %v5644 = vunpack.c.l.b16 %v5578
      %v5645 = vunpack.c.l.b16 %v5579
      %v5646 = vunpack.c.l.b16 %v5580
      %v5647 = vunpack.c.l.b16 %v5581
      %v5648 = vunpack.c.l.b16 %v5582
      %v5649 = vunpack.c.l.b16 %v5583
      %v5650 = vunpack.c.l.b16 %v5584
      %v5651 = vunpack.c.l.b16 %v5585
      %v5652 = vunpack.c.l.b16 %v5586
      %v5653 = vunpack.c.l.b16 %v5587
      %v5654 = vunpack.c.l.b16 %v5588
      %v5655 = vunpack.c.l.b16 %v5589
      %v5656 = vunpack.c.l.b16 %v5590
      %v5657 = vunpack.c.l.b16 %v5591
      %v5658 = vunpack.c.l.b16 %v5592
      %v5659 = vunpack.c.l.b16 %v5593
      %v5660 = vunpack.c.l.b16 %v5594
      %v5661 = vunpack.c.l.b16 %v5595
      %v5662 = vunpack.c.l.b16 %v5596
      %v5663 = vunpack.c.l.b16 %v5597
      %v5664 = vunpack.c.l.b16 %v5598
      %v5665 = vunpack.c.l.b16 %v5599
      %v5666 = vunpack.c.l.b16 %v5600
      %v5667 = vunpack.c.l.b16 %v5601
      %v5668 = vunpack.c.l.b16 %v5602
      %v5669 = vunpack.c.l.b16 %v5603
      %v5670 = vunpack.c.l.b16 %v5604
      %v5671 = vunpack.c.l.b16 %v5605
      %v5672 = vpack.c.b16 %v5641, %v5640
      %v5673 = vpack.c.b16 %v5643, %v5642
      %v5674 = vpack.c.b16 %v5645, %v5644
      %v5675 = vpack.c.b16 %v5647, %v5646
      %v5676 = vpack.c.b16 %v5649, %v5648
      %v5677 = vpack.c.b16 %v5651, %v5650
      %v5678 = vpack.c.b16 %v5653, %v5652
      %v5679 = vpack.c.b16 %v5655, %v5654
      %v5680 = vpack.c.b16 %v5657, %v5656
      %v5681 = vpack.c.b16 %v5659, %v5658
      %v5682 = vpack.c.b16 %v5661, %v5660
      %v5683 = vpack.c.b16 %v5663, %v5662
      %v5684 = vpack.c.b16 %v5665, %v5664
      %v5685 = vpack.c.b16 %v5667, %v5666
      %v5686 = vpack.c.b16 %v5669, %v5668
      %v5687 = vpack.c.b16 %v5671, %v5670
      %v5690 = vunpack.c.l.b16 %v5606
      %v5691 = vunpack.c.l.b16 %v5607
      %v5692 = vpack.c.b16 %v5691, %v5690
      %vm5694 = vcmask 130048
      %v5696 = vsel %vm5694, %v5672, 0
      %v5699 = vsel %vm5694, %v5673, 0
      %v5702 = vsel %vm5694, %v5674, 0
      %v5705 = vsel %vm5694, %v5675, 0
      %v5708 = vsel %vm5694, %v5676, 0
      %v5711 = vsel %vm5694, %v5677, 0
      %v5714 = vsel %vm5694, %v5678, 0
      %v5717 = vsel %vm5694, %v5679, 0
      %v5720 = vsel %vm5694, %v5680, 0
      %v5723 = vsel %vm5694, %v5681, 0
      %v5726 = vsel %vm5694, %v5682, 0
      %v5729 = vsel %vm5694, %v5683, 0
      %v5732 = vsel %vm5694, %v5684, 0
      %v5735 = vsel %vm5694, %v5685, 0
      %v5738 = vsel %vm5694, %v5686, 0
      %v5741 = vsel %vm5694, %v5687, 0
      %5743 = vmatprep.subr.bf16.mxu0 0
      %5744 = vmatpush1.bf16.msra.mxu0 0
      %5745 = vmatprep.subr.bf16.mxu0 0
      %5746 = vmatpush1.bf16.msra.mxu0 0
      %5747 = vmatprep.subr.bf16.mxu0 0
      %5748 = vmatpush1.bf16.msra.mxu0 0
      %5749 = vmatprep.subr.bf16.mxu0 0
      %5750 = vmatpush1.bf16.msra.mxu0 0
      %5751 = vmatprep.subr.bf16.mxu0 0
      %5752 = vmatpush1.bf16.msra.mxu0 0
      %5753 = vmatprep.subr.bf16.mxu0 0
      %5754 = vmatpush1.bf16.msra.mxu0 0
      %5755 = vmatprep.subr.bf16.mxu0 0
      %5756 = vmatpush1.bf16.msra.mxu0 0
      %5757 = vmatprep.subr.bf16.mxu0 0
      %5758 = vmatpush1.bf16.msra.mxu0 %v5692
      %5759 = vmatprep.subr.bf16.mxu0 0
      %5760 = vmatpush2.bf16.msra.mxu0 0
      %5761 = vmatprep.subr.bf16.mxu0 0
      %5762 = vmatpush2.bf16.msra.mxu0 0
      %5763 = vmatprep.subr.bf16.mxu0 0
      %5764 = vmatpush2.bf16.msra.mxu0 0
      %5765 = vmatprep.subr.bf16.mxu0 0
      %5766 = vmatpush2.bf16.msra.mxu0 0
      %5767 = vmatprep.subr.bf16.mxu0 0
      %5768 = vmatpush2.bf16.msra.mxu0 0
      %5769 = vmatprep.subr.bf16.mxu0 0
      %5770 = vmatpush2.bf16.msra.mxu0 0
      %5771 = vmatprep.subr.bf16.mxu0 0
      %5772 = vmatpush2.bf16.msra.mxu0 0
      %5773 = vmatprep.subr.bf16.mxu0 0
      %5774 = vmatpush2.bf16.msra.mxu0 0
      %5775 = vmatprep.mubr.bf16.mxu0 0
      %5776 = vmatmul.mubr.bf16.gmra.mxu0 %v5696
      %v5777 = vpop.f32.mrf.mxu0
      %v5778 = vadd.f32 0.0, %v5777
      %v5779 = vpop.f32.mrf.mxu0
      %v5780 = vpop.f32.mrf.mxu0
      %v5781 = vadd.f32 0.0, %v5780
      %v5782 = vpop.f32.mrf.mxu0
      %5783 = vmatprep.mubr.bf16.mxu0 0
      %5784 = vmatmul.mubr.bf16.gmra.mxu0 %v5699
      %v5785 = vpop.f32.mrf.mxu0
      %v5786 = vadd.f32 0.0, %v5785
      %v5787 = vpop.f32.mrf.mxu0
      %v5788 = vpop.f32.mrf.mxu0
      %v5789 = vadd.f32 0.0, %v5788
      %v5790 = vpop.f32.mrf.mxu0
      %5791 = vmatprep.mubr.bf16.mxu0 0
      %5792 = vmatmul.mubr.bf16.gmra.mxu0 %v5702
      %v5793 = vpop.f32.mrf.mxu0
      %v5794 = vadd.f32 0.0, %v5793
      %v5795 = vpop.f32.mrf.mxu0
      %v5796 = vpop.f32.mrf.mxu0
      %v5797 = vadd.f32 0.0, %v5796
      %v5798 = vpop.f32.mrf.mxu0
      %5799 = vmatprep.mubr.bf16.mxu0 0
      %5800 = vmatmul.mubr.bf16.gmra.mxu0 %v5705
      %v5801 = vpop.f32.mrf.mxu0
      %v5802 = vadd.f32 0.0, %v5801
      %v5803 = vpop.f32.mrf.mxu0
      %v5804 = vpop.f32.mrf.mxu0
      %v5805 = vadd.f32 0.0, %v5804
      %v5806 = vpop.f32.mrf.mxu0
      %5807 = vmatprep.mubr.bf16.mxu0 0
      %5808 = vmatmul.mubr.bf16.gmra.mxu0 %v5708
      %v5809 = vpop.f32.mrf.mxu0
      %v5810 = vadd.f32 0.0, %v5809
      %v5811 = vpop.f32.mrf.mxu0
      %v5812 = vpop.f32.mrf.mxu0
      %v5813 = vadd.f32 0.0, %v5812
      %v5814 = vpop.f32.mrf.mxu0
      %5815 = vmatprep.mubr.bf16.mxu0 0
      %5816 = vmatmul.mubr.bf16.gmra.mxu0 %v5711
      %v5817 = vpop.f32.mrf.mxu0
      %v5818 = vadd.f32 0.0, %v5817
      %v5819 = vpop.f32.mrf.mxu0
      %v5820 = vpop.f32.mrf.mxu0
      %v5821 = vadd.f32 0.0, %v5820
      %v5822 = vpop.f32.mrf.mxu0
      %5823 = vmatprep.mubr.bf16.mxu0 0
      %5824 = vmatmul.mubr.bf16.gmra.mxu0 %v5714
      %v5825 = vpop.f32.mrf.mxu0
      %v5826 = vadd.f32 0.0, %v5825
      %v5827 = vpop.f32.mrf.mxu0
      %v5828 = vpop.f32.mrf.mxu0
      %v5829 = vadd.f32 0.0, %v5828
      %v5830 = vpop.f32.mrf.mxu0
      %5831 = vmatprep.mubr.bf16.mxu0 0
      %5832 = vmatmul.mubr.bf16.gmra.mxu0 %v5717
      %v5833 = vpop.f32.mrf.mxu0
      %v5834 = vadd.f32 0.0, %v5833
      %v5835 = vpop.f32.mrf.mxu0
      %v5836 = vpop.f32.mrf.mxu0
      %v5837 = vadd.f32 0.0, %v5836
      %v5838 = vpop.f32.mrf.mxu0
      %5839 = vmatprep.mubr.bf16.mxu0 0
      %5840 = vmatmul.mubr.bf16.gmra.mxu0 %v5720
      %v5841 = vpop.f32.mrf.mxu0
      %v5842 = vadd.f32 0.0, %v5841
      %v5843 = vpop.f32.mrf.mxu0
      %v5844 = vpop.f32.mrf.mxu0
      %v5845 = vadd.f32 0.0, %v5844
      %v5846 = vpop.f32.mrf.mxu0
      %5847 = vmatprep.mubr.bf16.mxu0 0
      %5848 = vmatmul.mubr.bf16.gmra.mxu0 %v5723
      %v5849 = vpop.f32.mrf.mxu0
      %v5850 = vadd.f32 0.0, %v5849
      %v5851 = vpop.f32.mrf.mxu0
      %v5852 = vpop.f32.mrf.mxu0
      %v5853 = vadd.f32 0.0, %v5852
      %v5854 = vpop.f32.mrf.mxu0
      %5855 = vmatprep.mubr.bf16.mxu0 0
      %5856 = vmatmul.mubr.bf16.gmra.mxu0 %v5726
      %v5857 = vpop.f32.mrf.mxu0
      %v5858 = vadd.f32 0.0, %v5857
      %v5859 = vpop.f32.mrf.mxu0
      %v5860 = vpop.f32.mrf.mxu0
      %v5861 = vadd.f32 0.0, %v5860
      %v5862 = vpop.f32.mrf.mxu0
      %5863 = vmatprep.mubr.bf16.mxu0 0
      %5864 = vmatmul.mubr.bf16.gmra.mxu0 %v5729
      %v5865 = vpop.f32.mrf.mxu0
      %v5866 = vadd.f32 0.0, %v5865
      %v5867 = vpop.f32.mrf.mxu0
      %v5868 = vpop.f32.mrf.mxu0
      %v5869 = vadd.f32 0.0, %v5868
      %v5870 = vpop.f32.mrf.mxu0
      %5871 = vmatprep.mubr.bf16.mxu0 0
      %5872 = vmatmul.mubr.bf16.gmra.mxu0 %v5732
      %v5873 = vpop.f32.mrf.mxu0
      %v5874 = vadd.f32 0.0, %v5873
      %v5875 = vpop.f32.mrf.mxu0
      %v5876 = vpop.f32.mrf.mxu0
      %v5877 = vadd.f32 0.0, %v5876
      %v5878 = vpop.f32.mrf.mxu0
      %5879 = vmatprep.mubr.bf16.mxu0 0
      %5880 = vmatmul.mubr.bf16.gmra.mxu0 %v5735
      %v5881 = vpop.f32.mrf.mxu0
      %v5882 = vadd.f32 0.0, %v5881
      %v5883 = vpop.f32.mrf.mxu0
      %v5884 = vpop.f32.mrf.mxu0
      %v5885 = vadd.f32 0.0, %v5884
      %v5886 = vpop.f32.mrf.mxu0
      %5887 = vmatprep.mubr.bf16.mxu0 0
      %5888 = vmatmul.mubr.bf16.gmra.mxu0 %v5738
      %v5889 = vpop.f32.mrf.mxu0
      %v5890 = vadd.f32 0.0, %v5889
      %v5891 = vpop.f32.mrf.mxu0
      %v5892 = vpop.f32.mrf.mxu0
      %v5893 = vadd.f32 0.0, %v5892
      %v5894 = vpop.f32.mrf.mxu0
      %5895 = vmatprep.mubr.bf16.mxu0 0
      %5896 = vmatmul.mubr.bf16.gmra.mxu0 %v5741
      %v5897 = vpop.f32.mrf.mxu0
      %v5898 = vadd.f32 0.0, %v5897
      %v5899 = vpop.f32.mrf.mxu0
      %v5900 = vpop.f32.mrf.mxu0
      %v5901 = vadd.f32 0.0, %v5900
      %v5902 = vpop.f32.mrf.mxu0
      %5903 = vdwg.mxu0
      %5920 = vrot.lane.b32.xlu0 %v5556, 64
      %v5921 = vpop.permute.xlu0 %5920
      %5922 = vrot.lane.b32.xlu0 %v5557, 64
      %v5923 = vpop.permute.xlu0 %5922
      %5924 = vrot.lane.b32.xlu0 %v5558, 64
      %v5925 = vpop.permute.xlu0 %5924
      %5926 = vrot.lane.b32.xlu0 %v5559, 64
      %v5927 = vpop.permute.xlu0 %5926
      %5928 = vrot.lane.b32.xlu0 %v5560, 64
      %v5929 = vpop.permute.xlu0 %5928
      %5930 = vrot.lane.b32.xlu0 %v5561, 64
      %v5931 = vpop.permute.xlu0 %5930
      %5932 = vrot.lane.b32.xlu0 %v5562, 64
      %v5933 = vpop.permute.xlu0 %5932
      %5934 = vrot.lane.b32.xlu0 %v5563, 64
      %v5935 = vpop.permute.xlu0 %5934
      %5936 = vrot.lane.b32.xlu0 %v5564, 64
      %v5937 = vpop.permute.xlu0 %5936
      %5938 = vrot.lane.b32.xlu0 %v5565, 64
      %v5939 = vpop.permute.xlu0 %5938
      %5940 = vrot.lane.b32.xlu0 %v5566, 64
      %v5941 = vpop.permute.xlu0 %5940
      %5942 = vrot.lane.b32.xlu0 %v5567, 64
      %v5943 = vpop.permute.xlu0 %5942
      %5944 = vrot.lane.b32.xlu0 %v5568, 64
      %v5945 = vpop.permute.xlu0 %5944
      %5946 = vrot.lane.b32.xlu0 %v5569, 64
      %v5947 = vpop.permute.xlu0 %5946
      %5948 = vrot.lane.b32.xlu0 %v5570, 64
      %v5949 = vpop.permute.xlu0 %5948
      %5950 = vrot.lane.b32.xlu0 %v5571, 64
      %v5951 = vpop.permute.xlu0 %5950
      %v5954 = vunpack.c.l.b16 %v5572
      %v5955 = vunpack.c.l.b16 %v5573
      %v5956 = vpack.c.b16 %v5955, %v5954
      %v5959 = vsel %vm5694, %v5921, 0
      %v5962 = vsel %vm5694, %v5923, 0
      %v5965 = vsel %vm5694, %v5925, 0
      %v5968 = vsel %vm5694, %v5927, 0
      %v5971 = vsel %vm5694, %v5929, 0
      %v5974 = vsel %vm5694, %v5931, 0
      %v5977 = vsel %vm5694, %v5933, 0
      %v5980 = vsel %vm5694, %v5935, 0
      %v5983 = vsel %vm5694, %v5937, 0
      %v5986 = vsel %vm5694, %v5939, 0
      %v5989 = vsel %vm5694, %v5941, 0
      %v5992 = vsel %vm5694, %v5943, 0
      %v5995 = vsel %vm5694, %v5945, 0
      %v5998 = vsel %vm5694, %v5947, 0
      %v6001 = vsel %vm5694, %v5949, 0
      %v6004 = vsel %vm5694, %v5951, 0
      %6006 = vmatprep.subr.bf16.mxu0 0
      %6007 = vmatpush1.bf16.msra.mxu0 0
      %6008 = vmatprep.subr.bf16.mxu0 0
      %6009 = vmatpush1.bf16.msra.mxu0 0
      %6010 = vmatprep.subr.bf16.mxu0 0
      %6011 = vmatpush1.bf16.msra.mxu0 0
      %6012 = vmatprep.subr.bf16.mxu0 0
      %6013 = vmatpush1.bf16.msra.mxu0 0
      %6014 = vmatprep.subr.bf16.mxu0 0
      %6015 = vmatpush1.bf16.msra.mxu0 0
      %6016 = vmatprep.subr.bf16.mxu0 0
      %6017 = vmatpush1.bf16.msra.mxu0 0
      %6018 = vmatprep.subr.bf16.mxu0 0
      %6019 = vmatpush1.bf16.msra.mxu0 0
      %6020 = vmatprep.subr.bf16.mxu0 0
      %6021 = vmatpush1.bf16.msra.mxu0 %v5956
      %6022 = vmatprep.subr.bf16.mxu0 0
      %6023 = vmatpush2.bf16.msra.mxu0 0
      %6024 = vmatprep.subr.bf16.mxu0 0
      %6025 = vmatpush2.bf16.msra.mxu0 0
      %6026 = vmatprep.subr.bf16.mxu0 0
      %6027 = vmatpush2.bf16.msra.mxu0 0
      %6028 = vmatprep.subr.bf16.mxu0 0
      %6029 = vmatpush2.bf16.msra.mxu0 0
      %6030 = vmatprep.subr.bf16.mxu0 0
      %6031 = vmatpush2.bf16.msra.mxu0 0
      %6032 = vmatprep.subr.bf16.mxu0 0
      %6033 = vmatpush2.bf16.msra.mxu0 0
      %6034 = vmatprep.subr.bf16.mxu0 0
      %6035 = vmatpush2.bf16.msra.mxu0 0
      %6036 = vmatprep.subr.bf16.mxu0 0
      %6037 = vmatpush2.bf16.msra.mxu0 0
      %6038 = vmatprep.mubr.bf16.mxu0 0
      %6039 = vmatmul.mubr.bf16.gmra.mxu0 %v5959
      %v6040 = vpop.f32.mrf.mxu0
      %v6041 = vadd.f32 %v5778, %v6040
      %v6042 = vpop.f32.mrf.mxu0
      %v6043 = vpop.f32.mrf.mxu0
      %v6044 = vadd.f32 %v5781, %v6043
      %v6045 = vpop.f32.mrf.mxu0
      %6046 = vmatprep.mubr.bf16.mxu0 0
      %6047 = vmatmul.mubr.bf16.gmra.mxu0 %v5962
      %v6048 = vpop.f32.mrf.mxu0
      %v6049 = vadd.f32 %v5786, %v6048
      %v6050 = vpop.f32.mrf.mxu0
      %v6051 = vpop.f32.mrf.mxu0
      %v6052 = vadd.f32 %v5789, %v6051
      %v6053 = vpop.f32.mrf.mxu0
      %6054 = vmatprep.mubr.bf16.mxu0 0
      %6055 = vmatmul.mubr.bf16.gmra.mxu0 %v5965
      %v6056 = vpop.f32.mrf.mxu0
      %v6057 = vadd.f32 %v5794, %v6056
      %v6058 = vpop.f32.mrf.mxu0
      %v6059 = vpop.f32.mrf.mxu0
      %v6060 = vadd.f32 %v5797, %v6059
      %v6061 = vpop.f32.mrf.mxu0
      %6062 = vmatprep.mubr.bf16.mxu0 0
      %6063 = vmatmul.mubr.bf16.gmra.mxu0 %v5968
      %v6064 = vpop.f32.mrf.mxu0
      %v6065 = vadd.f32 %v5802, %v6064
      %v6066 = vpop.f32.mrf.mxu0
      %v6067 = vpop.f32.mrf.mxu0
      %v6068 = vadd.f32 %v5805, %v6067
      %v6069 = vpop.f32.mrf.mxu0
      %6070 = vmatprep.mubr.bf16.mxu0 0
      %6071 = vmatmul.mubr.bf16.gmra.mxu0 %v5971
      %v6072 = vpop.f32.mrf.mxu0
      %v6073 = vadd.f32 %v5810, %v6072
      %v6074 = vpop.f32.mrf.mxu0
      %v6075 = vpop.f32.mrf.mxu0
      %v6076 = vadd.f32 %v5813, %v6075
      %v6077 = vpop.f32.mrf.mxu0
      %6078 = vmatprep.mubr.bf16.mxu0 0
      %6079 = vmatmul.mubr.bf16.gmra.mxu0 %v5974
      %v6080 = vpop.f32.mrf.mxu0
      %v6081 = vadd.f32 %v5818, %v6080
      %v6082 = vpop.f32.mrf.mxu0
      %v6083 = vpop.f32.mrf.mxu0
      %v6084 = vadd.f32 %v5821, %v6083
      %v6085 = vpop.f32.mrf.mxu0
      %6086 = vmatprep.mubr.bf16.mxu0 0
      %6087 = vmatmul.mubr.bf16.gmra.mxu0 %v5977
      %v6088 = vpop.f32.mrf.mxu0
      %v6089 = vadd.f32 %v5826, %v6088
      %v6090 = vpop.f32.mrf.mxu0
      %v6091 = vpop.f32.mrf.mxu0
      %v6092 = vadd.f32 %v5829, %v6091
      %v6093 = vpop.f32.mrf.mxu0
      %6094 = vmatprep.mubr.bf16.mxu0 0
      %6095 = vmatmul.mubr.bf16.gmra.mxu0 %v5980
      %v6096 = vpop.f32.mrf.mxu0
      %v6097 = vadd.f32 %v5834, %v6096
      %v6098 = vpop.f32.mrf.mxu0
      %v6099 = vpop.f32.mrf.mxu0
      %v6100 = vadd.f32 %v5837, %v6099
      %v6101 = vpop.f32.mrf.mxu0
      %6102 = vmatprep.mubr.bf16.mxu0 0
      %6103 = vmatmul.mubr.bf16.gmra.mxu0 %v5983
      %v6104 = vpop.f32.mrf.mxu0
      %v6105 = vadd.f32 %v5842, %v6104
      %v6106 = vpop.f32.mrf.mxu0
      %v6107 = vpop.f32.mrf.mxu0
      %v6108 = vadd.f32 %v5845, %v6107
      %v6109 = vpop.f32.mrf.mxu0
      %6110 = vmatprep.mubr.bf16.mxu0 0
      %6111 = vmatmul.mubr.bf16.gmra.mxu0 %v5986
      %v6112 = vpop.f32.mrf.mxu0
      %v6113 = vadd.f32 %v5850, %v6112
      %v6114 = vpop.f32.mrf.mxu0
      %v6115 = vpop.f32.mrf.mxu0
      %v6116 = vadd.f32 %v5853, %v6115
      %v6117 = vpop.f32.mrf.mxu0
      %6118 = vmatprep.mubr.bf16.mxu0 0
      %6119 = vmatmul.mubr.bf16.gmra.mxu0 %v5989
      %v6120 = vpop.f32.mrf.mxu0
      %v6121 = vadd.f32 %v5858, %v6120
      %v6122 = vpop.f32.mrf.mxu0
      %v6123 = vpop.f32.mrf.mxu0
      %v6124 = vadd.f32 %v5861, %v6123
      %v6125 = vpop.f32.mrf.mxu0
      %6126 = vmatprep.mubr.bf16.mxu0 0
      %6127 = vmatmul.mubr.bf16.gmra.mxu0 %v5992
      %v6128 = vpop.f32.mrf.mxu0
      %v6129 = vadd.f32 %v5866, %v6128
      %v6130 = vpop.f32.mrf.mxu0
      %v6131 = vpop.f32.mrf.mxu0
      %v6132 = vadd.f32 %v5869, %v6131
      %v6133 = vpop.f32.mrf.mxu0
      %6134 = vmatprep.mubr.bf16.mxu0 0
      %6135 = vmatmul.mubr.bf16.gmra.mxu0 %v5995
      %v6136 = vpop.f32.mrf.mxu0
      %v6137 = vadd.f32 %v5874, %v6136
      %v6138 = vpop.f32.mrf.mxu0
      %v6139 = vpop.f32.mrf.mxu0
      %v6140 = vadd.f32 %v5877, %v6139
      %v6141 = vpop.f32.mrf.mxu0
      %6142 = vmatprep.mubr.bf16.mxu0 0
      %6143 = vmatmul.mubr.bf16.gmra.mxu0 %v5998
      %v6144 = vpop.f32.mrf.mxu0
      %v6145 = vadd.f32 %v5882, %v6144
      %v6146 = vpop.f32.mrf.mxu0
      %v6147 = vpop.f32.mrf.mxu0
      %v6148 = vadd.f32 %v5885, %v6147
      %v6149 = vpop.f32.mrf.mxu0
      %6150 = vmatprep.mubr.bf16.mxu0 0
      %6151 = vmatmul.mubr.bf16.gmra.mxu0 %v6001
      %v6152 = vpop.f32.mrf.mxu0
      %v6153 = vadd.f32 %v5890, %v6152
      %v6154 = vpop.f32.mrf.mxu0
      %v6155 = vpop.f32.mrf.mxu0
      %v6156 = vadd.f32 %v5893, %v6155
      %v6157 = vpop.f32.mrf.mxu0
      %6158 = vmatprep.mubr.bf16.mxu0 0
      %6159 = vmatmul.mubr.bf16.gmra.mxu0 %v6004
      %v6160 = vpop.f32.mrf.mxu0
      %v6161 = vadd.f32 %v5898, %v6160
      %v6162 = vpop.f32.mrf.mxu0
      %v6163 = vpop.f32.mrf.mxu0
      %v6164 = vadd.f32 %v5901, %v6163
      %v6165 = vpop.f32.mrf.mxu0
      %6166 = vdwg.mxu0
      %v6167 = vadd.f32 %v1702, %v6041
      %v6168 = vadd.f32 %v1705, %v6044
      %v6169 = vadd.f32 %v1710, %v6049
      %v6170 = vadd.f32 %v1713, %v6052
      %v6171 = vadd.f32 %v1718, %v6057
      %v6172 = vadd.f32 %v1721, %v6060
      %v6173 = vadd.f32 %v1726, %v6065
      %v6174 = vadd.f32 %v1729, %v6068
      %v6175 = vadd.f32 %v1734, %v6073
      %v6176 = vadd.f32 %v1737, %v6076
      %v6177 = vadd.f32 %v1742, %v6081
      %v6178 = vadd.f32 %v1745, %v6084
      %v6179 = vadd.f32 %v1750, %v6089
      %v6180 = vadd.f32 %v1753, %v6092
      %v6181 = vadd.f32 %v1758, %v6097
      %v6182 = vadd.f32 %v1761, %v6100
      %v6183 = vadd.f32 %v1766, %v6105
      %v6184 = vadd.f32 %v1769, %v6108
      %v6185 = vadd.f32 %v1774, %v6113
      %v6186 = vadd.f32 %v1777, %v6116
      %v6187 = vadd.f32 %v1782, %v6121
      %v6188 = vadd.f32 %v1785, %v6124
      %v6189 = vadd.f32 %v1790, %v6129
      %v6190 = vadd.f32 %v1793, %v6132
      %v6191 = vadd.f32 %v1798, %v6137
      %v6192 = vadd.f32 %v1801, %v6140
      %v6193 = vadd.f32 %v1806, %v6145
      %v6194 = vadd.f32 %v1809, %v6148
      %v6195 = vadd.f32 %v1814, %v6153
      %v6196 = vadd.f32 %v1817, %v6156
      %v6197 = vadd.f32 %v1822, %v6161
      %v6198 = vadd.f32 %v1825, %v6164
      %6231 = vrot.lane.b32.xlu0 %v6041, 32
      %v6232 = vpop.permute.xlu0 %6231
      %6233 = vrot.lane.b32.xlu0 %v6044, 32
      %v6234 = vpop.permute.xlu0 %6233
      %6235 = vrot.lane.b32.xlu0 %v6049, 32
      %v6236 = vpop.permute.xlu0 %6235
      %6237 = vrot.lane.b32.xlu0 %v6052, 32
      %v6238 = vpop.permute.xlu0 %6237
      %6239 = vrot.lane.b32.xlu0 %v6057, 32
      %v6240 = vpop.permute.xlu0 %6239
      %6241 = vrot.lane.b32.xlu0 %v6060, 32
      %v6242 = vpop.permute.xlu0 %6241
      %6243 = vrot.lane.b32.xlu0 %v6065, 32
      %v6244 = vpop.permute.xlu0 %6243
      %6245 = vrot.lane.b32.xlu0 %v6068, 32
      %v6246 = vpop.permute.xlu0 %6245
      %6247 = vrot.lane.b32.xlu0 %v6073, 32
      %v6248 = vpop.permute.xlu0 %6247
      %6249 = vrot.lane.b32.xlu0 %v6076, 32
      %v6250 = vpop.permute.xlu0 %6249
      %6251 = vrot.lane.b32.xlu0 %v6081, 32
      %v6252 = vpop.permute.xlu0 %6251
      %6253 = vrot.lane.b32.xlu0 %v6084, 32
      %v6254 = vpop.permute.xlu0 %6253
      %6255 = vrot.lane.b32.xlu0 %v6089, 32
      %v6256 = vpop.permute.xlu0 %6255
      %6257 = vrot.lane.b32.xlu0 %v6092, 32
      %v6258 = vpop.permute.xlu0 %6257
      %6259 = vrot.lane.b32.xlu0 %v6097, 32
      %v6260 = vpop.permute.xlu0 %6259
      %6261 = vrot.lane.b32.xlu0 %v6100, 32
      %v6262 = vpop.permute.xlu0 %6261
      %6263 = vrot.lane.b32.xlu0 %v6105, 32
      %v6264 = vpop.permute.xlu0 %6263
      %6265 = vrot.lane.b32.xlu0 %v6108, 32
      %v6266 = vpop.permute.xlu0 %6265
      %6267 = vrot.lane.b32.xlu0 %v6113, 32
      %v6268 = vpop.permute.xlu0 %6267
      %6269 = vrot.lane.b32.xlu0 %v6116, 32
      %v6270 = vpop.permute.xlu0 %6269
      %6271 = vrot.lane.b32.xlu0 %v6121, 32
      %v6272 = vpop.permute.xlu0 %6271
      %6273 = vrot.lane.b32.xlu0 %v6124, 32
      %v6274 = vpop.permute.xlu0 %6273
      %6275 = vrot.lane.b32.xlu0 %v6129, 32
      %v6276 = vpop.permute.xlu0 %6275
      %6277 = vrot.lane.b32.xlu0 %v6132, 32
      %v6278 = vpop.permute.xlu0 %6277
      %6279 = vrot.lane.b32.xlu0 %v6137, 32
      %v6280 = vpop.permute.xlu0 %6279
      %6281 = vrot.lane.b32.xlu0 %v6140, 32
      %v6282 = vpop.permute.xlu0 %6281
      %6283 = vrot.lane.b32.xlu0 %v6145, 32
      %v6284 = vpop.permute.xlu0 %6283
      %6285 = vrot.lane.b32.xlu0 %v6148, 32
      %v6286 = vpop.permute.xlu0 %6285
      %6287 = vrot.lane.b32.xlu0 %v6153, 32
      %v6288 = vpop.permute.xlu0 %6287
      %6289 = vrot.lane.b32.xlu0 %v6156, 32
      %v6290 = vpop.permute.xlu0 %6289
      %6291 = vrot.lane.b32.xlu0 %v6161, 32
      %v6292 = vpop.permute.xlu0 %6291
      %6293 = vrot.lane.b32.xlu0 %v6164, 32
      %v6294 = vpop.permute.xlu0 %6293
      %v6327 = vadd.f32 %v1702, %v6232
      %v6328 = vadd.f32 %v1705, %v6234
      %v6329 = vadd.f32 %v1710, %v6236
      %v6330 = vadd.f32 %v1713, %v6238
      %v6331 = vadd.f32 %v1718, %v6240
      %v6332 = vadd.f32 %v1721, %v6242
      %v6333 = vadd.f32 %v1726, %v6244
      %v6334 = vadd.f32 %v1729, %v6246
      %v6335 = vadd.f32 %v1734, %v6248
      %v6336 = vadd.f32 %v1737, %v6250
      %v6337 = vadd.f32 %v1742, %v6252
      %v6338 = vadd.f32 %v1745, %v6254
      %v6339 = vadd.f32 %v1750, %v6256
      %v6340 = vadd.f32 %v1753, %v6258
      %v6341 = vadd.f32 %v1758, %v6260
      %v6342 = vadd.f32 %v1761, %v6262
      %v6343 = vadd.f32 %v1766, %v6264
      %v6344 = vadd.f32 %v1769, %v6266
      %v6345 = vadd.f32 %v1774, %v6268
      %v6346 = vadd.f32 %v1777, %v6270
      %v6347 = vadd.f32 %v1782, %v6272
      %v6348 = vadd.f32 %v1785, %v6274
      %v6349 = vadd.f32 %v1790, %v6276
      %v6350 = vadd.f32 %v1793, %v6278
      %v6351 = vadd.f32 %v1798, %v6280
      %v6352 = vadd.f32 %v1801, %v6282
      %v6353 = vadd.f32 %v1806, %v6284
      %v6354 = vadd.f32 %v1809, %v6286
      %v6355 = vadd.f32 %v1814, %v6288
      %v6356 = vadd.f32 %v1817, %v6290
      %v6357 = vadd.f32 %v1822, %v6292
      %v6358 = vadd.f32 %v1825, %v6294
      %v6359 = vmul.f32 %v1461, %v6167
      %v6360 = vmul.f32 %v1464, %v6168
      %v6361 = vmul.f32 %v1469, %v6169
      %v6362 = vmul.f32 %v1472, %v6170
      %v6363 = vmul.f32 %v1477, %v6171
      %v6364 = vmul.f32 %v1480, %v6172
      %v6365 = vmul.f32 %v1485, %v6173
      %v6366 = vmul.f32 %v1488, %v6174
      %v6367 = vmul.f32 %v1493, %v6175
      %v6368 = vmul.f32 %v1496, %v6176
      %v6369 = vmul.f32 %v1501, %v6177
      %v6370 = vmul.f32 %v1504, %v6178
      %v6371 = vmul.f32 %v1509, %v6179
      %v6372 = vmul.f32 %v1512, %v6180
      %v6373 = vmul.f32 %v1517, %v6181
      %v6374 = vmul.f32 %v1520, %v6182
      %v6375 = vmul.f32 %v1525, %v6183
      %v6376 = vmul.f32 %v1528, %v6184
      %v6377 = vmul.f32 %v1533, %v6185
      %v6378 = vmul.f32 %v1536, %v6186
      %v6379 = vmul.f32 %v1541, %v6187
      %v6380 = vmul.f32 %v1544, %v6188
      %v6381 = vmul.f32 %v1549, %v6189
      %v6382 = vmul.f32 %v1552, %v6190
      %v6383 = vmul.f32 %v1557, %v6191
      %v6384 = vmul.f32 %v1560, %v6192
      %v6385 = vmul.f32 %v1565, %v6193
      %v6386 = vmul.f32 %v1568, %v6194
      %v6387 = vmul.f32 %v1573, %v6195
      %v6388 = vmul.f32 %v1576, %v6196
      %v6389 = vmul.f32 %v1581, %v6197
      %v6390 = vmul.f32 %v1584, %v6198
      %v6391 = vsel %vm5694, %v6359, 0.0
      %6392 = vadd.xlane.f32.xlu0 %v6391
      %v6393 = vpop.xlane.xlu0 %6392
      %v6394 = vsel %vm5694, %v6360, 0.0
      %6395 = vadd.xlane.f32.xlu0 %v6394
      %v6396 = vpop.xlane.xlu0 %6395
      %v6397 = vsel %vm5694, %v6361, 0.0
      %6398 = vadd.xlane.f32.xlu0 %v6397
      %v6399 = vpop.xlane.xlu0 %6398
      %v6400 = vsel %vm5694, %v6362, 0.0
      %6401 = vadd.xlane.f32.xlu0 %v6400
      %v6402 = vpop.xlane.xlu0 %6401
      %v6403 = vsel %vm5694, %v6363, 0.0
      %6404 = vadd.xlane.f32.xlu0 %v6403
      %v6405 = vpop.xlane.xlu0 %6404
      %v6406 = vsel %vm5694, %v6364, 0.0
      %6407 = vadd.xlane.f32.xlu0 %v6406
      %v6408 = vpop.xlane.xlu0 %6407
      %v6409 = vsel %vm5694, %v6365, 0.0
      %6410 = vadd.xlane.f32.xlu0 %v6409
      %v6411 = vpop.xlane.xlu0 %6410
      %v6412 = vsel %vm5694, %v6366, 0.0
      %6413 = vadd.xlane.f32.xlu0 %v6412
      %v6414 = vpop.xlane.xlu0 %6413
      %v6415 = vsel %vm5694, %v6367, 0.0
      %6416 = vadd.xlane.f32.xlu0 %v6415
      %v6417 = vpop.xlane.xlu0 %6416
      %v6418 = vsel %vm5694, %v6368, 0.0
      %6419 = vadd.xlane.f32.xlu0 %v6418
      %v6420 = vpop.xlane.xlu0 %6419
      %v6421 = vsel %vm5694, %v6369, 0.0
      %6422 = vadd.xlane.f32.xlu0 %v6421
      %v6423 = vpop.xlane.xlu0 %6422
      %v6424 = vsel %vm5694, %v6370, 0.0
      %6425 = vadd.xlane.f32.xlu0 %v6424
      %v6426 = vpop.xlane.xlu0 %6425
      %v6427 = vsel %vm5694, %v6371, 0.0
      %6428 = vadd.xlane.f32.xlu0 %v6427
      %v6429 = vpop.xlane.xlu0 %6428
      %v6430 = vsel %vm5694, %v6372, 0.0
      %6431 = vadd.xlane.f32.xlu0 %v6430
      %v6432 = vpop.xlane.xlu0 %6431
      %v6433 = vsel %vm5694, %v6373, 0.0
      %6434 = vadd.xlane.f32.xlu0 %v6433
      %v6435 = vpop.xlane.xlu0 %6434
      %v6436 = vsel %vm5694, %v6374, 0.0
      %6437 = vadd.xlane.f32.xlu0 %v6436
      %v6438 = vpop.xlane.xlu0 %6437
      %v6439 = vsel %vm5694, %v6375, 0.0
      %6440 = vadd.xlane.f32.xlu0 %v6439
      %v6441 = vpop.xlane.xlu0 %6440
      %v6442 = vsel %vm5694, %v6376, 0.0
      %6443 = vadd.xlane.f32.xlu0 %v6442
      %v6444 = vpop.xlane.xlu0 %6443
      %v6445 = vsel %vm5694, %v6377, 0.0
      %6446 = vadd.xlane.f32.xlu0 %v6445
      %v6447 = vpop.xlane.xlu0 %6446
      %v6448 = vsel %vm5694, %v6378, 0.0
      %6449 = vadd.xlane.f32.xlu0 %v6448
      %v6450 = vpop.xlane.xlu0 %6449
      %v6451 = vsel %vm5694, %v6379, 0.0
      %6452 = vadd.xlane.f32.xlu0 %v6451
      %v6453 = vpop.xlane.xlu0 %6452
      %v6454 = vsel %vm5694, %v6380, 0.0
      %6455 = vadd.xlane.f32.xlu0 %v6454
      %v6456 = vpop.xlane.xlu0 %6455
      %v6457 = vsel %vm5694, %v6381, 0.0
      %6458 = vadd.xlane.f32.xlu0 %v6457
      %v6459 = vpop.xlane.xlu0 %6458
      %v6460 = vsel %vm5694, %v6382, 0.0
      %6461 = vadd.xlane.f32.xlu0 %v6460
      %v6462 = vpop.xlane.xlu0 %6461
      %v6463 = vsel %vm5694, %v6383, 0.0
      %6464 = vadd.xlane.f32.xlu0 %v6463
      %v6465 = vpop.xlane.xlu0 %6464
      %v6466 = vsel %vm5694, %v6384, 0.0
      %6467 = vadd.xlane.f32.xlu0 %v6466
      %v6468 = vpop.xlane.xlu0 %6467
      %v6469 = vsel %vm5694, %v6385, 0.0
      %6470 = vadd.xlane.f32.xlu0 %v6469
      %v6471 = vpop.xlane.xlu0 %6470
      %v6472 = vsel %vm5694, %v6386, 0.0
      %6473 = vadd.xlane.f32.xlu0 %v6472
      %v6474 = vpop.xlane.xlu0 %6473
      %v6475 = vsel %vm5694, %v6387, 0.0
      %6476 = vadd.xlane.f32.xlu0 %v6475
      %v6477 = vpop.xlane.xlu0 %6476
      %v6478 = vsel %vm5694, %v6388, 0.0
      %6479 = vadd.xlane.f32.xlu0 %v6478
      %v6480 = vpop.xlane.xlu0 %6479
      %v6481 = vsel %vm5694, %v6389, 0.0
      %6482 = vadd.xlane.f32.xlu0 %v6481
      %v6483 = vpop.xlane.xlu0 %6482
      %v6484 = vsel %vm5694, %v6390, 0.0
      %6485 = vadd.xlane.f32.xlu0 %v6484
      %v6486 = vpop.xlane.xlu0 %6485
      %6519 = vrot.lane.b32.xlu0 %v6359, 112
      %v6520 = vpop.permute.xlu0 %6519
      %6521 = vrot.lane.b32.xlu0 %v6360, 112
      %v6522 = vpop.permute.xlu0 %6521
      %6523 = vrot.lane.b32.xlu0 %v6361, 112
      %v6524 = vpop.permute.xlu0 %6523
      %6525 = vrot.lane.b32.xlu0 %v6362, 112
      %v6526 = vpop.permute.xlu0 %6525
      %6527 = vrot.lane.b32.xlu0 %v6363, 112
      %v6528 = vpop.permute.xlu0 %6527
      %6529 = vrot.lane.b32.xlu0 %v6364, 112
      %v6530 = vpop.permute.xlu0 %6529
      %6531 = vrot.lane.b32.xlu0 %v6365, 112
      %v6532 = vpop.permute.xlu0 %6531
      %6533 = vrot.lane.b32.xlu0 %v6366, 112
      %v6534 = vpop.permute.xlu0 %6533
      %6535 = vrot.lane.b32.xlu0 %v6367, 112
      %v6536 = vpop.permute.xlu0 %6535
      %6537 = vrot.lane.b32.xlu0 %v6368, 112
      %v6538 = vpop.permute.xlu0 %6537
      %6539 = vrot.lane.b32.xlu0 %v6369, 112
      %v6540 = vpop.permute.xlu0 %6539
      %6541 = vrot.lane.b32.xlu0 %v6370, 112
      %v6542 = vpop.permute.xlu0 %6541
      %6543 = vrot.lane.b32.xlu0 %v6371, 112
      %v6544 = vpop.permute.xlu0 %6543
      %6545 = vrot.lane.b32.xlu0 %v6372, 112
      %v6546 = vpop.permute.xlu0 %6545
      %6547 = vrot.lane.b32.xlu0 %v6373, 112
      %v6548 = vpop.permute.xlu0 %6547
      %6549 = vrot.lane.b32.xlu0 %v6374, 112
      %v6550 = vpop.permute.xlu0 %6549
      %6551 = vrot.lane.b32.xlu0 %v6375, 112
      %v6552 = vpop.permute.xlu0 %6551
      %6553 = vrot.lane.b32.xlu0 %v6376, 112
      %v6554 = vpop.permute.xlu0 %6553
      %6555 = vrot.lane.b32.xlu0 %v6377, 112
      %v6556 = vpop.permute.xlu0 %6555
      %6557 = vrot.lane.b32.xlu0 %v6378, 112
      %v6558 = vpop.permute.xlu0 %6557
      %6559 = vrot.lane.b32.xlu0 %v6379, 112
      %v6560 = vpop.permute.xlu0 %6559
      %6561 = vrot.lane.b32.xlu0 %v6380, 112
      %v6562 = vpop.permute.xlu0 %6561
      %6563 = vrot.lane.b32.xlu0 %v6381, 112
      %v6564 = vpop.permute.xlu0 %6563
      %6565 = vrot.lane.b32.xlu0 %v6382, 112
      %v6566 = vpop.permute.xlu0 %6565
      %6567 = vrot.lane.b32.xlu0 %v6383, 112
      %v6568 = vpop.permute.xlu0 %6567
      %6569 = vrot.lane.b32.xlu0 %v6384, 112
      %v6570 = vpop.permute.xlu0 %6569
      %6571 = vrot.lane.b32.xlu0 %v6385, 112
      %v6572 = vpop.permute.xlu0 %6571
      %6573 = vrot.lane.b32.xlu0 %v6386, 112
      %v6574 = vpop.permute.xlu0 %6573
      %6575 = vrot.lane.b32.xlu0 %v6387, 112
      %v6576 = vpop.permute.xlu0 %6575
      %6577 = vrot.lane.b32.xlu0 %v6388, 112
      %v6578 = vpop.permute.xlu0 %6577
      %6579 = vrot.lane.b32.xlu0 %v6389, 112
      %v6580 = vpop.permute.xlu0 %6579
      %6581 = vrot.lane.b32.xlu0 %v6390, 112
      %v6582 = vpop.permute.xlu0 %6581
      %v6615 = vsel %vm5694, %v6520, 0.0
      %6616 = vadd.xlane.f32.xlu0 %v6615
      %v6617 = vpop.xlane.xlu0 %6616
      %v6618 = vsel %vm5694, %v6522, 0.0
      %6619 = vadd.xlane.f32.xlu0 %v6618
      %v6620 = vpop.xlane.xlu0 %6619
      %v6621 = vsel %vm5694, %v6524, 0.0
      %6622 = vadd.xlane.f32.xlu0 %v6621
      %v6623 = vpop.xlane.xlu0 %6622
      %v6624 = vsel %vm5694, %v6526, 0.0
      %6625 = vadd.xlane.f32.xlu0 %v6624
      %v6626 = vpop.xlane.xlu0 %6625
      %v6627 = vsel %vm5694, %v6528, 0.0
      %6628 = vadd.xlane.f32.xlu0 %v6627
      %v6629 = vpop.xlane.xlu0 %6628
      %v6630 = vsel %vm5694, %v6530, 0.0
      %6631 = vadd.xlane.f32.xlu0 %v6630
      %v6632 = vpop.xlane.xlu0 %6631
      %v6633 = vsel %vm5694, %v6532, 0.0
      %6634 = vadd.xlane.f32.xlu0 %v6633
      %v6635 = vpop.xlane.xlu0 %6634
      %v6636 = vsel %vm5694, %v6534, 0.0
      %6637 = vadd.xlane.f32.xlu0 %v6636
      %v6638 = vpop.xlane.xlu0 %6637
      %v6639 = vsel %vm5694, %v6536, 0.0
      %6640 = vadd.xlane.f32.xlu0 %v6639
      %v6641 = vpop.xlane.xlu0 %6640
      %v6642 = vsel %vm5694, %v6538, 0.0
      %6643 = vadd.xlane.f32.xlu0 %v6642
      %v6644 = vpop.xlane.xlu0 %6643
      %v6645 = vsel %vm5694, %v6540, 0.0
      %6646 = vadd.xlane.f32.xlu0 %v6645
      %v6647 = vpop.xlane.xlu0 %6646
      %v6648 = vsel %vm5694, %v6542, 0.0
      %6649 = vadd.xlane.f32.xlu0 %v6648
      %v6650 = vpop.xlane.xlu0 %6649
      %v6651 = vsel %vm5694, %v6544, 0.0
      %6652 = vadd.xlane.f32.xlu0 %v6651
      %v6653 = vpop.xlane.xlu0 %6652
      %v6654 = vsel %vm5694, %v6546, 0.0
      %6655 = vadd.xlane.f32.xlu0 %v6654
      %v6656 = vpop.xlane.xlu0 %6655
      %v6657 = vsel %vm5694, %v6548, 0.0
      %6658 = vadd.xlane.f32.xlu0 %v6657
      %v6659 = vpop.xlane.xlu0 %6658
      %v6660 = vsel %vm5694, %v6550, 0.0
      %6661 = vadd.xlane.f32.xlu0 %v6660
      %v6662 = vpop.xlane.xlu0 %6661
      %v6663 = vsel %vm5694, %v6552, 0.0
      %6664 = vadd.xlane.f32.xlu0 %v6663
      %v6665 = vpop.xlane.xlu0 %6664
      %v6666 = vsel %vm5694, %v6554, 0.0
      %6667 = vadd.xlane.f32.xlu0 %v6666
      %v6668 = vpop.xlane.xlu0 %6667
      %v6669 = vsel %vm5694, %v6556, 0.0
      %6670 = vadd.xlane.f32.xlu0 %v6669
      %v6671 = vpop.xlane.xlu0 %6670
      %v6672 = vsel %vm5694, %v6558, 0.0
      %6673 = vadd.xlane.f32.xlu0 %v6672
      %v6674 = vpop.xlane.xlu0 %6673
      %v6675 = vsel %vm5694, %v6560, 0.0
      %6676 = vadd.xlane.f32.xlu0 %v6675
      %v6677 = vpop.xlane.xlu0 %6676
      %v6678 = vsel %vm5694, %v6562, 0.0
      %6679 = vadd.xlane.f32.xlu0 %v6678
      %v6680 = vpop.xlane.xlu0 %6679
      %v6681 = vsel %vm5694, %v6564, 0.0
      %6682 = vadd.xlane.f32.xlu0 %v6681
      %v6683 = vpop.xlane.xlu0 %6682
      %v6684 = vsel %vm5694, %v6566, 0.0
      %6685 = vadd.xlane.f32.xlu0 %v6684
      %v6686 = vpop.xlane.xlu0 %6685
      %v6687 = vsel %vm5694, %v6568, 0.0
      %6688 = vadd.xlane.f32.xlu0 %v6687
      %v6689 = vpop.xlane.xlu0 %6688
      %v6690 = vsel %vm5694, %v6570, 0.0
      %6691 = vadd.xlane.f32.xlu0 %v6690
      %v6692 = vpop.xlane.xlu0 %6691
      %v6693 = vsel %vm5694, %v6572, 0.0
      %6694 = vadd.xlane.f32.xlu0 %v6693
      %v6695 = vpop.xlane.xlu0 %6694
      %v6696 = vsel %vm5694, %v6574, 0.0
      %6697 = vadd.xlane.f32.xlu0 %v6696
      %v6698 = vpop.xlane.xlu0 %6697
      %v6699 = vsel %vm5694, %v6576, 0.0
      %6700 = vadd.xlane.f32.xlu0 %v6699
      %v6701 = vpop.xlane.xlu0 %6700
      %v6702 = vsel %vm5694, %v6578, 0.0
      %6703 = vadd.xlane.f32.xlu0 %v6702
      %v6704 = vpop.xlane.xlu0 %6703
      %v6705 = vsel %vm5694, %v6580, 0.0
      %6706 = vadd.xlane.f32.xlu0 %v6705
      %v6707 = vpop.xlane.xlu0 %6706
      %v6708 = vsel %vm5694, %v6582, 0.0
      %6709 = vadd.xlane.f32.xlu0 %v6708
      %v6710 = vpop.xlane.xlu0 %6709
      %vm6711 = vcmask 7168
      %v6712 = vsel %vm6711, %v6393, %v6617
      %v6713 = vsel %vm6711, %v6396, %v6620
      %v6714 = vsel %vm6711, %v6399, %v6623
      %v6715 = vsel %vm6711, %v6402, %v6626
      %v6716 = vsel %vm6711, %v6405, %v6629
      %v6717 = vsel %vm6711, %v6408, %v6632
      %v6718 = vsel %vm6711, %v6411, %v6635
      %v6719 = vsel %vm6711, %v6414, %v6638
      %v6720 = vsel %vm6711, %v6417, %v6641
      %v6721 = vsel %vm6711, %v6420, %v6644
      %v6722 = vsel %vm6711, %v6423, %v6647
      %v6723 = vsel %vm6711, %v6426, %v6650
      %v6724 = vsel %vm6711, %v6429, %v6653
      %v6725 = vsel %vm6711, %v6432, %v6656
      %v6726 = vsel %vm6711, %v6435, %v6659
      %v6727 = vsel %vm6711, %v6438, %v6662
      %v6728 = vsel %vm6711, %v6441, %v6665
      %v6729 = vsel %vm6711, %v6444, %v6668
      %v6730 = vsel %vm6711, %v6447, %v6671
      %v6731 = vsel %vm6711, %v6450, %v6674
      %v6732 = vsel %vm6711, %v6453, %v6677
      %v6733 = vsel %vm6711, %v6456, %v6680
      %v6734 = vsel %vm6711, %v6459, %v6683
      %v6735 = vsel %vm6711, %v6462, %v6686
      %v6736 = vsel %vm6711, %v6465, %v6689
      %v6737 = vsel %vm6711, %v6468, %v6692
      %v6738 = vsel %vm6711, %v6471, %v6695
      %v6739 = vsel %vm6711, %v6474, %v6698
      %v6740 = vsel %vm6711, %v6477, %v6701
      %v6741 = vsel %vm6711, %v6480, %v6704
      %v6742 = vsel %vm6711, %v6483, %v6707
      %v6743 = vsel %vm6711, %v6486, %v6710
      %v6744 = vmul.f32 %v6712, 0.25
      %v6745 = vmul.f32 %v6713, 0.25
      %v6746 = vmul.f32 %v6714, 0.25
      %v6747 = vmul.f32 %v6715, 0.25
      %v6748 = vmul.f32 %v6716, 0.25
      %v6749 = vmul.f32 %v6717, 0.25
      %v6750 = vmul.f32 %v6718, 0.25
      %v6751 = vmul.f32 %v6719, 0.25
      %v6752 = vmul.f32 %v6720, 0.25
      %v6753 = vmul.f32 %v6721, 0.25
      %v6754 = vmul.f32 %v6722, 0.25
      %v6755 = vmul.f32 %v6723, 0.25
      %v6756 = vmul.f32 %v6724, 0.25
      %v6757 = vmul.f32 %v6725, 0.25
      %v6758 = vmul.f32 %v6726, 0.25
      %v6759 = vmul.f32 %v6727, 0.25
      %v6760 = vmul.f32 %v6728, 0.25
      %v6761 = vmul.f32 %v6729, 0.25
      %v6762 = vmul.f32 %v6730, 0.25
      %v6763 = vmul.f32 %v6731, 0.25
      %v6764 = vmul.f32 %v6732, 0.25
      %v6765 = vmul.f32 %v6733, 0.25
      %v6766 = vmul.f32 %v6734, 0.25
      %v6767 = vmul.f32 %v6735, 0.25
      %v6768 = vmul.f32 %v6736, 0.25
      %v6769 = vmul.f32 %v6737, 0.25
      %v6770 = vmul.f32 %v6738, 0.25
      %v6771 = vmul.f32 %v6739, 0.25
      %v6772 = vmul.f32 %v6740, 0.25
      %v6773 = vmul.f32 %v6741, 0.25
      %v6774 = vmul.f32 %v6742, 0.25
      %v6775 = vmul.f32 %v6743, 0.25
      %6776 = vxpose.xlu0.b32.start [1/16] %v6744, 128
      %6777 = vxpose.xlu0.b32.cont [2/16] %v6745, 128
      %6778 = vxpose.xlu0.b32.cont [3/16] %v6746, 128
      %6779 = vxpose.xlu0.b32.cont [4/16] %v6747, 128
      %6780 = vxpose.xlu0.b32.cont [5/16] %v6748, 128
      %6781 = vxpose.xlu0.b32.cont [6/16] %v6749, 128
      %6782 = vxpose.xlu0.b32.cont [7/16] %v6750, 128
      %6783 = vxpose.xlu0.b32.cont [8/16] %v6751, 128
      %6784 = vxpose.xlu0.b32.cont [9/16] %v6752, 128
      %6785 = vxpose.xlu0.b32.cont [10/16] %v6753, 128
      %6786 = vxpose.xlu0.b32.cont [11/16] %v6754, 128
      %6787 = vxpose.xlu0.b32.cont [12/16] %v6755, 128
      %6788 = vxpose.xlu0.b32.cont [13/16] %v6756, 128
      %6789 = vxpose.xlu0.b32.cont [14/16] %v6757, 128
      %6790 = vxpose.xlu0.b32.cont [15/16] %v6758, 128
      %6791 = vxpose.xlu0.b32.end [16/16] %v6759, 128
      %v6792 = vpop.trf.xlu0
      %v6793 = vpop.trf.xlu0
      %v6794 = vpop.trf.xlu0
      %v6795 = vpop.trf.xlu0
      %v6796 = vpop.trf.xlu0
      %v6797 = vpop.trf.xlu0
      %v6798 = vpop.trf.xlu0
      %v6799 = vpop.trf.xlu0
      %v6800 = vpop.trf.xlu0
      %v6801 = vpop.trf.xlu0
      %v6802 = vpop.trf.xlu0
      %v6803 = vpop.trf.xlu0
      %v6804 = vpop.trf.xlu0
      %v6805 = vpop.trf.xlu0
      %v6806 = vpop.trf.xlu0
      %v6807 = vpop.trf.xlu0
      %6808 = vxpose.xlu0.b32.start [1/16] %v6760, 128
      %6809 = vxpose.xlu0.b32.cont [2/16] %v6761, 128
      %6810 = vxpose.xlu0.b32.cont [3/16] %v6762, 128
      %6811 = vxpose.xlu0.b32.cont [4/16] %v6763, 128
      %6812 = vxpose.xlu0.b32.cont [5/16] %v6764, 128
      %6813 = vxpose.xlu0.b32.cont [6/16] %v6765, 128
      %6814 = vxpose.xlu0.b32.cont [7/16] %v6766, 128
      %6815 = vxpose.xlu0.b32.cont [8/16] %v6767, 128
      %6816 = vxpose.xlu0.b32.cont [9/16] %v6768, 128
      %6817 = vxpose.xlu0.b32.cont [10/16] %v6769, 128
      %6818 = vxpose.xlu0.b32.cont [11/16] %v6770, 128
      %6819 = vxpose.xlu0.b32.cont [12/16] %v6771, 128
      %6820 = vxpose.xlu0.b32.cont [13/16] %v6772, 128
      %6821 = vxpose.xlu0.b32.cont [14/16] %v6773, 128
      %6822 = vxpose.xlu0.b32.cont [15/16] %v6774, 128
      %6823 = vxpose.xlu0.b32.end [16/16] %v6775, 128
      %v6824 = vpop.trf.xlu0
      %v6825 = vpop.trf.xlu0
      %v6826 = vpop.trf.xlu0
      %v6827 = vpop.trf.xlu0
      %v6828 = vpop.trf.xlu0
      %v6829 = vpop.trf.xlu0
      %v6830 = vpop.trf.xlu0
      %v6831 = vpop.trf.xlu0
      %v6832 = vpop.trf.xlu0
      %v6833 = vpop.trf.xlu0
      %v6834 = vpop.trf.xlu0
      %v6835 = vpop.trf.xlu0
      %v6836 = vpop.trf.xlu0
      %v6837 = vpop.trf.xlu0
      %v6838 = vpop.trf.xlu0
      %v6839 = vpop.trf.xlu0
      %v6840 = vlaneseq
      %v6841 = vshrl.u32 %v6840, 7
      %v6842 = vsub.s32 0, %v6841
      %v6843 = vrot.slane %v6792, %v6842
      %v6844 = vlaneseq
      %v6845 = vshrl.u32 %v6844, 7
      %v6846 = vsub.s32 0, %v6845
      %v6847 = vrot.slane %v6824, %v6846
      %v6848 = vsel %vm1329, %v6843, -1.2676506e+30
      %v6849 = vsel %vm1330, %v6847, -1.2676506e+30
      %v6850 = vsel %vm1331, %v6843, -1.2676506e+30
      %v6851 = vsel %vm1332, %v6847, -1.2676506e+30
      %v6852 = vsel %vm1333, %v6843, -1.2676506e+30
      %v6853 = vsel %vm1334, %v6847, -1.2676506e+30
      %v6854 = vsel %vm1335, %v6843, -1.2676506e+30
      %v6855 = vsel %vm1336, %v6847, -1.2676506e+30
      %v6856 = vsel %vm1337, %v6843, -1.2676506e+30
      %v6857 = vsel %vm1338, %v6847, -1.2676506e+30
      %v6858 = vsel %vm1339, %v6843, -1.2676506e+30
      %v6859 = vsel %vm1340, %v6847, -1.2676506e+30
      %v6860 = vsel %vm1341, %v6843, -1.2676506e+30
      %v6861 = vsel %vm1342, %v6847, -1.2676506e+30
      %v6862 = vsel %vm1343, %v6843, -1.2676506e+30
      %v6863 = vsel %vm1344, %v6847, -1.2676506e+30
      %v6864 = vmax.f32 %v6848, %v6849
      %6865 = vmax.xlane.f32.xlu0 %v6864
      %v6866 = vpop.xlane.xlu0 %6865
      %v6867 = vmax.f32 %v6850, %v6851
      %6868 = vmax.xlane.f32.xlu0 %v6867
      %v6869 = vpop.xlane.xlu0 %6868
      %v6870 = vmax.f32 %v6852, %v6853
      %6871 = vmax.xlane.f32.xlu0 %v6870
      %v6872 = vpop.xlane.xlu0 %6871
      %v6873 = vmax.f32 %v6854, %v6855
      %6874 = vmax.xlane.f32.xlu0 %v6873
      %v6875 = vpop.xlane.xlu0 %6874
      %v6876 = vmax.f32 %v6856, %v6857
      %6877 = vmax.xlane.f32.xlu0 %v6876
      %v6878 = vpop.xlane.xlu0 %6877
      %v6879 = vmax.f32 %v6858, %v6859
      %6880 = vmax.xlane.f32.xlu0 %v6879
      %v6881 = vpop.xlane.xlu0 %6880
      %v6882 = vmax.f32 %v6860, %v6861
      %6883 = vmax.xlane.f32.xlu0 %v6882
      %v6884 = vpop.xlane.xlu0 %6883
      %v6885 = vmax.f32 %v6862, %v6863
      %6886 = vmax.xlane.f32.xlu0 %v6885
      %v6887 = vpop.xlane.xlu0 %6886
      %v6888 = vlaneseq
      %v6889 = vshrl.u32 %v6888, 7
      %v6890 = vsub.s32 1, %v6889
      %v6891 = vrot.slane %v6792, %v6890
      %v6892 = vlaneseq
      %v6893 = vshrl.u32 %v6892, 7
      %v6894 = vsub.s32 1, %v6893
      %v6895 = vrot.slane %v6824, %v6894
      %v6896 = vsel %vm1329, %v6891, -1.2676506e+30
      %v6897 = vsel %vm1330, %v6895, -1.2676506e+30
      %v6898 = vsel %vm1331, %v6891, -1.2676506e+30
      %v6899 = vsel %vm1332, %v6895, -1.2676506e+30
      %v6900 = vsel %vm1333, %v6891, -1.2676506e+30
      %v6901 = vsel %vm1334, %v6895, -1.2676506e+30
      %v6902 = vsel %vm1335, %v6891, -1.2676506e+30
      %v6903 = vsel %vm1336, %v6895, -1.2676506e+30
      %v6904 = vsel %vm1337, %v6891, -1.2676506e+30
      %v6905 = vsel %vm1338, %v6895, -1.2676506e+30
      %v6906 = vsel %vm1339, %v6891, -1.2676506e+30
      %v6907 = vsel %vm1340, %v6895, -1.2676506e+30
      %v6908 = vsel %vm1341, %v6891, -1.2676506e+30
      %v6909 = vsel %vm1342, %v6895, -1.2676506e+30
      %v6910 = vsel %vm1343, %v6891, -1.2676506e+30
      %v6911 = vsel %vm1344, %v6895, -1.2676506e+30
      %v6912 = vmax.f32 %v6896, %v6897
      %6913 = vmax.xlane.f32.xlu0 %v6912
      %v6914 = vpop.xlane.xlu0 %6913
      %v6915 = vmax.f32 %v6898, %v6899
      %6916 = vmax.xlane.f32.xlu0 %v6915
      %v6917 = vpop.xlane.xlu0 %6916
      %v6918 = vmax.f32 %v6900, %v6901
      %6919 = vmax.xlane.f32.xlu0 %v6918
      %v6920 = vpop.xlane.xlu0 %6919
      %v6921 = vmax.f32 %v6902, %v6903
      %6922 = vmax.xlane.f32.xlu0 %v6921
      %v6923 = vpop.xlane.xlu0 %6922
      %v6924 = vmax.f32 %v6904, %v6905
      %6925 = vmax.xlane.f32.xlu0 %v6924
      %v6926 = vpop.xlane.xlu0 %6925
      %v6927 = vmax.f32 %v6906, %v6907
      %6928 = vmax.xlane.f32.xlu0 %v6927
      %v6929 = vpop.xlane.xlu0 %6928
      %v6930 = vmax.f32 %v6908, %v6909
      %6931 = vmax.xlane.f32.xlu0 %v6930
      %v6932 = vpop.xlane.xlu0 %6931
      %v6933 = vmax.f32 %v6910, %v6911
      %6934 = vmax.xlane.f32.xlu0 %v6933
      %v6935 = vpop.xlane.xlu0 %6934
      %v6936 = vsel %vm6711, %v6866, %v6914
      %v6937 = vsel %vm6711, %v6869, %v6917
      %v6938 = vsel %vm6711, %v6872, %v6920
      %v6939 = vsel %vm6711, %v6875, %v6923
      %v6940 = vsel %vm6711, %v6878, %v6926
      %v6941 = vsel %vm6711, %v6881, %v6929
      %v6942 = vsel %vm6711, %v6884, %v6932
      %v6943 = vsel %vm6711, %v6887, %v6935
      %v6944 = vld [vmem:[#allocation5] sm:$0xff]
      %v6945 = vld [vmem:[#allocation5 + $0x8] sm:$0xff]
      %v6946 = vld [vmem:[#allocation5 + $0x10] sm:$0xff]
      %v6947 = vld [vmem:[#allocation5 + $0x18] sm:$0xff]
      %v6948 = vld [vmem:[#allocation5 + $0x20] sm:$0xff]
      %v6949 = vld [vmem:[#allocation5 + $0x28] sm:$0xff]
      %v6950 = vld [vmem:[#allocation5 + $0x30] sm:$0xff]
      %v6951 = vld [vmem:[#allocation5 + $0x38] sm:$0xff]
      %v6952 = vmax.f32 %v6944, %v6936
      %v6953 = vmax.f32 %v6945, %v6937
      %v6954 = vmax.f32 %v6946, %v6938
      %v6955 = vmax.f32 %v6947, %v6939
      %v6956 = vmax.f32 %v6948, %v6940
      %v6957 = vmax.f32 %v6949, %v6941
      %v6958 = vmax.f32 %v6950, %v6942
      %v6959 = vmax.f32 %v6951, %v6943
      %v6960 = vpack.c.bf16 %v6953, %v6952
      %v6961 = vpack.c.bf16 %v6955, %v6954
      %v6962 = vpack.c.bf16 %v6957, %v6956
      %v6963 = vpack.c.bf16 %v6959, %v6958
      %v6964 = vunpack.c.l.bf16 %v6960
      %v6965 = vunpack.c.h.bf16 %v6960
      %v6966 = vunpack.c.l.bf16 %v6961
      %v6967 = vunpack.c.h.bf16 %v6961
      %v6968 = vunpack.c.l.bf16 %v6962
      %v6969 = vunpack.c.h.bf16 %v6962
      %v6970 = vunpack.c.l.bf16 %v6963
      %v6971 = vunpack.c.h.bf16 %v6963
      %v6972 = vsub.f32 %v6944, %v6964
      %v6973 = vsub.f32 %v6945, %v6965
      %v6974 = vsub.f32 %v6946, %v6966
      %v6975 = vsub.f32 %v6947, %v6967
      %v6976 = vsub.f32 %v6948, %v6968
      %v6977 = vsub.f32 %v6949, %v6969
      %v6978 = vsub.f32 %v6950, %v6970
      %v6979 = vsub.f32 %v6951, %v6971
      %v6980 = vmul.f32 %v6972, 1.442695
      %v6981 = vpow.pop %v6980
      %v6982 = vmul.f32 %v6973, 1.442695
      %v6983 = vpow.pop %v6982
      %v6984 = vmul.f32 %v6974, 1.442695
      %v6985 = vpow.pop %v6984
      %v6986 = vmul.f32 %v6975, 1.442695
      %v6987 = vpow.pop %v6986
      %v6988 = vmul.f32 %v6976, 1.442695
      %v6989 = vpow.pop %v6988
      %v6990 = vmul.f32 %v6977, 1.442695
      %v6991 = vpow.pop %v6990
      %v6992 = vmul.f32 %v6978, 1.442695
      %v6993 = vpow.pop %v6992
      %v6994 = vmul.f32 %v6979, 1.442695
      %v6995 = vpow.pop %v6994
      %vm6996 = vcmask 15360
      %6997 = vst.msk [vmem:[#allocation5] sm:$0xff] %vm6996, %v6964
      %6998 = vst.msk [vmem:[#allocation5 + $0x8] sm:$0xff] %vm6996, %v6965
      %6999 = vst.msk [vmem:[#allocation5 + $0x10] sm:$0xff] %vm6996, %v6966
      %7000 = vst.msk [vmem:[#allocation5 + $0x18] sm:$0xff] %vm6996, %v6967
      %7001 = vst.msk [vmem:[#allocation5 + $0x20] sm:$0xff] %vm6996, %v6968
      %7002 = vst.msk [vmem:[#allocation5 + $0x28] sm:$0xff] %vm6996, %v6969
      %7003 = vst.msk [vmem:[#allocation5 + $0x30] sm:$0xff] %vm6996, %v6970
      %7004 = vst.msk [vmem:[#allocation5 + $0x38] sm:$0xff] %vm6996, %v6971
      %7005 = vmatprep.subr.bf16.mxu0 0
      %7006 = vmatpush1.bf16.msra.mxu0 0
      %7007 = vmatprep.subr.bf16.mxu0 0
      %7008 = vmatpush1.bf16.msra.mxu0 0
      %7009 = vmatprep.subr.bf16.mxu0 0
      %7010 = vmatpush1.bf16.msra.mxu0 0
      %7011 = vmatprep.subr.bf16.mxu0 0
      %7012 = vmatpush1.bf16.msra.mxu0 0
      %7013 = vmatprep.subr.bf16.mxu0 0
      %7014 = vmatpush1.bf16.msra.mxu0 %v6963
      %7015 = vmatprep.subr.bf16.mxu0 0
      %7016 = vmatpush1.bf16.msra.mxu0 %v6962
      %7017 = vmatprep.subr.bf16.mxu0 0
      %7018 = vmatpush1.bf16.msra.mxu0 %v6961
      %7019 = vmatprep.subr.bf16.mxu0 0
      %7020 = vmatpush1.bf16.msra.mxu0 %v6960
      %7021 = vmatprep.subr.bf16.mxu0 0
      %7022 = vmatpush2.bf16.msra.mxu0 0
      %7023 = vmatprep.subr.bf16.mxu0 0
      %7024 = vmatpush2.bf16.msra.mxu0 0
      %7025 = vmatprep.subr.bf16.mxu0 0
      %7026 = vmatpush2.bf16.msra.mxu0 0
      %7027 = vmatprep.subr.bf16.mxu0 0
      %7028 = vmatpush2.bf16.msra.mxu0 0
      %7029 = vmatprep.subr.bf16.mxu0 0
      %7030 = vmatpush2.bf16.msra.mxu0 0
      %7031 = vmatprep.subr.bf16.mxu0 0
      %7032 = vmatpush2.bf16.msra.mxu0 0
      %7033 = vmatprep.subr.bf16.mxu0 0
      %7034 = vmatpush2.bf16.msra.mxu0 0
      %7035 = vmatprep.subr.bf16.mxu0 0
      %7036 = vmatpush2.bf16.msra.mxu0 0
      %7037 = vmatprep.mubr.bf16.mxu0 0
      %7038 = vmatmul.mubr.bf16.gmra.mxu0 %v1379
      %v7039 = vpop.f32.mrf.mxu0
      %v7040 = vadd.f32 0.0, %v7039
      %v7041 = vpop.f32.mrf.mxu0
      %v7042 = vpop.f32.mrf.mxu0
      %v7043 = vadd.f32 0.0, %v7042
      %v7044 = vpop.f32.mrf.mxu0
      %7045 = vmatprep.mubr.bf16.mxu0 0
      %7046 = vmatmul.mubr.bf16.gmra.mxu0 %v1382
      %v7047 = vpop.f32.mrf.mxu0
      %v7048 = vadd.f32 0.0, %v7047
      %v7049 = vpop.f32.mrf.mxu0
      %v7050 = vpop.f32.mrf.mxu0
      %v7051 = vadd.f32 0.0, %v7050
      %v7052 = vpop.f32.mrf.mxu0
      %7053 = vmatprep.mubr.bf16.mxu0 0
      %7054 = vmatmul.mubr.bf16.gmra.mxu0 %v1385
      %v7055 = vpop.f32.mrf.mxu0
      %v7056 = vadd.f32 0.0, %v7055
      %v7057 = vpop.f32.mrf.mxu0
      %v7058 = vpop.f32.mrf.mxu0
      %v7059 = vadd.f32 0.0, %v7058
      %v7060 = vpop.f32.mrf.mxu0
      %7061 = vmatprep.mubr.bf16.mxu0 0
      %7062 = vmatmul.mubr.bf16.gmra.mxu0 %v1388
      %v7063 = vpop.f32.mrf.mxu0
      %v7064 = vadd.f32 0.0, %v7063
      %v7065 = vpop.f32.mrf.mxu0
      %v7066 = vpop.f32.mrf.mxu0
      %v7067 = vadd.f32 0.0, %v7066
      %v7068 = vpop.f32.mrf.mxu0
      %7069 = vmatprep.mubr.bf16.mxu0 0
      %7070 = vmatmul.mubr.bf16.gmra.mxu0 %v1391
      %v7071 = vpop.f32.mrf.mxu0
      %v7072 = vadd.f32 0.0, %v7071
      %v7073 = vpop.f32.mrf.mxu0
      %v7074 = vpop.f32.mrf.mxu0
      %v7075 = vadd.f32 0.0, %v7074
      %v7076 = vpop.f32.mrf.mxu0
      %7077 = vmatprep.mubr.bf16.mxu0 0
      %7078 = vmatmul.mubr.bf16.gmra.mxu0 %v1394
      %v7079 = vpop.f32.mrf.mxu0
      %v7080 = vadd.f32 0.0, %v7079
      %v7081 = vpop.f32.mrf.mxu0
      %v7082 = vpop.f32.mrf.mxu0
      %v7083 = vadd.f32 0.0, %v7082
      %v7084 = vpop.f32.mrf.mxu0
      %7085 = vmatprep.mubr.bf16.mxu0 0
      %7086 = vmatmul.mubr.bf16.gmra.mxu0 %v1397
      %v7087 = vpop.f32.mrf.mxu0
      %v7088 = vadd.f32 0.0, %v7087
      %v7089 = vpop.f32.mrf.mxu0
      %v7090 = vpop.f32.mrf.mxu0
      %v7091 = vadd.f32 0.0, %v7090
      %v7092 = vpop.f32.mrf.mxu0
      %7093 = vmatprep.mubr.bf16.mxu0 0
      %7094 = vmatmul.mubr.bf16.gmra.mxu0 %v1400
      %v7095 = vpop.f32.mrf.mxu0
      %v7096 = vadd.f32 0.0, %v7095
      %v7097 = vpop.f32.mrf.mxu0
      %v7098 = vpop.f32.mrf.mxu0
      %v7099 = vadd.f32 0.0, %v7098
      %v7100 = vpop.f32.mrf.mxu0
      %7101 = vmatprep.mubr.bf16.mxu0 0
      %7102 = vmatmul.mubr.bf16.gmra.mxu0 %v1403
      %v7103 = vpop.f32.mrf.mxu0
      %v7104 = vadd.f32 0.0, %v7103
      %v7105 = vpop.f32.mrf.mxu0
      %v7106 = vpop.f32.mrf.mxu0
      %v7107 = vadd.f32 0.0, %v7106
      %v7108 = vpop.f32.mrf.mxu0
      %7109 = vmatprep.mubr.bf16.mxu0 0
      %7110 = vmatmul.mubr.bf16.gmra.mxu0 %v1406
      %v7111 = vpop.f32.mrf.mxu0
      %v7112 = vadd.f32 0.0, %v7111
      %v7113 = vpop.f32.mrf.mxu0
      %v7114 = vpop.f32.mrf.mxu0
      %v7115 = vadd.f32 0.0, %v7114
      %v7116 = vpop.f32.mrf.mxu0
      %7117 = vmatprep.mubr.bf16.mxu0 0
      %7118 = vmatmul.mubr.bf16.gmra.mxu0 %v1409
      %v7119 = vpop.f32.mrf.mxu0
      %v7120 = vadd.f32 0.0, %v7119
      %v7121 = vpop.f32.mrf.mxu0
      %v7122 = vpop.f32.mrf.mxu0
      %v7123 = vadd.f32 0.0, %v7122
      %v7124 = vpop.f32.mrf.mxu0
      %7125 = vmatprep.mubr.bf16.mxu0 0
      %7126 = vmatmul.mubr.bf16.gmra.mxu0 %v1412
      %v7127 = vpop.f32.mrf.mxu0
      %v7128 = vadd.f32 0.0, %v7127
      %v7129 = vpop.f32.mrf.mxu0
      %v7130 = vpop.f32.mrf.mxu0
      %v7131 = vadd.f32 0.0, %v7130
      %v7132 = vpop.f32.mrf.mxu0
      %7133 = vmatprep.mubr.bf16.mxu0 0
      %7134 = vmatmul.mubr.bf16.gmra.mxu0 %v1415
      %v7135 = vpop.f32.mrf.mxu0
      %v7136 = vadd.f32 0.0, %v7135
      %v7137 = vpop.f32.mrf.mxu0
      %v7138 = vpop.f32.mrf.mxu0
      %v7139 = vadd.f32 0.0, %v7138
      %v7140 = vpop.f32.mrf.mxu0
      %7141 = vmatprep.mubr.bf16.mxu0 0
      %7142 = vmatmul.mubr.bf16.gmra.mxu0 %v1418
      %v7143 = vpop.f32.mrf.mxu0
      %v7144 = vadd.f32 0.0, %v7143
      %v7145 = vpop.f32.mrf.mxu0
      %v7146 = vpop.f32.mrf.mxu0
      %v7147 = vadd.f32 0.0, %v7146
      %v7148 = vpop.f32.mrf.mxu0
      %7149 = vmatprep.mubr.bf16.mxu0 0
      %7150 = vmatmul.mubr.bf16.gmra.mxu0 %v1421
      %v7151 = vpop.f32.mrf.mxu0
      %v7152 = vadd.f32 0.0, %v7151
      %v7153 = vpop.f32.mrf.mxu0
      %v7154 = vpop.f32.mrf.mxu0
      %v7155 = vadd.f32 0.0, %v7154
      %v7156 = vpop.f32.mrf.mxu0
      %7157 = vmatprep.mubr.bf16.mxu0 0
      %7158 = vmatmul.mubr.bf16.gmra.mxu0 %v1424
      %v7159 = vpop.f32.mrf.mxu0
      %v7160 = vadd.f32 0.0, %v7159
      %v7161 = vpop.f32.mrf.mxu0
      %v7162 = vpop.f32.mrf.mxu0
      %v7163 = vadd.f32 0.0, %v7162
      %v7164 = vpop.f32.mrf.mxu0
      %7165 = vdwg.mxu0
      %v7166 = vsub.f32 %v6744, %v7040
      %v7167 = vsub.f32 %v6745, %v7043
      %v7168 = vsub.f32 %v6746, %v7048
      %v7169 = vsub.f32 %v6747, %v7051
      %v7170 = vsub.f32 %v6748, %v7056
      %v7171 = vsub.f32 %v6749, %v7059
      %v7172 = vsub.f32 %v6750, %v7064
      %v7173 = vsub.f32 %v6751, %v7067
      %v7174 = vsub.f32 %v6752, %v7072
      %v7175 = vsub.f32 %v6753, %v7075
      %v7176 = vsub.f32 %v6754, %v7080
      %v7177 = vsub.f32 %v6755, %v7083
      %v7178 = vsub.f32 %v6756, %v7088
      %v7179 = vsub.f32 %v6757, %v7091
      %v7180 = vsub.f32 %v6758, %v7096
      %v7181 = vsub.f32 %v6759, %v7099
      %v7182 = vsub.f32 %v6760, %v7104
      %v7183 = vsub.f32 %v6761, %v7107
      %v7184 = vsub.f32 %v6762, %v7112
      %v7185 = vsub.f32 %v6763, %v7115
      %v7186 = vsub.f32 %v6764, %v7120
      %v7187 = vsub.f32 %v6765, %v7123
      %v7188 = vsub.f32 %v6766, %v7128
      %v7189 = vsub.f32 %v6767, %v7131
      %v7190 = vsub.f32 %v6768, %v7136
      %v7191 = vsub.f32 %v6769, %v7139
      %v7192 = vsub.f32 %v6770, %v7144
      %v7193 = vsub.f32 %v6771, %v7147
      %v7194 = vsub.f32 %v6772, %v7152
      %v7195 = vsub.f32 %v6773, %v7155
      %v7196 = vsub.f32 %v6774, %v7160
      %v7197 = vsub.f32 %v6775, %v7163
      %v7198 = vmul.f32 %v7166, 1.442695
      %v7199 = vpow.pop %v7198
      %v7200 = vmul.f32 %v7167, 1.442695
      %v7201 = vpow.pop %v7200
      %v7202 = vmul.f32 %v7168, 1.442695
      %v7203 = vpow.pop %v7202
      %v7204 = vmul.f32 %v7169, 1.442695
      %v7205 = vpow.pop %v7204
      %v7206 = vmul.f32 %v7170, 1.442695
      %v7207 = vpow.pop %v7206
      %v7208 = vmul.f32 %v7171, 1.442695
      %v7209 = vpow.pop %v7208
      %v7210 = vmul.f32 %v7172, 1.442695
      %v7211 = vpow.pop %v7210
      %v7212 = vmul.f32 %v7173, 1.442695
      %v7213 = vpow.pop %v7212
      %v7214 = vmul.f32 %v7174, 1.442695
      %v7215 = vpow.pop %v7214
      %v7216 = vmul.f32 %v7175, 1.442695
      %v7217 = vpow.pop %v7216
      %v7218 = vmul.f32 %v7176, 1.442695
      %v7219 = vpow.pop %v7218
      %v7220 = vmul.f32 %v7177, 1.442695
      %v7221 = vpow.pop %v7220
      %v7222 = vmul.f32 %v7178, 1.442695
      %v7223 = vpow.pop %v7222
      %v7224 = vmul.f32 %v7179, 1.442695
      %v7225 = vpow.pop %v7224
      %v7226 = vmul.f32 %v7180, 1.442695
      %v7227 = vpow.pop %v7226
      %v7228 = vmul.f32 %v7181, 1.442695
      %v7229 = vpow.pop %v7228
      %v7230 = vmul.f32 %v7182, 1.442695
      %v7231 = vpow.pop %v7230
      %v7232 = vmul.f32 %v7183, 1.442695
      %v7233 = vpow.pop %v7232
      %v7234 = vmul.f32 %v7184, 1.442695
      %v7235 = vpow.pop %v7234
      %v7236 = vmul.f32 %v7185, 1.442695
      %v7237 = vpow.pop %v7236
      %v7238 = vmul.f32 %v7186, 1.442695
      %v7239 = vpow.pop %v7238
      %v7240 = vmul.f32 %v7187, 1.442695
      %v7241 = vpow.pop %v7240
      %v7242 = vmul.f32 %v7188, 1.442695
      %v7243 = vpow.pop %v7242
      %v7244 = vmul.f32 %v7189, 1.442695
      %v7245 = vpow.pop %v7244
      %v7246 = vmul.f32 %v7190, 1.442695
      %v7247 = vpow.pop %v7246
      %v7248 = vmul.f32 %v7191, 1.442695
      %v7249 = vpow.pop %v7248
      %v7250 = vmul.f32 %v7192, 1.442695
      %v7251 = vpow.pop %v7250
      %v7252 = vmul.f32 %v7193, 1.442695
      %v7253 = vpow.pop %v7252
      %v7254 = vmul.f32 %v7194, 1.442695
      %v7255 = vpow.pop %v7254
      %v7256 = vmul.f32 %v7195, 1.442695
      %v7257 = vpow.pop %v7256
      %v7258 = vmul.f32 %v7196, 1.442695
      %v7259 = vpow.pop %v7258
      %v7260 = vmul.f32 %v7197, 1.442695
      %v7261 = vpow.pop %v7260
      %7263 = vset.pattern.permute.xlu0 0
      %7264 = vperm.xlu0 %7263, %v7199
      %v7265 = vpop.permute.xlu0 %7264
      %7268 = vset.pattern.permute.xlu0 0
      %7269 = vperm.xlu0 %7268, %v7201
      %v7270 = vpop.permute.xlu0 %7269
      %7273 = vset.pattern.permute.xlu0 0
      %7274 = vperm.xlu0 %7273, %v7203
      %v7275 = vpop.permute.xlu0 %7274
      %7278 = vset.pattern.permute.xlu0 0
      %7279 = vperm.xlu0 %7278, %v7205
      %v7280 = vpop.permute.xlu0 %7279
      %7283 = vset.pattern.permute.xlu0 0
      %7284 = vperm.xlu0 %7283, %v7207
      %v7285 = vpop.permute.xlu0 %7284
      %7288 = vset.pattern.permute.xlu0 0
      %7289 = vperm.xlu0 %7288, %v7209
      %v7290 = vpop.permute.xlu0 %7289
      %7293 = vset.pattern.permute.xlu0 0
      %7294 = vperm.xlu0 %7293, %v7211
      %v7295 = vpop.permute.xlu0 %7294
      %7298 = vset.pattern.permute.xlu0 0
      %7299 = vperm.xlu0 %7298, %v7213
      %v7300 = vpop.permute.xlu0 %7299
      %7303 = vset.pattern.permute.xlu0 0
      %7304 = vperm.xlu0 %7303, %v7215
      %v7305 = vpop.permute.xlu0 %7304
      %7308 = vset.pattern.permute.xlu0 0
      %7309 = vperm.xlu0 %7308, %v7217
      %v7310 = vpop.permute.xlu0 %7309
      %7313 = vset.pattern.permute.xlu0 0
      %7314 = vperm.xlu0 %7313, %v7219
      %v7315 = vpop.permute.xlu0 %7314
      %7318 = vset.pattern.permute.xlu0 0
      %7319 = vperm.xlu0 %7318, %v7221
      %v7320 = vpop.permute.xlu0 %7319
      %7323 = vset.pattern.permute.xlu0 0
      %7324 = vperm.xlu0 %7323, %v7223
      %v7325 = vpop.permute.xlu0 %7324
      %7328 = vset.pattern.permute.xlu0 0
      %7329 = vperm.xlu0 %7328, %v7225
      %v7330 = vpop.permute.xlu0 %7329
      %7333 = vset.pattern.permute.xlu0 0
      %7334 = vperm.xlu0 %7333, %v7227
      %v7335 = vpop.permute.xlu0 %7334
      %7338 = vset.pattern.permute.xlu0 0
      %7339 = vperm.xlu0 %7338, %v7229
      %v7340 = vpop.permute.xlu0 %7339
      %7343 = vset.pattern.permute.xlu0 0
      %7344 = vperm.xlu0 %7343, %v7231
      %v7345 = vpop.permute.xlu0 %7344
      %7348 = vset.pattern.permute.xlu0 0
      %7349 = vperm.xlu0 %7348, %v7233
      %v7350 = vpop.permute.xlu0 %7349
      %7353 = vset.pattern.permute.xlu0 0
      %7354 = vperm.xlu0 %7353, %v7235
      %v7355 = vpop.permute.xlu0 %7354
      %7358 = vset.pattern.permute.xlu0 0
      %7359 = vperm.xlu0 %7358, %v7237
      %v7360 = vpop.permute.xlu0 %7359
      %7363 = vset.pattern.permute.xlu0 0
      %7364 = vperm.xlu0 %7363, %v7239
      %v7365 = vpop.permute.xlu0 %7364
      %7368 = vset.pattern.permute.xlu0 0
      %7369 = vperm.xlu0 %7368, %v7241
      %v7370 = vpop.permute.xlu0 %7369
      %7373 = vset.pattern.permute.xlu0 0
      %7374 = vperm.xlu0 %7373, %v7243
      %v7375 = vpop.permute.xlu0 %7374
      %7378 = vset.pattern.permute.xlu0 0
      %7379 = vperm.xlu0 %7378, %v7245
      %v7380 = vpop.permute.xlu0 %7379
      %7383 = vset.pattern.permute.xlu0 0
      %7384 = vperm.xlu0 %7383, %v7247
      %v7385 = vpop.permute.xlu0 %7384
      %7388 = vset.pattern.permute.xlu0 0
      %7389 = vperm.xlu0 %7388, %v7249
      %v7390 = vpop.permute.xlu0 %7389
      %7393 = vset.pattern.permute.xlu0 0
      %7394 = vperm.xlu0 %7393, %v7251
      %v7395 = vpop.permute.xlu0 %7394
      %7398 = vset.pattern.permute.xlu0 0
      %7399 = vperm.xlu0 %7398, %v7253
      %v7400 = vpop.permute.xlu0 %7399
      %7403 = vset.pattern.permute.xlu0 0
      %7404 = vperm.xlu0 %7403, %v7255
      %v7405 = vpop.permute.xlu0 %7404
      %7408 = vset.pattern.permute.xlu0 0
      %7409 = vperm.xlu0 %7408, %v7257
      %v7410 = vpop.permute.xlu0 %7409
      %7413 = vset.pattern.permute.xlu0 0
      %7414 = vperm.xlu0 %7413, %v7259
      %v7415 = vpop.permute.xlu0 %7414
      %7418 = vset.pattern.permute.xlu0 0
      %7419 = vperm.xlu0 %7418, %v7261
      %v7420 = vpop.permute.xlu0 %7419
      %7422 = vset.pattern.permute.xlu0 1
      %7423 = vperm.xlu0 %7422, %v7199
      %v7424 = vpop.permute.xlu0 %7423
      %7426 = vset.pattern.permute.xlu0 1
      %7427 = vperm.xlu0 %7426, %v7201
      %v7428 = vpop.permute.xlu0 %7427
      %7430 = vset.pattern.permute.xlu0 1
      %7431 = vperm.xlu0 %7430, %v7203
      %v7432 = vpop.permute.xlu0 %7431
      %7434 = vset.pattern.permute.xlu0 1
      %7435 = vperm.xlu0 %7434, %v7205
      %v7436 = vpop.permute.xlu0 %7435
      %7438 = vset.pattern.permute.xlu0 1
      %7439 = vperm.xlu0 %7438, %v7207
      %v7440 = vpop.permute.xlu0 %7439
      %7442 = vset.pattern.permute.xlu0 1
      %7443 = vperm.xlu0 %7442, %v7209
      %v7444 = vpop.permute.xlu0 %7443
      %7446 = vset.pattern.permute.xlu0 1
      %7447 = vperm.xlu0 %7446, %v7211
      %v7448 = vpop.permute.xlu0 %7447
      %7450 = vset.pattern.permute.xlu0 1
      %7451 = vperm.xlu0 %7450, %v7213
      %v7452 = vpop.permute.xlu0 %7451
      %7454 = vset.pattern.permute.xlu0 1
      %7455 = vperm.xlu0 %7454, %v7215
      %v7456 = vpop.permute.xlu0 %7455
      %7458 = vset.pattern.permute.xlu0 1
      %7459 = vperm.xlu0 %7458, %v7217
      %v7460 = vpop.permute.xlu0 %7459
      %7462 = vset.pattern.permute.xlu0 1
      %7463 = vperm.xlu0 %7462, %v7219
      %v7464 = vpop.permute.xlu0 %7463
      %7466 = vset.pattern.permute.xlu0 1
      %7467 = vperm.xlu0 %7466, %v7221
      %v7468 = vpop.permute.xlu0 %7467
      %7470 = vset.pattern.permute.xlu0 1
      %7471 = vperm.xlu0 %7470, %v7223
      %v7472 = vpop.permute.xlu0 %7471
      %7474 = vset.pattern.permute.xlu0 1
      %7475 = vperm.xlu0 %7474, %v7225
      %v7476 = vpop.permute.xlu0 %7475
      %7478 = vset.pattern.permute.xlu0 1
      %7479 = vperm.xlu0 %7478, %v7227
      %v7480 = vpop.permute.xlu0 %7479
      %7482 = vset.pattern.permute.xlu0 1
      %7483 = vperm.xlu0 %7482, %v7229
      %v7484 = vpop.permute.xlu0 %7483
      %7486 = vset.pattern.permute.xlu0 1
      %7487 = vperm.xlu0 %7486, %v7231
      %v7488 = vpop.permute.xlu0 %7487
      %7490 = vset.pattern.permute.xlu0 1
      %7491 = vperm.xlu0 %7490, %v7233
      %v7492 = vpop.permute.xlu0 %7491
      %7494 = vset.pattern.permute.xlu0 1
      %7495 = vperm.xlu0 %7494, %v7235
      %v7496 = vpop.permute.xlu0 %7495
      %7498 = vset.pattern.permute.xlu0 1
      %7499 = vperm.xlu0 %7498, %v7237
      %v7500 = vpop.permute.xlu0 %7499
      %7502 = vset.pattern.permute.xlu0 1
      %7503 = vperm.xlu0 %7502, %v7239
      %v7504 = vpop.permute.xlu0 %7503
      %7506 = vset.pattern.permute.xlu0 1
      %7507 = vperm.xlu0 %7506, %v7241
      %v7508 = vpop.permute.xlu0 %7507
      %7510 = vset.pattern.permute.xlu0 1
      %7511 = vperm.xlu0 %7510, %v7243
      %v7512 = vpop.permute.xlu0 %7511
      %7514 = vset.pattern.permute.xlu0 1
      %7515 = vperm.xlu0 %7514, %v7245
      %v7516 = vpop.permute.xlu0 %7515
      %7518 = vset.pattern.permute.xlu0 1
      %7519 = vperm.xlu0 %7518, %v7247
      %v7520 = vpop.permute.xlu0 %7519
      %7522 = vset.pattern.permute.xlu0 1
      %7523 = vperm.xlu0 %7522, %v7249
      %v7524 = vpop.permute.xlu0 %7523
      %7526 = vset.pattern.permute.xlu0 1
      %7527 = vperm.xlu0 %7526, %v7251
      %v7528 = vpop.permute.xlu0 %7527
      %7530 = vset.pattern.permute.xlu0 1
      %7531 = vperm.xlu0 %7530, %v7253
      %v7532 = vpop.permute.xlu0 %7531
      %7534 = vset.pattern.permute.xlu0 1
      %7535 = vperm.xlu0 %7534, %v7255
      %v7536 = vpop.permute.xlu0 %7535
      %7538 = vset.pattern.permute.xlu0 1
      %7539 = vperm.xlu0 %7538, %v7257
      %v7540 = vpop.permute.xlu0 %7539
      %7542 = vset.pattern.permute.xlu0 1
      %7543 = vperm.xlu0 %7542, %v7259
      %v7544 = vpop.permute.xlu0 %7543
      %7546 = vset.pattern.permute.xlu0 1
      %7547 = vperm.xlu0 %7546, %v7261
      %v7548 = vpop.permute.xlu0 %7547
      %v7550 = vsel %vm5694, %v7265, %v7424
      %v7551 = vsel %vm5694, %v7270, %v7428
      %v7552 = vsel %vm5694, %v7275, %v7432
      %v7553 = vsel %vm5694, %v7280, %v7436
      %v7554 = vsel %vm5694, %v7285, %v7440
      %v7555 = vsel %vm5694, %v7290, %v7444
      %v7556 = vsel %vm5694, %v7295, %v7448
      %v7557 = vsel %vm5694, %v7300, %v7452
      %v7558 = vsel %vm5694, %v7305, %v7456
      %v7559 = vsel %vm5694, %v7310, %v7460
      %v7560 = vsel %vm5694, %v7315, %v7464
      %v7561 = vsel %vm5694, %v7320, %v7468
      %v7562 = vsel %vm5694, %v7325, %v7472
      %v7563 = vsel %vm5694, %v7330, %v7476
      %v7564 = vsel %vm5694, %v7335, %v7480
      %v7565 = vsel %vm5694, %v7340, %v7484
      %v7566 = vsel %vm5694, %v7345, %v7488
      %v7567 = vsel %vm5694, %v7350, %v7492
      %v7568 = vsel %vm5694, %v7355, %v7496
      %v7569 = vsel %vm5694, %v7360, %v7500
      %v7570 = vsel %vm5694, %v7365, %v7504
      %v7571 = vsel %vm5694, %v7370, %v7508
      %v7572 = vsel %vm5694, %v7375, %v7512
      %v7573 = vsel %vm5694, %v7380, %v7516
      %v7574 = vsel %vm5694, %v7385, %v7520
      %v7575 = vsel %vm5694, %v7390, %v7524
      %v7576 = vsel %vm5694, %v7395, %v7528
      %v7577 = vsel %vm5694, %v7400, %v7532
      %v7578 = vsel %vm5694, %v7405, %v7536
      %v7579 = vsel %vm5694, %v7410, %v7540
      %v7580 = vsel %vm5694, %v7415, %v7544
      %v7581 = vsel %vm5694, %v7420, %v7548
      %7614 = vrot.lane.b32.xlu0 %v6327, 96
      %v7615 = vpop.permute.xlu0 %7614
      %7616 = vrot.lane.b32.xlu0 %v6328, 96
      %v7617 = vpop.permute.xlu0 %7616
      %7618 = vrot.lane.b32.xlu0 %v6329, 96
      %v7619 = vpop.permute.xlu0 %7618
      %7620 = vrot.lane.b32.xlu0 %v6330, 96
      %v7621 = vpop.permute.xlu0 %7620
      %7622 = vrot.lane.b32.xlu0 %v6331, 96
      %v7623 = vpop.permute.xlu0 %7622
      %7624 = vrot.lane.b32.xlu0 %v6332, 96
      %v7625 = vpop.permute.xlu0 %7624
      %7626 = vrot.lane.b32.xlu0 %v6333, 96
      %v7627 = vpop.permute.xlu0 %7626
      %7628 = vrot.lane.b32.xlu0 %v6334, 96
      %v7629 = vpop.permute.xlu0 %7628
      %7630 = vrot.lane.b32.xlu0 %v6335, 96
      %v7631 = vpop.permute.xlu0 %7630
      %7632 = vrot.lane.b32.xlu0 %v6336, 96
      %v7633 = vpop.permute.xlu0 %7632
      %7634 = vrot.lane.b32.xlu0 %v6337, 96
      %v7635 = vpop.permute.xlu0 %7634
      %7636 = vrot.lane.b32.xlu0 %v6338, 96
      %v7637 = vpop.permute.xlu0 %7636
      %7638 = vrot.lane.b32.xlu0 %v6339, 96
      %v7639 = vpop.permute.xlu0 %7638
      %7640 = vrot.lane.b32.xlu0 %v6340, 96
      %v7641 = vpop.permute.xlu0 %7640
      %7642 = vrot.lane.b32.xlu0 %v6341, 96
      %v7643 = vpop.permute.xlu0 %7642
      %7644 = vrot.lane.b32.xlu0 %v6342, 96
      %v7645 = vpop.permute.xlu0 %7644
      %7646 = vrot.lane.b32.xlu0 %v6343, 96
      %v7647 = vpop.permute.xlu0 %7646
      %7648 = vrot.lane.b32.xlu0 %v6344, 96
      %v7649 = vpop.permute.xlu0 %7648
      %7650 = vrot.lane.b32.xlu0 %v6345, 96
      %v7651 = vpop.permute.xlu0 %7650
      %7652 = vrot.lane.b32.xlu0 %v6346, 96
      %v7653 = vpop.permute.xlu0 %7652
      %7654 = vrot.lane.b32.xlu0 %v6347, 96
      %v7655 = vpop.permute.xlu0 %7654
      %7656 = vrot.lane.b32.xlu0 %v6348, 96
      %v7657 = vpop.permute.xlu0 %7656
      %7658 = vrot.lane.b32.xlu0 %v6349, 96
      %v7659 = vpop.permute.xlu0 %7658
      %7660 = vrot.lane.b32.xlu0 %v6350, 96
      %v7661 = vpop.permute.xlu0 %7660
      %7662 = vrot.lane.b32.xlu0 %v6351, 96
      %v7663 = vpop.permute.xlu0 %7662
      %7664 = vrot.lane.b32.xlu0 %v6352, 96
      %v7665 = vpop.permute.xlu0 %7664
      %7666 = vrot.lane.b32.xlu0 %v6353, 96
      %v7667 = vpop.permute.xlu0 %7666
      %7668 = vrot.lane.b32.xlu0 %v6354, 96
      %v7669 = vpop.permute.xlu0 %7668
      %7670 = vrot.lane.b32.xlu0 %v6355, 96
      %v7671 = vpop.permute.xlu0 %7670
      %7672 = vrot.lane.b32.xlu0 %v6356, 96
      %v7673 = vpop.permute.xlu0 %7672
      %7674 = vrot.lane.b32.xlu0 %v6357, 96
      %v7675 = vpop.permute.xlu0 %7674
      %7676 = vrot.lane.b32.xlu0 %v6358, 96
      %v7677 = vpop.permute.xlu0 %7676
      %v7710 = vmul.f32 %v7550, %v7615
      %v7711 = vmul.f32 %v7551, %v7617
      %v7712 = vmul.f32 %v7552, %v7619
      %v7713 = vmul.f32 %v7553, %v7621
      %v7714 = vmul.f32 %v7554, %v7623
      %v7715 = vmul.f32 %v7555, %v7625
      %v7716 = vmul.f32 %v7556, %v7627
      %v7717 = vmul.f32 %v7557, %v7629
      %v7718 = vmul.f32 %v7558, %v7631
      %v7719 = vmul.f32 %v7559, %v7633
      %v7720 = vmul.f32 %v7560, %v7635
      %v7721 = vmul.f32 %v7561, %v7637
      %v7722 = vmul.f32 %v7562, %v7639
      %v7723 = vmul.f32 %v7563, %v7641
      %v7724 = vmul.f32 %v7564, %v7643
      %v7725 = vmul.f32 %v7565, %v7645
      %v7726 = vmul.f32 %v7566, %v7647
      %v7727 = vmul.f32 %v7567, %v7649
      %v7728 = vmul.f32 %v7568, %v7651
      %v7729 = vmul.f32 %v7569, %v7653
      %v7730 = vmul.f32 %v7570, %v7655
      %v7731 = vmul.f32 %v7571, %v7657
      %v7732 = vmul.f32 %v7572, %v7659
      %v7733 = vmul.f32 %v7573, %v7661
      %v7734 = vmul.f32 %v7574, %v7663
      %v7735 = vmul.f32 %v7575, %v7665
      %v7736 = vmul.f32 %v7576, %v7667
      %v7737 = vmul.f32 %v7577, %v7669
      %v7738 = vmul.f32 %v7578, %v7671
      %v7739 = vmul.f32 %v7579, %v7673
      %v7740 = vmul.f32 %v7580, %v7675
      %v7741 = vmul.f32 %v7581, %v7677
      %v7742 = vsel %vm1329, 1, 0
      %v7743 = vsel %vm1330, 1, 0
      %v7744 = vsel %vm1331, 1, 0
      %v7745 = vsel %vm1332, 1, 0
      %v7746 = vsel %vm1333, 1, 0
      %v7747 = vsel %vm1334, 1, 0
      %v7748 = vsel %vm1335, 1, 0
      %v7749 = vsel %vm1336, 1, 0
      %v7750 = vsel %vm1337, 1, 0
      %v7751 = vsel %vm1338, 1, 0
      %v7752 = vsel %vm1339, 1, 0
      %v7753 = vsel %vm1340, 1, 0
      %v7754 = vsel %vm1341, 1, 0
      %v7755 = vsel %vm1342, 1, 0
      %v7756 = vsel %vm1343, 1, 0
      %v7757 = vsel %vm1344, 1, 0
      %v7758 = vcvt.s32.f32 %v7742
      %v7759 = vcvt.s32.f32 %v7743
      %v7760 = vcvt.s32.f32 %v7744
      %v7761 = vcvt.s32.f32 %v7745
      %v7762 = vcvt.s32.f32 %v7746
      %v7763 = vcvt.s32.f32 %v7747
      %v7764 = vcvt.s32.f32 %v7748
      %v7765 = vcvt.s32.f32 %v7749
      %v7766 = vcvt.s32.f32 %v7750
      %v7767 = vcvt.s32.f32 %v7751
      %v7768 = vcvt.s32.f32 %v7752
      %v7769 = vcvt.s32.f32 %v7753
      %v7770 = vcvt.s32.f32 %v7754
      %v7771 = vcvt.s32.f32 %v7755
      %v7772 = vcvt.s32.f32 %v7756
      %v7773 = vcvt.s32.f32 %v7757
      %v7774 = vpack.c.bf16 %v7760, %v7758
      %v7775 = vpack.c.bf16 %v7761, %v7759
      %v7776 = vpack.c.bf16 %v7764, %v7762
      %v7777 = vpack.c.bf16 %v7765, %v7763
      %v7778 = vpack.c.bf16 %v7768, %v7766
      %v7779 = vpack.c.bf16 %v7769, %v7767
      %v7780 = vpack.c.bf16 %v7772, %v7770
      %v7781 = vpack.c.bf16 %v7773, %v7771
      %7782 = vrot.lane.b32.xlu0 %v7199, 32
      %v7783 = vpop.permute.xlu0 %7782
      %7784 = vrot.lane.b32.xlu0 %v7201, 32
      %v7785 = vpop.permute.xlu0 %7784
      %7786 = vrot.lane.b32.xlu0 %v7203, 32
      %v7787 = vpop.permute.xlu0 %7786
      %7788 = vrot.lane.b32.xlu0 %v7205, 32
      %v7789 = vpop.permute.xlu0 %7788
      %7790 = vrot.lane.b32.xlu0 %v7207, 32
      %v7791 = vpop.permute.xlu0 %7790
      %7792 = vrot.lane.b32.xlu0 %v7209, 32
      %v7793 = vpop.permute.xlu0 %7792
      %7794 = vrot.lane.b32.xlu0 %v7211, 32
      %v7795 = vpop.permute.xlu0 %7794
      %7796 = vrot.lane.b32.xlu0 %v7213, 32
      %v7797 = vpop.permute.xlu0 %7796
      %7798 = vrot.lane.b32.xlu0 %v7215, 32
      %v7799 = vpop.permute.xlu0 %7798
      %7800 = vrot.lane.b32.xlu0 %v7217, 32
      %v7801 = vpop.permute.xlu0 %7800
      %7802 = vrot.lane.b32.xlu0 %v7219, 32
      %v7803 = vpop.permute.xlu0 %7802
      %7804 = vrot.lane.b32.xlu0 %v7221, 32
      %v7805 = vpop.permute.xlu0 %7804
      %7806 = vrot.lane.b32.xlu0 %v7223, 32
      %v7807 = vpop.permute.xlu0 %7806
      %7808 = vrot.lane.b32.xlu0 %v7225, 32
      %v7809 = vpop.permute.xlu0 %7808
      %7810 = vrot.lane.b32.xlu0 %v7227, 32
      %v7811 = vpop.permute.xlu0 %7810
      %7812 = vrot.lane.b32.xlu0 %v7229, 32
      %v7813 = vpop.permute.xlu0 %7812
      %7814 = vrot.lane.b32.xlu0 %v7231, 32
      %v7815 = vpop.permute.xlu0 %7814
      %7816 = vrot.lane.b32.xlu0 %v7233, 32
      %v7817 = vpop.permute.xlu0 %7816
      %7818 = vrot.lane.b32.xlu0 %v7235, 32
      %v7819 = vpop.permute.xlu0 %7818
      %7820 = vrot.lane.b32.xlu0 %v7237, 32
      %v7821 = vpop.permute.xlu0 %7820
      %7822 = vrot.lane.b32.xlu0 %v7239, 32
      %v7823 = vpop.permute.xlu0 %7822
      %7824 = vrot.lane.b32.xlu0 %v7241, 32
      %v7825 = vpop.permute.xlu0 %7824
      %7826 = vrot.lane.b32.xlu0 %v7243, 32
      %v7827 = vpop.permute.xlu0 %7826
      %7828 = vrot.lane.b32.xlu0 %v7245, 32
      %v7829 = vpop.permute.xlu0 %7828
      %7830 = vrot.lane.b32.xlu0 %v7247, 32
      %v7831 = vpop.permute.xlu0 %7830
      %7832 = vrot.lane.b32.xlu0 %v7249, 32
      %v7833 = vpop.permute.xlu0 %7832
      %7834 = vrot.lane.b32.xlu0 %v7251, 32
      %v7835 = vpop.permute.xlu0 %7834
      %7836 = vrot.lane.b32.xlu0 %v7253, 32
      %v7837 = vpop.permute.xlu0 %7836
      %7838 = vrot.lane.b32.xlu0 %v7255, 32
      %v7839 = vpop.permute.xlu0 %7838
      %7840 = vrot.lane.b32.xlu0 %v7257, 32
      %v7841 = vpop.permute.xlu0 %7840
      %7842 = vrot.lane.b32.xlu0 %v7259, 32
      %v7843 = vpop.permute.xlu0 %7842
      %7844 = vrot.lane.b32.xlu0 %v7261, 32
      %v7845 = vpop.permute.xlu0 %7844
      %vm7878 = vcmask 261120
      %v7879 = vsel %vm7878, %v7710, %v7783
      %v7880 = vsel %vm7878, %v7711, %v7785
      %v7881 = vsel %vm7878, %v7712, %v7787
      %v7882 = vsel %vm7878, %v7713, %v7789
      %v7883 = vsel %vm7878, %v7714, %v7791
      %v7884 = vsel %vm7878, %v7715, %v7793
      %v7885 = vsel %vm7878, %v7716, %v7795
      %v7886 = vsel %vm7878, %v7717, %v7797
      %v7887 = vsel %vm7878, %v7718, %v7799
      %v7888 = vsel %vm7878, %v7719, %v7801
      %v7889 = vsel %vm7878, %v7720, %v7803
      %v7890 = vsel %vm7878, %v7721, %v7805
      %v7891 = vsel %vm7878, %v7722, %v7807
      %v7892 = vsel %vm7878, %v7723, %v7809
      %v7893 = vsel %vm7878, %v7724, %v7811
      %v7894 = vsel %vm7878, %v7725, %v7813
      %v7895 = vsel %vm7878, %v7726, %v7815
      %v7896 = vsel %vm7878, %v7727, %v7817
      %v7897 = vsel %vm7878, %v7728, %v7819
      %v7898 = vsel %vm7878, %v7729, %v7821
      %v7899 = vsel %vm7878, %v7730, %v7823
      %v7900 = vsel %vm7878, %v7731, %v7825
      %v7901 = vsel %vm7878, %v7732, %v7827
      %v7902 = vsel %vm7878, %v7733, %v7829
      %v7903 = vsel %vm7878, %v7734, %v7831
      %v7904 = vsel %vm7878, %v7735, %v7833
      %v7905 = vsel %vm7878, %v7736, %v7835
      %v7906 = vsel %vm7878, %v7737, %v7837
      %v7907 = vsel %vm7878, %v7738, %v7839
      %v7908 = vsel %vm7878, %v7739, %v7841
      %v7909 = vsel %vm7878, %v7740, %v7843
      %v7910 = vsel %vm7878, %v7741, %v7845
      %v7911 = vpack.c.bf16 %v7880, %v7879
      %v7912 = vpack.c.bf16 %v7882, %v7881
      %v7913 = vpack.c.bf16 %v7884, %v7883
      %v7914 = vpack.c.bf16 %v7886, %v7885
      %v7915 = vpack.c.bf16 %v7888, %v7887
      %v7916 = vpack.c.bf16 %v7890, %v7889
      %v7917 = vpack.c.bf16 %v7892, %v7891
      %v7918 = vpack.c.bf16 %v7894, %v7893
      %v7919 = vpack.c.bf16 %v7896, %v7895
      %v7920 = vpack.c.bf16 %v7898, %v7897
      %v7921 = vpack.c.bf16 %v7900, %v7899
      %v7922 = vpack.c.bf16 %v7902, %v7901
      %v7923 = vpack.c.bf16 %v7904, %v7903
      %v7924 = vpack.c.bf16 %v7906, %v7905
      %v7925 = vpack.c.bf16 %v7908, %v7907
      %v7926 = vpack.c.bf16 %v7910, %v7909
      %7927 = vmatprep.subr.bf16.mxu0 0
      %7928 = vmatpush1.bf16.msra.mxu0 %v7918
      %7929 = vmatprep.subr.bf16.mxu0 0
      %7930 = vmatpush1.bf16.msra.mxu0 %v7917
      %7931 = vmatprep.subr.bf16.mxu0 0
      %7932 = vmatpush1.bf16.msra.mxu0 %v7916
      %7933 = vmatprep.subr.bf16.mxu0 0
      %7934 = vmatpush1.bf16.msra.mxu0 %v7915
      %7935 = vmatprep.subr.bf16.mxu0 0
      %7936 = vmatpush1.bf16.msra.mxu0 %v7914
      %7937 = vmatprep.subr.bf16.mxu0 0
      %7938 = vmatpush1.bf16.msra.mxu0 %v7913
      %7939 = vmatprep.subr.bf16.mxu0 0
      %7940 = vmatpush1.bf16.msra.mxu0 %v7912
      %7941 = vmatprep.subr.bf16.mxu0 0
      %7942 = vmatpush1.bf16.msra.mxu0 %v7911
      %7943 = vmatprep.subr.bf16.mxu0 0
      %7944 = vmatpush2.bf16.msra.mxu0 %v7926
      %7945 = vmatprep.subr.bf16.mxu0 0
      %7946 = vmatpush2.bf16.msra.mxu0 %v7925
      %7947 = vmatprep.subr.bf16.mxu0 0
      %7948 = vmatpush2.bf16.msra.mxu0 %v7924
      %7949 = vmatprep.subr.bf16.mxu0 0
      %7950 = vmatpush2.bf16.msra.mxu0 %v7923
      %7951 = vmatprep.subr.bf16.mxu0 0
      %7952 = vmatpush2.bf16.msra.mxu0 %v7922
      %7953 = vmatprep.subr.bf16.mxu0 0
      %7954 = vmatpush2.bf16.msra.mxu0 %v7921
      %7955 = vmatprep.subr.bf16.mxu0 0
      %7956 = vmatpush2.bf16.msra.mxu0 %v7920
      %7957 = vmatprep.subr.bf16.mxu0 0
      %7958 = vmatpush2.bf16.msra.mxu0 %v7919
      %7959 = vmatprep.mubr.bf16.mxu0 %v7775
      %7960 = vmatmul.mubr.bf16.gmra.mxu0 %v7774
      %v7961 = vpop.f32.mrf.mxu0
      %v7962 = vadd.f32 0.0, %v7961
      %v7963 = vpop.f32.mrf.mxu0
      %v7964 = vpop.f32.mrf.mxu0
      %v7965 = vadd.f32 0.0, %v7964
      %v7966 = vpop.f32.mrf.mxu0
      %7967 = vmatprep.mubr.bf16.mxu0 %v7777
      %7968 = vmatmul.mubr.bf16.gmra.mxu0 %v7776
      %v7969 = vpop.f32.mrf.mxu0
      %v7970 = vadd.f32 0.0, %v7969
      %v7971 = vpop.f32.mrf.mxu0
      %v7972 = vpop.f32.mrf.mxu0
      %v7973 = vadd.f32 0.0, %v7972
      %v7974 = vpop.f32.mrf.mxu0
      %7975 = vmatprep.mubr.bf16.mxu0 %v7779
      %7976 = vmatmul.mubr.bf16.gmra.mxu0 %v7778
      %v7977 = vpop.f32.mrf.mxu0
      %v7978 = vadd.f32 0.0, %v7977
      %v7979 = vpop.f32.mrf.mxu0
      %v7980 = vpop.f32.mrf.mxu0
      %v7981 = vadd.f32 0.0, %v7980
      %v7982 = vpop.f32.mrf.mxu0
      %7983 = vmatprep.mubr.bf16.mxu0 %v7781
      %7984 = vmatmul.mubr.bf16.gmra.mxu0 %v7780
      %v7985 = vpop.f32.mrf.mxu0
      %v7986 = vadd.f32 0.0, %v7985
      %v7987 = vpop.f32.mrf.mxu0
      %v7988 = vpop.f32.mrf.mxu0
      %v7989 = vadd.f32 0.0, %v7988
      %v7990 = vpop.f32.mrf.mxu0
      %7991 = vdwg.mxu0
      %7993 = vset.pattern.permute.xlu0 0
      %7994 = vperm.xlu0 %7993, %v6981
      %v7995 = vpop.permute.xlu0 %7994
      %7998 = vset.pattern.permute.xlu0 0
      %7999 = vperm.xlu0 %7998, %v6983
      %v8000 = vpop.permute.xlu0 %7999
      %8003 = vset.pattern.permute.xlu0 0
      %8004 = vperm.xlu0 %8003, %v6985
      %v8005 = vpop.permute.xlu0 %8004
      %8008 = vset.pattern.permute.xlu0 0
      %8009 = vperm.xlu0 %8008, %v6987
      %v8010 = vpop.permute.xlu0 %8009
      %8013 = vset.pattern.permute.xlu0 0
      %8014 = vperm.xlu0 %8013, %v6989
      %v8015 = vpop.permute.xlu0 %8014
      %8018 = vset.pattern.permute.xlu0 0
      %8019 = vperm.xlu0 %8018, %v6991
      %v8020 = vpop.permute.xlu0 %8019
      %8023 = vset.pattern.permute.xlu0 0
      %8024 = vperm.xlu0 %8023, %v6993
      %v8025 = vpop.permute.xlu0 %8024
      %8028 = vset.pattern.permute.xlu0 0
      %8029 = vperm.xlu0 %8028, %v6995
      %v8030 = vpop.permute.xlu0 %8029
      %8032 = vset.pattern.permute.xlu0 1
      %8033 = vperm.xlu0 %8032, %v6981
      %v8034 = vpop.permute.xlu0 %8033
      %8036 = vset.pattern.permute.xlu0 1
      %8037 = vperm.xlu0 %8036, %v6983
      %v8038 = vpop.permute.xlu0 %8037
      %8040 = vset.pattern.permute.xlu0 1
      %8041 = vperm.xlu0 %8040, %v6985
      %v8042 = vpop.permute.xlu0 %8041
      %8044 = vset.pattern.permute.xlu0 1
      %8045 = vperm.xlu0 %8044, %v6987
      %v8046 = vpop.permute.xlu0 %8045
      %8048 = vset.pattern.permute.xlu0 1
      %8049 = vperm.xlu0 %8048, %v6989
      %v8050 = vpop.permute.xlu0 %8049
      %8052 = vset.pattern.permute.xlu0 1
      %8053 = vperm.xlu0 %8052, %v6991
      %v8054 = vpop.permute.xlu0 %8053
      %8056 = vset.pattern.permute.xlu0 1
      %8057 = vperm.xlu0 %8056, %v6993
      %v8058 = vpop.permute.xlu0 %8057
      %8060 = vset.pattern.permute.xlu0 1
      %8061 = vperm.xlu0 %8060, %v6995
      %v8062 = vpop.permute.xlu0 %8061
      %v8064 = vsel %vm5694, %v7995, %v8034
      %v8065 = vsel %vm5694, %v8000, %v8038
      %v8066 = vsel %vm5694, %v8005, %v8042
      %v8067 = vsel %vm5694, %v8010, %v8046
      %v8068 = vsel %vm5694, %v8015, %v8050
      %v8069 = vsel %vm5694, %v8020, %v8054
      %v8070 = vsel %vm5694, %v8025, %v8058
      %v8071 = vsel %vm5694, %v8030, %v8062
      %v8072 = vld [vmem:[#allocation7] sm:$0xff]
      %v8073 = vld [vmem:[#allocation7 + $0x8] sm:$0xff]
      %v8074 = vld [vmem:[#allocation7 + $0x10] sm:$0xff]
      %v8075 = vld [vmem:[#allocation7 + $0x18] sm:$0xff]
      %v8076 = vld [vmem:[#allocation7 + $0x20] sm:$0xff]
      %v8077 = vld [vmem:[#allocation7 + $0x28] sm:$0xff]
      %v8078 = vld [vmem:[#allocation7 + $0x30] sm:$0xff]
      %v8079 = vld [vmem:[#allocation7 + $0x38] sm:$0xff]
      %v8080 = vmul.f32 %v8064, %v8072
      %v8081 = vmul.f32 %v8065, %v8073
      %v8082 = vmul.f32 %v8066, %v8074
      %v8083 = vmul.f32 %v8067, %v8075
      %v8084 = vmul.f32 %v8068, %v8076
      %v8085 = vmul.f32 %v8069, %v8077
      %v8086 = vmul.f32 %v8070, %v8078
      %v8087 = vmul.f32 %v8071, %v8079
      %v8088 = vadd.f32 %v8080, %v7962
      %v8089 = vadd.f32 %v8081, %v7965
      %v8090 = vadd.f32 %v8082, %v7970
      %v8091 = vadd.f32 %v8083, %v7973
      %v8092 = vadd.f32 %v8084, %v7978
      %v8093 = vadd.f32 %v8085, %v7981
      %v8094 = vadd.f32 %v8086, %v7986
      %v8095 = vadd.f32 %v8087, %v7989
      %8096 = vst.msk [vmem:[#allocation7] sm:$0xff] %vm7878, %v8088
      %8097 = vst.msk [vmem:[#allocation7 + $0x8] sm:$0xff] %vm7878, %v8089
      %8098 = vst.msk [vmem:[#allocation7 + $0x10] sm:$0xff] %vm7878, %v8090
      %8099 = vst.msk [vmem:[#allocation7 + $0x18] sm:$0xff] %vm7878, %v8091
      %8100 = vst.msk [vmem:[#allocation7 + $0x20] sm:$0xff] %vm7878, %v8092
      %8101 = vst.msk [vmem:[#allocation7 + $0x28] sm:$0xff] %vm7878, %v8093
      %8102 = vst.msk [vmem:[#allocation7 + $0x30] sm:$0xff] %vm7878, %v8094
      %8103 = vst.msk [vmem:[#allocation7 + $0x38] sm:$0xff] %vm7878, %v8095
      %v8104 = vld [vmem:[#allocation6] sm:$0xff]
      %v8105 = vld [vmem:[#allocation6 + $0x8] sm:$0xff]
      %v8106 = vld [vmem:[#allocation6 + $0x10] sm:$0xff]
      %v8107 = vld [vmem:[#allocation6 + $0x18] sm:$0xff]
      %v8108 = vld [vmem:[#allocation6 + $0x20] sm:$0xff]
      %v8109 = vld [vmem:[#allocation6 + $0x28] sm:$0xff]
      %v8110 = vld [vmem:[#allocation6 + $0x30] sm:$0xff]
      %v8111 = vld [vmem:[#allocation6 + $0x38] sm:$0xff]
      %v8112 = vmul.f32 %v6981, %v8104
      %v8113 = vmul.f32 %v6983, %v8105
      %v8114 = vmul.f32 %v6985, %v8106
      %v8115 = vmul.f32 %v6987, %v8107
      %v8116 = vmul.f32 %v6989, %v8108
      %v8117 = vmul.f32 %v6991, %v8109
      %v8118 = vmul.f32 %v6993, %v8110
      %v8119 = vmul.f32 %v6995, %v8111
      %8128 = vrot.lane.b32.xlu0 %v7962, 96
      %v8129 = vpop.permute.xlu0 %8128
      %8130 = vrot.lane.b32.xlu0 %v7965, 96
      %v8131 = vpop.permute.xlu0 %8130
      %8132 = vrot.lane.b32.xlu0 %v7970, 96
      %v8133 = vpop.permute.xlu0 %8132
      %8134 = vrot.lane.b32.xlu0 %v7973, 96
      %v8135 = vpop.permute.xlu0 %8134
      %8136 = vrot.lane.b32.xlu0 %v7978, 96
      %v8137 = vpop.permute.xlu0 %8136
      %8138 = vrot.lane.b32.xlu0 %v7981, 96
      %v8139 = vpop.permute.xlu0 %8138
      %8140 = vrot.lane.b32.xlu0 %v7986, 96
      %v8141 = vpop.permute.xlu0 %8140
      %8142 = vrot.lane.b32.xlu0 %v7989, 96
      %v8143 = vpop.permute.xlu0 %8142
      %v8152 = vadd.f32 %v8112, %v8129
      %v8153 = vadd.f32 %v8113, %v8131
      %v8154 = vadd.f32 %v8114, %v8133
      %v8155 = vadd.f32 %v8115, %v8135
      %v8156 = vadd.f32 %v8116, %v8137
      %v8157 = vadd.f32 %v8117, %v8139
      %v8158 = vadd.f32 %v8118, %v8141
      %v8159 = vadd.f32 %v8119, %v8143
      %8160 = vst.msk [vmem:[#allocation6] sm:$0xff] %vm6996, %v8152
      %8161 = vst.msk [vmem:[#allocation6 + $0x8] sm:$0xff] %vm6996, %v8153
      %8162 = vst.msk [vmem:[#allocation6 + $0x10] sm:$0xff] %vm6996, %v8154
      %8163 = vst.msk [vmem:[#allocation6 + $0x18] sm:$0xff] %vm6996, %v8155
      %8164 = vst.msk [vmem:[#allocation6 + $0x20] sm:$0xff] %vm6996, %v8156
      %8165 = vst.msk [vmem:[#allocation6 + $0x28] sm:$0xff] %vm6996, %v8157
      %8166 = vst.msk [vmem:[#allocation6 + $0x30] sm:$0xff] %vm6996, %v8158
      %8167 = vst.msk [vmem:[#allocation6 + $0x38] sm:$0xff] %vm6996, %v8159
      %p8168 = scmp.eq.s32.totalorder %s23, 1
      // Predicated region
      $region73: #{tpu_custom_call.1} parent=67 // pred_check
        %p8169 = pneg %p8168
      $region74: #{tpu_custom_call.1} parent=67 // pred_check_branch
        %8171 = sbr.rel (%p8169) target = $region76
      $region75: #{tpu_custom_call.1} parent=67 // pred_region
        %v8172 = vld [vmem:[#allocation6] sm:$0xff]
        %v8173 = vld [vmem:[#allocation6 + $0x8] sm:$0xff]
        %v8174 = vld [vmem:[#allocation6 + $0x10] sm:$0xff]
        %v8175 = vld [vmem:[#allocation6 + $0x18] sm:$0xff]
        %v8176 = vld [vmem:[#allocation6 + $0x20] sm:$0xff]
        %v8177 = vld [vmem:[#allocation6 + $0x28] sm:$0xff]
        %v8178 = vld [vmem:[#allocation6 + $0x30] sm:$0xff]
        %v8179 = vld [vmem:[#allocation6 + $0x38] sm:$0xff]
        %v8180 = vadd.f32 %v8172, 1e-16
        %v8181 = vadd.f32 %v8173, 1e-16
        %v8182 = vadd.f32 %v8174, 1e-16
        %v8183 = vadd.f32 %v8175, 1e-16
        %v8184 = vadd.f32 %v8176, 1e-16
        %v8185 = vadd.f32 %v8177, 1e-16
        %v8186 = vadd.f32 %v8178, 1e-16
        %v8187 = vadd.f32 %v8179, 1e-16
        %v8188 = vrcp.pop %v8180
        %v8189 = vrcp.pop %v8181
        %v8190 = vrcp.pop %v8182
        %v8191 = vrcp.pop %v8183
        %v8192 = vrcp.pop %v8184
        %v8193 = vrcp.pop %v8185
        %v8194 = vrcp.pop %v8186
        %v8195 = vrcp.pop %v8187
        %v8196 = vld [vmem:[#allocation7] sm:$0xff]
        %v8197 = vld [vmem:[#allocation7 + $0x8] sm:$0xff]
        %v8198 = vld [vmem:[#allocation7 + $0x10] sm:$0xff]
        %v8199 = vld [vmem:[#allocation7 + $0x18] sm:$0xff]
        %v8200 = vld [vmem:[#allocation7 + $0x20] sm:$0xff]
        %v8201 = vld [vmem:[#allocation7 + $0x28] sm:$0xff]
        %v8202 = vld [vmem:[#allocation7 + $0x30] sm:$0xff]
        %v8203 = vld [vmem:[#allocation7 + $0x38] sm:$0xff]
        %8205 = vset.pattern.permute.xlu0 0
        %8206 = vperm.xlu0 %8205, %v8188
        %v8207 = vpop.permute.xlu0 %8206
        %8210 = vset.pattern.permute.xlu0 0
        %8211 = vperm.xlu0 %8210, %v8189
        %v8212 = vpop.permute.xlu0 %8211
        %8215 = vset.pattern.permute.xlu0 0
        %8216 = vperm.xlu0 %8215, %v8190
        %v8217 = vpop.permute.xlu0 %8216
        %8220 = vset.pattern.permute.xlu0 0
        %8221 = vperm.xlu0 %8220, %v8191
        %v8222 = vpop.permute.xlu0 %8221
        %8225 = vset.pattern.permute.xlu0 0
        %8226 = vperm.xlu0 %8225, %v8192
        %v8227 = vpop.permute.xlu0 %8226
        %8230 = vset.pattern.permute.xlu0 0
        %8231 = vperm.xlu0 %8230, %v8193
        %v8232 = vpop.permute.xlu0 %8231
        %8235 = vset.pattern.permute.xlu0 0
        %8236 = vperm.xlu0 %8235, %v8194
        %v8237 = vpop.permute.xlu0 %8236
        %8240 = vset.pattern.permute.xlu0 0
        %8241 = vperm.xlu0 %8240, %v8195
        %v8242 = vpop.permute.xlu0 %8241
        %8244 = vset.pattern.permute.xlu0 1
        %8245 = vperm.xlu0 %8244, %v8188
        %v8246 = vpop.permute.xlu0 %8245
        %8248 = vset.pattern.permute.xlu0 1
        %8249 = vperm.xlu0 %8248, %v8189
        %v8250 = vpop.permute.xlu0 %8249
        %8252 = vset.pattern.permute.xlu0 1
        %8253 = vperm.xlu0 %8252, %v8190
        %v8254 = vpop.permute.xlu0 %8253
        %8256 = vset.pattern.permute.xlu0 1
        %8257 = vperm.xlu0 %8256, %v8191
        %v8258 = vpop.permute.xlu0 %8257
        %8260 = vset.pattern.permute.xlu0 1
        %8261 = vperm.xlu0 %8260, %v8192
        %v8262 = vpop.permute.xlu0 %8261
        %8264 = vset.pattern.permute.xlu0 1
        %8265 = vperm.xlu0 %8264, %v8193
        %v8266 = vpop.permute.xlu0 %8265
        %8268 = vset.pattern.permute.xlu0 1
        %8269 = vperm.xlu0 %8268, %v8194
        %v8270 = vpop.permute.xlu0 %8269
        %8272 = vset.pattern.permute.xlu0 1
        %8273 = vperm.xlu0 %8272, %v8195
        %v8274 = vpop.permute.xlu0 %8273
        %v8276 = vsel %vm5694, %v8207, %v8246
        %v8277 = vsel %vm5694, %v8212, %v8250
        %v8278 = vsel %vm5694, %v8217, %v8254
        %v8279 = vsel %vm5694, %v8222, %v8258
        %v8280 = vsel %vm5694, %v8227, %v8262
        %v8281 = vsel %vm5694, %v8232, %v8266
        %v8282 = vsel %vm5694, %v8237, %v8270
        %v8283 = vsel %vm5694, %v8242, %v8274
        %v8284 = vmul.f32 %v8196, %v8276
        %v8285 = vmul.f32 %v8197, %v8277
        %v8286 = vmul.f32 %v8198, %v8278
        %v8287 = vmul.f32 %v8199, %v8279
        %v8288 = vmul.f32 %v8200, %v8280
        %v8289 = vmul.f32 %v8201, %v8281
        %v8290 = vmul.f32 %v8202, %v8282
        %v8291 = vmul.f32 %v8203, %v8283
        %v8292 = vld [vmem:[#allocation4] sm:$0xff]
        %v8293 = vld [vmem:[#allocation4 + $0x8] sm:$0xff]
        %v8294 = vld [vmem:[#allocation4 + $0x10] sm:$0xff]
        %v8295 = vld [vmem:[#allocation4 + $0x18] sm:$0xff]
        %v8296 = vld [vmem:[#allocation4 + $0x20] sm:$0xff]
        %v8297 = vld [vmem:[#allocation4 + $0x28] sm:$0xff]
        %v8298 = vld [vmem:[#allocation4 + $0x30] sm:$0xff]
        %v8299 = vld [vmem:[#allocation4 + $0x38] sm:$0xff]
        %v8300 = vadd.f32 %v8284, %v8292
        %v8301 = vadd.f32 %v8285, %v8293
        %v8302 = vadd.f32 %v8286, %v8294
        %v8303 = vadd.f32 %v8287, %v8295
        %v8304 = vadd.f32 %v8288, %v8296
        %v8305 = vadd.f32 %v8289, %v8297
        %v8306 = vadd.f32 %v8290, %v8298
        %v8307 = vadd.f32 %v8291, %v8299
        %8308 = vst.msk [vmem:[%s12] sm:$0xff] %vm7878, %v8300
        %8309 = vst.msk [vmem:[%s12 + $0x8] sm:$0xff] %vm7878, %v8301
        %8310 = vst.msk [vmem:[%s12 + $0x10] sm:$0xff] %vm7878, %v8302
        %8311 = vst.msk [vmem:[%s12 + $0x18] sm:$0xff] %vm7878, %v8303
        %8312 = vst.msk [vmem:[%s12 + $0x20] sm:$0xff] %vm7878, %v8304
        %8313 = vst.msk [vmem:[%s12 + $0x28] sm:$0xff] %vm7878, %v8305
        %8314 = vst.msk [vmem:[%s12 + $0x30] sm:$0xff] %vm7878, %v8306
        %8315 = vst.msk [vmem:[%s12 + $0x38] sm:$0xff] %vm7878, %v8307
      $region76: #{tpu_custom_call.1} parent=67 // pred_fallthru
        _
      // Predicated region
      $region77: #{tpu_custom_call.1} parent=67 // pred_check
        %p8316 = pneg %p308
      $region78: #{tpu_custom_call.1} parent=67 // pred_check_branch
        %8318 = sbr.rel (%p8316) target = $region80
      $region79: #{tpu_custom_call.1} parent=67 // pred_region
        _
      $region80: #{tpu_custom_call.1} parent=67 // pred_fallthru
        _
      // Predicated region
      $region81: #{tpu_custom_call.1} parent=67 // pred_check
        %p8319 = pneg %p308
      $region82: #{tpu_custom_call.1} parent=67 // pred_check_branch
        %8321 = sbr.rel (%p8319) target = $region84
      $region83: #{tpu_custom_call.1} parent=67 // pred_region
        _
      $region84: #{tpu_custom_call.1} parent=67 // pred_fallthru
        _
    $region68: #{tpu_custom_call.1} parent=5 // pred_fallthru
      _
    %p8322 = scmp.le.s32.totalorder 2, %s18
    // Predicated region
    $region85: #{tpu_custom_call.1} parent=5 // pred_check
      %p8323 = pneg %p8322
    $region86: #{tpu_custom_call.1} parent=5 // pred_check_branch
      %8325 = sbr.rel (%p8323) target = $region88
    $region87: #{tpu_custom_call.1} parent=5 // pred_region
      %s8326 = ssub.s32 %s18, 2
    $region88: #{tpu_custom_call.1} parent=5 // pred_fallthru
      _
  $region6: #{tpu_custom_call.1} parent=0 // loop_footer
    %s22 = sadd.s32 1, %s18
  $region7: #{tpu_custom_call.1} parent=0 // loop_footer_branch
    %17 = sbr.rel target = $region3
  $region8: #{tpu_custom_call.1} parent=0 // loop_exit
    _

</llo_original>
